<compile_context>
chip_gen: v7x
topology: tpu7x:2x2x1
jax: 0.10.0
libtpu: 0.0.40
codegen_flags: <defaults>
</compile_context>

<pallas_src>
import numpy as np
import jax
import jax.numpy as jnp
from jax import lax
from jax.experimental import pallas as pl
from jax.experimental.pallas import tpu as pltpu

_SLOPE = 0.01                                     # LeakyReLU default negative_slope
_CIN_PAD = 16                                     # conv1 input channels 15 -> 16
# Effectively -inf for the max-pool halo (fine unless activations ~ -3.4e38).
_NEG_F32 = float(jnp.finfo(jnp.float32).min)


# ----------------------------------------------------------------------------
# In-kernel helpers (VMEM refs / values, all shapes static).
# ----------------------------------------------------------------------------
def _pad_hw(pref, interior, fill):
    """(H+2, W+2, C) buffer: interior <- value, 1-wide halo ring <- fill."""
    hp, wp, c = pref.shape
    pref[1:hp - 1, 1:wp - 1, :] = interior.astype(pref.dtype)
    row = jnp.full((1, wp, c), fill, pref.dtype)
    pref[0:1, :, :] = row
    pref[hp - 1:hp, :, :] = row
    col = jnp.full((hp, 1, c), fill, pref.dtype)
    pref[:, 0:1, :] = col
    pref[:, wp - 1:wp, :] = col


def _pad_w(pref, interior, fill):
    """(H, W+2, C) buffer: pad only along W with `fill`."""
    hp, wp, c = pref.shape
    pref[:, 1:wp - 1, :] = interior.astype(pref.dtype)
    col = jnp.full((hp, 1, c), fill, pref.dtype)
    pref[:, 0:1, :] = col
    pref[:, wp - 1:wp, :] = col


def _pad_h(pref, interior, fill):
    """(H+2, W, C) buffer: pad only along H with `fill`."""
    hp, wp, c = pref.shape
    pref[1:hp - 1, :, :] = interior.astype(pref.dtype)
    row = jnp.full((1, wp, c), fill, pref.dtype)
    pref[0:1, :, :] = row
    pref[hp - 1:hp, :, :] = row


def _conv3x3_lrelu(pref, w_ref, b_ref, h, w):
    """3x3 conv (pad=1) + bias + LeakyReLU via a single im2col matmul.

    pref : (h+2, w+2, Cin) bf16 scratch (zero halo, interior = activation)
    w_ref: (9*Cin, Cout)   bf16 packed weights, tap-major over (kh, kw)
    b_ref: (1, Cout)       f32 bias
    returns (h*w, Cout) f32 post-activation.
    """
    cin = pref.shape[-1]
    m = h * w
    taps = [pref[kh:kh + h, kw:kw + w, :].reshape(m, cin)
            for kh in range(3) for kw in range(3)]
    slab = jnp.concatenate(taps, axis=-1)                        # (m, 9*cin) bf16
    acc = jnp.dot(slab, w_ref[...], preferred_element_type=jnp.float32)
    acc = acc + b_ref[...]
    return jnp.where(acc >= 0, acc, _SLOPE * acc)                # (m, cout) f32


def _maxpool3x3s2(colp, rowp, y, h, w):
    """Separable MaxPool2d(3, stride=2, padding=1) in f32.

    colp: (h, w+2, C) f32 scratch   rowp: (h+2, w//2, C) f32 scratch
    y   : (h, w, C)   f32 conv output
    returns (h//2, w//2, C) f32 pooled.
    """
    c = colp.shape[-1]
    ho, wo = h // 2, w // 2
    _pad_w(colp, y, _NEG_F32)
    cm = jnp.maximum(jnp.maximum(colp[:, 0:w, :], colp[:, 1:w + 1, :]),
                     colp[:, 2:w + 2, :])                        # (h, w, c)
    cm = cm.reshape(h, wo, 2, c)[:, :, 0, :]                     # even columns
    _pad_h(rowp, cm, _NEG_F32)
    rm = jnp.maximum(jnp.maximum(rowp[0:h, :, :], rowp[1:h + 1, :, :]),
                     rowp[2:h + 2, :, :])                        # (h, wo, c)
    return rm.reshape(ho, 2, wo, c)[:, 0, :, :]                  # even rows


# ----------------------------------------------------------------------------
# Fused trunk kernel (one image per grid step):
#   conv1 -> pool -> conv2 -> pool -> conv3 -> pool -> conv4
# ----------------------------------------------------------------------------
def _trunk_kernel(x_ref, w1, b1, w2, b2, w3, b3, w4, b4, o_ref,
                  c1p, p1c, p1r, c2p, p2c, p2r, c3p, p3c, p3r, c4p):
    h, w = x_ref.shape[0], x_ref.shape[1]

    # conv1 + pool1
    _pad_hw(c1p, x_ref[...], 0.0)
    y = _conv3x3_lrelu(c1p, w1, b1, h, w)
    p = _maxpool3x3s2(p1c, p1r, y.reshape(h, w, -1), h, w)
    h, w = h // 2, w // 2

    # conv2 + pool2
    _pad_hw(c2p, p, 0.0)
    y = _conv3x3_lrelu(c2p, w2, b2, h, w)
    p = _maxpool3x3s2(p2c, p2r, y.reshape(h, w, -1), h, w)
    h, w = h // 2, w // 2

    # conv3 + pool3
    _pad_hw(c3p, p, 0.0)
    y = _conv3x3_lrelu(c3p, w3, b3, h, w)
    p = _maxpool3x3s2(p3c, p3r, y.reshape(h, w, -1), h, w)
    h, w = h // 2, w // 2

    # conv4 — the only HBM write: lane-dense (ho, wo, 256)
    _pad_hw(c4p, p, 0.0)
    y = _conv3x3_lrelu(c4p, w4, b4, h, w)
    o_ref[...] = y.reshape(h, w, -1).astype(o_ref.dtype)


# ----------------------------------------------------------------------------
# Host-side wrappers
# ----------------------------------------------------------------------------
def pack_params(params):
    """One-time packing: (Cout, Cin, 3, 3) f32 -> (9*Cin, Cout) bf16 im2col
    weights (tap-major over (kh, kw)); conv1 Cin zero-padded 15 -> 16;
    biases (1, Cout) f32."""
    def pack_w(w_oihw, cin_pad=None):
        cout, cin, kh, kw = w_oihw.shape
        wk = jnp.transpose(w_oihw, (2, 3, 1, 0))                 # (kh, kw, cin, cout)
        if cin_pad is not None and cin_pad > cin:
            wk = jnp.pad(wk, ((0, 0), (0, 0), (0, cin_pad - cin), (0, 0)))
            cin = cin_pad
        return wk.reshape(kh * kw * cin, cout).astype(jnp.bfloat16)

    def pack_b(bv):
        return bv.reshape(1, -1).astype(jnp.float32)

    return {
        "w1": pack_w(params["w1"], _CIN_PAD), "b1": pack_b(params["b1"]),
        "w2": pack_w(params["w2"]),           "b2": pack_b(params["b2"]),
        "w3": pack_w(params["w3"]),           "b3": pack_b(params["b3"]),
        "w4": pack_w(params["w4"]),           "b4": pack_b(params["b4"]),
    }


def _scratch_defs(h, w, c1, c2, c3):
    """Per-image VMEM scratch (shape, dtype): conv halos (bf16) + pool halos (f32)."""
    h1, w1, h2, w2, h3, w3 = h // 2, w // 2, h // 4, w // 4, h // 8, w // 8
    return [
        ((h + 2, w + 2, _CIN_PAD), jnp.bfloat16),   # conv1 halo
        ((h, w + 2, c1), jnp.float32),              # pool1 column halo
        ((h + 2, w1, c1), jnp.float32),             # pool1 row halo
        ((h1 + 2, w1 + 2, c1), jnp.bfloat16),       # conv2 halo
        ((h1, w1 + 2, c2), jnp.float32),            # pool2 column halo
        ((h1 + 2, w2, c2), jnp.float32),            # pool2 row halo
        ((h2 + 2, w2 + 2, c2), jnp.bfloat16),       # conv3 halo
        ((h2, w2 + 2, c3), jnp.float32),            # pool3 column halo
        ((h2 + 2, w3, c3), jnp.float32),            # pool3 row halo
        ((h3 + 2, w3 + 2, c3), jnp.bfloat16),       # conv4 halo
    ]


def _const_spec(shape):
    n = len(shape)
    return pl.BlockSpec(shape, lambda b, _n=n: (0,) * _n)


@jax.jit
def model_forward(x_nchw, packed):
    b, cin, h, w = x_nchw.shape
    assert h % 8 == 0 and w % 8 == 0, "three stride-2 pools need H, W divisible by 8"
    c1 = packed["w1"].shape[-1]
    c2 = packed["w2"].shape[-1]
    c3 = packed["w3"].shape[-1]
    c4 = packed["w4"].shape[-1]
    ho, wo = h // 8, w // 8

    # NCHW -> NHWC, zero-pad Cin 15 -> 16, cast to bf16 once (single cheap XLA op).
    x = jnp.transpose(x_nchw, (0, 2, 3, 1))
    x = jnp.pad(x, ((0, 0), (0, 0), (0, 0), (0, _CIN_PAD - cin))).astype(jnp.bfloat16)

    sdefs = _scratch_defs(h, w, c1, c2, c3)

    # ---------------- VMEM budget guard + explicit scoped-VMEM limit ----------------
    def nbytes(shape, dt):
        return int(np.prod(shape)) * jnp.dtype(dt).itemsize

    dims = [(h, w, _CIN_PAD, c1), (h // 2, w // 2, c1, c2),
            (h // 4, w // 4, c2, c3), (ho, wo, c3, c4)]
    scratch_bytes = sum(nbytes(s, d) for s, d in sdefs)
    io_bytes = 2 * nbytes((h, w, _CIN_PAD), jnp.bfloat16) + 2 * nbytes((ho, wo, c4), jnp.float32)
    wgt_bytes = sum(int(packed[k].size) * jnp.dtype(packed[k].dtype).itemsize for k in packed)
    temp_bytes = max(hh * ww * (9 * ci * 2 + 2 * co * 4) for hh, ww, ci, co in dims)
    est = scratch_bytes + io_bytes + 2 * wgt_bytes + temp_bytes
    # TODO(synk): add a halo'd spatial row-tile grid axis so large H,W do not have
    # to fit a whole image's intermediates in per-step VMEM.
    if est > 48 * 2**20:
        raise ValueError(
            f"per-image VMEM footprint ~{est / 2**20:.1f} MiB exceeds the 48 MiB budget; "
            "reduce H,W or add spatial tiling")
    vmem_limit = int(min(max(2 * est, 32 * 2**20), 64 * 2**20))

    flops = 2 * b * sum(hh * ww * 9 * ci * co for hh, ww, ci, co in dims)
    bytes_accessed = int(x.size) * 2 + wgt_bytes + b * ho * wo * c4 * 4
    cost = pl.CostEstimate(flops=flops, transcendentals=0,
                           bytes_accessed=int(bytes_accessed))

    in_specs = [pl.BlockSpec((None, h, w, _CIN_PAD), lambda bb: (bb, 0, 0, 0))]
    in_specs += [_const_spec(packed[k].shape)
                 for k in ("w1", "b1", "w2", "b2", "w3", "b3", "w4", "b4")]

    out = pl.pallas_call(
        _trunk_kernel,
        grid=(b,),
        out_shape=jax.ShapeDtypeStruct((b, ho, wo, c4), jnp.float32),
        in_specs=in_specs,
        out_specs=pl.BlockSpec((None, ho, wo, c4), lambda bb: (bb, 0, 0, 0)),
        scratch_shapes=[pltpu.VMEM(s, d) for s, d in sdefs],
        compiler_params=pltpu.CompilerParams(
            dimension_semantics=("parallel",),
            vmem_limit_bytes=vmem_limit),
        cost_estimate=cost,
    )(x, packed["w1"], packed["b1"], packed["w2"], packed["b2"],
      packed["w3"], packed["b3"], packed["w4"], packed["b4"])

    return jnp.transpose(out, (0, 3, 1, 2))                      # NHWC -> NCHW


# Pure-JAX f32 reference (correctness check only).
def ref_forward(x_nchw, params):
    def conv(x, w, bvec):
        y = lax.conv_general_dilated(
            x, w, (1, 1), ((1, 1), (1, 1)),
            dimension_numbers=("NCHW", "OIHW", "NCHW"))
        y = y + bvec[None, :, None, None]
        return jnp.where(y >= 0, y, _SLOPE * y)

    def pool(x):
        return lax.reduce_window(
            x, -jnp.inf, lax.max, (1, 1, 3, 3), (1, 1, 2, 2),
            [(0, 0), (0, 0), (1, 1), (1, 1)])

    x = pool(conv(x_nchw, params["w1"], params["b1"]))
    x = pool(conv(x, params["w2"], params["b2"]))
    x = pool(conv(x, params["w3"], params["b3"]))
    return conv(x, params["w4"], params["b4"])


def init_params(key):
    shapes = {
        "w1": (32, 15, 3, 3), "b1": (32,),
        "w2": (64, 32, 3, 3), "b2": (64,),
        "w3": (128, 64, 3, 3), "b3": (128,),
        "w4": (256, 128, 3, 3), "b4": (256,),
    }
    params = {}
    for name, shp in shapes.items():
        key, sub = jax.random.split(key)
        scale = 0.05 if name.startswith("w") else 0.01
        params[name] = scale * jax.random.normal(sub, shp, jnp.float32)
    return params


if __name__ == "__main__":
    key = jax.random.PRNGKey(0)
    pkey, xkey = jax.random.split(key)
    params = init_params(pkey)
    packed = pack_params(params)          # weight packing done once, off the hot path

    # Input consistent with the module: 15 input channels, NCHW.
    x = jax.random.normal(xkey, (2, 15, 16, 16), jnp.float32)

    out = jax.block_until_ready(model_forward(x, packed))
    ref = jax.block_until_ready(ref_forward(x, params))
    assert out.shape == ref.shape == (2, 256, 2, 2), out.shape

    # The kernel runs bf16 activations/weights with f32 accumulation (pools in
    # f32), so compare against the f32 reference with tolerance scaled to the
    # output range (bf16 rounding of pre-activations near LeakyReLU's zero
    # crossing turns ~0.5% relative error into a small absolute offset).
    out_np, ref_np = np.asarray(out), np.asarray(ref)
    scale = float(np.max(np.abs(ref_np)))
    np.testing.assert_allclose(out_np, ref_np, rtol=2e-2, atol=2e-2 * scale)

    print("KERNEL_OK")
</pallas_src>

<mosaic_0001>
module attributes {stable_mosaic.version = 11 : i64} {
  func.func @_trunk_kernel(%arg0: i32, %arg1: memref<1x16x16x16xbf16, #tpu.memory_space<vmem>>, %arg2: memref<144x32xbf16, #tpu.memory_space<vmem>>, %arg3: memref<1x32xf32, #tpu.memory_space<vmem>>, %arg4: memref<288x64xbf16, #tpu.memory_space<vmem>>, %arg5: memref<1x64xf32, #tpu.memory_space<vmem>>, %arg6: memref<576x128xbf16, #tpu.memory_space<vmem>>, %arg7: memref<1x128xf32, #tpu.memory_space<vmem>>, %arg8: memref<1152x256xbf16, #tpu.memory_space<vmem>>, %arg9: memref<1x256xf32, #tpu.memory_space<vmem>>, %arg10: memref<1x2x2x256xf32, #tpu.memory_space<vmem>>, %arg11: memref<18x18x16xbf16, #tpu.memory_space<vmem>>, %arg12: memref<16x18x32xf32, #tpu.memory_space<vmem>>, %arg13: memref<18x8x32xf32, #tpu.memory_space<vmem>>, %arg14: memref<10x10x32xbf16, #tpu.memory_space<vmem>>, %arg15: memref<8x10x64xf32, #tpu.memory_space<vmem>>, %arg16: memref<10x4x64xf32, #tpu.memory_space<vmem>>, %arg17: memref<6x6x64xbf16, #tpu.memory_space<vmem>>, %arg18: memref<4x6x128xf32, #tpu.memory_space<vmem>>, %arg19: memref<6x2x128xf32, #tpu.memory_space<vmem>>, %arg20: memref<4x4x128xbf16, #tpu.memory_space<vmem>>) attributes {dimension_semantics = [#tpu.dimension_semantics<parallel>], iteration_bounds = array<i64: 2>, scalar_prefetch = 0 : i64, scratch_operands = 10 : i64, tpu.core_type = #tpu.core_type<tc>, window_params = [{transform_indices = @transform_0, window_bounds = array<i64: 1, 16, 16, 16>}, {pipeline_mode = #tpu.pipeline_mode<synchronous>, transform_indices = @transform_1, window_bounds = array<i64: 144, 32>}, {pipeline_mode = #tpu.pipeline_mode<synchronous>, transform_indices = @transform_2, window_bounds = array<i64: 1, 32>}, {pipeline_mode = #tpu.pipeline_mode<synchronous>, transform_indices = @transform_3, window_bounds = array<i64: 288, 64>}, {pipeline_mode = #tpu.pipeline_mode<synchronous>, transform_indices = @transform_4, window_bounds = array<i64: 1, 64>}, {pipeline_mode = #tpu.pipeline_mode<synchronous>, transform_indices = @transform_5, window_bounds = array<i64: 576, 128>}, {pipeline_mode = #tpu.pipeline_mode<synchronous>, transform_indices = @transform_6, window_bounds = array<i64: 1, 128>}, {pipeline_mode = #tpu.pipeline_mode<synchronous>, transform_indices = @transform_7, window_bounds = array<i64: 1152, 256>}, {pipeline_mode = #tpu.pipeline_mode<synchronous>, transform_indices = @transform_8, window_bounds = array<i64: 1, 256>}, {transform_indices = @transform_9, window_bounds = array<i64: 1, 2, 2, 256>}]} {
    %c0 = arith.constant 0 : index
    %c0_0 = arith.constant 0 : index
    %c0_1 = arith.constant 0 : index
    %c0_2 = arith.constant 0 : index
    %0 = vector.load %arg1[%c0, %c0_0, %c0_1, %c0_2] : memref<1x16x16x16xbf16, #tpu.memory_space<vmem>>, vector<1x16x16x16xbf16>
    %1 = vector.shape_cast %0 : vector<1x16x16x16xbf16> to vector<16x16x16xbf16>
    %c1 = arith.constant 1 : index
    %c1_3 = arith.constant 1 : index
    %c0_4 = arith.constant 0 : index
    %2 = vector.load %arg11[%c1, %c1_3, %c0_4] : memref<18x18x16xbf16, #tpu.memory_space<vmem>>, vector<16x16x16xbf16>
    tpu.vector_store %arg11[%c1, %c1_3, %c0_4], %1 {strides = array<i32>} : memref<18x18x16xbf16, #tpu.memory_space<vmem>>, vector<16x16x16xbf16>,
    %cst = arith.constant 0.000000e+00 : bf16
    %3 = vector.broadcast %cst : bf16 to vector<1x18x16xbf16>
    %c0_5 = arith.constant 0 : index
    %c0_6 = arith.constant 0 : index
    %c0_7 = arith.constant 0 : index
    %4 = vector.load %arg11[%c0_5, %c0_6, %c0_7] : memref<18x18x16xbf16, #tpu.memory_space<vmem>>, vector<1x18x16xbf16>
    tpu.vector_store %arg11[%c0_5, %c0_6, %c0_7], %3 {strides = array<i32>} : memref<18x18x16xbf16, #tpu.memory_space<vmem>>, vector<1x18x16xbf16>,
    %c17 = arith.constant 17 : index
    %c0_8 = arith.constant 0 : index
    %c0_9 = arith.constant 0 : index
    %5 = vector.load %arg11[%c17, %c0_8, %c0_9] : memref<18x18x16xbf16, #tpu.memory_space<vmem>>, vector<1x18x16xbf16>
    tpu.vector_store %arg11[%c17, %c0_8, %c0_9], %3 {strides = array<i32>} : memref<18x18x16xbf16, #tpu.memory_space<vmem>>, vector<1x18x16xbf16>,
    %cst_10 = arith.constant 0.000000e+00 : bf16
    %6 = vector.broadcast %cst_10 : bf16 to vector<18x1x16xbf16>
    %c0_11 = arith.constant 0 : index
    %c0_12 = arith.constant 0 : index
    %c0_13 = arith.constant 0 : index
    %7 = vector.load %arg11[%c0_11, %c0_12, %c0_13] : memref<18x18x16xbf16, #tpu.memory_space<vmem>>, vector<18x1x16xbf16>
    tpu.vector_store %arg11[%c0_11, %c0_12, %c0_13], %6 {strides = array<i32>} : memref<18x18x16xbf16, #tpu.memory_space<vmem>>, vector<18x1x16xbf16>,
    %c0_14 = arith.constant 0 : index
    %c17_15 = arith.constant 17 : index
    %c0_16 = arith.constant 0 : index
    %8 = vector.load %arg11[%c0_14, %c17_15, %c0_16] : memref<18x18x16xbf16, #tpu.memory_space<vmem>>, vector<18x1x16xbf16>
    tpu.vector_store %arg11[%c0_14, %c17_15, %c0_16], %6 {strides = array<i32>} : memref<18x18x16xbf16, #tpu.memory_space<vmem>>, vector<18x1x16xbf16>,
    %c0_17 = arith.constant 0 : index
    %c0_18 = arith.constant 0 : index
    %c0_19 = arith.constant 0 : index
    %9 = vector.load %arg11[%c0_17, %c0_18, %c0_19] : memref<18x18x16xbf16, #tpu.memory_space<vmem>>, vector<16x16x16xbf16>
    %10 = vector.shape_cast %9 : vector<16x16x16xbf16> to vector<256x16xbf16>
    %c0_20 = arith.constant 0 : index
    %c1_21 = arith.constant 1 : index
    %c0_22 = arith.constant 0 : index
    %11 = vector.load %arg11[%c0_20, %c1_21, %c0_22] : memref<18x18x16xbf16, #tpu.memory_space<vmem>>, vector<16x16x16xbf16>
    %12 = vector.shape_cast %11 : vector<16x16x16xbf16> to vector<256x16xbf16>
    %c0_23 = arith.constant 0 : index
    %c2 = arith.constant 2 : index
    %c0_24 = arith.constant 0 : index
    %13 = vector.load %arg11[%c0_23, %c2, %c0_24] : memref<18x18x16xbf16, #tpu.memory_space<vmem>>, vector<16x16x16xbf16>
    %14 = vector.shape_cast %13 : vector<16x16x16xbf16> to vector<256x16xbf16>
    %c1_25 = arith.constant 1 : index
    %c0_26 = arith.constant 0 : index
    %c0_27 = arith.constant 0 : index
    %15 = vector.load %arg11[%c1_25, %c0_26, %c0_27] : memref<18x18x16xbf16, #tpu.memory_space<vmem>>, vector<16x16x16xbf16>
    %16 = vector.shape_cast %15 : vector<16x16x16xbf16> to vector<256x16xbf16>
    %c1_28 = arith.constant 1 : index
    %c1_29 = arith.constant 1 : index
    %c0_30 = arith.constant 0 : index
    %17 = vector.load %arg11[%c1_28, %c1_29, %c0_30] : memref<18x18x16xbf16, #tpu.memory_space<vmem>>, vector<16x16x16xbf16>
    %18 = vector.shape_cast %17 : vector<16x16x16xbf16> to vector<256x16xbf16>
    %c1_31 = arith.constant 1 : index
    %c2_32 = arith.constant 2 : index
    %c0_33 = arith.constant 0 : index
    %19 = vector.load %arg11[%c1_31, %c2_32, %c0_33] : memref<18x18x16xbf16, #tpu.memory_space<vmem>>, vector<16x16x16xbf16>
    %20 = vector.shape_cast %19 : vector<16x16x16xbf16> to vector<256x16xbf16>
    %c2_34 = arith.constant 2 : index
    %c0_35 = arith.constant 0 : index
    %c0_36 = arith.constant 0 : index
    %21 = vector.load %arg11[%c2_34, %c0_35, %c0_36] : memref<18x18x16xbf16, #tpu.memory_space<vmem>>, vector<16x16x16xbf16>
    %22 = vector.shape_cast %21 : vector<16x16x16xbf16> to vector<256x16xbf16>
    %c2_37 = arith.constant 2 : index
    %c1_38 = arith.constant 1 : index
    %c0_39 = arith.constant 0 : index
    %23 = vector.load %arg11[%c2_37, %c1_38, %c0_39] : memref<18x18x16xbf16, #tpu.memory_space<vmem>>, vector<16x16x16xbf16>
    %24 = vector.shape_cast %23 : vector<16x16x16xbf16> to vector<256x16xbf16>
    %c2_40 = arith.constant 2 : index
    %c2_41 = arith.constant 2 : index
    %c0_42 = arith.constant 0 : index
    %25 = vector.load %arg11[%c2_40, %c2_41, %c0_42] : memref<18x18x16xbf16, #tpu.memory_space<vmem>>, vector<16x16x16xbf16>
    %26 = vector.shape_cast %25 : vector<16x16x16xbf16> to vector<256x16xbf16>
    %27 = tpu.concatenate %10, %12, %14, %16, %18, %20, %22, %24, %26 in 1 : vector<256x16xbf16>, vector<256x16xbf16>, vector<256x16xbf16>, vector<256x16xbf16>, vector<256x16xbf16>, vector<256x16xbf16>, vector<256x16xbf16>, vector<256x16xbf16>, vector<256x16xbf16> -> vector<256x144xbf16>
    %c0_43 = arith.constant 0 : index
    %c0_44 = arith.constant 0 : index
    %28 = vector.load %arg2[%c0_43, %c0_44] : memref<144x32xbf16, #tpu.memory_space<vmem>>, vector<144x32xbf16>
    %cst_45 = arith.constant dense<0.000000e+00> : vector<256x32xf32>
    %29 = tpu.matmul %27, %28, %cst_45 {dimension_numbers = #tpu.dot_dimension_numbers<[1], [0], [0], [1], [0, 0, 1, 1], [], []>} : vector<256x144xbf16>, vector<144x32xbf16>, vector<256x32xf32> -> vector<256x32xf32>
    %c0_46 = arith.constant 0 : index
    %c0_47 = arith.constant 0 : index
    %30 = vector.load %arg3[%c0_46, %c0_47] : memref<1x32xf32, #tpu.memory_space<vmem>>, vector<1x32xf32>
    %31 = vector.broadcast %30 : vector<1x32xf32> to vector<256x32xf32>
    %32 = arith.addf %29, %31 : vector<256x32xf32>
    %cst_48 = arith.constant 0.000000e+00 : f32
    %33 = vector.broadcast %cst_48 : f32 to vector<256x32xf32>
    %34 = arith.cmpf oge, %32, %33 : vector<256x32xf32>
    %cst_49 = arith.constant 0.00999999977 : f32
    %35 = vector.broadcast %cst_49 : f32 to vector<256x32xf32>
    %36 = arith.mulf %35, %32 : vector<256x32xf32>
    %37 = arith.select %34, %32, %36 : vector<256x32xi1>, vector<256x32xf32>
    %38 = vector.shape_cast %37 : vector<256x32xf32> to vector<16x16x32xf32>
    %c0_50 = arith.constant 0 : index
    %c1_51 = arith.constant 1 : index
    %c0_52 = arith.constant 0 : index
    %39 = vector.load %arg12[%c0_50, %c1_51, %c0_52] : memref<16x18x32xf32, #tpu.memory_space<vmem>>, vector<16x16x32xf32>
    tpu.vector_store %arg12[%c0_50, %c1_51, %c0_52], %38 {strides = array<i32>} : memref<16x18x32xf32, #tpu.memory_space<vmem>>, vector<16x16x32xf32>,
    %cst_53 = arith.constant -3.40282347E+38 : f32
    %40 = vector.broadcast %cst_53 : f32 to vector<16x1x32xf32>
    %c0_54 = arith.constant 0 : index
    %c0_55 = arith.constant 0 : index
    %c0_56 = arith.constant 0 : index
    %41 = vector.load %arg12[%c0_54, %c0_55, %c0_56] : memref<16x18x32xf32, #tpu.memory_space<vmem>>, vector<16x1x32xf32>
    tpu.vector_store %arg12[%c0_54, %c0_55, %c0_56], %40 {strides = array<i32>} : memref<16x18x32xf32, #tpu.memory_space<vmem>>, vector<16x1x32xf32>,
    %c0_57 = arith.constant 0 : index
    %c17_58 = arith.constant 17 : index
    %c0_59 = arith.constant 0 : index
    %42 = vector.load %arg12[%c0_57, %c17_58, %c0_59] : memref<16x18x32xf32, #tpu.memory_space<vmem>>, vector<16x1x32xf32>
    tpu.vector_store %arg12[%c0_57, %c17_58, %c0_59], %40 {strides = array<i32>} : memref<16x18x32xf32, #tpu.memory_space<vmem>>, vector<16x1x32xf32>,
    %c0_60 = arith.constant 0 : index
    %c0_61 = arith.constant 0 : index
    %c0_62 = arith.constant 0 : index
    %43 = vector.load %arg12[%c0_60, %c0_61, %c0_62] : memref<16x18x32xf32, #tpu.memory_space<vmem>>, vector<16x16x32xf32>
    %c0_63 = arith.constant 0 : index
    %c1_64 = arith.constant 1 : index
    %c0_65 = arith.constant 0 : index
    %44 = vector.load %arg12[%c0_63, %c1_64, %c0_65] : memref<16x18x32xf32, #tpu.memory_space<vmem>>, vector<16x16x32xf32>
    %45 = arith.maximumf %43, %44 : vector<16x16x32xf32>
    %c0_66 = arith.constant 0 : index
    %c2_67 = arith.constant 2 : index
    %c0_68 = arith.constant 0 : index
    %46 = vector.load %arg12[%c0_66, %c2_67, %c0_68] : memref<16x18x32xf32, #tpu.memory_space<vmem>>, vector<16x16x32xf32>
    %47 = arith.maximumf %45, %46 : vector<16x16x32xf32>
    %48 = vector.shape_cast %47 : vector<16x16x32xf32> to vector<16x8x2x32xf32>
    %49 = vector.extract_strided_slice %48 {offsets = [0, 0, 0, 0], sizes = [16, 8, 1, 32], strides = [1, 1, 1, 1]} : vector<16x8x2x32xf32> to vector<16x8x1x32xf32>
    %50 = vector.shape_cast %49 : vector<16x8x1x32xf32> to vector<16x8x32xf32>
    %c1_69 = arith.constant 1 : index
    %c0_70 = arith.constant 0 : index
    %c0_71 = arith.constant 0 : index
    %51 = vector.load %arg13[%c1_69, %c0_70, %c0_71] : memref<18x8x32xf32, #tpu.memory_space<vmem>>, vector<16x8x32xf32>
    tpu.vector_store %arg13[%c1_69, %c0_70, %c0_71], %50 {strides = array<i32>} : memref<18x8x32xf32, #tpu.memory_space<vmem>>, vector<16x8x32xf32>,
    %cst_72 = arith.constant -3.40282347E+38 : f32
    %52 = vector.broadcast %cst_72 : f32 to vector<1x8x32xf32>
    %c0_73 = arith.constant 0 : index
    %c0_74 = arith.constant 0 : index
    %c0_75 = arith.constant 0 : index
    %53 = vector.load %arg13[%c0_73, %c0_74, %c0_75] : memref<18x8x32xf32, #tpu.memory_space<vmem>>, vector<1x8x32xf32>
    tpu.vector_store %arg13[%c0_73, %c0_74, %c0_75], %52 {strides = array<i32>} : memref<18x8x32xf32, #tpu.memory_space<vmem>>, vector<1x8x32xf32>,
    %c17_76 = arith.constant 17 : index
    %c0_77 = arith.constant 0 : index
    %c0_78 = arith.constant 0 : index
    %54 = vector.load %arg13[%c17_76, %c0_77, %c0_78] : memref<18x8x32xf32, #tpu.memory_space<vmem>>, vector<1x8x32xf32>
    tpu.vector_store %arg13[%c17_76, %c0_77, %c0_78], %52 {strides = array<i32>} : memref<18x8x32xf32, #tpu.memory_space<vmem>>, vector<1x8x32xf32>,
    %c0_79 = arith.constant 0 : index
    %c0_80 = arith.constant 0 : index
    %c0_81 = arith.constant 0 : index
    %55 = vector.load %arg13[%c0_79, %c0_80, %c0_81] : memref<18x8x32xf32, #tpu.memory_space<vmem>>, vector<16x8x32xf32>
    %c1_82 = arith.constant 1 : index
    %c0_83 = arith.constant 0 : index
    %c0_84 = arith.constant 0 : index
    %56 = vector.load %arg13[%c1_82, %c0_83, %c0_84] : memref<18x8x32xf32, #tpu.memory_space<vmem>>, vector<16x8x32xf32>
    %57 = arith.maximumf %55, %56 : vector<16x8x32xf32>
    %c2_85 = arith.constant 2 : index
    %c0_86 = arith.constant 0 : index
    %c0_87 = arith.constant 0 : index
    %58 = vector.load %arg13[%c2_85, %c0_86, %c0_87] : memref<18x8x32xf32, #tpu.memory_space<vmem>>, vector<16x8x32xf32>
    %59 = arith.maximumf %57, %58 : vector<16x8x32xf32>
    %60 = vector.shape_cast %59 : vector<16x8x32xf32> to vector<8x2x8x32xf32>
    %61 = vector.extract_strided_slice %60 {offsets = [0, 0, 0, 0], sizes = [8, 1, 8, 32], strides = [1, 1, 1, 1]} : vector<8x2x8x32xf32> to vector<8x1x8x32xf32>
    %62 = vector.shape_cast %61 : vector<8x1x8x32xf32> to vector<8x8x32xf32>
    %63 = arith.truncf %62 : vector<8x8x32xf32> to vector<8x8x32xbf16>
    %c1_88 = arith.constant 1 : index
    %c1_89 = arith.constant 1 : index
    %c0_90 = arith.constant 0 : index
    %64 = vector.load %arg14[%c1_88, %c1_89, %c0_90] : memref<10x10x32xbf16, #tpu.memory_space<vmem>>, vector<8x8x32xbf16>
    tpu.vector_store %arg14[%c1_88, %c1_89, %c0_90], %63 {strides = array<i32>} : memref<10x10x32xbf16, #tpu.memory_space<vmem>>, vector<8x8x32xbf16>,
    %cst_91 = arith.constant 0.000000e+00 : bf16
    %65 = vector.broadcast %cst_91 : bf16 to vector<1x10x32xbf16>
    %c0_92 = arith.constant 0 : index
    %c0_93 = arith.constant 0 : index
    %c0_94 = arith.constant 0 : index
    %66 = vector.load %arg14[%c0_92, %c0_93, %c0_94] : memref<10x10x32xbf16, #tpu.memory_space<vmem>>, vector<1x10x32xbf16>
    tpu.vector_store %arg14[%c0_92, %c0_93, %c0_94], %65 {strides = array<i32>} : memref<10x10x32xbf16, #tpu.memory_space<vmem>>, vector<1x10x32xbf16>,
    %c9 = arith.constant 9 : index
    %c0_95 = arith.constant 0 : index
    %c0_96 = arith.constant 0 : index
    %67 = vector.load %arg14[%c9, %c0_95, %c0_96] : memref<10x10x32xbf16, #tpu.memory_space<vmem>>, vector<1x10x32xbf16>
    tpu.vector_store %arg14[%c9, %c0_95, %c0_96], %65 {strides = array<i32>} : memref<10x10x32xbf16, #tpu.memory_space<vmem>>, vector<1x10x32xbf16>,
    %cst_97 = arith.constant 0.000000e+00 : bf16
    %68 = vector.broadcast %cst_97 : bf16 to vector<10x1x32xbf16>
    %c0_98 = arith.constant 0 : index
    %c0_99 = arith.constant 0 : index
    %c0_100 = arith.constant 0 : index
    %69 = vector.load %arg14[%c0_98, %c0_99, %c0_100] : memref<10x10x32xbf16, #tpu.memory_space<vmem>>, vector<10x1x32xbf16>
    tpu.vector_store %arg14[%c0_98, %c0_99, %c0_100], %68 {strides = array<i32>} : memref<10x10x32xbf16, #tpu.memory_space<vmem>>, vector<10x1x32xbf16>,
    %c0_101 = arith.constant 0 : index
    %c9_102 = arith.constant 9 : index
    %c0_103 = arith.constant 0 : index
    %70 = vector.load %arg14[%c0_101, %c9_102, %c0_103] : memref<10x10x32xbf16, #tpu.memory_space<vmem>>, vector<10x1x32xbf16>
    tpu.vector_store %arg14[%c0_101, %c9_102, %c0_103], %68 {strides = array<i32>} : memref<10x10x32xbf16, #tpu.memory_space<vmem>>, vector<10x1x32xbf16>,
    %c0_104 = arith.constant 0 : index
    %c0_105 = arith.constant 0 : index
    %c0_106 = arith.constant 0 : index
    %71 = vector.load %arg14[%c0_104, %c0_105, %c0_106] : memref<10x10x32xbf16, #tpu.memory_space<vmem>>, vector<8x8x32xbf16>
    %72 = vector.shape_cast %71 : vector<8x8x32xbf16> to vector<64x32xbf16>
    %c0_107 = arith.constant 0 : index
    %c1_108 = arith.constant 1 : index
    %c0_109 = arith.constant 0 : index
    %73 = vector.load %arg14[%c0_107, %c1_108, %c0_109] : memref<10x10x32xbf16, #tpu.memory_space<vmem>>, vector<8x8x32xbf16>
    %74 = vector.shape_cast %73 : vector<8x8x32xbf16> to vector<64x32xbf16>
    %c0_110 = arith.constant 0 : index
    %c2_111 = arith.constant 2 : index
    %c0_112 = arith.constant 0 : index
    %75 = vector.load %arg14[%c0_110, %c2_111, %c0_112] : memref<10x10x32xbf16, #tpu.memory_space<vmem>>, vector<8x8x32xbf16>
    %76 = vector.shape_cast %75 : vector<8x8x32xbf16> to vector<64x32xbf16>
    %c1_113 = arith.constant 1 : index
    %c0_114 = arith.constant 0 : index
    %c0_115 = arith.constant 0 : index
    %77 = vector.load %arg14[%c1_113, %c0_114, %c0_115] : memref<10x10x32xbf16, #tpu.memory_space<vmem>>, vector<8x8x32xbf16>
    %78 = vector.shape_cast %77 : vector<8x8x32xbf16> to vector<64x32xbf16>
    %c1_116 = arith.constant 1 : index
    %c1_117 = arith.constant 1 : index
    %c0_118 = arith.constant 0 : index
    %79 = vector.load %arg14[%c1_116, %c1_117, %c0_118] : memref<10x10x32xbf16, #tpu.memory_space<vmem>>, vector<8x8x32xbf16>
    %80 = vector.shape_cast %79 : vector<8x8x32xbf16> to vector<64x32xbf16>
    %c1_119 = arith.constant 1 : index
    %c2_120 = arith.constant 2 : index
    %c0_121 = arith.constant 0 : index
    %81 = vector.load %arg14[%c1_119, %c2_120, %c0_121] : memref<10x10x32xbf16, #tpu.memory_space<vmem>>, vector<8x8x32xbf16>
    %82 = vector.shape_cast %81 : vector<8x8x32xbf16> to vector<64x32xbf16>
    %c2_122 = arith.constant 2 : index
    %c0_123 = arith.constant 0 : index
    %c0_124 = arith.constant 0 : index
    %83 = vector.load %arg14[%c2_122, %c0_123, %c0_124] : memref<10x10x32xbf16, #tpu.memory_space<vmem>>, vector<8x8x32xbf16>
    %84 = vector.shape_cast %83 : vector<8x8x32xbf16> to vector<64x32xbf16>
    %c2_125 = arith.constant 2 : index
    %c1_126 = arith.constant 1 : index
    %c0_127 = arith.constant 0 : index
    %85 = vector.load %arg14[%c2_125, %c1_126, %c0_127] : memref<10x10x32xbf16, #tpu.memory_space<vmem>>, vector<8x8x32xbf16>
    %86 = vector.shape_cast %85 : vector<8x8x32xbf16> to vector<64x32xbf16>
    %c2_128 = arith.constant 2 : index
    %c2_129 = arith.constant 2 : index
    %c0_130 = arith.constant 0 : index
    %87 = vector.load %arg14[%c2_128, %c2_129, %c0_130] : memref<10x10x32xbf16, #tpu.memory_space<vmem>>, vector<8x8x32xbf16>
    %88 = vector.shape_cast %87 : vector<8x8x32xbf16> to vector<64x32xbf16>
    %89 = tpu.concatenate %72, %74, %76, %78, %80, %82, %84, %86, %88 in 1 : vector<64x32xbf16>, vector<64x32xbf16>, vector<64x32xbf16>, vector<64x32xbf16>, vector<64x32xbf16>, vector<64x32xbf16>, vector<64x32xbf16>, vector<64x32xbf16>, vector<64x32xbf16> -> vector<64x288xbf16>
    %c0_131 = arith.constant 0 : index
    %c0_132 = arith.constant 0 : index
    %90 = vector.load %arg4[%c0_131, %c0_132] : memref<288x64xbf16, #tpu.memory_space<vmem>>, vector<288x64xbf16>
    %cst_133 = arith.constant dense<0.000000e+00> : vector<64x64xf32>
    %91 = tpu.matmul %89, %90, %cst_133 {dimension_numbers = #tpu.dot_dimension_numbers<[1], [0], [0], [1], [0, 0, 1, 1], [], []>} : vector<64x288xbf16>, vector<288x64xbf16>, vector<64x64xf32> -> vector<64x64xf32>
    %c0_134 = arith.constant 0 : index
    %c0_135 = arith.constant 0 : index
    %92 = vector.load %arg5[%c0_134, %c0_135] : memref<1x64xf32, #tpu.memory_space<vmem>>, vector<1x64xf32>
    %93 = vector.broadcast %92 : vector<1x64xf32> to vector<64x64xf32>
    %94 = arith.addf %91, %93 : vector<64x64xf32>
    %cst_136 = arith.constant 0.000000e+00 : f32
    %95 = vector.broadcast %cst_136 : f32 to vector<64x64xf32>
    %96 = arith.cmpf oge, %94, %95 : vector<64x64xf32>
    %cst_137 = arith.constant 0.00999999977 : f32
    %97 = vector.broadcast %cst_137 : f32 to vector<64x64xf32>
    %98 = arith.mulf %97, %94 : vector<64x64xf32>
    %99 = arith.select %96, %94, %98 : vector<64x64xi1>, vector<64x64xf32>
    %100 = vector.shape_cast %99 : vector<64x64xf32> to vector<8x8x64xf32>
    %c0_138 = arith.constant 0 : index
    %c1_139 = arith.constant 1 : index
    %c0_140 = arith.constant 0 : index
    %101 = vector.load %arg15[%c0_138, %c1_139, %c0_140] : memref<8x10x64xf32, #tpu.memory_space<vmem>>, vector<8x8x64xf32>
    tpu.vector_store %arg15[%c0_138, %c1_139, %c0_140], %100 {strides = array<i32>} : memref<8x10x64xf32, #tpu.memory_space<vmem>>, vector<8x8x64xf32>,
    %cst_141 = arith.constant -3.40282347E+38 : f32
    %102 = vector.broadcast %cst_141 : f32 to vector<8x1x64xf32>
    %c0_142 = arith.constant 0 : index
    %c0_143 = arith.constant 0 : index
    %c0_144 = arith.constant 0 : index
    %103 = vector.load %arg15[%c0_142, %c0_143, %c0_144] : memref<8x10x64xf32, #tpu.memory_space<vmem>>, vector<8x1x64xf32>
    tpu.vector_store %arg15[%c0_142, %c0_143, %c0_144], %102 {strides = array<i32>} : memref<8x10x64xf32, #tpu.memory_space<vmem>>, vector<8x1x64xf32>,
    %c0_145 = arith.constant 0 : index
    %c9_146 = arith.constant 9 : index
    %c0_147 = arith.constant 0 : index
    %104 = vector.load %arg15[%c0_145, %c9_146, %c0_147] : memref<8x10x64xf32, #tpu.memory_space<vmem>>, vector<8x1x64xf32>
    tpu.vector_store %arg15[%c0_145, %c9_146, %c0_147], %102 {strides = array<i32>} : memref<8x10x64xf32, #tpu.memory_space<vmem>>, vector<8x1x64xf32>,
    %c0_148 = arith.constant 0 : index
    %c0_149 = arith.constant 0 : index
    %c0_150 = arith.constant 0 : index
    %105 = vector.load %arg15[%c0_148, %c0_149, %c0_150] : memref<8x10x64xf32, #tpu.memory_space<vmem>>, vector<8x8x64xf32>
    %c0_151 = arith.constant 0 : index
    %c1_152 = arith.constant 1 : index
    %c0_153 = arith.constant 0 : index
    %106 = vector.load %arg15[%c0_151, %c1_152, %c0_153] : memref<8x10x64xf32, #tpu.memory_space<vmem>>, vector<8x8x64xf32>
    %107 = arith.maximumf %105, %106 : vector<8x8x64xf32>
    %c0_154 = arith.constant 0 : index
    %c2_155 = arith.constant 2 : index
    %c0_156 = arith.constant 0 : index
    %108 = vector.load %arg15[%c0_154, %c2_155, %c0_156] : memref<8x10x64xf32, #tpu.memory_space<vmem>>, vector<8x8x64xf32>
    %109 = arith.maximumf %107, %108 : vector<8x8x64xf32>
    %110 = vector.shape_cast %109 : vector<8x8x64xf32> to vector<8x4x2x64xf32>
    %111 = vector.extract_strided_slice %110 {offsets = [0, 0, 0, 0], sizes = [8, 4, 1, 64], strides = [1, 1, 1, 1]} : vector<8x4x2x64xf32> to vector<8x4x1x64xf32>
    %112 = vector.shape_cast %111 : vector<8x4x1x64xf32> to vector<8x4x64xf32>
    %c1_157 = arith.constant 1 : index
    %c0_158 = arith.constant 0 : index
    %c0_159 = arith.constant 0 : index
    %113 = vector.load %arg16[%c1_157, %c0_158, %c0_159] : memref<10x4x64xf32, #tpu.memory_space<vmem>>, vector<8x4x64xf32>
    tpu.vector_store %arg16[%c1_157, %c0_158, %c0_159], %112 {strides = array<i32>} : memref<10x4x64xf32, #tpu.memory_space<vmem>>, vector<8x4x64xf32>,
    %cst_160 = arith.constant -3.40282347E+38 : f32
    %114 = vector.broadcast %cst_160 : f32 to vector<1x4x64xf32>
    %c0_161 = arith.constant 0 : index
    %c0_162 = arith.constant 0 : index
    %c0_163 = arith.constant 0 : index
    %115 = vector.load %arg16[%c0_161, %c0_162, %c0_163] : memref<10x4x64xf32, #tpu.memory_space<vmem>>, vector<1x4x64xf32>
    tpu.vector_store %arg16[%c0_161, %c0_162, %c0_163], %114 {strides = array<i32>} : memref<10x4x64xf32, #tpu.memory_space<vmem>>, vector<1x4x64xf32>,
    %c9_164 = arith.constant 9 : index
    %c0_165 = arith.constant 0 : index
    %c0_166 = arith.constant 0 : index
    %116 = vector.load %arg16[%c9_164, %c0_165, %c0_166] : memref<10x4x64xf32, #tpu.memory_space<vmem>>, vector<1x4x64xf32>
    tpu.vector_store %arg16[%c9_164, %c0_165, %c0_166], %114 {strides = array<i32>} : memref<10x4x64xf32, #tpu.memory_space<vmem>>, vector<1x4x64xf32>,
    %c0_167 = arith.constant 0 : index
    %c0_168 = arith.constant 0 : index
    %c0_169 = arith.constant 0 : index
    %117 = vector.load %arg16[%c0_167, %c0_168, %c0_169] : memref<10x4x64xf32, #tpu.memory_space<vmem>>, vector<8x4x64xf32>
    %c1_170 = arith.constant 1 : index
    %c0_171 = arith.constant 0 : index
    %c0_172 = arith.constant 0 : index
    %118 = vector.load %arg16[%c1_170, %c0_171, %c0_172] : memref<10x4x64xf32, #tpu.memory_space<vmem>>, vector<8x4x64xf32>
    %119 = arith.maximumf %117, %118 : vector<8x4x64xf32>
    %c2_173 = arith.constant 2 : index
    %c0_174 = arith.constant 0 : index
    %c0_175 = arith.constant 0 : index
    %120 = vector.load %arg16[%c2_173, %c0_174, %c0_175] : memref<10x4x64xf32, #tpu.memory_space<vmem>>, vector<8x4x64xf32>
    %121 = arith.maximumf %119, %120 : vector<8x4x64xf32>
    %122 = vector.shape_cast %121 : vector<8x4x64xf32> to vector<4x2x4x64xf32>
    %123 = vector.extract_strided_slice %122 {offsets = [0, 0, 0, 0], sizes = [4, 1, 4, 64], strides = [1, 1, 1, 1]} : vector<4x2x4x64xf32> to vector<4x1x4x64xf32>
    %124 = vector.shape_cast %123 : vector<4x1x4x64xf32> to vector<4x4x64xf32>
    %125 = arith.truncf %124 : vector<4x4x64xf32> to vector<4x4x64xbf16>
    %c1_176 = arith.constant 1 : index
    %c1_177 = arith.constant 1 : index
    %c0_178 = arith.constant 0 : index
    %126 = vector.load %arg17[%c1_176, %c1_177, %c0_178] : memref<6x6x64xbf16, #tpu.memory_space<vmem>>, vector<4x4x64xbf16>
    tpu.vector_store %arg17[%c1_176, %c1_177, %c0_178], %125 {strides = array<i32>} : memref<6x6x64xbf16, #tpu.memory_space<vmem>>, vector<4x4x64xbf16>,
    %cst_179 = arith.constant 0.000000e+00 : bf16
    %127 = vector.broadcast %cst_179 : bf16 to vector<1x6x64xbf16>
    %c0_180 = arith.constant 0 : index
    %c0_181 = arith.constant 0 : index
    %c0_182 = arith.constant 0 : index
    %128 = vector.load %arg17[%c0_180, %c0_181, %c0_182] : memref<6x6x64xbf16, #tpu.memory_space<vmem>>, vector<1x6x64xbf16>
    tpu.vector_store %arg17[%c0_180, %c0_181, %c0_182], %127 {strides = array<i32>} : memref<6x6x64xbf16, #tpu.memory_space<vmem>>, vector<1x6x64xbf16>,
    %c5 = arith.constant 5 : index
    %c0_183 = arith.constant 0 : index
    %c0_184 = arith.constant 0 : index
    %129 = vector.load %arg17[%c5, %c0_183, %c0_184] : memref<6x6x64xbf16, #tpu.memory_space<vmem>>, vector<1x6x64xbf16>
    tpu.vector_store %arg17[%c5, %c0_183, %c0_184], %127 {strides = array<i32>} : memref<6x6x64xbf16, #tpu.memory_space<vmem>>, vector<1x6x64xbf16>,
    %cst_185 = arith.constant 0.000000e+00 : bf16
    %130 = vector.broadcast %cst_185 : bf16 to vector<6x1x64xbf16>
    %c0_186 = arith.constant 0 : index
    %c0_187 = arith.constant 0 : index
    %c0_188 = arith.constant 0 : index
    %131 = vector.load %arg17[%c0_186, %c0_187, %c0_188] : memref<6x6x64xbf16, #tpu.memory_space<vmem>>, vector<6x1x64xbf16>
    tpu.vector_store %arg17[%c0_186, %c0_187, %c0_188], %130 {strides = array<i32>} : memref<6x6x64xbf16, #tpu.memory_space<vmem>>, vector<6x1x64xbf16>,
    %c0_189 = arith.constant 0 : index
    %c5_190 = arith.constant 5 : index
    %c0_191 = arith.constant 0 : index
    %132 = vector.load %arg17[%c0_189, %c5_190, %c0_191] : memref<6x6x64xbf16, #tpu.memory_space<vmem>>, vector<6x1x64xbf16>
    tpu.vector_store %arg17[%c0_189, %c5_190, %c0_191], %130 {strides = array<i32>} : memref<6x6x64xbf16, #tpu.memory_space<vmem>>, vector<6x1x64xbf16>,
    %c0_192 = arith.constant 0 : index
    %c0_193 = arith.constant 0 : index
    %c0_194 = arith.constant 0 : index
    %133 = vector.load %arg17[%c0_192, %c0_193, %c0_194] : memref<6x6x64xbf16, #tpu.memory_space<vmem>>, vector<4x4x64xbf16>
    %134 = vector.shape_cast %133 : vector<4x4x64xbf16> to vector<16x64xbf16>
    %c0_195 = arith.constant 0 : index
    %c1_196 = arith.constant 1 : index
    %c0_197 = arith.constant 0 : index
    %135 = vector.load %arg17[%c0_195, %c1_196, %c0_197] : memref<6x6x64xbf16, #tpu.memory_space<vmem>>, vector<4x4x64xbf16>
    %136 = vector.shape_cast %135 : vector<4x4x64xbf16> to vector<16x64xbf16>
    %c0_198 = arith.constant 0 : index
    %c2_199 = arith.constant 2 : index
    %c0_200 = arith.constant 0 : index
    %137 = vector.load %arg17[%c0_198, %c2_199, %c0_200] : memref<6x6x64xbf16, #tpu.memory_space<vmem>>, vector<4x4x64xbf16>
    %138 = vector.shape_cast %137 : vector<4x4x64xbf16> to vector<16x64xbf16>
    %c1_201 = arith.constant 1 : index
    %c0_202 = arith.constant 0 : index
    %c0_203 = arith.constant 0 : index
    %139 = vector.load %arg17[%c1_201, %c0_202, %c0_203] : memref<6x6x64xbf16, #tpu.memory_space<vmem>>, vector<4x4x64xbf16>
    %140 = vector.shape_cast %139 : vector<4x4x64xbf16> to vector<16x64xbf16>
    %c1_204 = arith.constant 1 : index
    %c1_205 = arith.constant 1 : index
    %c0_206 = arith.constant 0 : index
    %141 = vector.load %arg17[%c1_204, %c1_205, %c0_206] : memref<6x6x64xbf16, #tpu.memory_space<vmem>>, vector<4x4x64xbf16>
    %142 = vector.shape_cast %141 : vector<4x4x64xbf16> to vector<16x64xbf16>
    %c1_207 = arith.constant 1 : index
    %c2_208 = arith.constant 2 : index
    %c0_209 = arith.constant 0 : index
    %143 = vector.load %arg17[%c1_207, %c2_208, %c0_209] : memref<6x6x64xbf16, #tpu.memory_space<vmem>>, vector<4x4x64xbf16>
    %144 = vector.shape_cast %143 : vector<4x4x64xbf16> to vector<16x64xbf16>
    %c2_210 = arith.constant 2 : index
    %c0_211 = arith.constant 0 : index
    %c0_212 = arith.constant 0 : index
    %145 = vector.load %arg17[%c2_210, %c0_211, %c0_212] : memref<6x6x64xbf16, #tpu.memory_space<vmem>>, vector<4x4x64xbf16>
    %146 = vector.shape_cast %145 : vector<4x4x64xbf16> to vector<16x64xbf16>
    %c2_213 = arith.constant 2 : index
    %c1_214 = arith.constant 1 : index
    %c0_215 = arith.constant 0 : index
    %147 = vector.load %arg17[%c2_213, %c1_214, %c0_215] : memref<6x6x64xbf16, #tpu.memory_space<vmem>>, vector<4x4x64xbf16>
    %148 = vector.shape_cast %147 : vector<4x4x64xbf16> to vector<16x64xbf16>
    %c2_216 = arith.constant 2 : index
    %c2_217 = arith.constant 2 : index
    %c0_218 = arith.constant 0 : index
    %149 = vector.load %arg17[%c2_216, %c2_217, %c0_218] : memref<6x6x64xbf16, #tpu.memory_space<vmem>>, vector<4x4x64xbf16>
    %150 = vector.shape_cast %149 : vector<4x4x64xbf16> to vector<16x64xbf16>
    %151 = tpu.concatenate %134, %136, %138, %140, %142, %144, %146, %148, %150 in 1 : vector<16x64xbf16>, vector<16x64xbf16>, vector<16x64xbf16>, vector<16x64xbf16>, vector<16x64xbf16>, vector<16x64xbf16>, vector<16x64xbf16>, vector<16x64xbf16>, vector<16x64xbf16> -> vector<16x576xbf16>
    %c0_219 = arith.constant 0 : index
    %c0_220 = arith.constant 0 : index
    %152 = vector.load %arg6[%c0_219, %c0_220] : memref<576x128xbf16, #tpu.memory_space<vmem>>, vector<576x128xbf16>
    %cst_221 = arith.constant dense<0.000000e+00> : vector<16x128xf32>
    %153 = tpu.matmul %151, %152, %cst_221 {dimension_numbers = #tpu.dot_dimension_numbers<[1], [0], [0], [1], [0, 0, 1, 1], [], []>} : vector<16x576xbf16>, vector<576x128xbf16>, vector<16x128xf32> -> vector<16x128xf32>
    %c0_222 = arith.constant 0 : index
    %c0_223 = arith.constant 0 : index
    %154 = vector.load %arg7[%c0_222, %c0_223] : memref<1x128xf32, #tpu.memory_space<vmem>>, vector<1x128xf32>
    %155 = vector.broadcast %154 : vector<1x128xf32> to vector<16x128xf32>
    %156 = arith.addf %153, %155 : vector<16x128xf32>
    %cst_224 = arith.constant 0.000000e+00 : f32
    %157 = vector.broadcast %cst_224 : f32 to vector<16x128xf32>
    %158 = arith.cmpf oge, %156, %157 : vector<16x128xf32>
    %cst_225 = arith.constant 0.00999999977 : f32
    %159 = vector.broadcast %cst_225 : f32 to vector<16x128xf32>
    %160 = arith.mulf %159, %156 : vector<16x128xf32>
    %161 = arith.select %158, %156, %160 : vector<16x128xi1>, vector<16x128xf32>
    %162 = vector.shape_cast %161 : vector<16x128xf32> to vector<4x4x128xf32>
    %c0_226 = arith.constant 0 : index
    %c1_227 = arith.constant 1 : index
    %c0_228 = arith.constant 0 : index
    %163 = vector.load %arg18[%c0_226, %c1_227, %c0_228] : memref<4x6x128xf32, #tpu.memory_space<vmem>>, vector<4x4x128xf32>
    tpu.vector_store %arg18[%c0_226, %c1_227, %c0_228], %162 {strides = array<i32>} : memref<4x6x128xf32, #tpu.memory_space<vmem>>, vector<4x4x128xf32>,
    %cst_229 = arith.constant -3.40282347E+38 : f32
    %164 = vector.broadcast %cst_229 : f32 to vector<4x1x128xf32>
    %c0_230 = arith.constant 0 : index
    %c0_231 = arith.constant 0 : index
    %c0_232 = arith.constant 0 : index
    %165 = vector.load %arg18[%c0_230, %c0_231, %c0_232] : memref<4x6x128xf32, #tpu.memory_space<vmem>>, vector<4x1x128xf32>
    tpu.vector_store %arg18[%c0_230, %c0_231, %c0_232], %164 {strides = array<i32>} : memref<4x6x128xf32, #tpu.memory_space<vmem>>, vector<4x1x128xf32>,
    %c0_233 = arith.constant 0 : index
    %c5_234 = arith.constant 5 : index
    %c0_235 = arith.constant 0 : index
    %166 = vector.load %arg18[%c0_233, %c5_234, %c0_235] : memref<4x6x128xf32, #tpu.memory_space<vmem>>, vector<4x1x128xf32>
    tpu.vector_store %arg18[%c0_233, %c5_234, %c0_235], %164 {strides = array<i32>} : memref<4x6x128xf32, #tpu.memory_space<vmem>>, vector<4x1x128xf32>,
    %c0_236 = arith.constant 0 : index
    %c0_237 = arith.constant 0 : index
    %c0_238 = arith.constant 0 : index
    %167 = vector.load %arg18[%c0_236, %c0_237, %c0_238] : memref<4x6x128xf32, #tpu.memory_space<vmem>>, vector<4x4x128xf32>
    %c0_239 = arith.constant 0 : index
    %c1_240 = arith.constant 1 : index
    %c0_241 = arith.constant 0 : index
    %168 = vector.load %arg18[%c0_239, %c1_240, %c0_241] : memref<4x6x128xf32, #tpu.memory_space<vmem>>, vector<4x4x128xf32>
    %169 = arith.maximumf %167, %168 : vector<4x4x128xf32>
    %c0_242 = arith.constant 0 : index
    %c2_243 = arith.constant 2 : index
    %c0_244 = arith.constant 0 : index
    %170 = vector.load %arg18[%c0_242, %c2_243, %c0_244] : memref<4x6x128xf32, #tpu.memory_space<vmem>>, vector<4x4x128xf32>
    %171 = arith.maximumf %169, %170 : vector<4x4x128xf32>
    %172 = vector.shape_cast %171 : vector<4x4x128xf32> to vector<4x2x2x128xf32>
    %173 = vector.extract_strided_slice %172 {offsets = [0, 0, 0, 0], sizes = [4, 2, 1, 128], strides = [1, 1, 1, 1]} : vector<4x2x2x128xf32> to vector<4x2x1x128xf32>
    %174 = vector.shape_cast %173 : vector<4x2x1x128xf32> to vector<4x2x128xf32>
    %c1_245 = arith.constant 1 : index
    %c0_246 = arith.constant 0 : index
    %c0_247 = arith.constant 0 : index
    %175 = vector.load %arg19[%c1_245, %c0_246, %c0_247] : memref<6x2x128xf32, #tpu.memory_space<vmem>>, vector<4x2x128xf32>
    tpu.vector_store %arg19[%c1_245, %c0_246, %c0_247], %174 {strides = array<i32>} : memref<6x2x128xf32, #tpu.memory_space<vmem>>, vector<4x2x128xf32>,
    %cst_248 = arith.constant -3.40282347E+38 : f32
    %176 = vector.broadcast %cst_248 : f32 to vector<1x2x128xf32>
    %c0_249 = arith.constant 0 : index
    %c0_250 = arith.constant 0 : index
    %c0_251 = arith.constant 0 : index
    %177 = vector.load %arg19[%c0_249, %c0_250, %c0_251] : memref<6x2x128xf32, #tpu.memory_space<vmem>>, vector<1x2x128xf32>
    tpu.vector_store %arg19[%c0_249, %c0_250, %c0_251], %176 {strides = array<i32>} : memref<6x2x128xf32, #tpu.memory_space<vmem>>, vector<1x2x128xf32>,
    %c5_252 = arith.constant 5 : index
    %c0_253 = arith.constant 0 : index
    %c0_254 = arith.constant 0 : index
    %178 = vector.load %arg19[%c5_252, %c0_253, %c0_254] : memref<6x2x128xf32, #tpu.memory_space<vmem>>, vector<1x2x128xf32>
    tpu.vector_store %arg19[%c5_252, %c0_253, %c0_254], %176 {strides = array<i32>} : memref<6x2x128xf32, #tpu.memory_space<vmem>>, vector<1x2x128xf32>,
    %c0_255 = arith.constant 0 : index
    %c0_256 = arith.constant 0 : index
    %c0_257 = arith.constant 0 : index
    %179 = vector.load %arg19[%c0_255, %c0_256, %c0_257] : memref<6x2x128xf32, #tpu.memory_space<vmem>>, vector<4x2x128xf32>
    %c1_258 = arith.constant 1 : index
    %c0_259 = arith.constant 0 : index
    %c0_260 = arith.constant 0 : index
    %180 = vector.load %arg19[%c1_258, %c0_259, %c0_260] : memref<6x2x128xf32, #tpu.memory_space<vmem>>, vector<4x2x128xf32>
    %181 = arith.maximumf %179, %180 : vector<4x2x128xf32>
    %c2_261 = arith.constant 2 : index
    %c0_262 = arith.constant 0 : index
    %c0_263 = arith.constant 0 : index
    %182 = vector.load %arg19[%c2_261, %c0_262, %c0_263] : memref<6x2x128xf32, #tpu.memory_space<vmem>>, vector<4x2x128xf32>
    %183 = arith.maximumf %181, %182 : vector<4x2x128xf32>
    %184 = vector.shape_cast %183 : vector<4x2x128xf32> to vector<2x2x2x128xf32>
    %185 = vector.extract_strided_slice %184 {offsets = [0, 0, 0, 0], sizes = [2, 1, 2, 128], strides = [1, 1, 1, 1]} : vector<2x2x2x128xf32> to vector<2x1x2x128xf32>
    %186 = vector.shape_cast %185 : vector<2x1x2x128xf32> to vector<2x2x128xf32>
    %187 = arith.truncf %186 : vector<2x2x128xf32> to vector<2x2x128xbf16>
    %c1_264 = arith.constant 1 : index
    %c1_265 = arith.constant 1 : index
    %c0_266 = arith.constant 0 : index
    %188 = vector.load %arg20[%c1_264, %c1_265, %c0_266] : memref<4x4x128xbf16, #tpu.memory_space<vmem>>, vector<2x2x128xbf16>
    tpu.vector_store %arg20[%c1_264, %c1_265, %c0_266], %187 {strides = array<i32>} : memref<4x4x128xbf16, #tpu.memory_space<vmem>>, vector<2x2x128xbf16>,
    %cst_267 = arith.constant 0.000000e+00 : bf16
    %189 = vector.broadcast %cst_267 : bf16 to vector<1x4x128xbf16>
    %c0_268 = arith.constant 0 : index
    %c0_269 = arith.constant 0 : index
    %c0_270 = arith.constant 0 : index
    %190 = vector.load %arg20[%c0_268, %c0_269, %c0_270] : memref<4x4x128xbf16, #tpu.memory_space<vmem>>, vector<1x4x128xbf16>
    tpu.vector_store %arg20[%c0_268, %c0_269, %c0_270], %189 {strides = array<i32>} : memref<4x4x128xbf16, #tpu.memory_space<vmem>>, vector<1x4x128xbf16>,
    %c3 = arith.constant 3 : index
    %c0_271 = arith.constant 0 : index
    %c0_272 = arith.constant 0 : index
    %191 = vector.load %arg20[%c3, %c0_271, %c0_272] : memref<4x4x128xbf16, #tpu.memory_space<vmem>>, vector<1x4x128xbf16>
    tpu.vector_store %arg20[%c3, %c0_271, %c0_272], %189 {strides = array<i32>} : memref<4x4x128xbf16, #tpu.memory_space<vmem>>, vector<1x4x128xbf16>,
    %cst_273 = arith.constant 0.000000e+00 : bf16
    %192 = vector.broadcast %cst_273 : bf16 to vector<4x1x128xbf16>
    %c0_274 = arith.constant 0 : index
    %c0_275 = arith.constant 0 : index
    %c0_276 = arith.constant 0 : index
    %193 = vector.load %arg20[%c0_274, %c0_275, %c0_276] : memref<4x4x128xbf16, #tpu.memory_space<vmem>>, vector<4x1x128xbf16>
    tpu.vector_store %arg20[%c0_274, %c0_275, %c0_276], %192 {strides = array<i32>} : memref<4x4x128xbf16, #tpu.memory_space<vmem>>, vector<4x1x128xbf16>,
    %c0_277 = arith.constant 0 : index
    %c3_278 = arith.constant 3 : index
    %c0_279 = arith.constant 0 : index
    %194 = vector.load %arg20[%c0_277, %c3_278, %c0_279] : memref<4x4x128xbf16, #tpu.memory_space<vmem>>, vector<4x1x128xbf16>
    tpu.vector_store %arg20[%c0_277, %c3_278, %c0_279], %192 {strides = array<i32>} : memref<4x4x128xbf16, #tpu.memory_space<vmem>>, vector<4x1x128xbf16>,
    %c0_280 = arith.constant 0 : index
    %c0_281 = arith.constant 0 : index
    %c0_282 = arith.constant 0 : index
    %195 = vector.load %arg20[%c0_280, %c0_281, %c0_282] : memref<4x4x128xbf16, #tpu.memory_space<vmem>>, vector<2x2x128xbf16>
    %196 = vector.shape_cast %195 : vector<2x2x128xbf16> to vector<4x128xbf16>
    %c0_283 = arith.constant 0 : index
    %c1_284 = arith.constant 1 : index
    %c0_285 = arith.constant 0 : index
    %197 = vector.load %arg20[%c0_283, %c1_284, %c0_285] : memref<4x4x128xbf16, #tpu.memory_space<vmem>>, vector<2x2x128xbf16>
    %198 = vector.shape_cast %197 : vector<2x2x128xbf16> to vector<4x128xbf16>
    %c0_286 = arith.constant 0 : index
    %c2_287 = arith.constant 2 : index
    %c0_288 = arith.constant 0 : index
    %199 = vector.load %arg20[%c0_286, %c2_287, %c0_288] : memref<4x4x128xbf16, #tpu.memory_space<vmem>>, vector<2x2x128xbf16>
    %200 = vector.shape_cast %199 : vector<2x2x128xbf16> to vector<4x128xbf16>
    %c1_289 = arith.constant 1 : index
    %c0_290 = arith.constant 0 : index
    %c0_291 = arith.constant 0 : index
    %201 = vector.load %arg20[%c1_289, %c0_290, %c0_291] : memref<4x4x128xbf16, #tpu.memory_space<vmem>>, vector<2x2x128xbf16>
    %202 = vector.shape_cast %201 : vector<2x2x128xbf16> to vector<4x128xbf16>
    %c1_292 = arith.constant 1 : index
    %c1_293 = arith.constant 1 : index
    %c0_294 = arith.constant 0 : index
    %203 = vector.load %arg20[%c1_292, %c1_293, %c0_294] : memref<4x4x128xbf16, #tpu.memory_space<vmem>>, vector<2x2x128xbf16>
    %204 = vector.shape_cast %203 : vector<2x2x128xbf16> to vector<4x128xbf16>
    %c1_295 = arith.constant 1 : index
    %c2_296 = arith.constant 2 : index
    %c0_297 = arith.constant 0 : index
    %205 = vector.load %arg20[%c1_295, %c2_296, %c0_297] : memref<4x4x128xbf16, #tpu.memory_space<vmem>>, vector<2x2x128xbf16>
    %206 = vector.shape_cast %205 : vector<2x2x128xbf16> to vector<4x128xbf16>
    %c2_298 = arith.constant 2 : index
    %c0_299 = arith.constant 0 : index
    %c0_300 = arith.constant 0 : index
    %207 = vector.load %arg20[%c2_298, %c0_299, %c0_300] : memref<4x4x128xbf16, #tpu.memory_space<vmem>>, vector<2x2x128xbf16>
    %208 = vector.shape_cast %207 : vector<2x2x128xbf16> to vector<4x128xbf16>
    %c2_301 = arith.constant 2 : index
    %c1_302 = arith.constant 1 : index
    %c0_303 = arith.constant 0 : index
    %209 = vector.load %arg20[%c2_301, %c1_302, %c0_303] : memref<4x4x128xbf16, #tpu.memory_space<vmem>>, vector<2x2x128xbf16>
    %210 = vector.shape_cast %209 : vector<2x2x128xbf16> to vector<4x128xbf16>
    %c2_304 = arith.constant 2 : index
    %c2_305 = arith.constant 2 : index
    %c0_306 = arith.constant 0 : index
    %211 = vector.load %arg20[%c2_304, %c2_305, %c0_306] : memref<4x4x128xbf16, #tpu.memory_space<vmem>>, vector<2x2x128xbf16>
    %212 = vector.shape_cast %211 : vector<2x2x128xbf16> to vector<4x128xbf16>
    %213 = tpu.concatenate %196, %198, %200, %202, %204, %206, %208, %210, %212 in 1 : vector<4x128xbf16>, vector<4x128xbf16>, vector<4x128xbf16>, vector<4x128xbf16>, vector<4x128xbf16>, vector<4x128xbf16>, vector<4x128xbf16>, vector<4x128xbf16>, vector<4x128xbf16> -> vector<4x1152xbf16>
    %c0_307 = arith.constant 0 : index
    %c0_308 = arith.constant 0 : index
    %214 = vector.load %arg8[%c0_307, %c0_308] : memref<1152x256xbf16, #tpu.memory_space<vmem>>, vector<1152x256xbf16>
    %cst_309 = arith.constant dense<0.000000e+00> : vector<4x256xf32>
    %215 = tpu.matmul %213, %214, %cst_309 {dimension_numbers = #tpu.dot_dimension_numbers<[1], [0], [0], [1], [0, 0, 1, 1], [], []>} : vector<4x1152xbf16>, vector<1152x256xbf16>, vector<4x256xf32> -> vector<4x256xf32>
    %c0_310 = arith.constant 0 : index
    %c0_311 = arith.constant 0 : index
    %216 = vector.load %arg9[%c0_310, %c0_311] : memref<1x256xf32, #tpu.memory_space<vmem>>, vector<1x256xf32>
    %217 = vector.broadcast %216 : vector<1x256xf32> to vector<4x256xf32>
    %218 = arith.addf %215, %217 : vector<4x256xf32>
    %cst_312 = arith.constant 0.000000e+00 : f32
    %219 = vector.broadcast %cst_312 : f32 to vector<4x256xf32>
    %220 = arith.cmpf oge, %218, %219 : vector<4x256xf32>
    %cst_313 = arith.constant 0.00999999977 : f32
    %221 = vector.broadcast %cst_313 : f32 to vector<4x256xf32>
    %222 = arith.mulf %221, %218 : vector<4x256xf32>
    %223 = arith.select %220, %218, %222 : vector<4x256xi1>, vector<4x256xf32>
    %224 = vector.shape_cast %223 : vector<4x256xf32> to vector<2x2x256xf32>
    %c0_314 = arith.constant 0 : index
    %c0_315 = arith.constant 0 : index
    %c0_316 = arith.constant 0 : index
    %c0_317 = arith.constant 0 : index
    %225 = vector.load %arg10[%c0_314, %c0_315, %c0_316, %c0_317] : memref<1x2x2x256xf32, #tpu.memory_space<vmem>>, vector<1x2x2x256xf32>
    %226 = vector.shape_cast %225 : vector<1x2x2x256xf32> to vector<2x2x256xf32>
    %227 = vector.shape_cast %224 : vector<2x2x256xf32> to vector<1x2x2x256xf32>
    tpu.vector_store %arg10[%c0_314, %c0_315, %c0_316, %c0_317], %227 {strides = array<i32>} : memref<1x2x2x256xf32, #tpu.memory_space<vmem>>, vector<1x2x2x256xf32>,
    return
  }
  func.func @transform_0(%arg0: i32) -> (i32, i32, i32, i32) {
    %c0_i32 = arith.constant 0 : i32
    %c0_i32_0 = arith.constant 0 : i32
    %c0_i32_1 = arith.constant 0 : i32
    %c0_i32_2 = arith.constant 0 : i32
    return %arg0, %c0_i32, %c0_i32_0, %c0_i32_1 : i32, i32, i32, i32
  }
  func.func @transform_1(%arg0: i32) -> (i32, i32) {
    %c0_i32 = arith.constant 0 : i32
    %c0_i32_0 = arith.constant 0 : i32
    %c0_i32_1 = arith.constant 0 : i32
    return %c0_i32, %c0_i32_0 : i32, i32
  }
  func.func @transform_2(%arg0: i32) -> (i32, i32) {
    %c0_i32 = arith.constant 0 : i32
    %c0_i32_0 = arith.constant 0 : i32
    %c0_i32_1 = arith.constant 0 : i32
    return %c0_i32, %c0_i32_0 : i32, i32
  }
  func.func @transform_3(%arg0: i32) -> (i32, i32) {
    %c0_i32 = arith.constant 0 : i32
    %c0_i32_0 = arith.constant 0 : i32
    %c0_i32_1 = arith.constant 0 : i32
    return %c0_i32, %c0_i32_0 : i32, i32
  }
  func.func @transform_4(%arg0: i32) -> (i32, i32) {
    %c0_i32 = arith.constant 0 : i32
    %c0_i32_0 = arith.constant 0 : i32
    %c0_i32_1 = arith.constant 0 : i32
    return %c0_i32, %c0_i32_0 : i32, i32
  }
  func.func @transform_5(%arg0: i32) -> (i32, i32) {
    %c0_i32 = arith.constant 0 : i32
    %c0_i32_0 = arith.constant 0 : i32
    %c0_i32_1 = arith.constant 0 : i32
    return %c0_i32, %c0_i32_0 : i32, i32
  }
  func.func @transform_6(%arg0: i32) -> (i32, i32) {
    %c0_i32 = arith.constant 0 : i32
    %c0_i32_0 = arith.constant 0 : i32
    %c0_i32_1 = arith.constant 0 : i32
    return %c0_i32, %c0_i32_0 : i32, i32
  }
  func.func @transform_7(%arg0: i32) -> (i32, i32) {
    %c0_i32 = arith.constant 0 : i32
    %c0_i32_0 = arith.constant 0 : i32
    %c0_i32_1 = arith.constant 0 : i32
    return %c0_i32, %c0_i32_0 : i32, i32
  }
  func.func @transform_8(%arg0: i32) -> (i32, i32) {
    %c0_i32 = arith.constant 0 : i32
    %c0_i32_0 = arith.constant 0 : i32
    %c0_i32_1 = arith.constant 0 : i32
    return %c0_i32, %c0_i32_0 : i32, i32
  }
  func.func @transform_9(%arg0: i32) -> (i32, i32, i32, i32) {
    %c0_i32 = arith.constant 0 : i32
    %c0_i32_0 = arith.constant 0 : i32
    %c0_i32_1 = arith.constant 0 : i32
    %c0_i32_2 = arith.constant 0 : i32
    return %arg0, %c0_i32, %c0_i32_0, %c0_i32_1 : i32, i32, i32, i32
  }
}

</mosaic_0001>

<llo_original>
// kernel: model_forward.1
$region0: #{model_forward.1}
  #allocation0 [shape = 'u32[]', space=smem, size = 0x4, offset = 0x4, fixed_abs, tag = 'smem constant byte address 0x4 - core index']
  #allocation1 [shape = 'u32[144,128]{1,0:T(1,128)}', space=vmem, size = 0x12000, scoped, tag = 'internal scratch']
  #allocation2 [shape = 'bf16[18,18,16]{2,1,0:T(8,128)(2,1)}', space=vmem, size = 0x1b000, scoped, tag = 'scratch operand']
  #allocation3 [shape = 'f32[16,18,32]{2,1,0:T(8,128)}', space=vmem, size = 0x30000, scoped, tag = 'scratch operand']
  #allocation4 [shape = 'f32[18,8,32]{2,1,0:T(8,128)}', space=vmem, size = 0x12000, scoped, tag = 'scratch operand']
  #allocation5 [shape = 'bf16[10,10,32]{2,1,0:T(8,128)(2,1)}', space=vmem, size = 0xa000, scoped, tag = 'scratch operand']
  #allocation6 [shape = 'f32[8,10,64]{2,1,0:T(8,128)}', space=vmem, size = 0x10000, scoped, tag = 'scratch operand']
  #allocation7 [shape = 'f32[10,4,64]{2,1,0:T(4,128)}', space=vmem, size = 0x5000, scoped, tag = 'scratch operand']
  #allocation8 [shape = 'bf16[6,6,64]{2,1,0:T(8,128)(2,1)}', space=vmem, size = 0x3000, scoped, tag = 'scratch operand']
  #allocation9 [shape = 'f32[4,6,128]{2,1,0:T(8,128)}', space=vmem, size = 0x4000, scoped, tag = 'scratch operand']
  #allocation10 [shape = 'f32[6,2,128]{2,1,0:T(2,128)}', space=vmem, size = 0x1800, scoped, tag = 'scratch operand']
  #allocation11 [shape = 'bf16[4,4,128]{2,1,0:T(4,128)(2,1)}', space=vmem, size = 0x1000, scoped, tag = 'scratch operand']
  %s0 = inlined_call_operand.vmem [shape: bf16[2,16,16,16], index: 0, kind: input, shape index: {}]
  %s1 = inlined_call_operand.vmem [shape: bf16[144,32], index: 1, kind: input, shape index: {}]
  %s2 = inlined_call_operand.vmem [shape: f32[1,32], index: 2, kind: input, shape index: {}]
  %s3 = inlined_call_operand.vmem [shape: bf16[288,64], index: 3, kind: input, shape index: {}]
  %s4 = inlined_call_operand.vmem [shape: f32[1,64], index: 4, kind: input, shape index: {}]
  %s5 = inlined_call_operand.vmem [shape: bf16[576,128], index: 5, kind: input, shape index: {}]
  %s6 = inlined_call_operand.vmem [shape: f32[1,128], index: 6, kind: input, shape index: {}]
  %s7 = inlined_call_operand.vmem [shape: bf16[1152,256], index: 7, kind: input, shape index: {}]
  %s8 = inlined_call_operand.vmem [shape: f32[1,256], index: 8, kind: input, shape index: {}]
  %s9 = inlined_call_operand.hbm [shape: f32[2,2,2,256], index: 9, kind: output, shape index: {}]
  %s10 = sld [smem:[#allocation0]]
  $region69: #{model_forward.1} parent=0
    _
  %s12 = ssub.s32 1, %s10
  %s13 = scalar_select 0, %s12, %s10
  $region1: #{model_forward.1} parent=0
    #allocation12 [shape = 'u8[8192]{0}', space=vmem, size = 0x2000, scoped, tag = 'output window, operand 0']
    #allocation13 [shape = 's32[2]{0}', space=sflag, size = 0x8, scoped, tag = 'scoped memory for model_forward.1']
    %14 = vsyncpa [#allocation13], 0
    %s15 = scalar_lea.sflag [#allocation13], 1
    %16 = vsyncpa %s15, 0
    loop: start=0, step=1, limit=4
    $region2: #{model_forward.1} parent=1 // loop_pre_header
      _
    $region3: #{model_forward.1} parent=1 // loop_header
      %s18 = sphi 0, %s22
      %p19 = scmp.ge.s32.totalorder %s18, 4
      %s28 = sphi 0, %s30
      %s31 = sphi 0, %s28
      %s32 = sphi 0, %s31
      %s48 = sphi 0, %s32
      %s52 = sphi 0, %s52
      %s54 = sphi 0, %s52
      %s55 = sphi 0, %s54
      %s69 = sphi 0, %s55
      %s73 = sphi 0, %s73
      %s75 = sphi 0, %s73
      %s76 = sphi 0, %s75
      %s90 = sphi 0, %s76
      %s94 = sphi 0, %s94
      %s96 = sphi 0, %s94
      %s97 = sphi 0, %s96
      %s111 = sphi 0, %s97
      %s115 = sphi 0, %s115
      %s117 = sphi 0, %s115
      %s118 = sphi 0, %s117
      %s132 = sphi 0, %s118
      %s136 = sphi 0, %s136
      %s138 = sphi 0, %s136
      %s139 = sphi 0, %s138
      %s153 = sphi 0, %s139
      %s157 = sphi 0, %s157
      %s159 = sphi 0, %s157
      %s160 = sphi 0, %s159
      %s174 = sphi 0, %s160
      %s178 = sphi 0, %s178
      %s180 = sphi 0, %s178
      %s181 = sphi 0, %s180
      %s195 = sphi 0, %s181
      %s199 = sphi 0, %s199
      %s201 = sphi 0, %s199
      %s202 = sphi 0, %s201
      %s216 = sphi 0, %s202
      %s222 = sphi 0, %s224
      %s225 = sphi 0, %s222
      %s226 = sphi 0, %s225
      %s242 = sphi 0, %s226
    $region4: #{model_forward.1} parent=1 // loop_header_branch
      %21 = sbr.rel (%p19) target = $region8
    $region5: #{model_forward.1} parent=1 // loop_body
      %s23 = ssub.s32 %s18, 1
      %s24 = ssub.s32 %s18, 2
      %s25 = sadd.s32 %s18, 1
      %s26 = ssub.s32 %s18, %s25
      %p27 = scmp.eq.s32.totalorder %s26, 0
      %s29 = sadd.s32 %s28, 1
      %s30 = scalar_select %p27, %s28, %s29
      %p33 = pneg %p27
      %p34 = scmp.eq.s32.totalorder %s18, 1
      %p35 = por %p33, %p34
      %p36 = scmp.ne.s32.totalorder %s28, %s31
      %p37 = scmp.eq.s32.totalorder %s18, 0
      %p38 = por %p36, %p37
      %p39 = scmp.ne.s32.totalorder %s28, %s31
      %p40 = scmp.eq.s32.totalorder %s23, 1
      %p41 = por %p39, %p40
      %p42 = scmp.ne.s32.totalorder %s31, %s32
      %p43 = scmp.eq.s32.totalorder %s23, 0
      %p44 = por %p42, %p43
      %p45 = scmp.ne.s32.totalorder %s31, %s32
      %p46 = scmp.eq.s32.totalorder %s24, 1
      %p47 = por %p45, %p46
      %p49 = scmp.ne.s32.totalorder %s32, %s48
      %p50 = scmp.eq.s32.totalorder %s24, 0
      %p51 = por %p49, %p50
      %s53 = sadd.s32 %s52, 1
      %p56 = scmp.eq.s32.totalorder %s18, 1
      %p57 = scmp.ne.s32.totalorder %s52, %s54
      %p58 = scmp.eq.s32.totalorder %s18, 0
      %p59 = por %p57, %p58
      %p60 = scmp.ne.s32.totalorder %s52, %s54
      %p61 = scmp.eq.s32.totalorder %s23, 1
      %p62 = por %p60, %p61
      %p63 = scmp.ne.s32.totalorder %s54, %s55
      %p64 = scmp.eq.s32.totalorder %s23, 0
      %p65 = por %p63, %p64
      %p66 = scmp.ne.s32.totalorder %s54, %s55
      %p67 = scmp.eq.s32.totalorder %s24, 1
      %p68 = por %p66, %p67
      %p70 = scmp.ne.s32.totalorder %s55, %s69
      %p71 = scmp.eq.s32.totalorder %s24, 0
      %p72 = por %p70, %p71
      %s74 = sadd.s32 %s73, 1
      %p77 = scmp.eq.s32.totalorder %s18, 1
      %p78 = scmp.ne.s32.totalorder %s73, %s75
      %p79 = scmp.eq.s32.totalorder %s18, 0
      %p80 = por %p78, %p79
      %p81 = scmp.ne.s32.totalorder %s73, %s75
      %p82 = scmp.eq.s32.totalorder %s23, 1
      %p83 = por %p81, %p82
      %p84 = scmp.ne.s32.totalorder %s75, %s76
      %p85 = scmp.eq.s32.totalorder %s23, 0
      %p86 = por %p84, %p85
      %p87 = scmp.ne.s32.totalorder %s75, %s76
      %p88 = scmp.eq.s32.totalorder %s24, 1
      %p89 = por %p87, %p88
      %p91 = scmp.ne.s32.totalorder %s76, %s90
      %p92 = scmp.eq.s32.totalorder %s24, 0
      %p93 = por %p91, %p92
      %s95 = sadd.s32 %s94, 1
      %p98 = scmp.eq.s32.totalorder %s18, 1
      %p99 = scmp.ne.s32.totalorder %s94, %s96
      %p100 = scmp.eq.s32.totalorder %s18, 0
      %p101 = por %p99, %p100
      %p102 = scmp.ne.s32.totalorder %s94, %s96
      %p103 = scmp.eq.s32.totalorder %s23, 1
      %p104 = por %p102, %p103
      %p105 = scmp.ne.s32.totalorder %s96, %s97
      %p106 = scmp.eq.s32.totalorder %s23, 0
      %p107 = por %p105, %p106
      %p108 = scmp.ne.s32.totalorder %s96, %s97
      %p109 = scmp.eq.s32.totalorder %s24, 1
      %p110 = por %p108, %p109
      %p112 = scmp.ne.s32.totalorder %s97, %s111
      %p113 = scmp.eq.s32.totalorder %s24, 0
      %p114 = por %p112, %p113
      %s116 = sadd.s32 %s115, 1
      %p119 = scmp.eq.s32.totalorder %s18, 1
      %p120 = scmp.ne.s32.totalorder %s115, %s117
      %p121 = scmp.eq.s32.totalorder %s18, 0
      %p122 = por %p120, %p121
      %p123 = scmp.ne.s32.totalorder %s115, %s117
      %p124 = scmp.eq.s32.totalorder %s23, 1
      %p125 = por %p123, %p124
      %p126 = scmp.ne.s32.totalorder %s117, %s118
      %p127 = scmp.eq.s32.totalorder %s23, 0
      %p128 = por %p126, %p127
      %p129 = scmp.ne.s32.totalorder %s117, %s118
      %p130 = scmp.eq.s32.totalorder %s24, 1
      %p131 = por %p129, %p130
      %p133 = scmp.ne.s32.totalorder %s118, %s132
      %p134 = scmp.eq.s32.totalorder %s24, 0
      %p135 = por %p133, %p134
      %s137 = sadd.s32 %s136, 1
      %p140 = scmp.eq.s32.totalorder %s18, 1
      %p141 = scmp.ne.s32.totalorder %s136, %s138
      %p142 = scmp.eq.s32.totalorder %s18, 0
      %p143 = por %p141, %p142
      %p144 = scmp.ne.s32.totalorder %s136, %s138
      %p145 = scmp.eq.s32.totalorder %s23, 1
      %p146 = por %p144, %p145
      %p147 = scmp.ne.s32.totalorder %s138, %s139
      %p148 = scmp.eq.s32.totalorder %s23, 0
      %p149 = por %p147, %p148
      %p150 = scmp.ne.s32.totalorder %s138, %s139
      %p151 = scmp.eq.s32.totalorder %s24, 1
      %p152 = por %p150, %p151
      %p154 = scmp.ne.s32.totalorder %s139, %s153
      %p155 = scmp.eq.s32.totalorder %s24, 0
      %p156 = por %p154, %p155
      %s158 = sadd.s32 %s157, 1
      %p161 = scmp.eq.s32.totalorder %s18, 1
      %p162 = scmp.ne.s32.totalorder %s157, %s159
      %p163 = scmp.eq.s32.totalorder %s18, 0
      %p164 = por %p162, %p163
      %p165 = scmp.ne.s32.totalorder %s157, %s159
      %p166 = scmp.eq.s32.totalorder %s23, 1
      %p167 = por %p165, %p166
      %p168 = scmp.ne.s32.totalorder %s159, %s160
      %p169 = scmp.eq.s32.totalorder %s23, 0
      %p170 = por %p168, %p169
      %p171 = scmp.ne.s32.totalorder %s159, %s160
      %p172 = scmp.eq.s32.totalorder %s24, 1
      %p173 = por %p171, %p172
      %p175 = scmp.ne.s32.totalorder %s160, %s174
      %p176 = scmp.eq.s32.totalorder %s24, 0
      %p177 = por %p175, %p176
      %s179 = sadd.s32 %s178, 1
      %p182 = scmp.eq.s32.totalorder %s18, 1
      %p183 = scmp.ne.s32.totalorder %s178, %s180
      %p184 = scmp.eq.s32.totalorder %s18, 0
      %p185 = por %p183, %p184
      %p186 = scmp.ne.s32.totalorder %s178, %s180
      %p187 = scmp.eq.s32.totalorder %s23, 1
      %p188 = por %p186, %p187
      %p189 = scmp.ne.s32.totalorder %s180, %s181
      %p190 = scmp.eq.s32.totalorder %s23, 0
      %p191 = por %p189, %p190
      %p192 = scmp.ne.s32.totalorder %s180, %s181
      %p193 = scmp.eq.s32.totalorder %s24, 1
      %p194 = por %p192, %p193
      %p196 = scmp.ne.s32.totalorder %s181, %s195
      %p197 = scmp.eq.s32.totalorder %s24, 0
      %p198 = por %p196, %p197
      %s200 = sadd.s32 %s199, 1
      %p203 = scmp.eq.s32.totalorder %s18, 1
      %p204 = scmp.ne.s32.totalorder %s199, %s201
      %p205 = scmp.eq.s32.totalorder %s18, 0
      %p206 = por %p204, %p205
      %p207 = scmp.ne.s32.totalorder %s199, %s201
      %p208 = scmp.eq.s32.totalorder %s23, 1
      %p209 = por %p207, %p208
      %p210 = scmp.ne.s32.totalorder %s201, %s202
      %p211 = scmp.eq.s32.totalorder %s23, 0
      %p212 = por %p210, %p211
      %p213 = scmp.ne.s32.totalorder %s201, %s202
      %p214 = scmp.eq.s32.totalorder %s24, 1
      %p215 = por %p213, %p214
      %p217 = scmp.ne.s32.totalorder %s202, %s216
      %p218 = scmp.eq.s32.totalorder %s24, 0
      %p219 = por %p217, %p218
      %s220 = ssub.s32 %s18, %s25
      %p221 = scmp.eq.s32.totalorder %s220, 0
      %s223 = sadd.s32 %s222, 1
      %s224 = scalar_select %p221, %s222, %s223
      %p227 = pneg %p221
      %p228 = scmp.eq.s32.totalorder %s18, 1
      %p229 = por %p227, %p228
      %p230 = scmp.ne.s32.totalorder %s222, %s225
      %p231 = scmp.eq.s32.totalorder %s18, 0
      %p232 = por %p230, %p231
      %p233 = scmp.ne.s32.totalorder %s222, %s225
      %p234 = scmp.eq.s32.totalorder %s23, 1
      %p235 = por %p233, %p234
      %p236 = scmp.ne.s32.totalorder %s225, %s226
      %p237 = scmp.eq.s32.totalorder %s23, 0
      %p238 = por %p236, %p237
      %p239 = scmp.ne.s32.totalorder %s225, %s226
      %p240 = scmp.eq.s32.totalorder %s24, 1
      %p241 = por %p239, %p240
      %p243 = scmp.ne.s32.totalorder %s226, %s242
      %p244 = scmp.eq.s32.totalorder %s24, 0
      %p245 = por %p243, %p244
      %p246 = scmp.le.s32.totalorder 1, %s18
      %p247 = scmp.lt.s32.totalorder %s18, 3
      %p248 = pnand %p246, %p247
      %p249 = pneg %p248
      // Predicated region
      $region9: #{model_forward.1} parent=5 // pred_check
        _
      $region10: #{model_forward.1} parent=5 // pred_check_branch
        %251 = sbr.rel (%p248) target = $region12
      $region11: #{model_forward.1} parent=5 // pred_region
        %s252 = ssub.s32 %s18, 1
        // Predicated region
        $region13: #{model_forward.1} parent=11 // pred_check
          %p253 = pneg %p65
        $region14: #{model_forward.1} parent=11 // pred_check_branch
          %255 = sbr.rel (%p253) target = $region16
        $region15: #{model_forward.1} parent=11 // pred_region
          _
        $region16: #{model_forward.1} parent=11 // pred_fallthru
          _
        // Predicated region
        $region17: #{model_forward.1} parent=11 // pred_check
          %p256 = pneg %p86
        $region18: #{model_forward.1} parent=11 // pred_check_branch
          %258 = sbr.rel (%p256) target = $region20
        $region19: #{model_forward.1} parent=11 // pred_region
          _
        $region20: #{model_forward.1} parent=11 // pred_fallthru
          _
        // Predicated region
        $region21: #{model_forward.1} parent=11 // pred_check
          %p259 = pneg %p107
        $region22: #{model_forward.1} parent=11 // pred_check_branch
          %261 = sbr.rel (%p259) target = $region24
        $region23: #{model_forward.1} parent=11 // pred_region
          _
        $region24: #{model_forward.1} parent=11 // pred_fallthru
          _
        // Predicated region
        $region25: #{model_forward.1} parent=11 // pred_check
          %p262 = pneg %p128
        $region26: #{model_forward.1} parent=11 // pred_check_branch
          %264 = sbr.rel (%p262) target = $region28
        $region27: #{model_forward.1} parent=11 // pred_region
          _
        $region28: #{model_forward.1} parent=11 // pred_fallthru
          _
        // Predicated region
        $region29: #{model_forward.1} parent=11 // pred_check
          %p265 = pneg %p149
        $region30: #{model_forward.1} parent=11 // pred_check_branch
          %267 = sbr.rel (%p265) target = $region32
        $region31: #{model_forward.1} parent=11 // pred_region
          _
        $region32: #{model_forward.1} parent=11 // pred_fallthru
          _
        // Predicated region
        $region33: #{model_forward.1} parent=11 // pred_check
          %p268 = pneg %p170
        $region34: #{model_forward.1} parent=11 // pred_check_branch
          %270 = sbr.rel (%p268) target = $region36
        $region35: #{model_forward.1} parent=11 // pred_region
          _
        $region36: #{model_forward.1} parent=11 // pred_fallthru
          _
        // Predicated region
        $region37: #{model_forward.1} parent=11 // pred_check
          %p271 = pneg %p191
        $region38: #{model_forward.1} parent=11 // pred_check_branch
          %273 = sbr.rel (%p271) target = $region40
        $region39: #{model_forward.1} parent=11 // pred_region
          _
        $region40: #{model_forward.1} parent=11 // pred_fallthru
          _
        // Predicated region
        $region41: #{model_forward.1} parent=11 // pred_check
          %p274 = pneg %p212
        $region42: #{model_forward.1} parent=11 // pred_check_branch
          %276 = sbr.rel (%p274) target = $region44
        $region43: #{model_forward.1} parent=11 // pred_region
          _
        $region44: #{model_forward.1} parent=11 // pred_fallthru
          _
      $region12: #{model_forward.1} parent=5 // pred_fallthru
        _
      %p277 = scmp.lt.s32.totalorder %s18, 2
      // Predicated region
      $region45: #{model_forward.1} parent=5 // pred_check
        %p278 = pneg %p277
      $region46: #{model_forward.1} parent=5 // pred_check_branch
        %280 = sbr.rel (%p278) target = $region48
      $region47: #{model_forward.1} parent=5 // pred_region
        // Predicated region
        $region49: #{model_forward.1} parent=47 // pred_check
          %p281 = pneg %p38
        $region50: #{model_forward.1} parent=47 // pred_check_branch
          %283 = sbr.rel (%p281) target = $region52
        $region51: #{model_forward.1} parent=47 // pred_region
          %p284 = scmp.lt.s32.totalorder %s18, 1
          %s285 = scalar_select %p284, %s18, 1
          %s286 = smul.addr %s285, 32
          %s287 = smul.addr %s286, 4
          %s288 = scalar_lea.vmem %s0, %s287
        $region52: #{model_forward.1} parent=47 // pred_fallthru
          _
      $region48: #{model_forward.1} parent=5 // pred_fallthru
        _
      %p289 = scmp.le.s32.totalorder 1, %s18
      %p290 = scmp.lt.s32.totalorder %s18, 3
      %p291 = pnand %p289, %p290
      %p292 = pneg %p291
      // Predicated region
      $region53: #{model_forward.1} parent=5 // pred_check
        _
      $region54: #{model_forward.1} parent=5 // pred_check_branch
        %294 = sbr.rel (%p291) target = $region56
      $region55: #{model_forward.1} parent=5 // pred_region
        %s295 = ssub.s32 %s18, 1
        %p296 = scmp.lt.s32.totalorder %s23, 1
        %s297 = scalar_select %p296, %s23, 1
        %s298 = smul.addr %s297, 32
        %s299 = smul.addr %s298, 4
        %s300 = scalar_lea.vmem %s0, %s299
        %p301 = pneg %p44
        %p302 = pneg %p41
        %p303 = pneg %p65
        %p304 = pneg %p62
        %p305 = pneg %p86
        %p306 = pneg %p83
        %p307 = pneg %p107
        %p308 = pneg %p104
        %p309 = pneg %p128
        %p310 = pneg %p125
        %p311 = pneg %p149
        %p312 = pneg %p146
        %p313 = pneg %p170
        %p314 = pneg %p167
        %p315 = pneg %p191
        %p316 = pneg %p188
        %p317 = pneg %p212
        %p318 = pneg %p209
        %p319 = pneg %p238
        %p320 = pneg %p235
        %s321 = sand.u32 %s225, 1
        %s322 = scalar_lea.sflag [#allocation13], %s321
        %s323 = sand.u32 %s225, 1
        %s324 = smul.addr %s323, 8
        %s325 = scalar_lea.vmem [#allocation12], %s324
        %p326 = scmp.lt.s32.totalorder %s23, 1
        %s327 = scalar_select %p326, %s23, 1
        %s328 = smul.addr %s327, 32
        %s329 = smul.addr %s328, 4
        %s330 = scalar_lea.vmem %s0, %s329
        %v332 = vld [vmem:[%s330] sm:$0xf]
        %v333 = vld [vmem:[%s330 + $0x4] sm:$0xf]
        %v334 = vld [vmem:[%s330 + $0x8] sm:$0xf]
        %v335 = vld [vmem:[%s330 + $0xc] sm:$0xf]
        %v336 = vld [vmem:[%s330 + $0x10] sm:$0xf]
        %v337 = vld [vmem:[%s330 + $0x14] sm:$0xf]
        %v338 = vld [vmem:[%s330 + $0x18] sm:$0xf]
        %v339 = vld [vmem:[%s330 + $0x1c] sm:$0xf]
        %v340 = vld [vmem:[%s330 + $0x20] sm:$0xf]
        %v341 = vld [vmem:[%s330 + $0x24] sm:$0xf]
        %v342 = vld [vmem:[%s330 + $0x28] sm:$0xf]
        %v343 = vld [vmem:[%s330 + $0x2c] sm:$0xf]
        %v344 = vld [vmem:[%s330 + $0x30] sm:$0xf]
        %v345 = vld [vmem:[%s330 + $0x34] sm:$0xf]
        %v346 = vld [vmem:[%s330 + $0x38] sm:$0xf]
        %v347 = vld [vmem:[%s330 + $0x3c] sm:$0xf]
        %v348 = vld [vmem:[%s330 + $0x40] sm:$0xf]
        %v349 = vld [vmem:[%s330 + $0x44] sm:$0xf]
        %v350 = vld [vmem:[%s330 + $0x48] sm:$0xf]
        %v351 = vld [vmem:[%s330 + $0x4c] sm:$0xf]
        %v352 = vld [vmem:[%s330 + $0x50] sm:$0xf]
        %v353 = vld [vmem:[%s330 + $0x54] sm:$0xf]
        %v354 = vld [vmem:[%s330 + $0x58] sm:$0xf]
        %v355 = vld [vmem:[%s330 + $0x5c] sm:$0xf]
        %v356 = vld [vmem:[%s330 + $0x60] sm:$0xf]
        %v357 = vld [vmem:[%s330 + $0x64] sm:$0xf]
        %v358 = vld [vmem:[%s330 + $0x68] sm:$0xf]
        %v359 = vld [vmem:[%s330 + $0x6c] sm:$0xf]
        %v360 = vld [vmem:[%s330 + $0x70] sm:$0xf]
        %v361 = vld [vmem:[%s330 + $0x74] sm:$0xf]
        %v362 = vld [vmem:[%s330 + $0x78] sm:$0xf]
        %v363 = vld [vmem:[%s330 + $0x7c] sm:$0xf]
        %vm364 = vsmask.f32 256
        %vm365 = vsmask.f32 4368
        %vm366 = vmor %vm364, %vm365
        %v368 = vshrl.u32 %v332, 16
        %v370 = vrot.slane %v368, 7
        %v371 = vshll.u32 %v332, 16
        %v373 = vor.u32 %v370, %v371
        %v374 = vrot.slane %v370, 4
        %v376 = vshrl.u32 %v333, 16
        %v378 = vrot.slane %v376, 7
        %v379 = vshll.u32 %v333, 16
        %v381 = vor.u32 %v378, %v379
        %v382 = vsel %vm366, %v374, %v381
        %v383 = vrot.slane %v378, 4
        %v385 = vshrl.u32 %v334, 16
        %v387 = vrot.slane %v385, 7
        %v388 = vshll.u32 %v334, 16
        %v390 = vor.u32 %v387, %v388
        %v391 = vrot.slane %v387, 4
        %v393 = vshrl.u32 %v335, 16
        %v395 = vrot.slane %v393, 7
        %v396 = vshll.u32 %v335, 16
        %v398 = vor.u32 %v395, %v396
        %v399 = vsel %vm366, %v391, %v398
        %v400 = vrot.slane %v395, 4
        %v402 = vshrl.u32 %v336, 16
        %v404 = vrot.slane %v402, 7
        %v405 = vshll.u32 %v336, 16
        %v407 = vor.u32 %v404, %v405
        %v408 = vrot.slane %v404, 4
        %v410 = vshrl.u32 %v337, 16
        %v412 = vrot.slane %v410, 7
        %v413 = vshll.u32 %v337, 16
        %v415 = vor.u32 %v412, %v413
        %v416 = vsel %vm366, %v408, %v415
        %v417 = vrot.slane %v412, 4
        %v419 = vshrl.u32 %v338, 16
        %v421 = vrot.slane %v419, 7
        %v422 = vshll.u32 %v338, 16
        %v424 = vor.u32 %v421, %v422
        %v425 = vrot.slane %v421, 4
        %v427 = vshrl.u32 %v339, 16
        %v429 = vrot.slane %v427, 7
        %v430 = vshll.u32 %v339, 16
        %v432 = vor.u32 %v429, %v430
        %v433 = vsel %vm366, %v425, %v432
        %v434 = vrot.slane %v429, 4
        %v436 = vshrl.u32 %v340, 16
        %v438 = vrot.slane %v436, 7
        %v439 = vshll.u32 %v340, 16
        %v441 = vor.u32 %v438, %v439
        %v442 = vrot.slane %v438, 4
        %v444 = vshrl.u32 %v341, 16
        %v446 = vrot.slane %v444, 7
        %v447 = vshll.u32 %v341, 16
        %v449 = vor.u32 %v446, %v447
        %v450 = vsel %vm366, %v442, %v449
        %v451 = vrot.slane %v446, 4
        %v453 = vshrl.u32 %v342, 16
        %v455 = vrot.slane %v453, 7
        %v456 = vshll.u32 %v342, 16
        %v458 = vor.u32 %v455, %v456
        %v459 = vrot.slane %v455, 4
        %v461 = vshrl.u32 %v343, 16
        %v463 = vrot.slane %v461, 7
        %v464 = vshll.u32 %v343, 16
        %v466 = vor.u32 %v463, %v464
        %v467 = vsel %vm366, %v459, %v466
        %v468 = vrot.slane %v463, 4
        %v470 = vshrl.u32 %v344, 16
        %v472 = vrot.slane %v470, 7
        %v473 = vshll.u32 %v344, 16
        %v475 = vor.u32 %v472, %v473
        %v476 = vrot.slane %v472, 4
        %v478 = vshrl.u32 %v345, 16
        %v480 = vrot.slane %v478, 7
        %v481 = vshll.u32 %v345, 16
        %v483 = vor.u32 %v480, %v481
        %v484 = vsel %vm366, %v476, %v483
        %v485 = vrot.slane %v480, 4
        %v487 = vshrl.u32 %v346, 16
        %v489 = vrot.slane %v487, 7
        %v490 = vshll.u32 %v346, 16
        %v492 = vor.u32 %v489, %v490
        %v493 = vrot.slane %v489, 4
        %v495 = vshrl.u32 %v347, 16
        %v497 = vrot.slane %v495, 7
        %v498 = vshll.u32 %v347, 16
        %v500 = vor.u32 %v497, %v498
        %v501 = vsel %vm366, %v493, %v500
        %v502 = vrot.slane %v497, 4
        %v504 = vshrl.u32 %v348, 16
        %v506 = vrot.slane %v504, 7
        %v507 = vshll.u32 %v348, 16
        %v509 = vor.u32 %v506, %v507
        %v510 = vrot.slane %v506, 4
        %v512 = vshrl.u32 %v349, 16
        %v514 = vrot.slane %v512, 7
        %v515 = vshll.u32 %v349, 16
        %v517 = vor.u32 %v514, %v515
        %v518 = vsel %vm366, %v510, %v517
        %v519 = vrot.slane %v514, 4
        %v521 = vshrl.u32 %v350, 16
        %v523 = vrot.slane %v521, 7
        %v524 = vshll.u32 %v350, 16
        %v526 = vor.u32 %v523, %v524
        %v527 = vrot.slane %v523, 4
        %v529 = vshrl.u32 %v351, 16
        %v531 = vrot.slane %v529, 7
        %v532 = vshll.u32 %v351, 16
        %v534 = vor.u32 %v531, %v532
        %v535 = vsel %vm366, %v527, %v534
        %v536 = vrot.slane %v531, 4
        %v538 = vshrl.u32 %v352, 16
        %v540 = vrot.slane %v538, 7
        %v541 = vshll.u32 %v352, 16
        %v543 = vor.u32 %v540, %v541
        %v544 = vrot.slane %v540, 4
        %v546 = vshrl.u32 %v353, 16
        %v548 = vrot.slane %v546, 7
        %v549 = vshll.u32 %v353, 16
        %v551 = vor.u32 %v548, %v549
        %v552 = vsel %vm366, %v544, %v551
        %v553 = vrot.slane %v548, 4
        %v555 = vshrl.u32 %v354, 16
        %v557 = vrot.slane %v555, 7
        %v558 = vshll.u32 %v354, 16
        %v560 = vor.u32 %v557, %v558
        %v561 = vrot.slane %v557, 4
        %v563 = vshrl.u32 %v355, 16
        %v565 = vrot.slane %v563, 7
        %v566 = vshll.u32 %v355, 16
        %v568 = vor.u32 %v565, %v566
        %v569 = vsel %vm366, %v561, %v568
        %v570 = vrot.slane %v565, 4
        %v572 = vshrl.u32 %v356, 16
        %v574 = vrot.slane %v572, 7
        %v575 = vshll.u32 %v356, 16
        %v577 = vor.u32 %v574, %v575
        %v578 = vrot.slane %v574, 4
        %v580 = vshrl.u32 %v357, 16
        %v582 = vrot.slane %v580, 7
        %v583 = vshll.u32 %v357, 16
        %v585 = vor.u32 %v582, %v583
        %v586 = vsel %vm366, %v578, %v585
        %v587 = vrot.slane %v582, 4
        %v589 = vshrl.u32 %v358, 16
        %v591 = vrot.slane %v589, 7
        %v592 = vshll.u32 %v358, 16
        %v594 = vor.u32 %v591, %v592
        %v595 = vrot.slane %v591, 4
        %v597 = vshrl.u32 %v359, 16
        %v599 = vrot.slane %v597, 7
        %v600 = vshll.u32 %v359, 16
        %v602 = vor.u32 %v599, %v600
        %v603 = vsel %vm366, %v595, %v602
        %v604 = vrot.slane %v599, 4
        %v606 = vshrl.u32 %v360, 16
        %v608 = vrot.slane %v606, 7
        %v609 = vshll.u32 %v360, 16
        %v611 = vor.u32 %v608, %v609
        %v612 = vrot.slane %v608, 4
        %v614 = vshrl.u32 %v361, 16
        %v616 = vrot.slane %v614, 7
        %v617 = vshll.u32 %v361, 16
        %v619 = vor.u32 %v616, %v617
        %v620 = vsel %vm366, %v612, %v619
        %v621 = vrot.slane %v616, 4
        %v623 = vshrl.u32 %v362, 16
        %v625 = vrot.slane %v623, 7
        %v626 = vshll.u32 %v362, 16
        %v628 = vor.u32 %v625, %v626
        %v629 = vrot.slane %v625, 4
        %v631 = vshrl.u32 %v363, 16
        %v633 = vrot.slane %v631, 7
        %v634 = vshll.u32 %v363, 16
        %v636 = vor.u32 %v633, %v634
        %v637 = vsel %vm366, %v629, %v636
        %v638 = vrot.slane %v633, 4
        %s687 = scalar_lea.vmem [#allocation2], 12
        %vm688 = vcmask 125952
        %vm689 = vsmask.f32 7938
        %vm690 = vmand %vm688, %vm689
        %v691 = vld [vmem:[%s687] sm:$0xf]
        %v692 = vsel %vm690, %v373, %v691
        %693 = vst [vmem:[%s687] sm:$0xf] %v692
        %vm694 = vcmask 125952
        %695 = vst.msk [vmem:[%s687 + $0x4] sm:$0xf] %vm694, %v382
        %vm696 = vcmask 122880
        %vm697 = vmand %vm696, %vm364
        %v698 = vld [vmem:[%s687 + $0x8] sm:$0x1]
        %v699 = vsel %vm697, %v383, %v698
        %700 = vst [vmem:[%s687 + $0x8] sm:$0x1] %v699
        %v701 = vld [vmem:[%s687 + $0xc] sm:$0xf]
        %v702 = vsel %vm690, %v390, %v701
        %703 = vst [vmem:[%s687 + $0xc] sm:$0xf] %v702
        %704 = vst.msk [vmem:[%s687 + $0x10] sm:$0xf] %vm694, %v399
        %v705 = vld [vmem:[%s687 + $0x14] sm:$0x1]
        %v706 = vsel %vm697, %v400, %v705
        %707 = vst [vmem:[%s687 + $0x14] sm:$0x1] %v706
        %v708 = vld [vmem:[%s687 + $0x18] sm:$0xf]
        %v709 = vsel %vm690, %v407, %v708
        %710 = vst [vmem:[%s687 + $0x18] sm:$0xf] %v709
        %711 = vst.msk [vmem:[%s687 + $0x1c] sm:$0xf] %vm694, %v416
        %v712 = vld [vmem:[%s687 + $0x20] sm:$0x1]
        %v713 = vsel %vm697, %v417, %v712
        %714 = vst [vmem:[%s687 + $0x20] sm:$0x1] %v713
        %v715 = vld [vmem:[%s687 + $0x24] sm:$0xf]
        %v716 = vsel %vm690, %v424, %v715
        %717 = vst [vmem:[%s687 + $0x24] sm:$0xf] %v716
        %718 = vst.msk [vmem:[%s687 + $0x28] sm:$0xf] %vm694, %v433
        %v719 = vld [vmem:[%s687 + $0x2c] sm:$0x1]
        %v720 = vsel %vm697, %v434, %v719
        %721 = vst [vmem:[%s687 + $0x2c] sm:$0x1] %v720
        %v722 = vld [vmem:[%s687 + $0x30] sm:$0xf]
        %v723 = vsel %vm690, %v441, %v722
        %724 = vst [vmem:[%s687 + $0x30] sm:$0xf] %v723
        %725 = vst.msk [vmem:[%s687 + $0x34] sm:$0xf] %vm694, %v450
        %v726 = vld [vmem:[%s687 + $0x38] sm:$0x1]
        %v727 = vsel %vm697, %v451, %v726
        %728 = vst [vmem:[%s687 + $0x38] sm:$0x1] %v727
        %v729 = vld [vmem:[%s687 + $0x3c] sm:$0xf]
        %v730 = vsel %vm690, %v458, %v729
        %731 = vst [vmem:[%s687 + $0x3c] sm:$0xf] %v730
        %732 = vst.msk [vmem:[%s687 + $0x40] sm:$0xf] %vm694, %v467
        %v733 = vld [vmem:[%s687 + $0x44] sm:$0x1]
        %v734 = vsel %vm697, %v468, %v733
        %735 = vst [vmem:[%s687 + $0x44] sm:$0x1] %v734
        %v736 = vld [vmem:[%s687 + $0x48] sm:$0xf]
        %v737 = vsel %vm690, %v475, %v736
        %738 = vst [vmem:[%s687 + $0x48] sm:$0xf] %v737
        %739 = vst.msk [vmem:[%s687 + $0x4c] sm:$0xf] %vm694, %v484
        %v740 = vld [vmem:[%s687 + $0x50] sm:$0x1]
        %v741 = vsel %vm697, %v485, %v740
        %742 = vst [vmem:[%s687 + $0x50] sm:$0x1] %v741
        %v743 = vld [vmem:[%s687 + $0x54] sm:$0xf]
        %v744 = vsel %vm690, %v492, %v743
        %745 = vst [vmem:[%s687 + $0x54] sm:$0xf] %v744
        %746 = vst.msk [vmem:[%s687 + $0x58] sm:$0xf] %vm694, %v501
        %v747 = vld [vmem:[%s687 + $0x5c] sm:$0x1]
        %v748 = vsel %vm697, %v502, %v747
        %749 = vst [vmem:[%s687 + $0x5c] sm:$0x1] %v748
        %v750 = vld [vmem:[%s687 + $0x60] sm:$0xf]
        %v751 = vsel %vm690, %v509, %v750
        %752 = vst [vmem:[%s687 + $0x60] sm:$0xf] %v751
        %753 = vst.msk [vmem:[%s687 + $0x64] sm:$0xf] %vm694, %v518
        %v754 = vld [vmem:[%s687 + $0x68] sm:$0x1]
        %v755 = vsel %vm697, %v519, %v754
        %756 = vst [vmem:[%s687 + $0x68] sm:$0x1] %v755
        %v757 = vld [vmem:[%s687 + $0x6c] sm:$0xf]
        %v758 = vsel %vm690, %v526, %v757
        %759 = vst [vmem:[%s687 + $0x6c] sm:$0xf] %v758
        %760 = vst.msk [vmem:[%s687 + $0x70] sm:$0xf] %vm694, %v535
        %v761 = vld [vmem:[%s687 + $0x74] sm:$0x1]
        %v762 = vsel %vm697, %v536, %v761
        %763 = vst [vmem:[%s687 + $0x74] sm:$0x1] %v762
        %v764 = vld [vmem:[%s687 + $0x78] sm:$0xf]
        %v765 = vsel %vm690, %v543, %v764
        %766 = vst [vmem:[%s687 + $0x78] sm:$0xf] %v765
        %767 = vst.msk [vmem:[%s687 + $0x7c] sm:$0xf] %vm694, %v552
        %v768 = vld [vmem:[%s687 + $0x80] sm:$0x1]
        %v769 = vsel %vm697, %v553, %v768
        %770 = vst [vmem:[%s687 + $0x80] sm:$0x1] %v769
        %v771 = vld [vmem:[%s687 + $0x84] sm:$0xf]
        %v772 = vsel %vm690, %v560, %v771
        %773 = vst [vmem:[%s687 + $0x84] sm:$0xf] %v772
        %774 = vst.msk [vmem:[%s687 + $0x88] sm:$0xf] %vm694, %v569
        %v775 = vld [vmem:[%s687 + $0x8c] sm:$0x1]
        %v776 = vsel %vm697, %v570, %v775
        %777 = vst [vmem:[%s687 + $0x8c] sm:$0x1] %v776
        %v778 = vld [vmem:[%s687 + $0x90] sm:$0xf]
        %v779 = vsel %vm690, %v577, %v778
        %780 = vst [vmem:[%s687 + $0x90] sm:$0xf] %v779
        %781 = vst.msk [vmem:[%s687 + $0x94] sm:$0xf] %vm694, %v586
        %v782 = vld [vmem:[%s687 + $0x98] sm:$0x1]
        %v783 = vsel %vm697, %v587, %v782
        %784 = vst [vmem:[%s687 + $0x98] sm:$0x1] %v783
        %v785 = vld [vmem:[%s687 + $0x9c] sm:$0xf]
        %v786 = vsel %vm690, %v594, %v785
        %787 = vst [vmem:[%s687 + $0x9c] sm:$0xf] %v786
        %788 = vst.msk [vmem:[%s687 + $0xa0] sm:$0xf] %vm694, %v603
        %v789 = vld [vmem:[%s687 + $0xa4] sm:$0x1]
        %v790 = vsel %vm697, %v604, %v789
        %791 = vst [vmem:[%s687 + $0xa4] sm:$0x1] %v790
        %v792 = vld [vmem:[%s687 + $0xa8] sm:$0xf]
        %v793 = vsel %vm690, %v611, %v792
        %794 = vst [vmem:[%s687 + $0xa8] sm:$0xf] %v793
        %795 = vst.msk [vmem:[%s687 + $0xac] sm:$0xf] %vm694, %v620
        %v796 = vld [vmem:[%s687 + $0xb0] sm:$0x1]
        %v797 = vsel %vm697, %v621, %v796
        %798 = vst [vmem:[%s687 + $0xb0] sm:$0x1] %v797
        %v799 = vld [vmem:[%s687 + $0xb4] sm:$0xf]
        %v800 = vsel %vm690, %v628, %v799
        %801 = vst [vmem:[%s687 + $0xb4] sm:$0xf] %v800
        %802 = vst.msk [vmem:[%s687 + $0xb8] sm:$0xf] %vm694, %v637
        %v803 = vld [vmem:[%s687 + $0xbc] sm:$0x1]
        %v804 = vsel %vm697, %v638, %v803
        %805 = vst [vmem:[%s687 + $0xbc] sm:$0x1] %v804
        %806 = vst.msk [vmem:[#allocation2] sm:$0xf] %vm694, 0
        %807 = vst.msk [vmem:[#allocation2 + $0x4] sm:$0xf] %vm694, 0
        %vm808 = vcmask 122880
        %809 = vst.msk [vmem:[#allocation2 + $0x8] sm:$0x1] %vm808, 0
        %s810 = scalar_lea.vmem [#allocation2], 204
        %811 = vst.msk [vmem:[%s810] sm:$0xf] %vm694, 0
        %812 = vst.msk [vmem:[%s810 + $0x4] sm:$0xf] %vm694, 0
        %813 = vst.msk [vmem:[%s810 + $0x8] sm:$0x1] %vm808, 0
        %v814 = vld [vmem:[#allocation2] sm:$0x1]
        %v815 = vsel %vm697, 0, %v814
        %816 = vst [vmem:[#allocation2] sm:$0x1] %v815
        %v817 = vld [vmem:[#allocation2 + $0xc] sm:$0x1]
        %v818 = vsel %vm697, 0, %v817
        %819 = vst [vmem:[#allocation2 + $0xc] sm:$0x1] %v818
        %v820 = vld [vmem:[#allocation2 + $0x18] sm:$0x1]
        %v821 = vsel %vm697, 0, %v820
        %822 = vst [vmem:[#allocation2 + $0x18] sm:$0x1] %v821
        %v823 = vld [vmem:[#allocation2 + $0x24] sm:$0x1]
        %v824 = vsel %vm697, 0, %v823
        %825 = vst [vmem:[#allocation2 + $0x24] sm:$0x1] %v824
        %v826 = vld [vmem:[#allocation2 + $0x30] sm:$0x1]
        %v827 = vsel %vm697, 0, %v826
        %828 = vst [vmem:[#allocation2 + $0x30] sm:$0x1] %v827
        %v829 = vld [vmem:[#allocation2 + $0x3c] sm:$0x1]
        %v830 = vsel %vm697, 0, %v829
        %831 = vst [vmem:[#allocation2 + $0x3c] sm:$0x1] %v830
        %v832 = vld [vmem:[#allocation2 + $0x48] sm:$0x1]
        %v833 = vsel %vm697, 0, %v832
        %834 = vst [vmem:[#allocation2 + $0x48] sm:$0x1] %v833
        %v835 = vld [vmem:[#allocation2 + $0x54] sm:$0x1]
        %v836 = vsel %vm697, 0, %v835
        %837 = vst [vmem:[#allocation2 + $0x54] sm:$0x1] %v836
        %v838 = vld [vmem:[#allocation2 + $0x60] sm:$0x1]
        %v839 = vsel %vm697, 0, %v838
        %840 = vst [vmem:[#allocation2 + $0x60] sm:$0x1] %v839
        %v841 = vld [vmem:[#allocation2 + $0x6c] sm:$0x1]
        %v842 = vsel %vm697, 0, %v841
        %843 = vst [vmem:[#allocation2 + $0x6c] sm:$0x1] %v842
        %v844 = vld [vmem:[#allocation2 + $0x78] sm:$0x1]
        %v845 = vsel %vm697, 0, %v844
        %846 = vst [vmem:[#allocation2 + $0x78] sm:$0x1] %v845
        %v847 = vld [vmem:[#allocation2 + $0x84] sm:$0x1]
        %v848 = vsel %vm697, 0, %v847
        %849 = vst [vmem:[#allocation2 + $0x84] sm:$0x1] %v848
        %v850 = vld [vmem:[#allocation2 + $0x90] sm:$0x1]
        %v851 = vsel %vm697, 0, %v850
        %852 = vst [vmem:[#allocation2 + $0x90] sm:$0x1] %v851
        %v853 = vld [vmem:[#allocation2 + $0x9c] sm:$0x1]
        %v854 = vsel %vm697, 0, %v853
        %855 = vst [vmem:[#allocation2 + $0x9c] sm:$0x1] %v854
        %v856 = vld [vmem:[#allocation2 + $0xa8] sm:$0x1]
        %v857 = vsel %vm697, 0, %v856
        %858 = vst [vmem:[#allocation2 + $0xa8] sm:$0x1] %v857
        %v859 = vld [vmem:[#allocation2 + $0xb4] sm:$0x1]
        %v860 = vsel %vm697, 0, %v859
        %861 = vst [vmem:[#allocation2 + $0xb4] sm:$0x1] %v860
        %v862 = vld [vmem:[#allocation2 + $0xc0] sm:$0x1]
        %v863 = vsel %vm697, 0, %v862
        %864 = vst [vmem:[#allocation2 + $0xc0] sm:$0x1] %v863
        %v865 = vld [vmem:[#allocation2 + $0xcc] sm:$0x1]
        %v866 = vsel %vm697, 0, %v865
        %867 = vst [vmem:[#allocation2 + $0xcc] sm:$0x1] %v866
        %vm868 = vmand %vm696, %vm689
        %v869 = vld [vmem:[#allocation2 + $0x8] sm:$0x1]
        %v870 = vsel %vm868, 0, %v869
        %871 = vst [vmem:[#allocation2 + $0x8] sm:$0x1] %v870
        %v872 = vld [vmem:[#allocation2 + $0x14] sm:$0x1]
        %v873 = vsel %vm868, 0, %v872
        %874 = vst [vmem:[#allocation2 + $0x14] sm:$0x1] %v873
        %v875 = vld [vmem:[#allocation2 + $0x20] sm:$0x1]
        %v876 = vsel %vm868, 0, %v875
        %877 = vst [vmem:[#allocation2 + $0x20] sm:$0x1] %v876
        %v878 = vld [vmem:[#allocation2 + $0x2c] sm:$0x1]
        %v879 = vsel %vm868, 0, %v878
        %880 = vst [vmem:[#allocation2 + $0x2c] sm:$0x1] %v879
        %v881 = vld [vmem:[#allocation2 + $0x38] sm:$0x1]
        %v882 = vsel %vm868, 0, %v881
        %883 = vst [vmem:[#allocation2 + $0x38] sm:$0x1] %v882
        %v884 = vld [vmem:[#allocation2 + $0x44] sm:$0x1]
        %v885 = vsel %vm868, 0, %v884
        %886 = vst [vmem:[#allocation2 + $0x44] sm:$0x1] %v885
        %v887 = vld [vmem:[#allocation2 + $0x50] sm:$0x1]
        %v888 = vsel %vm868, 0, %v887
        %889 = vst [vmem:[#allocation2 + $0x50] sm:$0x1] %v888
        %v890 = vld [vmem:[#allocation2 + $0x5c] sm:$0x1]
        %v891 = vsel %vm868, 0, %v890
        %892 = vst [vmem:[#allocation2 + $0x5c] sm:$0x1] %v891
        %v893 = vld [vmem:[#allocation2 + $0x68] sm:$0x1]
        %v894 = vsel %vm868, 0, %v893
        %895 = vst [vmem:[#allocation2 + $0x68] sm:$0x1] %v894
        %v896 = vld [vmem:[#allocation2 + $0x74] sm:$0x1]
        %v897 = vsel %vm868, 0, %v896
        %898 = vst [vmem:[#allocation2 + $0x74] sm:$0x1] %v897
        %v899 = vld [vmem:[#allocation2 + $0x80] sm:$0x1]
        %v900 = vsel %vm868, 0, %v899
        %901 = vst [vmem:[#allocation2 + $0x80] sm:$0x1] %v900
        %v902 = vld [vmem:[#allocation2 + $0x8c] sm:$0x1]
        %v903 = vsel %vm868, 0, %v902
        %904 = vst [vmem:[#allocation2 + $0x8c] sm:$0x1] %v903
        %v905 = vld [vmem:[#allocation2 + $0x98] sm:$0x1]
        %v906 = vsel %vm868, 0, %v905
        %907 = vst [vmem:[#allocation2 + $0x98] sm:$0x1] %v906
        %v908 = vld [vmem:[#allocation2 + $0xa4] sm:$0x1]
        %v909 = vsel %vm868, 0, %v908
        %910 = vst [vmem:[#allocation2 + $0xa4] sm:$0x1] %v909
        %v911 = vld [vmem:[#allocation2 + $0xb0] sm:$0x1]
        %v912 = vsel %vm868, 0, %v911
        %913 = vst [vmem:[#allocation2 + $0xb0] sm:$0x1] %v912
        %v914 = vld [vmem:[#allocation2 + $0xbc] sm:$0x1]
        %v915 = vsel %vm868, 0, %v914
        %916 = vst [vmem:[#allocation2 + $0xbc] sm:$0x1] %v915
        %v917 = vld [vmem:[#allocation2 + $0xc8] sm:$0x1]
        %v918 = vsel %vm868, 0, %v917
        %919 = vst [vmem:[#allocation2 + $0xc8] sm:$0x1] %v918
        %v920 = vld [vmem:[#allocation2 + $0xd4] sm:$0x1]
        %v921 = vsel %vm868, 0, %v920
        %922 = vst [vmem:[#allocation2 + $0xd4] sm:$0x1] %v921
        %v923 = vld [vmem:[#allocation2] sm:$0xf]
        %v924 = vld [vmem:[#allocation2 + $0x4] sm:$0xf]
        %v925 = vld [vmem:[#allocation2 + $0xc] sm:$0xf]
        %v926 = vld [vmem:[#allocation2 + $0x10] sm:$0xf]
        %v927 = vld [vmem:[#allocation2 + $0x18] sm:$0xf]
        %v928 = vld [vmem:[#allocation2 + $0x1c] sm:$0xf]
        %v929 = vld [vmem:[#allocation2 + $0x24] sm:$0xf]
        %v930 = vld [vmem:[#allocation2 + $0x28] sm:$0xf]
        %v931 = vld [vmem:[#allocation2 + $0x30] sm:$0xf]
        %v932 = vld [vmem:[#allocation2 + $0x34] sm:$0xf]
        %v933 = vld [vmem:[#allocation2 + $0x3c] sm:$0xf]
        %v934 = vld [vmem:[#allocation2 + $0x40] sm:$0xf]
        %v935 = vld [vmem:[#allocation2 + $0x48] sm:$0xf]
        %v936 = vld [vmem:[#allocation2 + $0x4c] sm:$0xf]
        %v937 = vld [vmem:[#allocation2 + $0x54] sm:$0xf]
        %v938 = vld [vmem:[#allocation2 + $0x58] sm:$0xf]
        %v939 = vld [vmem:[#allocation2 + $0x60] sm:$0xf]
        %v940 = vld [vmem:[#allocation2 + $0x64] sm:$0xf]
        %v941 = vld [vmem:[#allocation2 + $0x6c] sm:$0xf]
        %v942 = vld [vmem:[#allocation2 + $0x70] sm:$0xf]
        %v943 = vld [vmem:[#allocation2 + $0x78] sm:$0xf]
        %v944 = vld [vmem:[#allocation2 + $0x7c] sm:$0xf]
        %v945 = vld [vmem:[#allocation2 + $0x84] sm:$0xf]
        %v946 = vld [vmem:[#allocation2 + $0x88] sm:$0xf]
        %v947 = vld [vmem:[#allocation2 + $0x90] sm:$0xf]
        %v948 = vld [vmem:[#allocation2 + $0x94] sm:$0xf]
        %v949 = vld [vmem:[#allocation2 + $0x9c] sm:$0xf]
        %v950 = vld [vmem:[#allocation2 + $0xa0] sm:$0xf]
        %v951 = vld [vmem:[#allocation2 + $0xa8] sm:$0xf]
        %v952 = vld [vmem:[#allocation2 + $0xac] sm:$0xf]
        %v953 = vld [vmem:[#allocation2 + $0xb4] sm:$0xf]
        %v954 = vld [vmem:[#allocation2 + $0xb8] sm:$0xf]
        %v955 = vld [vmem:[#allocation2 + $0x8] sm:$0x1]
        %v956 = vld [vmem:[#allocation2 + $0x14] sm:$0x1]
        %v957 = vld [vmem:[#allocation2 + $0x20] sm:$0x1]
        %v958 = vld [vmem:[#allocation2 + $0x2c] sm:$0x1]
        %v959 = vld [vmem:[#allocation2 + $0x38] sm:$0x1]
        %v960 = vld [vmem:[#allocation2 + $0x44] sm:$0x1]
        %v961 = vld [vmem:[#allocation2 + $0x50] sm:$0x1]
        %v962 = vld [vmem:[#allocation2 + $0x5c] sm:$0x1]
        %v963 = vld [vmem:[#allocation2 + $0x68] sm:$0x1]
        %v964 = vld [vmem:[#allocation2 + $0x74] sm:$0x1]
        %v965 = vld [vmem:[#allocation2 + $0x80] sm:$0x1]
        %v966 = vld [vmem:[#allocation2 + $0x8c] sm:$0x1]
        %v967 = vld [vmem:[#allocation2 + $0x98] sm:$0x1]
        %v968 = vld [vmem:[#allocation2 + $0xa4] sm:$0x1]
        %v969 = vld [vmem:[#allocation2 + $0xb0] sm:$0x1]
        %v970 = vld [vmem:[#allocation2 + $0xbc] sm:$0x1]
        %vm971 = vsmask.f32 3328
        %vm972 = vsmask.f32 7440
        %vm973 = vmor %vm971, %vm972
        %v975 = vshrl.u32 %v923, 16
        %v977 = vrot.slane %v975, 4
        %v978 = vshll.u32 %v923, 16
        %v980 = vrot.slane %v978, 5
        %v981 = vor.u32 %v977, %v980
        %v982 = vrot.slane %v981, 4
        %v984 = vshll.u32 %v924, 16
        %v986 = vrot.slane %v984, 5
        %v987 = vsel %vm973, %v982, %v986
        %v988 = vshrl.u32 %v924, 16
        %v990 = vrot.slane %v988, 4
        %v991 = vor.u32 %v990, %v986
        %v992 = vrot.slane %v991, 4
        %v994 = vshll.u32 %v955, 16
        %v996 = vrot.slane %v994, 5
        %v997 = vsel %vm973, %v992, %v996
        %v999 = vshrl.u32 %v925, 16
        %v1001 = vrot.slane %v999, 4
        %v1002 = vshll.u32 %v925, 16
        %v1004 = vrot.slane %v1002, 5
        %v1005 = vor.u32 %v1001, %v1004
        %v1006 = vrot.slane %v1005, 4
        %v1008 = vshll.u32 %v926, 16
        %v1010 = vrot.slane %v1008, 5
        %v1011 = vsel %vm973, %v1006, %v1010
        %v1012 = vshrl.u32 %v926, 16
        %v1014 = vrot.slane %v1012, 4
        %v1015 = vor.u32 %v1014, %v1010
        %v1016 = vrot.slane %v1015, 4
        %v1018 = vshll.u32 %v956, 16
        %v1020 = vrot.slane %v1018, 5
        %v1021 = vsel %vm973, %v1016, %v1020
        %v1023 = vshrl.u32 %v927, 16
        %v1025 = vrot.slane %v1023, 4
        %v1026 = vshll.u32 %v927, 16
        %v1028 = vrot.slane %v1026, 5
        %v1029 = vor.u32 %v1025, %v1028
        %v1030 = vrot.slane %v1029, 4
        %v1032 = vshll.u32 %v928, 16
        %v1034 = vrot.slane %v1032, 5
        %v1035 = vsel %vm973, %v1030, %v1034
        %v1036 = vshrl.u32 %v928, 16
        %v1038 = vrot.slane %v1036, 4
        %v1039 = vor.u32 %v1038, %v1034
        %v1040 = vrot.slane %v1039, 4
        %v1042 = vshll.u32 %v957, 16
        %v1044 = vrot.slane %v1042, 5
        %v1045 = vsel %vm973, %v1040, %v1044
        %v1047 = vshrl.u32 %v929, 16
        %v1049 = vrot.slane %v1047, 4
        %v1050 = vshll.u32 %v929, 16
        %v1052 = vrot.slane %v1050, 5
        %v1053 = vor.u32 %v1049, %v1052
        %v1054 = vrot.slane %v1053, 4
        %v1056 = vshll.u32 %v930, 16
        %v1058 = vrot.slane %v1056, 5
        %v1059 = vsel %vm973, %v1054, %v1058
        %v1060 = vshrl.u32 %v930, 16
        %v1062 = vrot.slane %v1060, 4
        %v1063 = vor.u32 %v1062, %v1058
        %v1064 = vrot.slane %v1063, 4
        %v1066 = vshll.u32 %v958, 16
        %v1068 = vrot.slane %v1066, 5
        %v1069 = vsel %vm973, %v1064, %v1068
        %v1071 = vshrl.u32 %v931, 16
        %v1073 = vrot.slane %v1071, 4
        %v1074 = vshll.u32 %v931, 16
        %v1076 = vrot.slane %v1074, 5
        %v1077 = vor.u32 %v1073, %v1076
        %v1078 = vrot.slane %v1077, 4
        %v1080 = vshll.u32 %v932, 16
        %v1082 = vrot.slane %v1080, 5
        %v1083 = vsel %vm973, %v1078, %v1082
        %v1084 = vshrl.u32 %v932, 16
        %v1086 = vrot.slane %v1084, 4
        %v1087 = vor.u32 %v1086, %v1082
        %v1088 = vrot.slane %v1087, 4
        %v1090 = vshll.u32 %v959, 16
        %v1092 = vrot.slane %v1090, 5
        %v1093 = vsel %vm973, %v1088, %v1092
        %v1095 = vshrl.u32 %v933, 16
        %v1097 = vrot.slane %v1095, 4
        %v1098 = vshll.u32 %v933, 16
        %v1100 = vrot.slane %v1098, 5
        %v1101 = vor.u32 %v1097, %v1100
        %v1102 = vrot.slane %v1101, 4
        %v1104 = vshll.u32 %v934, 16
        %v1106 = vrot.slane %v1104, 5
        %v1107 = vsel %vm973, %v1102, %v1106
        %v1108 = vshrl.u32 %v934, 16
        %v1110 = vrot.slane %v1108, 4
        %v1111 = vor.u32 %v1110, %v1106
        %v1112 = vrot.slane %v1111, 4
        %v1114 = vshll.u32 %v960, 16
        %v1116 = vrot.slane %v1114, 5
        %v1117 = vsel %vm973, %v1112, %v1116
        %v1119 = vshrl.u32 %v935, 16
        %v1121 = vrot.slane %v1119, 4
        %v1122 = vshll.u32 %v935, 16
        %v1124 = vrot.slane %v1122, 5
        %v1125 = vor.u32 %v1121, %v1124
        %v1126 = vrot.slane %v1125, 4
        %v1128 = vshll.u32 %v936, 16
        %v1130 = vrot.slane %v1128, 5
        %v1131 = vsel %vm973, %v1126, %v1130
        %v1132 = vshrl.u32 %v936, 16
        %v1134 = vrot.slane %v1132, 4
        %v1135 = vor.u32 %v1134, %v1130
        %v1136 = vrot.slane %v1135, 4
        %v1138 = vshll.u32 %v961, 16
        %v1140 = vrot.slane %v1138, 5
        %v1141 = vsel %vm973, %v1136, %v1140
        %v1143 = vshrl.u32 %v937, 16
        %v1145 = vrot.slane %v1143, 4
        %v1146 = vshll.u32 %v937, 16
        %v1148 = vrot.slane %v1146, 5
        %v1149 = vor.u32 %v1145, %v1148
        %v1150 = vrot.slane %v1149, 4
        %v1152 = vshll.u32 %v938, 16
        %v1154 = vrot.slane %v1152, 5
        %v1155 = vsel %vm973, %v1150, %v1154
        %v1156 = vshrl.u32 %v938, 16
        %v1158 = vrot.slane %v1156, 4
        %v1159 = vor.u32 %v1158, %v1154
        %v1160 = vrot.slane %v1159, 4
        %v1162 = vshll.u32 %v962, 16
        %v1164 = vrot.slane %v1162, 5
        %v1165 = vsel %vm973, %v1160, %v1164
        %v1167 = vshrl.u32 %v939, 16
        %v1169 = vrot.slane %v1167, 4
        %v1170 = vshll.u32 %v939, 16
        %v1172 = vrot.slane %v1170, 5
        %v1173 = vor.u32 %v1169, %v1172
        %v1174 = vrot.slane %v1173, 4
        %v1176 = vshll.u32 %v940, 16
        %v1178 = vrot.slane %v1176, 5
        %v1179 = vsel %vm973, %v1174, %v1178
        %v1180 = vshrl.u32 %v940, 16
        %v1182 = vrot.slane %v1180, 4
        %v1183 = vor.u32 %v1182, %v1178
        %v1184 = vrot.slane %v1183, 4
        %v1186 = vshll.u32 %v963, 16
        %v1188 = vrot.slane %v1186, 5
        %v1189 = vsel %vm973, %v1184, %v1188
        %v1191 = vshrl.u32 %v941, 16
        %v1193 = vrot.slane %v1191, 4
        %v1194 = vshll.u32 %v941, 16
        %v1196 = vrot.slane %v1194, 5
        %v1197 = vor.u32 %v1193, %v1196
        %v1198 = vrot.slane %v1197, 4
        %v1200 = vshll.u32 %v942, 16
        %v1202 = vrot.slane %v1200, 5
        %v1203 = vsel %vm973, %v1198, %v1202
        %v1204 = vshrl.u32 %v942, 16
        %v1206 = vrot.slane %v1204, 4
        %v1207 = vor.u32 %v1206, %v1202
        %v1208 = vrot.slane %v1207, 4
        %v1210 = vshll.u32 %v964, 16
        %v1212 = vrot.slane %v1210, 5
        %v1213 = vsel %vm973, %v1208, %v1212
        %v1215 = vshrl.u32 %v943, 16
        %v1217 = vrot.slane %v1215, 4
        %v1218 = vshll.u32 %v943, 16
        %v1220 = vrot.slane %v1218, 5
        %v1221 = vor.u32 %v1217, %v1220
        %v1222 = vrot.slane %v1221, 4
        %v1224 = vshll.u32 %v944, 16
        %v1226 = vrot.slane %v1224, 5
        %v1227 = vsel %vm973, %v1222, %v1226
        %v1228 = vshrl.u32 %v944, 16
        %v1230 = vrot.slane %v1228, 4
        %v1231 = vor.u32 %v1230, %v1226
        %v1232 = vrot.slane %v1231, 4
        %v1234 = vshll.u32 %v965, 16
        %v1236 = vrot.slane %v1234, 5
        %v1237 = vsel %vm973, %v1232, %v1236
        %v1239 = vshrl.u32 %v945, 16
        %v1241 = vrot.slane %v1239, 4
        %v1242 = vshll.u32 %v945, 16
        %v1244 = vrot.slane %v1242, 5
        %v1245 = vor.u32 %v1241, %v1244
        %v1246 = vrot.slane %v1245, 4
        %v1248 = vshll.u32 %v946, 16
        %v1250 = vrot.slane %v1248, 5
        %v1251 = vsel %vm973, %v1246, %v1250
        %v1252 = vshrl.u32 %v946, 16
        %v1254 = vrot.slane %v1252, 4
        %v1255 = vor.u32 %v1254, %v1250
        %v1256 = vrot.slane %v1255, 4
        %v1258 = vshll.u32 %v966, 16
        %v1260 = vrot.slane %v1258, 5
        %v1261 = vsel %vm973, %v1256, %v1260
        %v1263 = vshrl.u32 %v947, 16
        %v1265 = vrot.slane %v1263, 4
        %v1266 = vshll.u32 %v947, 16
        %v1268 = vrot.slane %v1266, 5
        %v1269 = vor.u32 %v1265, %v1268
        %v1270 = vrot.slane %v1269, 4
        %v1272 = vshll.u32 %v948, 16
        %v1274 = vrot.slane %v1272, 5
        %v1275 = vsel %vm973, %v1270, %v1274
        %v1276 = vshrl.u32 %v948, 16
        %v1278 = vrot.slane %v1276, 4
        %v1279 = vor.u32 %v1278, %v1274
        %v1280 = vrot.slane %v1279, 4
        %v1282 = vshll.u32 %v967, 16
        %v1284 = vrot.slane %v1282, 5
        %v1285 = vsel %vm973, %v1280, %v1284
        %v1287 = vshrl.u32 %v949, 16
        %v1289 = vrot.slane %v1287, 4
        %v1290 = vshll.u32 %v949, 16
        %v1292 = vrot.slane %v1290, 5
        %v1293 = vor.u32 %v1289, %v1292
        %v1294 = vrot.slane %v1293, 4
        %v1296 = vshll.u32 %v950, 16
        %v1298 = vrot.slane %v1296, 5
        %v1299 = vsel %vm973, %v1294, %v1298
        %v1300 = vshrl.u32 %v950, 16
        %v1302 = vrot.slane %v1300, 4
        %v1303 = vor.u32 %v1302, %v1298
        %v1304 = vrot.slane %v1303, 4
        %v1306 = vshll.u32 %v968, 16
        %v1308 = vrot.slane %v1306, 5
        %v1309 = vsel %vm973, %v1304, %v1308
        %v1311 = vshrl.u32 %v951, 16
        %v1313 = vrot.slane %v1311, 4
        %v1314 = vshll.u32 %v951, 16
        %v1316 = vrot.slane %v1314, 5
        %v1317 = vor.u32 %v1313, %v1316
        %v1318 = vrot.slane %v1317, 4
        %v1320 = vshll.u32 %v952, 16
        %v1322 = vrot.slane %v1320, 5
        %v1323 = vsel %vm973, %v1318, %v1322
        %v1324 = vshrl.u32 %v952, 16
        %v1326 = vrot.slane %v1324, 4
        %v1327 = vor.u32 %v1326, %v1322
        %v1328 = vrot.slane %v1327, 4
        %v1330 = vshll.u32 %v969, 16
        %v1332 = vrot.slane %v1330, 5
        %v1333 = vsel %vm973, %v1328, %v1332
        %v1335 = vshrl.u32 %v953, 16
        %v1337 = vrot.slane %v1335, 4
        %v1338 = vshll.u32 %v953, 16
        %v1340 = vrot.slane %v1338, 5
        %v1341 = vor.u32 %v1337, %v1340
        %v1342 = vrot.slane %v1341, 4
        %v1344 = vshll.u32 %v954, 16
        %v1346 = vrot.slane %v1344, 5
        %v1347 = vsel %vm973, %v1342, %v1346
        %v1348 = vshrl.u32 %v954, 16
        %v1350 = vrot.slane %v1348, 4
        %v1351 = vor.u32 %v1350, %v1346
        %v1352 = vrot.slane %v1351, 4
        %v1354 = vshll.u32 %v970, 16
        %v1356 = vrot.slane %v1354, 5
        %v1357 = vsel %vm973, %v1352, %v1356
        %v1358 = vld [vmem:[#allocation2] sm:$0xe]
        %v1359 = vld [vmem:[#allocation2 + $0xc] sm:$0xe]
        %v1360 = vld [vmem:[#allocation2 + $0x18] sm:$0xe]
        %v1361 = vld [vmem:[#allocation2 + $0x24] sm:$0xe]
        %v1362 = vld [vmem:[#allocation2 + $0x30] sm:$0xe]
        %v1363 = vld [vmem:[#allocation2 + $0x3c] sm:$0xe]
        %v1364 = vld [vmem:[#allocation2 + $0x48] sm:$0xe]
        %v1365 = vld [vmem:[#allocation2 + $0x54] sm:$0xe]
        %v1366 = vld [vmem:[#allocation2 + $0x60] sm:$0xe]
        %v1367 = vld [vmem:[#allocation2 + $0x6c] sm:$0xe]
        %v1368 = vld [vmem:[#allocation2 + $0x78] sm:$0xe]
        %v1369 = vld [vmem:[#allocation2 + $0x84] sm:$0xe]
        %v1370 = vld [vmem:[#allocation2 + $0x90] sm:$0xe]
        %v1371 = vld [vmem:[#allocation2 + $0x9c] sm:$0xe]
        %v1372 = vld [vmem:[#allocation2 + $0xa8] sm:$0xe]
        %v1373 = vld [vmem:[#allocation2 + $0xb4] sm:$0xe]
        %vm1422 = vcmask 1042432
        %vm1423 = vcmask 1046532
        %vm1424 = vmor %vm1422, %vm1423
        %v1425 = vrot.slane %v1358, 5
        %v1426 = vrot.slane %v1425, 4
        %v1427 = vrot.slane %v924, 5
        %v1428 = vsel %vm1424, %v1426, %v1427
        %v1429 = vrot.slane %v1427, 4
        %v1430 = vrot.slane %v955, 5
        %v1431 = vsel %vm1424, %v1429, %v1430
        %v1432 = vrot.slane %v1359, 5
        %v1433 = vrot.slane %v1432, 4
        %v1434 = vrot.slane %v926, 5
        %v1435 = vsel %vm1424, %v1433, %v1434
        %v1436 = vrot.slane %v1434, 4
        %v1437 = vrot.slane %v956, 5
        %v1438 = vsel %vm1424, %v1436, %v1437
        %v1439 = vrot.slane %v1360, 5
        %v1440 = vrot.slane %v1439, 4
        %v1441 = vrot.slane %v928, 5
        %v1442 = vsel %vm1424, %v1440, %v1441
        %v1443 = vrot.slane %v1441, 4
        %v1444 = vrot.slane %v957, 5
        %v1445 = vsel %vm1424, %v1443, %v1444
        %v1446 = vrot.slane %v1361, 5
        %v1447 = vrot.slane %v1446, 4
        %v1448 = vrot.slane %v930, 5
        %v1449 = vsel %vm1424, %v1447, %v1448
        %v1450 = vrot.slane %v1448, 4
        %v1451 = vrot.slane %v958, 5
        %v1452 = vsel %vm1424, %v1450, %v1451
        %v1453 = vrot.slane %v1362, 5
        %v1454 = vrot.slane %v1453, 4
        %v1455 = vrot.slane %v932, 5
        %v1456 = vsel %vm1424, %v1454, %v1455
        %v1457 = vrot.slane %v1455, 4
        %v1458 = vrot.slane %v959, 5
        %v1459 = vsel %vm1424, %v1457, %v1458
        %v1460 = vrot.slane %v1363, 5
        %v1461 = vrot.slane %v1460, 4
        %v1462 = vrot.slane %v934, 5
        %v1463 = vsel %vm1424, %v1461, %v1462
        %v1464 = vrot.slane %v1462, 4
        %v1465 = vrot.slane %v960, 5
        %v1466 = vsel %vm1424, %v1464, %v1465
        %v1467 = vrot.slane %v1364, 5
        %v1468 = vrot.slane %v1467, 4
        %v1469 = vrot.slane %v936, 5
        %v1470 = vsel %vm1424, %v1468, %v1469
        %v1471 = vrot.slane %v1469, 4
        %v1472 = vrot.slane %v961, 5
        %v1473 = vsel %vm1424, %v1471, %v1472
        %v1474 = vrot.slane %v1365, 5
        %v1475 = vrot.slane %v1474, 4
        %v1476 = vrot.slane %v938, 5
        %v1477 = vsel %vm1424, %v1475, %v1476
        %v1478 = vrot.slane %v1476, 4
        %v1479 = vrot.slane %v962, 5
        %v1480 = vsel %vm1424, %v1478, %v1479
        %v1481 = vrot.slane %v1366, 5
        %v1482 = vrot.slane %v1481, 4
        %v1483 = vrot.slane %v940, 5
        %v1484 = vsel %vm1424, %v1482, %v1483
        %v1485 = vrot.slane %v1483, 4
        %v1486 = vrot.slane %v963, 5
        %v1487 = vsel %vm1424, %v1485, %v1486
        %v1488 = vrot.slane %v1367, 5
        %v1489 = vrot.slane %v1488, 4
        %v1490 = vrot.slane %v942, 5
        %v1491 = vsel %vm1424, %v1489, %v1490
        %v1492 = vrot.slane %v1490, 4
        %v1493 = vrot.slane %v964, 5
        %v1494 = vsel %vm1424, %v1492, %v1493
        %v1495 = vrot.slane %v1368, 5
        %v1496 = vrot.slane %v1495, 4
        %v1497 = vrot.slane %v944, 5
        %v1498 = vsel %vm1424, %v1496, %v1497
        %v1499 = vrot.slane %v1497, 4
        %v1500 = vrot.slane %v965, 5
        %v1501 = vsel %vm1424, %v1499, %v1500
        %v1502 = vrot.slane %v1369, 5
        %v1503 = vrot.slane %v1502, 4
        %v1504 = vrot.slane %v946, 5
        %v1505 = vsel %vm1424, %v1503, %v1504
        %v1506 = vrot.slane %v1504, 4
        %v1507 = vrot.slane %v966, 5
        %v1508 = vsel %vm1424, %v1506, %v1507
        %v1509 = vrot.slane %v1370, 5
        %v1510 = vrot.slane %v1509, 4
        %v1511 = vrot.slane %v948, 5
        %v1512 = vsel %vm1424, %v1510, %v1511
        %v1513 = vrot.slane %v1511, 4
        %v1514 = vrot.slane %v967, 5
        %v1515 = vsel %vm1424, %v1513, %v1514
        %v1516 = vrot.slane %v1371, 5
        %v1517 = vrot.slane %v1516, 4
        %v1518 = vrot.slane %v950, 5
        %v1519 = vsel %vm1424, %v1517, %v1518
        %v1520 = vrot.slane %v1518, 4
        %v1521 = vrot.slane %v968, 5
        %v1522 = vsel %vm1424, %v1520, %v1521
        %v1523 = vrot.slane %v1372, 5
        %v1524 = vrot.slane %v1523, 4
        %v1525 = vrot.slane %v952, 5
        %v1526 = vsel %vm1424, %v1524, %v1525
        %v1527 = vrot.slane %v1525, 4
        %v1528 = vrot.slane %v969, 5
        %v1529 = vsel %vm1424, %v1527, %v1528
        %v1530 = vrot.slane %v1373, 5
        %v1531 = vrot.slane %v1530, 4
        %v1532 = vrot.slane %v954, 5
        %v1533 = vsel %vm1424, %v1531, %v1532
        %v1534 = vrot.slane %v1532, 4
        %v1535 = vrot.slane %v970, 5
        %v1536 = vsel %vm1424, %v1534, %v1535
        %v1537 = vld [vmem:[%s687] sm:$0xf]
        %v1538 = vld [vmem:[%s687 + $0x4] sm:$0xf]
        %v1539 = vld [vmem:[%s687 + $0xc] sm:$0xf]
        %v1540 = vld [vmem:[%s687 + $0x10] sm:$0xf]
        %v1541 = vld [vmem:[%s687 + $0x18] sm:$0xf]
        %v1542 = vld [vmem:[%s687 + $0x1c] sm:$0xf]
        %v1543 = vld [vmem:[%s687 + $0x24] sm:$0xf]
        %v1544 = vld [vmem:[%s687 + $0x28] sm:$0xf]
        %v1545 = vld [vmem:[%s687 + $0x30] sm:$0xf]
        %v1546 = vld [vmem:[%s687 + $0x34] sm:$0xf]
        %v1547 = vld [vmem:[%s687 + $0x3c] sm:$0xf]
        %v1548 = vld [vmem:[%s687 + $0x40] sm:$0xf]
        %v1549 = vld [vmem:[%s687 + $0x48] sm:$0xf]
        %v1550 = vld [vmem:[%s687 + $0x4c] sm:$0xf]
        %v1551 = vld [vmem:[%s687 + $0x54] sm:$0xf]
        %v1552 = vld [vmem:[%s687 + $0x58] sm:$0xf]
        %v1553 = vld [vmem:[%s687 + $0x60] sm:$0xf]
        %v1554 = vld [vmem:[%s687 + $0x64] sm:$0xf]
        %v1555 = vld [vmem:[%s687 + $0x6c] sm:$0xf]
        %v1556 = vld [vmem:[%s687 + $0x70] sm:$0xf]
        %v1557 = vld [vmem:[%s687 + $0x78] sm:$0xf]
        %v1558 = vld [vmem:[%s687 + $0x7c] sm:$0xf]
        %v1559 = vld [vmem:[%s687 + $0x84] sm:$0xf]
        %v1560 = vld [vmem:[%s687 + $0x88] sm:$0xf]
        %v1561 = vld [vmem:[%s687 + $0x90] sm:$0xf]
        %v1562 = vld [vmem:[%s687 + $0x94] sm:$0xf]
        %v1563 = vld [vmem:[%s687 + $0x9c] sm:$0xf]
        %v1564 = vld [vmem:[%s687 + $0xa0] sm:$0xf]
        %v1565 = vld [vmem:[%s687 + $0xa8] sm:$0xf]
        %v1566 = vld [vmem:[%s687 + $0xac] sm:$0xf]
        %v1567 = vld [vmem:[%s687 + $0xb4] sm:$0xf]
        %v1568 = vld [vmem:[%s687 + $0xb8] sm:$0xf]
        %v1569 = vld [vmem:[%s687 + $0x8] sm:$0x1]
        %v1570 = vld [vmem:[%s687 + $0x14] sm:$0x1]
        %v1571 = vld [vmem:[%s687 + $0x20] sm:$0x1]
        %v1572 = vld [vmem:[%s687 + $0x2c] sm:$0x1]
        %v1573 = vld [vmem:[%s687 + $0x38] sm:$0x1]
        %v1574 = vld [vmem:[%s687 + $0x44] sm:$0x1]
        %v1575 = vld [vmem:[%s687 + $0x50] sm:$0x1]
        %v1576 = vld [vmem:[%s687 + $0x5c] sm:$0x1]
        %v1577 = vld [vmem:[%s687 + $0x68] sm:$0x1]
        %v1578 = vld [vmem:[%s687 + $0x74] sm:$0x1]
        %v1579 = vld [vmem:[%s687 + $0x80] sm:$0x1]
        %v1580 = vld [vmem:[%s687 + $0x8c] sm:$0x1]
        %v1581 = vld [vmem:[%s687 + $0x98] sm:$0x1]
        %v1582 = vld [vmem:[%s687 + $0xa4] sm:$0x1]
        %v1583 = vld [vmem:[%s687 + $0xb0] sm:$0x1]
        %v1584 = vld [vmem:[%s687 + $0xbc] sm:$0x1]
        %v1586 = vshrl.u32 %v1537, 16
        %v1588 = vrot.slane %v1586, 4
        %v1589 = vshll.u32 %v1537, 16
        %v1591 = vrot.slane %v1589, 5
        %v1592 = vor.u32 %v1588, %v1591
        %v1593 = vrot.slane %v1592, 4
        %v1595 = vshll.u32 %v1538, 16
        %v1597 = vrot.slane %v1595, 5
        %v1598 = vsel %vm973, %v1593, %v1597
        %v1599 = vshrl.u32 %v1538, 16
        %v1601 = vrot.slane %v1599, 4
        %v1602 = vor.u32 %v1601, %v1597
        %v1603 = vrot.slane %v1602, 4
        %v1605 = vshll.u32 %v1569, 16
        %v1607 = vrot.slane %v1605, 5
        %v1608 = vsel %vm973, %v1603, %v1607
        %v1610 = vshrl.u32 %v1539, 16
        %v1612 = vrot.slane %v1610, 4
        %v1613 = vshll.u32 %v1539, 16
        %v1615 = vrot.slane %v1613, 5
        %v1616 = vor.u32 %v1612, %v1615
        %v1617 = vrot.slane %v1616, 4
        %v1619 = vshll.u32 %v1540, 16
        %v1621 = vrot.slane %v1619, 5
        %v1622 = vsel %vm973, %v1617, %v1621
        %v1623 = vshrl.u32 %v1540, 16
        %v1625 = vrot.slane %v1623, 4
        %v1626 = vor.u32 %v1625, %v1621
        %v1627 = vrot.slane %v1626, 4
        %v1629 = vshll.u32 %v1570, 16
        %v1631 = vrot.slane %v1629, 5
        %v1632 = vsel %vm973, %v1627, %v1631
        %v1634 = vshrl.u32 %v1541, 16
        %v1636 = vrot.slane %v1634, 4
        %v1637 = vshll.u32 %v1541, 16
        %v1639 = vrot.slane %v1637, 5
        %v1640 = vor.u32 %v1636, %v1639
        %v1641 = vrot.slane %v1640, 4
        %v1643 = vshll.u32 %v1542, 16
        %v1645 = vrot.slane %v1643, 5
        %v1646 = vsel %vm973, %v1641, %v1645
        %v1647 = vshrl.u32 %v1542, 16
        %v1649 = vrot.slane %v1647, 4
        %v1650 = vor.u32 %v1649, %v1645
        %v1651 = vrot.slane %v1650, 4
        %v1653 = vshll.u32 %v1571, 16
        %v1655 = vrot.slane %v1653, 5
        %v1656 = vsel %vm973, %v1651, %v1655
        %v1658 = vshrl.u32 %v1543, 16
        %v1660 = vrot.slane %v1658, 4
        %v1661 = vshll.u32 %v1543, 16
        %v1663 = vrot.slane %v1661, 5
        %v1664 = vor.u32 %v1660, %v1663
        %v1665 = vrot.slane %v1664, 4
        %v1667 = vshll.u32 %v1544, 16
        %v1669 = vrot.slane %v1667, 5
        %v1670 = vsel %vm973, %v1665, %v1669
        %v1671 = vshrl.u32 %v1544, 16
        %v1673 = vrot.slane %v1671, 4
        %v1674 = vor.u32 %v1673, %v1669
        %v1675 = vrot.slane %v1674, 4
        %v1677 = vshll.u32 %v1572, 16
        %v1679 = vrot.slane %v1677, 5
        %v1680 = vsel %vm973, %v1675, %v1679
        %v1682 = vshrl.u32 %v1545, 16
        %v1684 = vrot.slane %v1682, 4
        %v1685 = vshll.u32 %v1545, 16
        %v1687 = vrot.slane %v1685, 5
        %v1688 = vor.u32 %v1684, %v1687
        %v1689 = vrot.slane %v1688, 4
        %v1691 = vshll.u32 %v1546, 16
        %v1693 = vrot.slane %v1691, 5
        %v1694 = vsel %vm973, %v1689, %v1693
        %v1695 = vshrl.u32 %v1546, 16
        %v1697 = vrot.slane %v1695, 4
        %v1698 = vor.u32 %v1697, %v1693
        %v1699 = vrot.slane %v1698, 4
        %v1701 = vshll.u32 %v1573, 16
        %v1703 = vrot.slane %v1701, 5
        %v1704 = vsel %vm973, %v1699, %v1703
        %v1706 = vshrl.u32 %v1547, 16
        %v1708 = vrot.slane %v1706, 4
        %v1709 = vshll.u32 %v1547, 16
        %v1711 = vrot.slane %v1709, 5
        %v1712 = vor.u32 %v1708, %v1711
        %v1713 = vrot.slane %v1712, 4
        %v1715 = vshll.u32 %v1548, 16
        %v1717 = vrot.slane %v1715, 5
        %v1718 = vsel %vm973, %v1713, %v1717
        %v1719 = vshrl.u32 %v1548, 16
        %v1721 = vrot.slane %v1719, 4
        %v1722 = vor.u32 %v1721, %v1717
        %v1723 = vrot.slane %v1722, 4
        %v1725 = vshll.u32 %v1574, 16
        %v1727 = vrot.slane %v1725, 5
        %v1728 = vsel %vm973, %v1723, %v1727
        %v1730 = vshrl.u32 %v1549, 16
        %v1732 = vrot.slane %v1730, 4
        %v1733 = vshll.u32 %v1549, 16
        %v1735 = vrot.slane %v1733, 5
        %v1736 = vor.u32 %v1732, %v1735
        %v1737 = vrot.slane %v1736, 4
        %v1739 = vshll.u32 %v1550, 16
        %v1741 = vrot.slane %v1739, 5
        %v1742 = vsel %vm973, %v1737, %v1741
        %v1743 = vshrl.u32 %v1550, 16
        %v1745 = vrot.slane %v1743, 4
        %v1746 = vor.u32 %v1745, %v1741
        %v1747 = vrot.slane %v1746, 4
        %v1749 = vshll.u32 %v1575, 16
        %v1751 = vrot.slane %v1749, 5
        %v1752 = vsel %vm973, %v1747, %v1751
        %v1754 = vshrl.u32 %v1551, 16
        %v1756 = vrot.slane %v1754, 4
        %v1757 = vshll.u32 %v1551, 16
        %v1759 = vrot.slane %v1757, 5
        %v1760 = vor.u32 %v1756, %v1759
        %v1761 = vrot.slane %v1760, 4
        %v1763 = vshll.u32 %v1552, 16
        %v1765 = vrot.slane %v1763, 5
        %v1766 = vsel %vm973, %v1761, %v1765
        %v1767 = vshrl.u32 %v1552, 16
        %v1769 = vrot.slane %v1767, 4
        %v1770 = vor.u32 %v1769, %v1765
        %v1771 = vrot.slane %v1770, 4
        %v1773 = vshll.u32 %v1576, 16
        %v1775 = vrot.slane %v1773, 5
        %v1776 = vsel %vm973, %v1771, %v1775
        %v1778 = vshrl.u32 %v1553, 16
        %v1780 = vrot.slane %v1778, 4
        %v1781 = vshll.u32 %v1553, 16
        %v1783 = vrot.slane %v1781, 5
        %v1784 = vor.u32 %v1780, %v1783
        %v1785 = vrot.slane %v1784, 4
        %v1787 = vshll.u32 %v1554, 16
        %v1789 = vrot.slane %v1787, 5
        %v1790 = vsel %vm973, %v1785, %v1789
        %v1791 = vshrl.u32 %v1554, 16
        %v1793 = vrot.slane %v1791, 4
        %v1794 = vor.u32 %v1793, %v1789
        %v1795 = vrot.slane %v1794, 4
        %v1797 = vshll.u32 %v1577, 16
        %v1799 = vrot.slane %v1797, 5
        %v1800 = vsel %vm973, %v1795, %v1799
        %v1802 = vshrl.u32 %v1555, 16
        %v1804 = vrot.slane %v1802, 4
        %v1805 = vshll.u32 %v1555, 16
        %v1807 = vrot.slane %v1805, 5
        %v1808 = vor.u32 %v1804, %v1807
        %v1809 = vrot.slane %v1808, 4
        %v1811 = vshll.u32 %v1556, 16
        %v1813 = vrot.slane %v1811, 5
        %v1814 = vsel %vm973, %v1809, %v1813
        %v1815 = vshrl.u32 %v1556, 16
        %v1817 = vrot.slane %v1815, 4
        %v1818 = vor.u32 %v1817, %v1813
        %v1819 = vrot.slane %v1818, 4
        %v1821 = vshll.u32 %v1578, 16
        %v1823 = vrot.slane %v1821, 5
        %v1824 = vsel %vm973, %v1819, %v1823
        %v1826 = vshrl.u32 %v1557, 16
        %v1828 = vrot.slane %v1826, 4
        %v1829 = vshll.u32 %v1557, 16
        %v1831 = vrot.slane %v1829, 5
        %v1832 = vor.u32 %v1828, %v1831
        %v1833 = vrot.slane %v1832, 4
        %v1835 = vshll.u32 %v1558, 16
        %v1837 = vrot.slane %v1835, 5
        %v1838 = vsel %vm973, %v1833, %v1837
        %v1839 = vshrl.u32 %v1558, 16
        %v1841 = vrot.slane %v1839, 4
        %v1842 = vor.u32 %v1841, %v1837
        %v1843 = vrot.slane %v1842, 4
        %v1845 = vshll.u32 %v1579, 16
        %v1847 = vrot.slane %v1845, 5
        %v1848 = vsel %vm973, %v1843, %v1847
        %v1850 = vshrl.u32 %v1559, 16
        %v1852 = vrot.slane %v1850, 4
        %v1853 = vshll.u32 %v1559, 16
        %v1855 = vrot.slane %v1853, 5
        %v1856 = vor.u32 %v1852, %v1855
        %v1857 = vrot.slane %v1856, 4
        %v1859 = vshll.u32 %v1560, 16
        %v1861 = vrot.slane %v1859, 5
        %v1862 = vsel %vm973, %v1857, %v1861
        %v1863 = vshrl.u32 %v1560, 16
        %v1865 = vrot.slane %v1863, 4
        %v1866 = vor.u32 %v1865, %v1861
        %v1867 = vrot.slane %v1866, 4
        %v1869 = vshll.u32 %v1580, 16
        %v1871 = vrot.slane %v1869, 5
        %v1872 = vsel %vm973, %v1867, %v1871
        %v1874 = vshrl.u32 %v1561, 16
        %v1876 = vrot.slane %v1874, 4
        %v1877 = vshll.u32 %v1561, 16
        %v1879 = vrot.slane %v1877, 5
        %v1880 = vor.u32 %v1876, %v1879
        %v1881 = vrot.slane %v1880, 4
        %v1883 = vshll.u32 %v1562, 16
        %v1885 = vrot.slane %v1883, 5
        %v1886 = vsel %vm973, %v1881, %v1885
        %v1887 = vshrl.u32 %v1562, 16
        %v1889 = vrot.slane %v1887, 4
        %v1890 = vor.u32 %v1889, %v1885
        %v1891 = vrot.slane %v1890, 4
        %v1893 = vshll.u32 %v1581, 16
        %v1895 = vrot.slane %v1893, 5
        %v1896 = vsel %vm973, %v1891, %v1895
        %v1898 = vshrl.u32 %v1563, 16
        %v1900 = vrot.slane %v1898, 4
        %v1901 = vshll.u32 %v1563, 16
        %v1903 = vrot.slane %v1901, 5
        %v1904 = vor.u32 %v1900, %v1903
        %v1905 = vrot.slane %v1904, 4
        %v1907 = vshll.u32 %v1564, 16
        %v1909 = vrot.slane %v1907, 5
        %v1910 = vsel %vm973, %v1905, %v1909
        %v1911 = vshrl.u32 %v1564, 16
        %v1913 = vrot.slane %v1911, 4
        %v1914 = vor.u32 %v1913, %v1909
        %v1915 = vrot.slane %v1914, 4
        %v1917 = vshll.u32 %v1582, 16
        %v1919 = vrot.slane %v1917, 5
        %v1920 = vsel %vm973, %v1915, %v1919
        %v1922 = vshrl.u32 %v1565, 16
        %v1924 = vrot.slane %v1922, 4
        %v1925 = vshll.u32 %v1565, 16
        %v1927 = vrot.slane %v1925, 5
        %v1928 = vor.u32 %v1924, %v1927
        %v1929 = vrot.slane %v1928, 4
        %v1931 = vshll.u32 %v1566, 16
        %v1933 = vrot.slane %v1931, 5
        %v1934 = vsel %vm973, %v1929, %v1933
        %v1935 = vshrl.u32 %v1566, 16
        %v1937 = vrot.slane %v1935, 4
        %v1938 = vor.u32 %v1937, %v1933
        %v1939 = vrot.slane %v1938, 4
        %v1941 = vshll.u32 %v1583, 16
        %v1943 = vrot.slane %v1941, 5
        %v1944 = vsel %vm973, %v1939, %v1943
        %v1946 = vshrl.u32 %v1567, 16
        %v1948 = vrot.slane %v1946, 4
        %v1949 = vshll.u32 %v1567, 16
        %v1951 = vrot.slane %v1949, 5
        %v1952 = vor.u32 %v1948, %v1951
        %v1953 = vrot.slane %v1952, 4
        %v1955 = vshll.u32 %v1568, 16
        %v1957 = vrot.slane %v1955, 5
        %v1958 = vsel %vm973, %v1953, %v1957
        %v1959 = vshrl.u32 %v1568, 16
        %v1961 = vrot.slane %v1959, 4
        %v1962 = vor.u32 %v1961, %v1957
        %v1963 = vrot.slane %v1962, 4
        %v1965 = vshll.u32 %v1584, 16
        %v1967 = vrot.slane %v1965, 5
        %v1968 = vsel %vm973, %v1963, %v1967
        %v1969 = vld [vmem:[%s687] sm:$0xe]
        %v1970 = vld [vmem:[%s687 + $0xc] sm:$0xe]
        %v1971 = vld [vmem:[%s687 + $0x18] sm:$0xe]
        %v1972 = vld [vmem:[%s687 + $0x24] sm:$0xe]
        %v1973 = vld [vmem:[%s687 + $0x30] sm:$0xe]
        %v1974 = vld [vmem:[%s687 + $0x3c] sm:$0xe]
        %v1975 = vld [vmem:[%s687 + $0x48] sm:$0xe]
        %v1976 = vld [vmem:[%s687 + $0x54] sm:$0xe]
        %v1977 = vld [vmem:[%s687 + $0x60] sm:$0xe]
        %v1978 = vld [vmem:[%s687 + $0x6c] sm:$0xe]
        %v1979 = vld [vmem:[%s687 + $0x78] sm:$0xe]
        %v1980 = vld [vmem:[%s687 + $0x84] sm:$0xe]
        %v1981 = vld [vmem:[%s687 + $0x90] sm:$0xe]
        %v1982 = vld [vmem:[%s687 + $0x9c] sm:$0xe]
        %v1983 = vld [vmem:[%s687 + $0xa8] sm:$0xe]
        %v1984 = vld [vmem:[%s687 + $0xb4] sm:$0xe]
        %v2033 = vrot.slane %v1969, 5
        %v2034 = vrot.slane %v2033, 4
        %v2035 = vrot.slane %v1538, 5
        %v2036 = vsel %vm1424, %v2034, %v2035
        %v2037 = vrot.slane %v2035, 4
        %v2038 = vrot.slane %v1569, 5
        %v2039 = vsel %vm1424, %v2037, %v2038
        %v2040 = vrot.slane %v1970, 5
        %v2041 = vrot.slane %v2040, 4
        %v2042 = vrot.slane %v1540, 5
        %v2043 = vsel %vm1424, %v2041, %v2042
        %v2044 = vrot.slane %v2042, 4
        %v2045 = vrot.slane %v1570, 5
        %v2046 = vsel %vm1424, %v2044, %v2045
        %v2047 = vrot.slane %v1971, 5
        %v2048 = vrot.slane %v2047, 4
        %v2049 = vrot.slane %v1542, 5
        %v2050 = vsel %vm1424, %v2048, %v2049
        %v2051 = vrot.slane %v2049, 4
        %v2052 = vrot.slane %v1571, 5
        %v2053 = vsel %vm1424, %v2051, %v2052
        %v2054 = vrot.slane %v1972, 5
        %v2055 = vrot.slane %v2054, 4
        %v2056 = vrot.slane %v1544, 5
        %v2057 = vsel %vm1424, %v2055, %v2056
        %v2058 = vrot.slane %v2056, 4
        %v2059 = vrot.slane %v1572, 5
        %v2060 = vsel %vm1424, %v2058, %v2059
        %v2061 = vrot.slane %v1973, 5
        %v2062 = vrot.slane %v2061, 4
        %v2063 = vrot.slane %v1546, 5
        %v2064 = vsel %vm1424, %v2062, %v2063
        %v2065 = vrot.slane %v2063, 4
        %v2066 = vrot.slane %v1573, 5
        %v2067 = vsel %vm1424, %v2065, %v2066
        %v2068 = vrot.slane %v1974, 5
        %v2069 = vrot.slane %v2068, 4
        %v2070 = vrot.slane %v1548, 5
        %v2071 = vsel %vm1424, %v2069, %v2070
        %v2072 = vrot.slane %v2070, 4
        %v2073 = vrot.slane %v1574, 5
        %v2074 = vsel %vm1424, %v2072, %v2073
        %v2075 = vrot.slane %v1975, 5
        %v2076 = vrot.slane %v2075, 4
        %v2077 = vrot.slane %v1550, 5
        %v2078 = vsel %vm1424, %v2076, %v2077
        %v2079 = vrot.slane %v2077, 4
        %v2080 = vrot.slane %v1575, 5
        %v2081 = vsel %vm1424, %v2079, %v2080
        %v2082 = vrot.slane %v1976, 5
        %v2083 = vrot.slane %v2082, 4
        %v2084 = vrot.slane %v1552, 5
        %v2085 = vsel %vm1424, %v2083, %v2084
        %v2086 = vrot.slane %v2084, 4
        %v2087 = vrot.slane %v1576, 5
        %v2088 = vsel %vm1424, %v2086, %v2087
        %v2089 = vrot.slane %v1977, 5
        %v2090 = vrot.slane %v2089, 4
        %v2091 = vrot.slane %v1554, 5
        %v2092 = vsel %vm1424, %v2090, %v2091
        %v2093 = vrot.slane %v2091, 4
        %v2094 = vrot.slane %v1577, 5
        %v2095 = vsel %vm1424, %v2093, %v2094
        %v2096 = vrot.slane %v1978, 5
        %v2097 = vrot.slane %v2096, 4
        %v2098 = vrot.slane %v1556, 5
        %v2099 = vsel %vm1424, %v2097, %v2098
        %v2100 = vrot.slane %v2098, 4
        %v2101 = vrot.slane %v1578, 5
        %v2102 = vsel %vm1424, %v2100, %v2101
        %v2103 = vrot.slane %v1979, 5
        %v2104 = vrot.slane %v2103, 4
        %v2105 = vrot.slane %v1558, 5
        %v2106 = vsel %vm1424, %v2104, %v2105
        %v2107 = vrot.slane %v2105, 4
        %v2108 = vrot.slane %v1579, 5
        %v2109 = vsel %vm1424, %v2107, %v2108
        %v2110 = vrot.slane %v1980, 5
        %v2111 = vrot.slane %v2110, 4
        %v2112 = vrot.slane %v1560, 5
        %v2113 = vsel %vm1424, %v2111, %v2112
        %v2114 = vrot.slane %v2112, 4
        %v2115 = vrot.slane %v1580, 5
        %v2116 = vsel %vm1424, %v2114, %v2115
        %v2117 = vrot.slane %v1981, 5
        %v2118 = vrot.slane %v2117, 4
        %v2119 = vrot.slane %v1562, 5
        %v2120 = vsel %vm1424, %v2118, %v2119
        %v2121 = vrot.slane %v2119, 4
        %v2122 = vrot.slane %v1581, 5
        %v2123 = vsel %vm1424, %v2121, %v2122
        %v2124 = vrot.slane %v1982, 5
        %v2125 = vrot.slane %v2124, 4
        %v2126 = vrot.slane %v1564, 5
        %v2127 = vsel %vm1424, %v2125, %v2126
        %v2128 = vrot.slane %v2126, 4
        %v2129 = vrot.slane %v1582, 5
        %v2130 = vsel %vm1424, %v2128, %v2129
        %v2131 = vrot.slane %v1983, 5
        %v2132 = vrot.slane %v2131, 4
        %v2133 = vrot.slane %v1566, 5
        %v2134 = vsel %vm1424, %v2132, %v2133
        %v2135 = vrot.slane %v2133, 4
        %v2136 = vrot.slane %v1583, 5
        %v2137 = vsel %vm1424, %v2135, %v2136
        %v2138 = vrot.slane %v1984, 5
        %v2139 = vrot.slane %v2138, 4
        %v2140 = vrot.slane %v1568, 5
        %v2141 = vsel %vm1424, %v2139, %v2140
        %v2142 = vrot.slane %v2140, 4
        %v2143 = vrot.slane %v1584, 5
        %v2144 = vsel %vm1424, %v2142, %v2143
        %s2145 = scalar_lea.vmem [#allocation2], 24
        %v2146 = vld [vmem:[%s2145] sm:$0xf]
        %v2147 = vld [vmem:[%s2145 + $0x4] sm:$0xf]
        %v2148 = vld [vmem:[%s2145 + $0xc] sm:$0xf]
        %v2149 = vld [vmem:[%s2145 + $0x10] sm:$0xf]
        %v2150 = vld [vmem:[%s2145 + $0x18] sm:$0xf]
        %v2151 = vld [vmem:[%s2145 + $0x1c] sm:$0xf]
        %v2152 = vld [vmem:[%s2145 + $0x24] sm:$0xf]
        %v2153 = vld [vmem:[%s2145 + $0x28] sm:$0xf]
        %v2154 = vld [vmem:[%s2145 + $0x30] sm:$0xf]
        %v2155 = vld [vmem:[%s2145 + $0x34] sm:$0xf]
        %v2156 = vld [vmem:[%s2145 + $0x3c] sm:$0xf]
        %v2157 = vld [vmem:[%s2145 + $0x40] sm:$0xf]
        %v2158 = vld [vmem:[%s2145 + $0x48] sm:$0xf]
        %v2159 = vld [vmem:[%s2145 + $0x4c] sm:$0xf]
        %v2160 = vld [vmem:[%s2145 + $0x54] sm:$0xf]
        %v2161 = vld [vmem:[%s2145 + $0x58] sm:$0xf]
        %v2162 = vld [vmem:[%s2145 + $0x60] sm:$0xf]
        %v2163 = vld [vmem:[%s2145 + $0x64] sm:$0xf]
        %v2164 = vld [vmem:[%s2145 + $0x6c] sm:$0xf]
        %v2165 = vld [vmem:[%s2145 + $0x70] sm:$0xf]
        %v2166 = vld [vmem:[%s2145 + $0x78] sm:$0xf]
        %v2167 = vld [vmem:[%s2145 + $0x7c] sm:$0xf]
        %v2168 = vld [vmem:[%s2145 + $0x84] sm:$0xf]
        %v2169 = vld [vmem:[%s2145 + $0x88] sm:$0xf]
        %v2170 = vld [vmem:[%s2145 + $0x90] sm:$0xf]
        %v2171 = vld [vmem:[%s2145 + $0x94] sm:$0xf]
        %v2172 = vld [vmem:[%s2145 + $0x9c] sm:$0xf]
        %v2173 = vld [vmem:[%s2145 + $0xa0] sm:$0xf]
        %v2174 = vld [vmem:[%s2145 + $0xa8] sm:$0xf]
        %v2175 = vld [vmem:[%s2145 + $0xac] sm:$0xf]
        %v2176 = vld [vmem:[%s2145 + $0xb4] sm:$0xf]
        %v2177 = vld [vmem:[%s2145 + $0xb8] sm:$0xf]
        %v2178 = vld [vmem:[%s2145 + $0x8] sm:$0x1]
        %v2179 = vld [vmem:[%s2145 + $0x14] sm:$0x1]
        %v2180 = vld [vmem:[%s2145 + $0x20] sm:$0x1]
        %v2181 = vld [vmem:[%s2145 + $0x2c] sm:$0x1]
        %v2182 = vld [vmem:[%s2145 + $0x38] sm:$0x1]
        %v2183 = vld [vmem:[%s2145 + $0x44] sm:$0x1]
        %v2184 = vld [vmem:[%s2145 + $0x50] sm:$0x1]
        %v2185 = vld [vmem:[%s2145 + $0x5c] sm:$0x1]
        %v2186 = vld [vmem:[%s2145 + $0x68] sm:$0x1]
        %v2187 = vld [vmem:[%s2145 + $0x74] sm:$0x1]
        %v2188 = vld [vmem:[%s2145 + $0x80] sm:$0x1]
        %v2189 = vld [vmem:[%s2145 + $0x8c] sm:$0x1]
        %v2190 = vld [vmem:[%s2145 + $0x98] sm:$0x1]
        %v2191 = vld [vmem:[%s2145 + $0xa4] sm:$0x1]
        %v2192 = vld [vmem:[%s2145 + $0xb0] sm:$0x1]
        %v2193 = vld [vmem:[%s2145 + $0xbc] sm:$0x1]
        %v2195 = vshrl.u32 %v2146, 16
        %v2197 = vrot.slane %v2195, 4
        %v2198 = vshll.u32 %v2146, 16
        %v2200 = vrot.slane %v2198, 5
        %v2201 = vor.u32 %v2197, %v2200
        %v2202 = vrot.slane %v2201, 4
        %v2204 = vshll.u32 %v2147, 16
        %v2206 = vrot.slane %v2204, 5
        %v2207 = vsel %vm973, %v2202, %v2206
        %v2208 = vshrl.u32 %v2147, 16
        %v2210 = vrot.slane %v2208, 4
        %v2211 = vor.u32 %v2210, %v2206
        %v2212 = vrot.slane %v2211, 4
        %v2214 = vshll.u32 %v2178, 16
        %v2216 = vrot.slane %v2214, 5
        %v2217 = vsel %vm973, %v2212, %v2216
        %v2219 = vshrl.u32 %v2148, 16
        %v2221 = vrot.slane %v2219, 4
        %v2222 = vshll.u32 %v2148, 16
        %v2224 = vrot.slane %v2222, 5
        %v2225 = vor.u32 %v2221, %v2224
        %v2226 = vrot.slane %v2225, 4
        %v2228 = vshll.u32 %v2149, 16
        %v2230 = vrot.slane %v2228, 5
        %v2231 = vsel %vm973, %v2226, %v2230
        %v2232 = vshrl.u32 %v2149, 16
        %v2234 = vrot.slane %v2232, 4
        %v2235 = vor.u32 %v2234, %v2230
        %v2236 = vrot.slane %v2235, 4
        %v2238 = vshll.u32 %v2179, 16
        %v2240 = vrot.slane %v2238, 5
        %v2241 = vsel %vm973, %v2236, %v2240
        %v2243 = vshrl.u32 %v2150, 16
        %v2245 = vrot.slane %v2243, 4
        %v2246 = vshll.u32 %v2150, 16
        %v2248 = vrot.slane %v2246, 5
        %v2249 = vor.u32 %v2245, %v2248
        %v2250 = vrot.slane %v2249, 4
        %v2252 = vshll.u32 %v2151, 16
        %v2254 = vrot.slane %v2252, 5
        %v2255 = vsel %vm973, %v2250, %v2254
        %v2256 = vshrl.u32 %v2151, 16
        %v2258 = vrot.slane %v2256, 4
        %v2259 = vor.u32 %v2258, %v2254
        %v2260 = vrot.slane %v2259, 4
        %v2262 = vshll.u32 %v2180, 16
        %v2264 = vrot.slane %v2262, 5
        %v2265 = vsel %vm973, %v2260, %v2264
        %v2267 = vshrl.u32 %v2152, 16
        %v2269 = vrot.slane %v2267, 4
        %v2270 = vshll.u32 %v2152, 16
        %v2272 = vrot.slane %v2270, 5
        %v2273 = vor.u32 %v2269, %v2272
        %v2274 = vrot.slane %v2273, 4
        %v2276 = vshll.u32 %v2153, 16
        %v2278 = vrot.slane %v2276, 5
        %v2279 = vsel %vm973, %v2274, %v2278
        %v2280 = vshrl.u32 %v2153, 16
        %v2282 = vrot.slane %v2280, 4
        %v2283 = vor.u32 %v2282, %v2278
        %v2284 = vrot.slane %v2283, 4
        %v2286 = vshll.u32 %v2181, 16
        %v2288 = vrot.slane %v2286, 5
        %v2289 = vsel %vm973, %v2284, %v2288
        %v2291 = vshrl.u32 %v2154, 16
        %v2293 = vrot.slane %v2291, 4
        %v2294 = vshll.u32 %v2154, 16
        %v2296 = vrot.slane %v2294, 5
        %v2297 = vor.u32 %v2293, %v2296
        %v2298 = vrot.slane %v2297, 4
        %v2300 = vshll.u32 %v2155, 16
        %v2302 = vrot.slane %v2300, 5
        %v2303 = vsel %vm973, %v2298, %v2302
        %v2304 = vshrl.u32 %v2155, 16
        %v2306 = vrot.slane %v2304, 4
        %v2307 = vor.u32 %v2306, %v2302
        %v2308 = vrot.slane %v2307, 4
        %v2310 = vshll.u32 %v2182, 16
        %v2312 = vrot.slane %v2310, 5
        %v2313 = vsel %vm973, %v2308, %v2312
        %v2315 = vshrl.u32 %v2156, 16
        %v2317 = vrot.slane %v2315, 4
        %v2318 = vshll.u32 %v2156, 16
        %v2320 = vrot.slane %v2318, 5
        %v2321 = vor.u32 %v2317, %v2320
        %v2322 = vrot.slane %v2321, 4
        %v2324 = vshll.u32 %v2157, 16
        %v2326 = vrot.slane %v2324, 5
        %v2327 = vsel %vm973, %v2322, %v2326
        %v2328 = vshrl.u32 %v2157, 16
        %v2330 = vrot.slane %v2328, 4
        %v2331 = vor.u32 %v2330, %v2326
        %v2332 = vrot.slane %v2331, 4
        %v2334 = vshll.u32 %v2183, 16
        %v2336 = vrot.slane %v2334, 5
        %v2337 = vsel %vm973, %v2332, %v2336
        %v2339 = vshrl.u32 %v2158, 16
        %v2341 = vrot.slane %v2339, 4
        %v2342 = vshll.u32 %v2158, 16
        %v2344 = vrot.slane %v2342, 5
        %v2345 = vor.u32 %v2341, %v2344
        %v2346 = vrot.slane %v2345, 4
        %v2348 = vshll.u32 %v2159, 16
        %v2350 = vrot.slane %v2348, 5
        %v2351 = vsel %vm973, %v2346, %v2350
        %v2352 = vshrl.u32 %v2159, 16
        %v2354 = vrot.slane %v2352, 4
        %v2355 = vor.u32 %v2354, %v2350
        %v2356 = vrot.slane %v2355, 4
        %v2358 = vshll.u32 %v2184, 16
        %v2360 = vrot.slane %v2358, 5
        %v2361 = vsel %vm973, %v2356, %v2360
        %v2363 = vshrl.u32 %v2160, 16
        %v2365 = vrot.slane %v2363, 4
        %v2366 = vshll.u32 %v2160, 16
        %v2368 = vrot.slane %v2366, 5
        %v2369 = vor.u32 %v2365, %v2368
        %v2370 = vrot.slane %v2369, 4
        %v2372 = vshll.u32 %v2161, 16
        %v2374 = vrot.slane %v2372, 5
        %v2375 = vsel %vm973, %v2370, %v2374
        %v2376 = vshrl.u32 %v2161, 16
        %v2378 = vrot.slane %v2376, 4
        %v2379 = vor.u32 %v2378, %v2374
        %v2380 = vrot.slane %v2379, 4
        %v2382 = vshll.u32 %v2185, 16
        %v2384 = vrot.slane %v2382, 5
        %v2385 = vsel %vm973, %v2380, %v2384
        %v2387 = vshrl.u32 %v2162, 16
        %v2389 = vrot.slane %v2387, 4
        %v2390 = vshll.u32 %v2162, 16
        %v2392 = vrot.slane %v2390, 5
        %v2393 = vor.u32 %v2389, %v2392
        %v2394 = vrot.slane %v2393, 4
        %v2396 = vshll.u32 %v2163, 16
        %v2398 = vrot.slane %v2396, 5
        %v2399 = vsel %vm973, %v2394, %v2398
        %v2400 = vshrl.u32 %v2163, 16
        %v2402 = vrot.slane %v2400, 4
        %v2403 = vor.u32 %v2402, %v2398
        %v2404 = vrot.slane %v2403, 4
        %v2406 = vshll.u32 %v2186, 16
        %v2408 = vrot.slane %v2406, 5
        %v2409 = vsel %vm973, %v2404, %v2408
        %v2411 = vshrl.u32 %v2164, 16
        %v2413 = vrot.slane %v2411, 4
        %v2414 = vshll.u32 %v2164, 16
        %v2416 = vrot.slane %v2414, 5
        %v2417 = vor.u32 %v2413, %v2416
        %v2418 = vrot.slane %v2417, 4
        %v2420 = vshll.u32 %v2165, 16
        %v2422 = vrot.slane %v2420, 5
        %v2423 = vsel %vm973, %v2418, %v2422
        %v2424 = vshrl.u32 %v2165, 16
        %v2426 = vrot.slane %v2424, 4
        %v2427 = vor.u32 %v2426, %v2422
        %v2428 = vrot.slane %v2427, 4
        %v2430 = vshll.u32 %v2187, 16
        %v2432 = vrot.slane %v2430, 5
        %v2433 = vsel %vm973, %v2428, %v2432
        %v2435 = vshrl.u32 %v2166, 16
        %v2437 = vrot.slane %v2435, 4
        %v2438 = vshll.u32 %v2166, 16
        %v2440 = vrot.slane %v2438, 5
        %v2441 = vor.u32 %v2437, %v2440
        %v2442 = vrot.slane %v2441, 4
        %v2444 = vshll.u32 %v2167, 16
        %v2446 = vrot.slane %v2444, 5
        %v2447 = vsel %vm973, %v2442, %v2446
        %v2448 = vshrl.u32 %v2167, 16
        %v2450 = vrot.slane %v2448, 4
        %v2451 = vor.u32 %v2450, %v2446
        %v2452 = vrot.slane %v2451, 4
        %v2454 = vshll.u32 %v2188, 16
        %v2456 = vrot.slane %v2454, 5
        %v2457 = vsel %vm973, %v2452, %v2456
        %v2459 = vshrl.u32 %v2168, 16
        %v2461 = vrot.slane %v2459, 4
        %v2462 = vshll.u32 %v2168, 16
        %v2464 = vrot.slane %v2462, 5
        %v2465 = vor.u32 %v2461, %v2464
        %v2466 = vrot.slane %v2465, 4
        %v2468 = vshll.u32 %v2169, 16
        %v2470 = vrot.slane %v2468, 5
        %v2471 = vsel %vm973, %v2466, %v2470
        %v2472 = vshrl.u32 %v2169, 16
        %v2474 = vrot.slane %v2472, 4
        %v2475 = vor.u32 %v2474, %v2470
        %v2476 = vrot.slane %v2475, 4
        %v2478 = vshll.u32 %v2189, 16
        %v2480 = vrot.slane %v2478, 5
        %v2481 = vsel %vm973, %v2476, %v2480
        %v2483 = vshrl.u32 %v2170, 16
        %v2485 = vrot.slane %v2483, 4
        %v2486 = vshll.u32 %v2170, 16
        %v2488 = vrot.slane %v2486, 5
        %v2489 = vor.u32 %v2485, %v2488
        %v2490 = vrot.slane %v2489, 4
        %v2492 = vshll.u32 %v2171, 16
        %v2494 = vrot.slane %v2492, 5
        %v2495 = vsel %vm973, %v2490, %v2494
        %v2496 = vshrl.u32 %v2171, 16
        %v2498 = vrot.slane %v2496, 4
        %v2499 = vor.u32 %v2498, %v2494
        %v2500 = vrot.slane %v2499, 4
        %v2502 = vshll.u32 %v2190, 16
        %v2504 = vrot.slane %v2502, 5
        %v2505 = vsel %vm973, %v2500, %v2504
        %v2507 = vshrl.u32 %v2172, 16
        %v2509 = vrot.slane %v2507, 4
        %v2510 = vshll.u32 %v2172, 16
        %v2512 = vrot.slane %v2510, 5
        %v2513 = vor.u32 %v2509, %v2512
        %v2514 = vrot.slane %v2513, 4
        %v2516 = vshll.u32 %v2173, 16
        %v2518 = vrot.slane %v2516, 5
        %v2519 = vsel %vm973, %v2514, %v2518
        %v2520 = vshrl.u32 %v2173, 16
        %v2522 = vrot.slane %v2520, 4
        %v2523 = vor.u32 %v2522, %v2518
        %v2524 = vrot.slane %v2523, 4
        %v2526 = vshll.u32 %v2191, 16
        %v2528 = vrot.slane %v2526, 5
        %v2529 = vsel %vm973, %v2524, %v2528
        %v2531 = vshrl.u32 %v2174, 16
        %v2533 = vrot.slane %v2531, 4
        %v2534 = vshll.u32 %v2174, 16
        %v2536 = vrot.slane %v2534, 5
        %v2537 = vor.u32 %v2533, %v2536
        %v2538 = vrot.slane %v2537, 4
        %v2540 = vshll.u32 %v2175, 16
        %v2542 = vrot.slane %v2540, 5
        %v2543 = vsel %vm973, %v2538, %v2542
        %v2544 = vshrl.u32 %v2175, 16
        %v2546 = vrot.slane %v2544, 4
        %v2547 = vor.u32 %v2546, %v2542
        %v2548 = vrot.slane %v2547, 4
        %v2550 = vshll.u32 %v2192, 16
        %v2552 = vrot.slane %v2550, 5
        %v2553 = vsel %vm973, %v2548, %v2552
        %v2555 = vshrl.u32 %v2176, 16
        %v2557 = vrot.slane %v2555, 4
        %v2558 = vshll.u32 %v2176, 16
        %v2560 = vrot.slane %v2558, 5
        %v2561 = vor.u32 %v2557, %v2560
        %v2562 = vrot.slane %v2561, 4
        %v2564 = vshll.u32 %v2177, 16
        %v2566 = vrot.slane %v2564, 5
        %v2567 = vsel %vm973, %v2562, %v2566
        %v2568 = vshrl.u32 %v2177, 16
        %v2570 = vrot.slane %v2568, 4
        %v2571 = vor.u32 %v2570, %v2566
        %v2572 = vrot.slane %v2571, 4
        %v2574 = vshll.u32 %v2193, 16
        %v2576 = vrot.slane %v2574, 5
        %v2577 = vsel %vm973, %v2572, %v2576
        %v2578 = vld [vmem:[%s2145] sm:$0xe]
        %v2579 = vld [vmem:[%s2145 + $0xc] sm:$0xe]
        %v2580 = vld [vmem:[%s2145 + $0x18] sm:$0xe]
        %v2581 = vld [vmem:[%s2145 + $0x24] sm:$0xe]
        %v2582 = vld [vmem:[%s2145 + $0x30] sm:$0xe]
        %v2583 = vld [vmem:[%s2145 + $0x3c] sm:$0xe]
        %v2584 = vld [vmem:[%s2145 + $0x48] sm:$0xe]
        %v2585 = vld [vmem:[%s2145 + $0x54] sm:$0xe]
        %v2586 = vld [vmem:[%s2145 + $0x60] sm:$0xe]
        %v2587 = vld [vmem:[%s2145 + $0x6c] sm:$0xe]
        %v2588 = vld [vmem:[%s2145 + $0x78] sm:$0xe]
        %v2589 = vld [vmem:[%s2145 + $0x84] sm:$0xe]
        %v2590 = vld [vmem:[%s2145 + $0x90] sm:$0xe]
        %v2591 = vld [vmem:[%s2145 + $0x9c] sm:$0xe]
        %v2592 = vld [vmem:[%s2145 + $0xa8] sm:$0xe]
        %v2593 = vld [vmem:[%s2145 + $0xb4] sm:$0xe]
        %v2642 = vrot.slane %v2578, 5
        %v2643 = vrot.slane %v2642, 4
        %v2644 = vrot.slane %v2147, 5
        %v2645 = vsel %vm1424, %v2643, %v2644
        %v2646 = vrot.slane %v2644, 4
        %v2647 = vrot.slane %v2178, 5
        %v2648 = vsel %vm1424, %v2646, %v2647
        %v2649 = vrot.slane %v2579, 5
        %v2650 = vrot.slane %v2649, 4
        %v2651 = vrot.slane %v2149, 5
        %v2652 = vsel %vm1424, %v2650, %v2651
        %v2653 = vrot.slane %v2651, 4
        %v2654 = vrot.slane %v2179, 5
        %v2655 = vsel %vm1424, %v2653, %v2654
        %v2656 = vrot.slane %v2580, 5
        %v2657 = vrot.slane %v2656, 4
        %v2658 = vrot.slane %v2151, 5
        %v2659 = vsel %vm1424, %v2657, %v2658
        %v2660 = vrot.slane %v2658, 4
        %v2661 = vrot.slane %v2180, 5
        %v2662 = vsel %vm1424, %v2660, %v2661
        %v2663 = vrot.slane %v2581, 5
        %v2664 = vrot.slane %v2663, 4
        %v2665 = vrot.slane %v2153, 5
        %v2666 = vsel %vm1424, %v2664, %v2665
        %v2667 = vrot.slane %v2665, 4
        %v2668 = vrot.slane %v2181, 5
        %v2669 = vsel %vm1424, %v2667, %v2668
        %v2670 = vrot.slane %v2582, 5
        %v2671 = vrot.slane %v2670, 4
        %v2672 = vrot.slane %v2155, 5
        %v2673 = vsel %vm1424, %v2671, %v2672
        %v2674 = vrot.slane %v2672, 4
        %v2675 = vrot.slane %v2182, 5
        %v2676 = vsel %vm1424, %v2674, %v2675
        %v2677 = vrot.slane %v2583, 5
        %v2678 = vrot.slane %v2677, 4
        %v2679 = vrot.slane %v2157, 5
        %v2680 = vsel %vm1424, %v2678, %v2679
        %v2681 = vrot.slane %v2679, 4
        %v2682 = vrot.slane %v2183, 5
        %v2683 = vsel %vm1424, %v2681, %v2682
        %v2684 = vrot.slane %v2584, 5
        %v2685 = vrot.slane %v2684, 4
        %v2686 = vrot.slane %v2159, 5
        %v2687 = vsel %vm1424, %v2685, %v2686
        %v2688 = vrot.slane %v2686, 4
        %v2689 = vrot.slane %v2184, 5
        %v2690 = vsel %vm1424, %v2688, %v2689
        %v2691 = vrot.slane %v2585, 5
        %v2692 = vrot.slane %v2691, 4
        %v2693 = vrot.slane %v2161, 5
        %v2694 = vsel %vm1424, %v2692, %v2693
        %v2695 = vrot.slane %v2693, 4
        %v2696 = vrot.slane %v2185, 5
        %v2697 = vsel %vm1424, %v2695, %v2696
        %v2698 = vrot.slane %v2586, 5
        %v2699 = vrot.slane %v2698, 4
        %v2700 = vrot.slane %v2163, 5
        %v2701 = vsel %vm1424, %v2699, %v2700
        %v2702 = vrot.slane %v2700, 4
        %v2703 = vrot.slane %v2186, 5
        %v2704 = vsel %vm1424, %v2702, %v2703
        %v2705 = vrot.slane %v2587, 5
        %v2706 = vrot.slane %v2705, 4
        %v2707 = vrot.slane %v2165, 5
        %v2708 = vsel %vm1424, %v2706, %v2707
        %v2709 = vrot.slane %v2707, 4
        %v2710 = vrot.slane %v2187, 5
        %v2711 = vsel %vm1424, %v2709, %v2710
        %v2712 = vrot.slane %v2588, 5
        %v2713 = vrot.slane %v2712, 4
        %v2714 = vrot.slane %v2167, 5
        %v2715 = vsel %vm1424, %v2713, %v2714
        %v2716 = vrot.slane %v2714, 4
        %v2717 = vrot.slane %v2188, 5
        %v2718 = vsel %vm1424, %v2716, %v2717
        %v2719 = vrot.slane %v2589, 5
        %v2720 = vrot.slane %v2719, 4
        %v2721 = vrot.slane %v2169, 5
        %v2722 = vsel %vm1424, %v2720, %v2721
        %v2723 = vrot.slane %v2721, 4
        %v2724 = vrot.slane %v2189, 5
        %v2725 = vsel %vm1424, %v2723, %v2724
        %v2726 = vrot.slane %v2590, 5
        %v2727 = vrot.slane %v2726, 4
        %v2728 = vrot.slane %v2171, 5
        %v2729 = vsel %vm1424, %v2727, %v2728
        %v2730 = vrot.slane %v2728, 4
        %v2731 = vrot.slane %v2190, 5
        %v2732 = vsel %vm1424, %v2730, %v2731
        %v2733 = vrot.slane %v2591, 5
        %v2734 = vrot.slane %v2733, 4
        %v2735 = vrot.slane %v2173, 5
        %v2736 = vsel %vm1424, %v2734, %v2735
        %v2737 = vrot.slane %v2735, 4
        %v2738 = vrot.slane %v2191, 5
        %v2739 = vsel %vm1424, %v2737, %v2738
        %v2740 = vrot.slane %v2592, 5
        %v2741 = vrot.slane %v2740, 4
        %v2742 = vrot.slane %v2175, 5
        %v2743 = vsel %vm1424, %v2741, %v2742
        %v2744 = vrot.slane %v2742, 4
        %v2745 = vrot.slane %v2192, 5
        %v2746 = vsel %vm1424, %v2744, %v2745
        %v2747 = vrot.slane %v2593, 5
        %v2748 = vrot.slane %v2747, 4
        %v2749 = vrot.slane %v2177, 5
        %v2750 = vsel %vm1424, %v2748, %v2749
        %v2751 = vrot.slane %v2749, 4
        %v2752 = vrot.slane %v2193, 5
        %v2753 = vsel %vm1424, %v2751, %v2752
        %v2770 = vunpack.c.l.b16 %v923
        %v2771 = vunpack.c.l.b16 %v924
        %v2772 = vunpack.c.l.b16 %v925
        %v2773 = vunpack.c.l.b16 %v926
        %v2774 = vunpack.c.l.b16 %v927
        %v2775 = vunpack.c.l.b16 %v928
        %v2776 = vunpack.c.l.b16 %v929
        %v2777 = vunpack.c.l.b16 %v930
        %v2778 = vunpack.c.l.b16 %v931
        %v2779 = vunpack.c.l.b16 %v932
        %v2780 = vunpack.c.l.b16 %v933
        %v2781 = vunpack.c.l.b16 %v934
        %v2782 = vunpack.c.l.b16 %v935
        %v2783 = vunpack.c.l.b16 %v936
        %v2784 = vunpack.c.l.b16 %v937
        %v2785 = vunpack.c.l.b16 %v938
        %v2786 = vunpack.c.l.b16 %v939
        %v2787 = vunpack.c.l.b16 %v940
        %v2788 = vunpack.c.l.b16 %v941
        %v2789 = vunpack.c.l.b16 %v942
        %v2790 = vunpack.c.l.b16 %v943
        %v2791 = vunpack.c.l.b16 %v944
        %v2792 = vunpack.c.l.b16 %v945
        %v2793 = vunpack.c.l.b16 %v946
        %v2794 = vunpack.c.l.b16 %v947
        %v2795 = vunpack.c.l.b16 %v948
        %v2796 = vunpack.c.l.b16 %v949
        %v2797 = vunpack.c.l.b16 %v950
        %v2798 = vunpack.c.l.b16 %v951
        %v2799 = vunpack.c.l.b16 %v952
        %v2800 = vunpack.c.l.b16 %v953
        %v2801 = vunpack.c.l.b16 %v954
        %v2802 = vpack.c.b16 %v2771, %v2770
        %v2803 = vpack.c.b16 %v2773, %v2772
        %v2804 = vpack.c.b16 %v2775, %v2774
        %v2805 = vpack.c.b16 %v2777, %v2776
        %v2806 = vpack.c.b16 %v2779, %v2778
        %v2807 = vpack.c.b16 %v2781, %v2780
        %v2808 = vpack.c.b16 %v2783, %v2782
        %v2809 = vpack.c.b16 %v2785, %v2784
        %v2810 = vpack.c.b16 %v2787, %v2786
        %v2811 = vpack.c.b16 %v2789, %v2788
        %v2812 = vpack.c.b16 %v2791, %v2790
        %v2813 = vpack.c.b16 %v2793, %v2792
        %v2814 = vpack.c.b16 %v2795, %v2794
        %v2815 = vpack.c.b16 %v2797, %v2796
        %v2816 = vpack.c.b16 %v2799, %v2798
        %v2817 = vpack.c.b16 %v2801, %v2800
        %v2818 = vunpack.c.l.b16 %v987
        %v2819 = vunpack.c.l.b16 %v997
        %v2820 = vunpack.c.l.b16 %v1011
        %v2821 = vunpack.c.l.b16 %v1021
        %v2822 = vunpack.c.l.b16 %v1035
        %v2823 = vunpack.c.l.b16 %v1045
        %v2824 = vunpack.c.l.b16 %v1059
        %v2825 = vunpack.c.l.b16 %v1069
        %v2826 = vunpack.c.l.b16 %v1083
        %v2827 = vunpack.c.l.b16 %v1093
        %v2828 = vunpack.c.l.b16 %v1107
        %v2829 = vunpack.c.l.b16 %v1117
        %v2830 = vunpack.c.l.b16 %v1131
        %v2831 = vunpack.c.l.b16 %v1141
        %v2832 = vunpack.c.l.b16 %v1155
        %v2833 = vunpack.c.l.b16 %v1165
        %v2834 = vunpack.c.l.b16 %v1179
        %v2835 = vunpack.c.l.b16 %v1189
        %v2836 = vunpack.c.l.b16 %v1203
        %v2837 = vunpack.c.l.b16 %v1213
        %v2838 = vunpack.c.l.b16 %v1227
        %v2839 = vunpack.c.l.b16 %v1237
        %v2840 = vunpack.c.l.b16 %v1251
        %v2841 = vunpack.c.l.b16 %v1261
        %v2842 = vunpack.c.l.b16 %v1275
        %v2843 = vunpack.c.l.b16 %v1285
        %v2844 = vunpack.c.l.b16 %v1299
        %v2845 = vunpack.c.l.b16 %v1309
        %v2846 = vunpack.c.l.b16 %v1323
        %v2847 = vunpack.c.l.b16 %v1333
        %v2848 = vunpack.c.l.b16 %v1347
        %v2849 = vunpack.c.l.b16 %v1357
        %v2850 = vpack.c.b16 %v2819, %v2818
        %v2851 = vpack.c.b16 %v2821, %v2820
        %v2852 = vpack.c.b16 %v2823, %v2822
        %v2853 = vpack.c.b16 %v2825, %v2824
        %v2854 = vpack.c.b16 %v2827, %v2826
        %v2855 = vpack.c.b16 %v2829, %v2828
        %v2856 = vpack.c.b16 %v2831, %v2830
        %v2857 = vpack.c.b16 %v2833, %v2832
        %v2858 = vpack.c.b16 %v2835, %v2834
        %v2859 = vpack.c.b16 %v2837, %v2836
        %v2860 = vpack.c.b16 %v2839, %v2838
        %v2861 = vpack.c.b16 %v2841, %v2840
        %v2862 = vpack.c.b16 %v2843, %v2842
        %v2863 = vpack.c.b16 %v2845, %v2844
        %v2864 = vpack.c.b16 %v2847, %v2846
        %v2865 = vpack.c.b16 %v2849, %v2848
        %2866 = vrot.lane.b32.xlu0 %v2850, 16
        %v2867 = vpop.permute.xlu0 %2866
        %2868 = vrot.lane.b32.xlu0 %v2851, 16
        %v2869 = vpop.permute.xlu0 %2868
        %2870 = vrot.lane.b32.xlu0 %v2852, 16
        %v2871 = vpop.permute.xlu0 %2870
        %2872 = vrot.lane.b32.xlu0 %v2853, 16
        %v2873 = vpop.permute.xlu0 %2872
        %2874 = vrot.lane.b32.xlu0 %v2854, 16
        %v2875 = vpop.permute.xlu0 %2874
        %2876 = vrot.lane.b32.xlu0 %v2855, 16
        %v2877 = vpop.permute.xlu0 %2876
        %2878 = vrot.lane.b32.xlu0 %v2856, 16
        %v2879 = vpop.permute.xlu0 %2878
        %2880 = vrot.lane.b32.xlu0 %v2857, 16
        %v2881 = vpop.permute.xlu0 %2880
        %2882 = vrot.lane.b32.xlu0 %v2858, 16
        %v2883 = vpop.permute.xlu0 %2882
        %2884 = vrot.lane.b32.xlu0 %v2859, 16
        %v2885 = vpop.permute.xlu0 %2884
        %2886 = vrot.lane.b32.xlu0 %v2860, 16
        %v2887 = vpop.permute.xlu0 %2886
        %2888 = vrot.lane.b32.xlu0 %v2861, 16
        %v2889 = vpop.permute.xlu0 %2888
        %2890 = vrot.lane.b32.xlu0 %v2862, 16
        %v2891 = vpop.permute.xlu0 %2890
        %2892 = vrot.lane.b32.xlu0 %v2863, 16
        %v2893 = vpop.permute.xlu0 %2892
        %2894 = vrot.lane.b32.xlu0 %v2864, 16
        %v2895 = vpop.permute.xlu0 %2894
        %2896 = vrot.lane.b32.xlu0 %v2865, 16
        %v2897 = vpop.permute.xlu0 %2896
        %v2898 = vunpack.c.l.b16 %v1428
        %v2899 = vunpack.c.l.b16 %v1431
        %v2900 = vunpack.c.l.b16 %v1435
        %v2901 = vunpack.c.l.b16 %v1438
        %v2902 = vunpack.c.l.b16 %v1442
        %v2903 = vunpack.c.l.b16 %v1445
        %v2904 = vunpack.c.l.b16 %v1449
        %v2905 = vunpack.c.l.b16 %v1452
        %v2906 = vunpack.c.l.b16 %v1456
        %v2907 = vunpack.c.l.b16 %v1459
        %v2908 = vunpack.c.l.b16 %v1463
        %v2909 = vunpack.c.l.b16 %v1466
        %v2910 = vunpack.c.l.b16 %v1470
        %v2911 = vunpack.c.l.b16 %v1473
        %v2912 = vunpack.c.l.b16 %v1477
        %v2913 = vunpack.c.l.b16 %v1480
        %v2914 = vunpack.c.l.b16 %v1484
        %v2915 = vunpack.c.l.b16 %v1487
        %v2916 = vunpack.c.l.b16 %v1491
        %v2917 = vunpack.c.l.b16 %v1494
        %v2918 = vunpack.c.l.b16 %v1498
        %v2919 = vunpack.c.l.b16 %v1501
        %v2920 = vunpack.c.l.b16 %v1505
        %v2921 = vunpack.c.l.b16 %v1508
        %v2922 = vunpack.c.l.b16 %v1512
        %v2923 = vunpack.c.l.b16 %v1515
        %v2924 = vunpack.c.l.b16 %v1519
        %v2925 = vunpack.c.l.b16 %v1522
        %v2926 = vunpack.c.l.b16 %v1526
        %v2927 = vunpack.c.l.b16 %v1529
        %v2928 = vunpack.c.l.b16 %v1533
        %v2929 = vunpack.c.l.b16 %v1536
        %v2930 = vpack.c.b16 %v2899, %v2898
        %v2931 = vpack.c.b16 %v2901, %v2900
        %v2932 = vpack.c.b16 %v2903, %v2902
        %v2933 = vpack.c.b16 %v2905, %v2904
        %v2934 = vpack.c.b16 %v2907, %v2906
        %v2935 = vpack.c.b16 %v2909, %v2908
        %v2936 = vpack.c.b16 %v2911, %v2910
        %v2937 = vpack.c.b16 %v2913, %v2912
        %v2938 = vpack.c.b16 %v2915, %v2914
        %v2939 = vpack.c.b16 %v2917, %v2916
        %v2940 = vpack.c.b16 %v2919, %v2918
        %v2941 = vpack.c.b16 %v2921, %v2920
        %v2942 = vpack.c.b16 %v2923, %v2922
        %v2943 = vpack.c.b16 %v2925, %v2924
        %v2944 = vpack.c.b16 %v2927, %v2926
        %v2945 = vpack.c.b16 %v2929, %v2928
        %2946 = vrot.lane.b32.xlu0 %v2930, 32
        %v2947 = vpop.permute.xlu0 %2946
        %2948 = vrot.lane.b32.xlu0 %v2931, 32
        %v2949 = vpop.permute.xlu0 %2948
        %2950 = vrot.lane.b32.xlu0 %v2932, 32
        %v2951 = vpop.permute.xlu0 %2950
        %2952 = vrot.lane.b32.xlu0 %v2933, 32
        %v2953 = vpop.permute.xlu0 %2952
        %2954 = vrot.lane.b32.xlu0 %v2934, 32
        %v2955 = vpop.permute.xlu0 %2954
        %2956 = vrot.lane.b32.xlu0 %v2935, 32
        %v2957 = vpop.permute.xlu0 %2956
        %2958 = vrot.lane.b32.xlu0 %v2936, 32
        %v2959 = vpop.permute.xlu0 %2958
        %2960 = vrot.lane.b32.xlu0 %v2937, 32
        %v2961 = vpop.permute.xlu0 %2960
        %2962 = vrot.lane.b32.xlu0 %v2938, 32
        %v2963 = vpop.permute.xlu0 %2962
        %2964 = vrot.lane.b32.xlu0 %v2939, 32
        %v2965 = vpop.permute.xlu0 %2964
        %2966 = vrot.lane.b32.xlu0 %v2940, 32
        %v2967 = vpop.permute.xlu0 %2966
        %2968 = vrot.lane.b32.xlu0 %v2941, 32
        %v2969 = vpop.permute.xlu0 %2968
        %2970 = vrot.lane.b32.xlu0 %v2942, 32
        %v2971 = vpop.permute.xlu0 %2970
        %2972 = vrot.lane.b32.xlu0 %v2943, 32
        %v2973 = vpop.permute.xlu0 %2972
        %2974 = vrot.lane.b32.xlu0 %v2944, 32
        %v2975 = vpop.permute.xlu0 %2974
        %2976 = vrot.lane.b32.xlu0 %v2945, 32
        %v2977 = vpop.permute.xlu0 %2976
        %v2994 = vunpack.c.l.b16 %v1537
        %v2995 = vunpack.c.l.b16 %v1538
        %v2996 = vunpack.c.l.b16 %v1539
        %v2997 = vunpack.c.l.b16 %v1540
        %v2998 = vunpack.c.l.b16 %v1541
        %v2999 = vunpack.c.l.b16 %v1542
        %v3000 = vunpack.c.l.b16 %v1543
        %v3001 = vunpack.c.l.b16 %v1544
        %v3002 = vunpack.c.l.b16 %v1545
        %v3003 = vunpack.c.l.b16 %v1546
        %v3004 = vunpack.c.l.b16 %v1547
        %v3005 = vunpack.c.l.b16 %v1548
        %v3006 = vunpack.c.l.b16 %v1549
        %v3007 = vunpack.c.l.b16 %v1550
        %v3008 = vunpack.c.l.b16 %v1551
        %v3009 = vunpack.c.l.b16 %v1552
        %v3010 = vunpack.c.l.b16 %v1553
        %v3011 = vunpack.c.l.b16 %v1554
        %v3012 = vunpack.c.l.b16 %v1555
        %v3013 = vunpack.c.l.b16 %v1556
        %v3014 = vunpack.c.l.b16 %v1557
        %v3015 = vunpack.c.l.b16 %v1558
        %v3016 = vunpack.c.l.b16 %v1559
        %v3017 = vunpack.c.l.b16 %v1560
        %v3018 = vunpack.c.l.b16 %v1561
        %v3019 = vunpack.c.l.b16 %v1562
        %v3020 = vunpack.c.l.b16 %v1563
        %v3021 = vunpack.c.l.b16 %v1564
        %v3022 = vunpack.c.l.b16 %v1565
        %v3023 = vunpack.c.l.b16 %v1566
        %v3024 = vunpack.c.l.b16 %v1567
        %v3025 = vunpack.c.l.b16 %v1568
        %v3026 = vpack.c.b16 %v2995, %v2994
        %v3027 = vpack.c.b16 %v2997, %v2996
        %v3028 = vpack.c.b16 %v2999, %v2998
        %v3029 = vpack.c.b16 %v3001, %v3000
        %v3030 = vpack.c.b16 %v3003, %v3002
        %v3031 = vpack.c.b16 %v3005, %v3004
        %v3032 = vpack.c.b16 %v3007, %v3006
        %v3033 = vpack.c.b16 %v3009, %v3008
        %v3034 = vpack.c.b16 %v3011, %v3010
        %v3035 = vpack.c.b16 %v3013, %v3012
        %v3036 = vpack.c.b16 %v3015, %v3014
        %v3037 = vpack.c.b16 %v3017, %v3016
        %v3038 = vpack.c.b16 %v3019, %v3018
        %v3039 = vpack.c.b16 %v3021, %v3020
        %v3040 = vpack.c.b16 %v3023, %v3022
        %v3041 = vpack.c.b16 %v3025, %v3024
        %3042 = vrot.lane.b32.xlu0 %v3026, 48
        %v3043 = vpop.permute.xlu0 %3042
        %3044 = vrot.lane.b32.xlu0 %v3027, 48
        %v3045 = vpop.permute.xlu0 %3044
        %3046 = vrot.lane.b32.xlu0 %v3028, 48
        %v3047 = vpop.permute.xlu0 %3046
        %3048 = vrot.lane.b32.xlu0 %v3029, 48
        %v3049 = vpop.permute.xlu0 %3048
        %3050 = vrot.lane.b32.xlu0 %v3030, 48
        %v3051 = vpop.permute.xlu0 %3050
        %3052 = vrot.lane.b32.xlu0 %v3031, 48
        %v3053 = vpop.permute.xlu0 %3052
        %3054 = vrot.lane.b32.xlu0 %v3032, 48
        %v3055 = vpop.permute.xlu0 %3054
        %3056 = vrot.lane.b32.xlu0 %v3033, 48
        %v3057 = vpop.permute.xlu0 %3056
        %3058 = vrot.lane.b32.xlu0 %v3034, 48
        %v3059 = vpop.permute.xlu0 %3058
        %3060 = vrot.lane.b32.xlu0 %v3035, 48
        %v3061 = vpop.permute.xlu0 %3060
        %3062 = vrot.lane.b32.xlu0 %v3036, 48
        %v3063 = vpop.permute.xlu0 %3062
        %3064 = vrot.lane.b32.xlu0 %v3037, 48
        %v3065 = vpop.permute.xlu0 %3064
        %3066 = vrot.lane.b32.xlu0 %v3038, 48
        %v3067 = vpop.permute.xlu0 %3066
        %3068 = vrot.lane.b32.xlu0 %v3039, 48
        %v3069 = vpop.permute.xlu0 %3068
        %3070 = vrot.lane.b32.xlu0 %v3040, 48
        %v3071 = vpop.permute.xlu0 %3070
        %3072 = vrot.lane.b32.xlu0 %v3041, 48
        %v3073 = vpop.permute.xlu0 %3072
        %v3074 = vunpack.c.l.b16 %v1598
        %v3075 = vunpack.c.l.b16 %v1608
        %v3076 = vunpack.c.l.b16 %v1622
        %v3077 = vunpack.c.l.b16 %v1632
        %v3078 = vunpack.c.l.b16 %v1646
        %v3079 = vunpack.c.l.b16 %v1656
        %v3080 = vunpack.c.l.b16 %v1670
        %v3081 = vunpack.c.l.b16 %v1680
        %v3082 = vunpack.c.l.b16 %v1694
        %v3083 = vunpack.c.l.b16 %v1704
        %v3084 = vunpack.c.l.b16 %v1718
        %v3085 = vunpack.c.l.b16 %v1728
        %v3086 = vunpack.c.l.b16 %v1742
        %v3087 = vunpack.c.l.b16 %v1752
        %v3088 = vunpack.c.l.b16 %v1766
        %v3089 = vunpack.c.l.b16 %v1776
        %v3090 = vunpack.c.l.b16 %v1790
        %v3091 = vunpack.c.l.b16 %v1800
        %v3092 = vunpack.c.l.b16 %v1814
        %v3093 = vunpack.c.l.b16 %v1824
        %v3094 = vunpack.c.l.b16 %v1838
        %v3095 = vunpack.c.l.b16 %v1848
        %v3096 = vunpack.c.l.b16 %v1862
        %v3097 = vunpack.c.l.b16 %v1872
        %v3098 = vunpack.c.l.b16 %v1886
        %v3099 = vunpack.c.l.b16 %v1896
        %v3100 = vunpack.c.l.b16 %v1910
        %v3101 = vunpack.c.l.b16 %v1920
        %v3102 = vunpack.c.l.b16 %v1934
        %v3103 = vunpack.c.l.b16 %v1944
        %v3104 = vunpack.c.l.b16 %v1958
        %v3105 = vunpack.c.l.b16 %v1968
        %v3106 = vpack.c.b16 %v3075, %v3074
        %v3107 = vpack.c.b16 %v3077, %v3076
        %v3108 = vpack.c.b16 %v3079, %v3078
        %v3109 = vpack.c.b16 %v3081, %v3080
        %v3110 = vpack.c.b16 %v3083, %v3082
        %v3111 = vpack.c.b16 %v3085, %v3084
        %v3112 = vpack.c.b16 %v3087, %v3086
        %v3113 = vpack.c.b16 %v3089, %v3088
        %v3114 = vpack.c.b16 %v3091, %v3090
        %v3115 = vpack.c.b16 %v3093, %v3092
        %v3116 = vpack.c.b16 %v3095, %v3094
        %v3117 = vpack.c.b16 %v3097, %v3096
        %v3118 = vpack.c.b16 %v3099, %v3098
        %v3119 = vpack.c.b16 %v3101, %v3100
        %v3120 = vpack.c.b16 %v3103, %v3102
        %v3121 = vpack.c.b16 %v3105, %v3104
        %3122 = vrot.lane.b32.xlu0 %v3106, 64
        %v3123 = vpop.permute.xlu0 %3122
        %3124 = vrot.lane.b32.xlu0 %v3107, 64
        %v3125 = vpop.permute.xlu0 %3124
        %3126 = vrot.lane.b32.xlu0 %v3108, 64
        %v3127 = vpop.permute.xlu0 %3126
        %3128 = vrot.lane.b32.xlu0 %v3109, 64
        %v3129 = vpop.permute.xlu0 %3128
        %3130 = vrot.lane.b32.xlu0 %v3110, 64
        %v3131 = vpop.permute.xlu0 %3130
        %3132 = vrot.lane.b32.xlu0 %v3111, 64
        %v3133 = vpop.permute.xlu0 %3132
        %3134 = vrot.lane.b32.xlu0 %v3112, 64
        %v3135 = vpop.permute.xlu0 %3134
        %3136 = vrot.lane.b32.xlu0 %v3113, 64
        %v3137 = vpop.permute.xlu0 %3136
        %3138 = vrot.lane.b32.xlu0 %v3114, 64
        %v3139 = vpop.permute.xlu0 %3138
        %3140 = vrot.lane.b32.xlu0 %v3115, 64
        %v3141 = vpop.permute.xlu0 %3140
        %3142 = vrot.lane.b32.xlu0 %v3116, 64
        %v3143 = vpop.permute.xlu0 %3142
        %3144 = vrot.lane.b32.xlu0 %v3117, 64
        %v3145 = vpop.permute.xlu0 %3144
        %3146 = vrot.lane.b32.xlu0 %v3118, 64
        %v3147 = vpop.permute.xlu0 %3146
        %3148 = vrot.lane.b32.xlu0 %v3119, 64
        %v3149 = vpop.permute.xlu0 %3148
        %3150 = vrot.lane.b32.xlu0 %v3120, 64
        %v3151 = vpop.permute.xlu0 %3150
        %3152 = vrot.lane.b32.xlu0 %v3121, 64
        %v3153 = vpop.permute.xlu0 %3152
        %v3154 = vunpack.c.l.b16 %v2036
        %v3155 = vunpack.c.l.b16 %v2039
        %v3156 = vunpack.c.l.b16 %v2043
        %v3157 = vunpack.c.l.b16 %v2046
        %v3158 = vunpack.c.l.b16 %v2050
        %v3159 = vunpack.c.l.b16 %v2053
        %v3160 = vunpack.c.l.b16 %v2057
        %v3161 = vunpack.c.l.b16 %v2060
        %v3162 = vunpack.c.l.b16 %v2064
        %v3163 = vunpack.c.l.b16 %v2067
        %v3164 = vunpack.c.l.b16 %v2071
        %v3165 = vunpack.c.l.b16 %v2074
        %v3166 = vunpack.c.l.b16 %v2078
        %v3167 = vunpack.c.l.b16 %v2081
        %v3168 = vunpack.c.l.b16 %v2085
        %v3169 = vunpack.c.l.b16 %v2088
        %v3170 = vunpack.c.l.b16 %v2092
        %v3171 = vunpack.c.l.b16 %v2095
        %v3172 = vunpack.c.l.b16 %v2099
        %v3173 = vunpack.c.l.b16 %v2102
        %v3174 = vunpack.c.l.b16 %v2106
        %v3175 = vunpack.c.l.b16 %v2109
        %v3176 = vunpack.c.l.b16 %v2113
        %v3177 = vunpack.c.l.b16 %v2116
        %v3178 = vunpack.c.l.b16 %v2120
        %v3179 = vunpack.c.l.b16 %v2123
        %v3180 = vunpack.c.l.b16 %v2127
        %v3181 = vunpack.c.l.b16 %v2130
        %v3182 = vunpack.c.l.b16 %v2134
        %v3183 = vunpack.c.l.b16 %v2137
        %v3184 = vunpack.c.l.b16 %v2141
        %v3185 = vunpack.c.l.b16 %v2144
        %v3186 = vpack.c.b16 %v3155, %v3154
        %v3187 = vpack.c.b16 %v3157, %v3156
        %v3188 = vpack.c.b16 %v3159, %v3158
        %v3189 = vpack.c.b16 %v3161, %v3160
        %v3190 = vpack.c.b16 %v3163, %v3162
        %v3191 = vpack.c.b16 %v3165, %v3164
        %v3192 = vpack.c.b16 %v3167, %v3166
        %v3193 = vpack.c.b16 %v3169, %v3168
        %v3194 = vpack.c.b16 %v3171, %v3170
        %v3195 = vpack.c.b16 %v3173, %v3172
        %v3196 = vpack.c.b16 %v3175, %v3174
        %v3197 = vpack.c.b16 %v3177, %v3176
        %v3198 = vpack.c.b16 %v3179, %v3178
        %v3199 = vpack.c.b16 %v3181, %v3180
        %v3200 = vpack.c.b16 %v3183, %v3182
        %v3201 = vpack.c.b16 %v3185, %v3184
        %3202 = vrot.lane.b32.xlu0 %v3186, 80
        %v3203 = vpop.permute.xlu0 %3202
        %3204 = vrot.lane.b32.xlu0 %v3187, 80
        %v3205 = vpop.permute.xlu0 %3204
        %3206 = vrot.lane.b32.xlu0 %v3188, 80
        %v3207 = vpop.permute.xlu0 %3206
        %3208 = vrot.lane.b32.xlu0 %v3189, 80
        %v3209 = vpop.permute.xlu0 %3208
        %3210 = vrot.lane.b32.xlu0 %v3190, 80
        %v3211 = vpop.permute.xlu0 %3210
        %3212 = vrot.lane.b32.xlu0 %v3191, 80
        %v3213 = vpop.permute.xlu0 %3212
        %3214 = vrot.lane.b32.xlu0 %v3192, 80
        %v3215 = vpop.permute.xlu0 %3214
        %3216 = vrot.lane.b32.xlu0 %v3193, 80
        %v3217 = vpop.permute.xlu0 %3216
        %3218 = vrot.lane.b32.xlu0 %v3194, 80
        %v3219 = vpop.permute.xlu0 %3218
        %3220 = vrot.lane.b32.xlu0 %v3195, 80
        %v3221 = vpop.permute.xlu0 %3220
        %3222 = vrot.lane.b32.xlu0 %v3196, 80
        %v3223 = vpop.permute.xlu0 %3222
        %3224 = vrot.lane.b32.xlu0 %v3197, 80
        %v3225 = vpop.permute.xlu0 %3224
        %3226 = vrot.lane.b32.xlu0 %v3198, 80
        %v3227 = vpop.permute.xlu0 %3226
        %3228 = vrot.lane.b32.xlu0 %v3199, 80
        %v3229 = vpop.permute.xlu0 %3228
        %3230 = vrot.lane.b32.xlu0 %v3200, 80
        %v3231 = vpop.permute.xlu0 %3230
        %3232 = vrot.lane.b32.xlu0 %v3201, 80
        %v3233 = vpop.permute.xlu0 %3232
        %v3250 = vunpack.c.l.b16 %v2146
        %v3251 = vunpack.c.l.b16 %v2147
        %v3252 = vunpack.c.l.b16 %v2148
        %v3253 = vunpack.c.l.b16 %v2149
        %v3254 = vunpack.c.l.b16 %v2150
        %v3255 = vunpack.c.l.b16 %v2151
        %v3256 = vunpack.c.l.b16 %v2152
        %v3257 = vunpack.c.l.b16 %v2153
        %v3258 = vunpack.c.l.b16 %v2154
        %v3259 = vunpack.c.l.b16 %v2155
        %v3260 = vunpack.c.l.b16 %v2156
        %v3261 = vunpack.c.l.b16 %v2157
        %v3262 = vunpack.c.l.b16 %v2158
        %v3263 = vunpack.c.l.b16 %v2159
        %v3264 = vunpack.c.l.b16 %v2160
        %v3265 = vunpack.c.l.b16 %v2161
        %v3266 = vunpack.c.l.b16 %v2162
        %v3267 = vunpack.c.l.b16 %v2163
        %v3268 = vunpack.c.l.b16 %v2164
        %v3269 = vunpack.c.l.b16 %v2165
        %v3270 = vunpack.c.l.b16 %v2166
        %v3271 = vunpack.c.l.b16 %v2167
        %v3272 = vunpack.c.l.b16 %v2168
        %v3273 = vunpack.c.l.b16 %v2169
        %v3274 = vunpack.c.l.b16 %v2170
        %v3275 = vunpack.c.l.b16 %v2171
        %v3276 = vunpack.c.l.b16 %v2172
        %v3277 = vunpack.c.l.b16 %v2173
        %v3278 = vunpack.c.l.b16 %v2174
        %v3279 = vunpack.c.l.b16 %v2175
        %v3280 = vunpack.c.l.b16 %v2176
        %v3281 = vunpack.c.l.b16 %v2177
        %v3282 = vpack.c.b16 %v3251, %v3250
        %v3283 = vpack.c.b16 %v3253, %v3252
        %v3284 = vpack.c.b16 %v3255, %v3254
        %v3285 = vpack.c.b16 %v3257, %v3256
        %v3286 = vpack.c.b16 %v3259, %v3258
        %v3287 = vpack.c.b16 %v3261, %v3260
        %v3288 = vpack.c.b16 %v3263, %v3262
        %v3289 = vpack.c.b16 %v3265, %v3264
        %v3290 = vpack.c.b16 %v3267, %v3266
        %v3291 = vpack.c.b16 %v3269, %v3268
        %v3292 = vpack.c.b16 %v3271, %v3270
        %v3293 = vpack.c.b16 %v3273, %v3272
        %v3294 = vpack.c.b16 %v3275, %v3274
        %v3295 = vpack.c.b16 %v3277, %v3276
        %v3296 = vpack.c.b16 %v3279, %v3278
        %v3297 = vpack.c.b16 %v3281, %v3280
        %3298 = vrot.lane.b32.xlu0 %v3282, 96
        %v3299 = vpop.permute.xlu0 %3298
        %3300 = vrot.lane.b32.xlu0 %v3283, 96
        %v3301 = vpop.permute.xlu0 %3300
        %3302 = vrot.lane.b32.xlu0 %v3284, 96
        %v3303 = vpop.permute.xlu0 %3302
        %3304 = vrot.lane.b32.xlu0 %v3285, 96
        %v3305 = vpop.permute.xlu0 %3304
        %3306 = vrot.lane.b32.xlu0 %v3286, 96
        %v3307 = vpop.permute.xlu0 %3306
        %3308 = vrot.lane.b32.xlu0 %v3287, 96
        %v3309 = vpop.permute.xlu0 %3308
        %3310 = vrot.lane.b32.xlu0 %v3288, 96
        %v3311 = vpop.permute.xlu0 %3310
        %3312 = vrot.lane.b32.xlu0 %v3289, 96
        %v3313 = vpop.permute.xlu0 %3312
        %3314 = vrot.lane.b32.xlu0 %v3290, 96
        %v3315 = vpop.permute.xlu0 %3314
        %3316 = vrot.lane.b32.xlu0 %v3291, 96
        %v3317 = vpop.permute.xlu0 %3316
        %3318 = vrot.lane.b32.xlu0 %v3292, 96
        %v3319 = vpop.permute.xlu0 %3318
        %3320 = vrot.lane.b32.xlu0 %v3293, 96
        %v3321 = vpop.permute.xlu0 %3320
        %3322 = vrot.lane.b32.xlu0 %v3294, 96
        %v3323 = vpop.permute.xlu0 %3322
        %3324 = vrot.lane.b32.xlu0 %v3295, 96
        %v3325 = vpop.permute.xlu0 %3324
        %3326 = vrot.lane.b32.xlu0 %v3296, 96
        %v3327 = vpop.permute.xlu0 %3326
        %3328 = vrot.lane.b32.xlu0 %v3297, 96
        %v3329 = vpop.permute.xlu0 %3328
        %v3330 = vunpack.c.l.b16 %v2207
        %v3331 = vunpack.c.l.b16 %v2217
        %v3332 = vunpack.c.l.b16 %v2231
        %v3333 = vunpack.c.l.b16 %v2241
        %v3334 = vunpack.c.l.b16 %v2255
        %v3335 = vunpack.c.l.b16 %v2265
        %v3336 = vunpack.c.l.b16 %v2279
        %v3337 = vunpack.c.l.b16 %v2289
        %v3338 = vunpack.c.l.b16 %v2303
        %v3339 = vunpack.c.l.b16 %v2313
        %v3340 = vunpack.c.l.b16 %v2327
        %v3341 = vunpack.c.l.b16 %v2337
        %v3342 = vunpack.c.l.b16 %v2351
        %v3343 = vunpack.c.l.b16 %v2361
        %v3344 = vunpack.c.l.b16 %v2375
        %v3345 = vunpack.c.l.b16 %v2385
        %v3346 = vunpack.c.l.b16 %v2399
        %v3347 = vunpack.c.l.b16 %v2409
        %v3348 = vunpack.c.l.b16 %v2423
        %v3349 = vunpack.c.l.b16 %v2433
        %v3350 = vunpack.c.l.b16 %v2447
        %v3351 = vunpack.c.l.b16 %v2457
        %v3352 = vunpack.c.l.b16 %v2471
        %v3353 = vunpack.c.l.b16 %v2481
        %v3354 = vunpack.c.l.b16 %v2495
        %v3355 = vunpack.c.l.b16 %v2505
        %v3356 = vunpack.c.l.b16 %v2519
        %v3357 = vunpack.c.l.b16 %v2529
        %v3358 = vunpack.c.l.b16 %v2543
        %v3359 = vunpack.c.l.b16 %v2553
        %v3360 = vunpack.c.l.b16 %v2567
        %v3361 = vunpack.c.l.b16 %v2577
        %v3362 = vpack.c.b16 %v3331, %v3330
        %v3363 = vpack.c.b16 %v3333, %v3332
        %v3364 = vpack.c.b16 %v3335, %v3334
        %v3365 = vpack.c.b16 %v3337, %v3336
        %v3366 = vpack.c.b16 %v3339, %v3338
        %v3367 = vpack.c.b16 %v3341, %v3340
        %v3368 = vpack.c.b16 %v3343, %v3342
        %v3369 = vpack.c.b16 %v3345, %v3344
        %v3370 = vpack.c.b16 %v3347, %v3346
        %v3371 = vpack.c.b16 %v3349, %v3348
        %v3372 = vpack.c.b16 %v3351, %v3350
        %v3373 = vpack.c.b16 %v3353, %v3352
        %v3374 = vpack.c.b16 %v3355, %v3354
        %v3375 = vpack.c.b16 %v3357, %v3356
        %v3376 = vpack.c.b16 %v3359, %v3358
        %v3377 = vpack.c.b16 %v3361, %v3360
        %3378 = vrot.lane.b32.xlu0 %v3362, 112
        %v3379 = vpop.permute.xlu0 %3378
        %3380 = vrot.lane.b32.xlu0 %v3363, 112
        %v3381 = vpop.permute.xlu0 %3380
        %3382 = vrot.lane.b32.xlu0 %v3364, 112
        %v3383 = vpop.permute.xlu0 %3382
        %3384 = vrot.lane.b32.xlu0 %v3365, 112
        %v3385 = vpop.permute.xlu0 %3384
        %3386 = vrot.lane.b32.xlu0 %v3366, 112
        %v3387 = vpop.permute.xlu0 %3386
        %3388 = vrot.lane.b32.xlu0 %v3367, 112
        %v3389 = vpop.permute.xlu0 %3388
        %3390 = vrot.lane.b32.xlu0 %v3368, 112
        %v3391 = vpop.permute.xlu0 %3390
        %3392 = vrot.lane.b32.xlu0 %v3369, 112
        %v3393 = vpop.permute.xlu0 %3392
        %3394 = vrot.lane.b32.xlu0 %v3370, 112
        %v3395 = vpop.permute.xlu0 %3394
        %3396 = vrot.lane.b32.xlu0 %v3371, 112
        %v3397 = vpop.permute.xlu0 %3396
        %3398 = vrot.lane.b32.xlu0 %v3372, 112
        %v3399 = vpop.permute.xlu0 %3398
        %3400 = vrot.lane.b32.xlu0 %v3373, 112
        %v3401 = vpop.permute.xlu0 %3400
        %3402 = vrot.lane.b32.xlu0 %v3374, 112
        %v3403 = vpop.permute.xlu0 %3402
        %3404 = vrot.lane.b32.xlu0 %v3375, 112
        %v3405 = vpop.permute.xlu0 %3404
        %3406 = vrot.lane.b32.xlu0 %v3376, 112
        %v3407 = vpop.permute.xlu0 %3406
        %3408 = vrot.lane.b32.xlu0 %v3377, 112
        %v3409 = vpop.permute.xlu0 %3408
        %v3410 = vunpack.c.l.b16 %v2645
        %v3411 = vunpack.c.l.b16 %v2648
        %v3412 = vunpack.c.l.b16 %v2652
        %v3413 = vunpack.c.l.b16 %v2655
        %v3414 = vunpack.c.l.b16 %v2659
        %v3415 = vunpack.c.l.b16 %v2662
        %v3416 = vunpack.c.l.b16 %v2666
        %v3417 = vunpack.c.l.b16 %v2669
        %v3418 = vunpack.c.l.b16 %v2673
        %v3419 = vunpack.c.l.b16 %v2676
        %v3420 = vunpack.c.l.b16 %v2680
        %v3421 = vunpack.c.l.b16 %v2683
        %v3422 = vunpack.c.l.b16 %v2687
        %v3423 = vunpack.c.l.b16 %v2690
        %v3424 = vunpack.c.l.b16 %v2694
        %v3425 = vunpack.c.l.b16 %v2697
        %v3426 = vunpack.c.l.b16 %v2701
        %v3427 = vunpack.c.l.b16 %v2704
        %v3428 = vunpack.c.l.b16 %v2708
        %v3429 = vunpack.c.l.b16 %v2711
        %v3430 = vunpack.c.l.b16 %v2715
        %v3431 = vunpack.c.l.b16 %v2718
        %v3432 = vunpack.c.l.b16 %v2722
        %v3433 = vunpack.c.l.b16 %v2725
        %v3434 = vunpack.c.l.b16 %v2729
        %v3435 = vunpack.c.l.b16 %v2732
        %v3436 = vunpack.c.l.b16 %v2736
        %v3437 = vunpack.c.l.b16 %v2739
        %v3438 = vunpack.c.l.b16 %v2743
        %v3439 = vunpack.c.l.b16 %v2746
        %v3440 = vunpack.c.l.b16 %v2750
        %v3441 = vunpack.c.l.b16 %v2753
        %v3442 = vpack.c.b16 %v3411, %v3410
        %v3443 = vpack.c.b16 %v3413, %v3412
        %v3444 = vpack.c.b16 %v3415, %v3414
        %v3445 = vpack.c.b16 %v3417, %v3416
        %v3446 = vpack.c.b16 %v3419, %v3418
        %v3447 = vpack.c.b16 %v3421, %v3420
        %v3448 = vpack.c.b16 %v3423, %v3422
        %v3449 = vpack.c.b16 %v3425, %v3424
        %v3450 = vpack.c.b16 %v3427, %v3426
        %v3451 = vpack.c.b16 %v3429, %v3428
        %v3452 = vpack.c.b16 %v3431, %v3430
        %v3453 = vpack.c.b16 %v3433, %v3432
        %v3454 = vpack.c.b16 %v3435, %v3434
        %v3455 = vpack.c.b16 %v3437, %v3436
        %v3456 = vpack.c.b16 %v3439, %v3438
        %v3457 = vpack.c.b16 %v3441, %v3440
        %vm3458 = vcmask 130048
        %v3461 = vsel %vm3458, %v2802, %v2867
        %v3464 = vsel %vm3458, %v2803, %v2869
        %v3467 = vsel %vm3458, %v2804, %v2871
        %v3470 = vsel %vm3458, %v2805, %v2873
        %v3473 = vsel %vm3458, %v2806, %v2875
        %v3476 = vsel %vm3458, %v2807, %v2877
        %v3479 = vsel %vm3458, %v2808, %v2879
        %v3482 = vsel %vm3458, %v2809, %v2881
        %v3485 = vsel %vm3458, %v2810, %v2883
        %v3488 = vsel %vm3458, %v2811, %v2885
        %v3491 = vsel %vm3458, %v2812, %v2887
        %v3494 = vsel %vm3458, %v2813, %v2889
        %v3497 = vsel %vm3458, %v2814, %v2891
        %v3500 = vsel %vm3458, %v2815, %v2893
        %v3503 = vsel %vm3458, %v2816, %v2895
        %v3506 = vsel %vm3458, %v2817, %v2897
        %vm3507 = vcmask 261120
        %v3509 = vsel %vm3507, %v3461, %v2947
        %v3511 = vsel %vm3507, %v3464, %v2949
        %v3513 = vsel %vm3507, %v3467, %v2951
        %v3515 = vsel %vm3507, %v3470, %v2953
        %v3517 = vsel %vm3507, %v3473, %v2955
        %v3519 = vsel %vm3507, %v3476, %v2957
        %v3521 = vsel %vm3507, %v3479, %v2959
        %v3523 = vsel %vm3507, %v3482, %v2961
        %v3525 = vsel %vm3507, %v3485, %v2963
        %v3527 = vsel %vm3507, %v3488, %v2965
        %v3529 = vsel %vm3507, %v3491, %v2967
        %v3531 = vsel %vm3507, %v3494, %v2969
        %v3533 = vsel %vm3507, %v3497, %v2971
        %v3535 = vsel %vm3507, %v3500, %v2973
        %v3537 = vsel %vm3507, %v3503, %v2975
        %v3539 = vsel %vm3507, %v3506, %v2977
        %vm3540 = vcmask 392192
        %v3542 = vsel %vm3540, %v3509, %v3043
        %v3544 = vsel %vm3540, %v3511, %v3045
        %v3546 = vsel %vm3540, %v3513, %v3047
        %v3548 = vsel %vm3540, %v3515, %v3049
        %v3550 = vsel %vm3540, %v3517, %v3051
        %v3552 = vsel %vm3540, %v3519, %v3053
        %v3554 = vsel %vm3540, %v3521, %v3055
        %v3556 = vsel %vm3540, %v3523, %v3057
        %v3558 = vsel %vm3540, %v3525, %v3059
        %v3560 = vsel %vm3540, %v3527, %v3061
        %v3562 = vsel %vm3540, %v3529, %v3063
        %v3564 = vsel %vm3540, %v3531, %v3065
        %v3566 = vsel %vm3540, %v3533, %v3067
        %v3568 = vsel %vm3540, %v3535, %v3069
        %v3570 = vsel %vm3540, %v3537, %v3071
        %v3572 = vsel %vm3540, %v3539, %v3073
        %vm3573 = vcmask 523264
        %v3575 = vsel %vm3573, %v3542, %v3123
        %v3577 = vsel %vm3573, %v3544, %v3125
        %v3579 = vsel %vm3573, %v3546, %v3127
        %v3581 = vsel %vm3573, %v3548, %v3129
        %v3583 = vsel %vm3573, %v3550, %v3131
        %v3585 = vsel %vm3573, %v3552, %v3133
        %v3587 = vsel %vm3573, %v3554, %v3135
        %v3589 = vsel %vm3573, %v3556, %v3137
        %v3591 = vsel %vm3573, %v3558, %v3139
        %v3593 = vsel %vm3573, %v3560, %v3141
        %v3595 = vsel %vm3573, %v3562, %v3143
        %v3597 = vsel %vm3573, %v3564, %v3145
        %v3599 = vsel %vm3573, %v3566, %v3147
        %v3601 = vsel %vm3573, %v3568, %v3149
        %v3603 = vsel %vm3573, %v3570, %v3151
        %v3605 = vsel %vm3573, %v3572, %v3153
        %vm3606 = vcmask 654336
        %v3608 = vsel %vm3606, %v3575, %v3203
        %v3610 = vsel %vm3606, %v3577, %v3205
        %v3612 = vsel %vm3606, %v3579, %v3207
        %v3614 = vsel %vm3606, %v3581, %v3209
        %v3616 = vsel %vm3606, %v3583, %v3211
        %v3618 = vsel %vm3606, %v3585, %v3213
        %v3620 = vsel %vm3606, %v3587, %v3215
        %v3622 = vsel %vm3606, %v3589, %v3217
        %v3624 = vsel %vm3606, %v3591, %v3219
        %v3626 = vsel %vm3606, %v3593, %v3221
        %v3628 = vsel %vm3606, %v3595, %v3223
        %v3630 = vsel %vm3606, %v3597, %v3225
        %v3632 = vsel %vm3606, %v3599, %v3227
        %v3634 = vsel %vm3606, %v3601, %v3229
        %v3636 = vsel %vm3606, %v3603, %v3231
        %v3638 = vsel %vm3606, %v3605, %v3233
        %vm3639 = vcmask 785408
        %v3641 = vsel %vm3639, %v3608, %v3299
        %v3643 = vsel %vm3639, %v3610, %v3301
        %v3645 = vsel %vm3639, %v3612, %v3303
        %v3647 = vsel %vm3639, %v3614, %v3305
        %v3649 = vsel %vm3639, %v3616, %v3307
        %v3651 = vsel %vm3639, %v3618, %v3309
        %v3653 = vsel %vm3639, %v3620, %v3311
        %v3655 = vsel %vm3639, %v3622, %v3313
        %v3657 = vsel %vm3639, %v3624, %v3315
        %v3659 = vsel %vm3639, %v3626, %v3317
        %v3661 = vsel %vm3639, %v3628, %v3319
        %v3663 = vsel %vm3639, %v3630, %v3321
        %v3665 = vsel %vm3639, %v3632, %v3323
        %v3667 = vsel %vm3639, %v3634, %v3325
        %v3669 = vsel %vm3639, %v3636, %v3327
        %v3671 = vsel %vm3639, %v3638, %v3329
        %vm3672 = vcmask 916480
        %v3674 = vsel %vm3672, %v3641, %v3379
        %v3677 = vsel %vm3672, %v3643, %v3381
        %v3680 = vsel %vm3672, %v3645, %v3383
        %v3683 = vsel %vm3672, %v3647, %v3385
        %v3686 = vsel %vm3672, %v3649, %v3387
        %v3689 = vsel %vm3672, %v3651, %v3389
        %v3692 = vsel %vm3672, %v3653, %v3391
        %v3695 = vsel %vm3672, %v3655, %v3393
        %v3698 = vsel %vm3672, %v3657, %v3395
        %v3701 = vsel %vm3672, %v3659, %v3397
        %v3704 = vsel %vm3672, %v3661, %v3399
        %v3707 = vsel %vm3672, %v3663, %v3401
        %v3710 = vsel %vm3672, %v3665, %v3403
        %v3713 = vsel %vm3672, %v3667, %v3405
        %v3716 = vsel %vm3672, %v3669, %v3407
        %v3719 = vsel %vm3672, %v3671, %v3409
        %v3721 = vld [vmem:[%s1] sm:$0xf]
        %v3722 = vld [vmem:[%s1 + $0x4] sm:$0xf]
        %v3723 = vld [vmem:[%s1 + $0x8] sm:$0xf]
        %v3724 = vld [vmem:[%s1 + $0xc] sm:$0xf]
        %v3725 = vld [vmem:[%s1 + $0x10] sm:$0xf]
        %v3726 = vld [vmem:[%s1 + $0x14] sm:$0xf]
        %v3727 = vld [vmem:[%s1 + $0x18] sm:$0xf]
        %v3728 = vld [vmem:[%s1 + $0x1c] sm:$0xf]
        %v3729 = vld [vmem:[%s1 + $0x20] sm:$0xf]
        %v3730 = vld [vmem:[%s1 + $0x24] sm:$0xf]
        %v3731 = vld [vmem:[%s1 + $0x28] sm:$0xf]
        %v3732 = vld [vmem:[%s1 + $0x2c] sm:$0xf]
        %v3733 = vld [vmem:[%s1 + $0x30] sm:$0xf]
        %v3734 = vld [vmem:[%s1 + $0x34] sm:$0xf]
        %v3735 = vld [vmem:[%s1 + $0x38] sm:$0xf]
        %v3736 = vld [vmem:[%s1 + $0x3c] sm:$0xf]
        %v3737 = vld [vmem:[%s1 + $0x40] sm:$0xf]
        %v3738 = vld [vmem:[%s1 + $0x44] sm:$0xf]
        %v3739 = vld [vmem:[%s2] sm:$0x1]
        %v3741 = vlaneseq
        %v3742 = vshrl.u32 %v3741, 7
        %v3743 = vsub.s32 0, %v3742
        %v3744 = vrot.slane %v3739, %v3743
        %v3764 = vunpack.c.l.b16 %v3721
        %v3765 = vunpack.c.l.b16 %v3722
        %v3766 = vunpack.c.l.b16 %v3723
        %v3767 = vunpack.c.l.b16 %v3724
        %v3768 = vunpack.c.l.b16 %v3725
        %v3769 = vunpack.c.l.b16 %v3726
        %v3770 = vunpack.c.l.b16 %v3727
        %v3771 = vunpack.c.l.b16 %v3728
        %v3772 = vunpack.c.l.b16 %v3729
        %v3773 = vunpack.c.l.b16 %v3730
        %v3774 = vunpack.c.l.b16 %v3731
        %v3775 = vunpack.c.l.b16 %v3732
        %v3776 = vunpack.c.l.b16 %v3733
        %v3777 = vunpack.c.l.b16 %v3734
        %v3778 = vunpack.c.l.b16 %v3735
        %v3779 = vunpack.c.l.b16 %v3736
        %v3780 = vunpack.c.l.b16 %v3737
        %v3781 = vunpack.c.l.b16 %v3738
        %v3782 = vpack.c.b16 %v3765, %v3764
        %v3783 = vpack.c.b16 %v3767, %v3766
        %v3784 = vpack.c.b16 %v3769, %v3768
        %v3785 = vpack.c.b16 %v3771, %v3770
        %v3786 = vpack.c.b16 %v3773, %v3772
        %v3787 = vpack.c.b16 %v3775, %v3774
        %v3788 = vpack.c.b16 %v3777, %v3776
        %v3789 = vpack.c.b16 %v3779, %v3778
        %v3790 = vpack.c.b16 %v3781, %v3780
        %v3801 = vsel %vm3458, %v3442, 0
        %v3804 = vsel %vm3458, %v3443, 0
        %v3807 = vsel %vm3458, %v3444, 0
        %v3810 = vsel %vm3458, %v3445, 0
        %v3813 = vsel %vm3458, %v3446, 0
        %v3816 = vsel %vm3458, %v3447, 0
        %v3819 = vsel %vm3458, %v3448, 0
        %v3822 = vsel %vm3458, %v3449, 0
        %v3825 = vsel %vm3458, %v3450, 0
        %v3828 = vsel %vm3458, %v3451, 0
        %v3831 = vsel %vm3458, %v3452, 0
        %v3834 = vsel %vm3458, %v3453, 0
        %v3837 = vsel %vm3458, %v3454, 0
        %v3840 = vsel %vm3458, %v3455, 0
        %v3843 = vsel %vm3458, %v3456, 0
        %v3846 = vsel %vm3458, %v3457, 0
        %3848 = vmatprep.subr.bf16.mxu0 0
        %3849 = vmatpush1.bf16.msra.mxu0 %v3782
        %3850 = vmatprep.subr.bf16.mxu0 0
        %3851 = vmatpush1.bf16.msra.mxu0 %v3783
        %3852 = vmatprep.subr.bf16.mxu0 0
        %3853 = vmatpush1.bf16.msra.mxu0 %v3784
        %3854 = vmatprep.subr.bf16.mxu0 0
        %3855 = vmatpush1.bf16.msra.mxu0 %v3785
        %3856 = vmatprep.subr.bf16.mxu0 0
        %3857 = vmatpush1.bf16.msra.mxu0 %v3786
        %3858 = vmatprep.subr.bf16.mxu0 0
        %3859 = vmatpush1.bf16.msra.mxu0 %v3787
        %3860 = vmatprep.subr.bf16.mxu0 0
        %3861 = vmatpush1.bf16.msra.mxu0 %v3788
        %3862 = vmatprep.subr.bf16.mxu0 0
        %3863 = vmatpush1.bf16.msra.mxu0 %v3789
        %3864 = vmatprep.subr.bf16.mxu0 0
        %3865 = vmatpush1.bf16.msra.mxu0 %v3790
        %3866 = vmatprep.subr.bf16.mxu0 0
        %3867 = vmatpush1.bf16.msra.mxu0 0
        %3868 = vmatprep.subr.bf16.mxu0 0
        %3869 = vmatpush1.bf16.msra.mxu0 0
        %3870 = vmatprep.subr.bf16.mxu0 0
        %3871 = vmatpush1.bf16.msra.mxu0 0
        %3872 = vmatprep.subr.bf16.mxu0 0
        %3873 = vmatpush1.bf16.msra.mxu0 0
        %3874 = vmatprep.subr.bf16.mxu0 0
        %3875 = vmatpush1.bf16.msra.mxu0 0
        %3876 = vmatprep.subr.bf16.mxu0 0
        %3877 = vmatpush1.bf16.msra.mxu0 0
        %3878 = vmatprep.subr.bf16.mxu0 0
        %3879 = vmatpush1.bf16.msra.mxu0 0
        %3880 = vmatprep.mubr.bf16.mxu0 %v3801
        %3881 = vmatmul.mubr.bf16.gmra.mrb[0].mxu0 %v3674
        %v3882 = vpop.f32.mrb[0].mxu0
        %v3883 = vadd.f32 %v3744, %v3882
        %v3884 = vpop.f32.mrb[0].mxu0
        %v3885 = vpop.f32.mrb[0].mxu0
        %v3886 = vadd.f32 %v3744, %v3885
        %v3887 = vpop.f32.mrb[0].mxu0
        %3888 = vmatprep.mubr.bf16.mxu0 %v3804
        %3889 = vmatmul.mubr.bf16.gmra.mrb[0].mxu0 %v3677
        %v3890 = vpop.f32.mrb[0].mxu0
        %v3891 = vadd.f32 %v3744, %v3890
        %v3892 = vpop.f32.mrb[0].mxu0
        %v3893 = vpop.f32.mrb[0].mxu0
        %v3894 = vadd.f32 %v3744, %v3893
        %v3895 = vpop.f32.mrb[0].mxu0
        %3896 = vmatprep.mubr.bf16.mxu0 %v3807
        %3897 = vmatmul.mubr.bf16.gmra.mrb[0].mxu0 %v3680
        %v3898 = vpop.f32.mrb[0].mxu0
        %v3899 = vadd.f32 %v3744, %v3898
        %v3900 = vpop.f32.mrb[0].mxu0
        %v3901 = vpop.f32.mrb[0].mxu0
        %v3902 = vadd.f32 %v3744, %v3901
        %v3903 = vpop.f32.mrb[0].mxu0
        %3904 = vmatprep.mubr.bf16.mxu0 %v3810
        %3905 = vmatmul.mubr.bf16.gmra.mrb[0].mxu0 %v3683
        %v3906 = vpop.f32.mrb[0].mxu0
        %v3907 = vadd.f32 %v3744, %v3906
        %v3908 = vpop.f32.mrb[0].mxu0
        %v3909 = vpop.f32.mrb[0].mxu0
        %v3910 = vadd.f32 %v3744, %v3909
        %v3911 = vpop.f32.mrb[0].mxu0
        %3912 = vmatprep.mubr.bf16.mxu0 %v3813
        %3913 = vmatmul.mubr.bf16.gmra.mrb[0].mxu0 %v3686
        %v3914 = vpop.f32.mrb[0].mxu0
        %v3915 = vadd.f32 %v3744, %v3914
        %v3916 = vpop.f32.mrb[0].mxu0
        %v3917 = vpop.f32.mrb[0].mxu0
        %v3918 = vadd.f32 %v3744, %v3917
        %v3919 = vpop.f32.mrb[0].mxu0
        %3920 = vmatprep.mubr.bf16.mxu0 %v3816
        %3921 = vmatmul.mubr.bf16.gmra.mrb[0].mxu0 %v3689
        %v3922 = vpop.f32.mrb[0].mxu0
        %v3923 = vadd.f32 %v3744, %v3922
        %v3924 = vpop.f32.mrb[0].mxu0
        %v3925 = vpop.f32.mrb[0].mxu0
        %v3926 = vadd.f32 %v3744, %v3925
        %v3927 = vpop.f32.mrb[0].mxu0
        %3928 = vmatprep.mubr.bf16.mxu0 %v3819
        %3929 = vmatmul.mubr.bf16.gmra.mrb[0].mxu0 %v3692
        %v3930 = vpop.f32.mrb[0].mxu0
        %v3931 = vadd.f32 %v3744, %v3930
        %v3932 = vpop.f32.mrb[0].mxu0
        %v3933 = vpop.f32.mrb[0].mxu0
        %v3934 = vadd.f32 %v3744, %v3933
        %v3935 = vpop.f32.mrb[0].mxu0
        %3936 = vmatprep.mubr.bf16.mxu0 %v3822
        %3937 = vmatmul.mubr.bf16.gmra.mrb[0].mxu0 %v3695
        %v3938 = vpop.f32.mrb[0].mxu0
        %v3939 = vadd.f32 %v3744, %v3938
        %v3940 = vpop.f32.mrb[0].mxu0
        %v3941 = vpop.f32.mrb[0].mxu0
        %v3942 = vadd.f32 %v3744, %v3941
        %v3943 = vpop.f32.mrb[0].mxu0
        %3944 = vmatprep.mubr.bf16.mxu0 %v3825
        %3945 = vmatmul.mubr.bf16.gmra.mrb[0].mxu0 %v3698
        %v3946 = vpop.f32.mrb[0].mxu0
        %v3947 = vadd.f32 %v3744, %v3946
        %v3948 = vpop.f32.mrb[0].mxu0
        %v3949 = vpop.f32.mrb[0].mxu0
        %v3950 = vadd.f32 %v3744, %v3949
        %v3951 = vpop.f32.mrb[0].mxu0
        %3952 = vmatprep.mubr.bf16.mxu0 %v3828
        %3953 = vmatmul.mubr.bf16.gmra.mrb[0].mxu0 %v3701
        %v3954 = vpop.f32.mrb[0].mxu0
        %v3955 = vadd.f32 %v3744, %v3954
        %v3956 = vpop.f32.mrb[0].mxu0
        %v3957 = vpop.f32.mrb[0].mxu0
        %v3958 = vadd.f32 %v3744, %v3957
        %v3959 = vpop.f32.mrb[0].mxu0
        %3960 = vmatprep.mubr.bf16.mxu0 %v3831
        %3961 = vmatmul.mubr.bf16.gmra.mrb[0].mxu0 %v3704
        %v3962 = vpop.f32.mrb[0].mxu0
        %v3963 = vadd.f32 %v3744, %v3962
        %v3964 = vpop.f32.mrb[0].mxu0
        %v3965 = vpop.f32.mrb[0].mxu0
        %v3966 = vadd.f32 %v3744, %v3965
        %v3967 = vpop.f32.mrb[0].mxu0
        %3968 = vmatprep.mubr.bf16.mxu0 %v3834
        %3969 = vmatmul.mubr.bf16.gmra.mrb[0].mxu0 %v3707
        %v3970 = vpop.f32.mrb[0].mxu0
        %v3971 = vadd.f32 %v3744, %v3970
        %v3972 = vpop.f32.mrb[0].mxu0
        %v3973 = vpop.f32.mrb[0].mxu0
        %v3974 = vadd.f32 %v3744, %v3973
        %v3975 = vpop.f32.mrb[0].mxu0
        %3976 = vmatprep.mubr.bf16.mxu0 %v3837
        %3977 = vmatmul.mubr.bf16.gmra.mrb[0].mxu0 %v3710
        %v3978 = vpop.f32.mrb[0].mxu0
        %v3979 = vadd.f32 %v3744, %v3978
        %v3980 = vpop.f32.mrb[0].mxu0
        %v3981 = vpop.f32.mrb[0].mxu0
        %v3982 = vadd.f32 %v3744, %v3981
        %v3983 = vpop.f32.mrb[0].mxu0
        %3984 = vmatprep.mubr.bf16.mxu0 %v3840
        %3985 = vmatmul.mubr.bf16.gmra.mrb[0].mxu0 %v3713
        %v3986 = vpop.f32.mrb[0].mxu0
        %v3987 = vadd.f32 %v3744, %v3986
        %v3988 = vpop.f32.mrb[0].mxu0
        %v3989 = vpop.f32.mrb[0].mxu0
        %v3990 = vadd.f32 %v3744, %v3989
        %v3991 = vpop.f32.mrb[0].mxu0
        %3992 = vmatprep.mubr.bf16.mxu0 %v3843
        %3993 = vmatmul.mubr.bf16.gmra.mrb[0].mxu0 %v3716
        %v3994 = vpop.f32.mrb[0].mxu0
        %v3995 = vadd.f32 %v3744, %v3994
        %v3996 = vpop.f32.mrb[0].mxu0
        %v3997 = vpop.f32.mrb[0].mxu0
        %v3998 = vadd.f32 %v3744, %v3997
        %v3999 = vpop.f32.mrb[0].mxu0
        %4000 = vmatprep.mubr.bf16.mxu0 %v3846
        %4001 = vmatmul.mubr.bf16.gmra.mrb[0].mxu0 %v3719
        %v4002 = vpop.f32.mrb[0].mxu0
        %v4003 = vadd.f32 %v3744, %v4002
        %v4004 = vpop.f32.mrb[0].mxu0
        %v4005 = vpop.f32.mrb[0].mxu0
        %v4006 = vadd.f32 %v3744, %v4005
        %v4007 = vpop.f32.mrb[0].mxu0
        %4008 = vdwg.mxu0
        %vm4009 = vcmp.ge.f32.partialorder %v3883, 0.0
        %vm4010 = vcmp.ge.f32.partialorder %v3886, 0.0
        %vm4011 = vcmp.ge.f32.partialorder %v3891, 0.0
        %vm4012 = vcmp.ge.f32.partialorder %v3894, 0.0
        %vm4013 = vcmp.ge.f32.partialorder %v3899, 0.0
        %vm4014 = vcmp.ge.f32.partialorder %v3902, 0.0
        %vm4015 = vcmp.ge.f32.partialorder %v3907, 0.0
        %vm4016 = vcmp.ge.f32.partialorder %v3910, 0.0
        %vm4017 = vcmp.ge.f32.partialorder %v3915, 0.0
        %vm4018 = vcmp.ge.f32.partialorder %v3918, 0.0
        %vm4019 = vcmp.ge.f32.partialorder %v3923, 0.0
        %vm4020 = vcmp.ge.f32.partialorder %v3926, 0.0
        %vm4021 = vcmp.ge.f32.partialorder %v3931, 0.0
        %vm4022 = vcmp.ge.f32.partialorder %v3934, 0.0
        %vm4023 = vcmp.ge.f32.partialorder %v3939, 0.0
        %vm4024 = vcmp.ge.f32.partialorder %v3942, 0.0
        %vm4025 = vcmp.ge.f32.partialorder %v3947, 0.0
        %vm4026 = vcmp.ge.f32.partialorder %v3950, 0.0
        %vm4027 = vcmp.ge.f32.partialorder %v3955, 0.0
        %vm4028 = vcmp.ge.f32.partialorder %v3958, 0.0
        %vm4029 = vcmp.ge.f32.partialorder %v3963, 0.0
        %vm4030 = vcmp.ge.f32.partialorder %v3966, 0.0
        %vm4031 = vcmp.ge.f32.partialorder %v3971, 0.0
        %vm4032 = vcmp.ge.f32.partialorder %v3974, 0.0
        %vm4033 = vcmp.ge.f32.partialorder %v3979, 0.0
        %vm4034 = vcmp.ge.f32.partialorder %v3982, 0.0
        %vm4035 = vcmp.ge.f32.partialorder %v3987, 0.0
        %vm4036 = vcmp.ge.f32.partialorder %v3990, 0.0
        %vm4037 = vcmp.ge.f32.partialorder %v3995, 0.0
        %vm4038 = vcmp.ge.f32.partialorder %v3998, 0.0
        %vm4039 = vcmp.ge.f32.partialorder %v4003, 0.0
        %vm4040 = vcmp.ge.f32.partialorder %v4006, 0.0
        %v4041 = vmul.f32 %v3883, 0.01
        %v4042 = vmul.f32 %v3886, 0.01
        %v4043 = vmul.f32 %v3891, 0.01
        %v4044 = vmul.f32 %v3894, 0.01
        %v4045 = vmul.f32 %v3899, 0.01
        %v4046 = vmul.f32 %v3902, 0.01
        %v4047 = vmul.f32 %v3907, 0.01
        %v4048 = vmul.f32 %v3910, 0.01
        %v4049 = vmul.f32 %v3915, 0.01
        %v4050 = vmul.f32 %v3918, 0.01
        %v4051 = vmul.f32 %v3923, 0.01
        %v4052 = vmul.f32 %v3926, 0.01
        %v4053 = vmul.f32 %v3931, 0.01
        %v4054 = vmul.f32 %v3934, 0.01
        %v4055 = vmul.f32 %v3939, 0.01
        %v4056 = vmul.f32 %v3942, 0.01
        %v4057 = vmul.f32 %v3947, 0.01
        %v4058 = vmul.f32 %v3950, 0.01
        %v4059 = vmul.f32 %v3955, 0.01
        %v4060 = vmul.f32 %v3958, 0.01
        %v4061 = vmul.f32 %v3963, 0.01
        %v4062 = vmul.f32 %v3966, 0.01
        %v4063 = vmul.f32 %v3971, 0.01
        %v4064 = vmul.f32 %v3974, 0.01
        %v4065 = vmul.f32 %v3979, 0.01
        %v4066 = vmul.f32 %v3982, 0.01
        %v4067 = vmul.f32 %v3987, 0.01
        %v4068 = vmul.f32 %v3990, 0.01
        %v4069 = vmul.f32 %v3995, 0.01
        %v4070 = vmul.f32 %v3998, 0.01
        %v4071 = vmul.f32 %v4003, 0.01
        %v4072 = vmul.f32 %v4006, 0.01
        %v4073 = vsel %vm4009, %v3883, %v4041
        %v4074 = vsel %vm4010, %v3886, %v4042
        %v4075 = vsel %vm4011, %v3891, %v4043
        %v4076 = vsel %vm4012, %v3894, %v4044
        %v4077 = vsel %vm4013, %v3899, %v4045
        %v4078 = vsel %vm4014, %v3902, %v4046
        %v4079 = vsel %vm4015, %v3907, %v4047
        %v4080 = vsel %vm4016, %v3910, %v4048
        %v4081 = vsel %vm4017, %v3915, %v4049
        %v4082 = vsel %vm4018, %v3918, %v4050
        %v4083 = vsel %vm4019, %v3923, %v4051
        %v4084 = vsel %vm4020, %v3926, %v4052
        %v4085 = vsel %vm4021, %v3931, %v4053
        %v4086 = vsel %vm4022, %v3934, %v4054
        %v4087 = vsel %vm4023, %v3939, %v4055
        %v4088 = vsel %vm4024, %v3942, %v4056
        %v4089 = vsel %vm4025, %v3947, %v4057
        %v4090 = vsel %vm4026, %v3950, %v4058
        %v4091 = vsel %vm4027, %v3955, %v4059
        %v4092 = vsel %vm4028, %v3958, %v4060
        %v4093 = vsel %vm4029, %v3963, %v4061
        %v4094 = vsel %vm4030, %v3966, %v4062
        %v4095 = vsel %vm4031, %v3971, %v4063
        %v4096 = vsel %vm4032, %v3974, %v4064
        %v4097 = vsel %vm4033, %v3979, %v4065
        %v4098 = vsel %vm4034, %v3982, %v4066
        %v4099 = vsel %vm4035, %v3987, %v4067
        %v4100 = vsel %vm4036, %v3990, %v4068
        %v4101 = vsel %vm4037, %v3995, %v4069
        %v4102 = vsel %vm4038, %v3998, %v4070
        %v4103 = vsel %vm4039, %v4003, %v4071
        %v4104 = vsel %vm4040, %v4006, %v4072
        %4105 = vst.msk [vmem:[#allocation3 + $0x1] sm:$0xff] %vm3507, %v4073
        %4106 = vst.msk [vmem:[#allocation3 + $0x9] sm:$0xff] %vm3507, %v4074
        %4107 = vst.msk [vmem:[#allocation3 + $0x19] sm:$0xff] %vm3507, %v4075
        %4108 = vst.msk [vmem:[#allocation3 + $0x21] sm:$0xff] %vm3507, %v4076
        %4109 = vst.msk [vmem:[#allocation3 + $0x31] sm:$0xff] %vm3507, %v4077
        %4110 = vst.msk [vmem:[#allocation3 + $0x39] sm:$0xff] %vm3507, %v4078
        %4111 = vst.msk [vmem:[#allocation3 + $0x49] sm:$0xff] %vm3507, %v4079
        %4112 = vst.msk [vmem:[#allocation3 + $0x51] sm:$0xff] %vm3507, %v4080
        %4113 = vst.msk [vmem:[#allocation3 + $0x61] sm:$0xff] %vm3507, %v4081
        %4114 = vst.msk [vmem:[#allocation3 + $0x69] sm:$0xff] %vm3507, %v4082
        %4115 = vst.msk [vmem:[#allocation3 + $0x79] sm:$0xff] %vm3507, %v4083
        %4116 = vst.msk [vmem:[#allocation3 + $0x81] sm:$0xff] %vm3507, %v4084
        %4117 = vst.msk [vmem:[#allocation3 + $0x91] sm:$0xff] %vm3507, %v4085
        %4118 = vst.msk [vmem:[#allocation3 + $0x99] sm:$0xff] %vm3507, %v4086
        %4119 = vst.msk [vmem:[#allocation3 + $0xa9] sm:$0xff] %vm3507, %v4087
        %4120 = vst.msk [vmem:[#allocation3 + $0xb1] sm:$0xff] %vm3507, %v4088
        %4121 = vst.msk [vmem:[#allocation3 + $0xc1] sm:$0xff] %vm3507, %v4089
        %4122 = vst.msk [vmem:[#allocation3 + $0xc9] sm:$0xff] %vm3507, %v4090
        %4123 = vst.msk [vmem:[#allocation3 + $0xd9] sm:$0xff] %vm3507, %v4091
        %4124 = vst.msk [vmem:[#allocation3 + $0xe1] sm:$0xff] %vm3507, %v4092
        %4125 = vst.msk [vmem:[#allocation3 + $0xf1] sm:$0xff] %vm3507, %v4093
        %4126 = vst.msk [vmem:[#allocation3 + $0xf9] sm:$0xff] %vm3507, %v4094
        %4127 = vst.msk [vmem:[#allocation3 + $0x109] sm:$0xff] %vm3507, %v4095
        %4128 = vst.msk [vmem:[#allocation3 + $0x111] sm:$0xff] %vm3507, %v4096
        %4129 = vst.msk [vmem:[#allocation3 + $0x121] sm:$0xff] %vm3507, %v4097
        %4130 = vst.msk [vmem:[#allocation3 + $0x129] sm:$0xff] %vm3507, %v4098
        %4131 = vst.msk [vmem:[#allocation3 + $0x139] sm:$0xff] %vm3507, %v4099
        %4132 = vst.msk [vmem:[#allocation3 + $0x141] sm:$0xff] %vm3507, %v4100
        %4133 = vst.msk [vmem:[#allocation3 + $0x151] sm:$0xff] %vm3507, %v4101
        %4134 = vst.msk [vmem:[#allocation3 + $0x159] sm:$0xff] %vm3507, %v4102
        %4135 = vst.msk [vmem:[#allocation3 + $0x169] sm:$0xff] %vm3507, %v4103
        %4136 = vst.msk [vmem:[#allocation3 + $0x171] sm:$0xff] %vm3507, %v4104
        %vm4137 = vcmask 253952
        %4138 = vst.msk [vmem:[#allocation3] sm:$0x1] %vm4137, -3.4028235e+38
        %4139 = vst.msk [vmem:[#allocation3 + $0x18] sm:$0x1] %vm4137, -3.4028235e+38
        %4140 = vst.msk [vmem:[#allocation3 + $0x30] sm:$0x1] %vm4137, -3.4028235e+38
        %4141 = vst.msk [vmem:[#allocation3 + $0x48] sm:$0x1] %vm4137, -3.4028235e+38
        %4142 = vst.msk [vmem:[#allocation3 + $0x60] sm:$0x1] %vm4137, -3.4028235e+38
        %4143 = vst.msk [vmem:[#allocation3 + $0x78] sm:$0x1] %vm4137, -3.4028235e+38
        %4144 = vst.msk [vmem:[#allocation3 + $0x90] sm:$0x1] %vm4137, -3.4028235e+38
        %4145 = vst.msk [vmem:[#allocation3 + $0xa8] sm:$0x1] %vm4137, -3.4028235e+38
        %4146 = vst.msk [vmem:[#allocation3 + $0xc0] sm:$0x1] %vm4137, -3.4028235e+38
        %4147 = vst.msk [vmem:[#allocation3 + $0xd8] sm:$0x1] %vm4137, -3.4028235e+38
        %4148 = vst.msk [vmem:[#allocation3 + $0xf0] sm:$0x1] %vm4137, -3.4028235e+38
        %4149 = vst.msk [vmem:[#allocation3 + $0x108] sm:$0x1] %vm4137, -3.4028235e+38
        %4150 = vst.msk [vmem:[#allocation3 + $0x120] sm:$0x1] %vm4137, -3.4028235e+38
        %4151 = vst.msk [vmem:[#allocation3 + $0x138] sm:$0x1] %vm4137, -3.4028235e+38
        %4152 = vst.msk [vmem:[#allocation3 + $0x150] sm:$0x1] %vm4137, -3.4028235e+38
        %4153 = vst.msk [vmem:[#allocation3 + $0x168] sm:$0x1] %vm4137, -3.4028235e+38
        %4154 = vst.msk [vmem:[#allocation3 + $0x11] sm:$0x1] %vm4137, -3.4028235e+38
        %4155 = vst.msk [vmem:[#allocation3 + $0x29] sm:$0x1] %vm4137, -3.4028235e+38
        %4156 = vst.msk [vmem:[#allocation3 + $0x41] sm:$0x1] %vm4137, -3.4028235e+38
        %4157 = vst.msk [vmem:[#allocation3 + $0x59] sm:$0x1] %vm4137, -3.4028235e+38
        %4158 = vst.msk [vmem:[#allocation3 + $0x71] sm:$0x1] %vm4137, -3.4028235e+38
        %4159 = vst.msk [vmem:[#allocation3 + $0x89] sm:$0x1] %vm4137, -3.4028235e+38
        %4160 = vst.msk [vmem:[#allocation3 + $0xa1] sm:$0x1] %vm4137, -3.4028235e+38
        %4161 = vst.msk [vmem:[#allocation3 + $0xb9] sm:$0x1] %vm4137, -3.4028235e+38
        %4162 = vst.msk [vmem:[#allocation3 + $0xd1] sm:$0x1] %vm4137, -3.4028235e+38
        %4163 = vst.msk [vmem:[#allocation3 + $0xe9] sm:$0x1] %vm4137, -3.4028235e+38
        %4164 = vst.msk [vmem:[#allocation3 + $0x101] sm:$0x1] %vm4137, -3.4028235e+38
        %4165 = vst.msk [vmem:[#allocation3 + $0x119] sm:$0x1] %vm4137, -3.4028235e+38
        %4166 = vst.msk [vmem:[#allocation3 + $0x131] sm:$0x1] %vm4137, -3.4028235e+38
        %4167 = vst.msk [vmem:[#allocation3 + $0x149] sm:$0x1] %vm4137, -3.4028235e+38
        %4168 = vst.msk [vmem:[#allocation3 + $0x161] sm:$0x1] %vm4137, -3.4028235e+38
        %4169 = vst.msk [vmem:[#allocation3 + $0x179] sm:$0x1] %vm4137, -3.4028235e+38
        %v4170 = vld [vmem:[#allocation3] sm:$0xff]
        %v4171 = vld [vmem:[#allocation3 + $0x8] sm:$0xff]
        %v4172 = vld [vmem:[#allocation3 + $0x18] sm:$0xff]
        %v4173 = vld [vmem:[#allocation3 + $0x20] sm:$0xff]
        %v4174 = vld [vmem:[#allocation3 + $0x30] sm:$0xff]
        %v4175 = vld [vmem:[#allocation3 + $0x38] sm:$0xff]
        %v4176 = vld [vmem:[#allocation3 + $0x48] sm:$0xff]
        %v4177 = vld [vmem:[#allocation3 + $0x50] sm:$0xff]
        %v4178 = vld [vmem:[#allocation3 + $0x60] sm:$0xff]
        %v4179 = vld [vmem:[#allocation3 + $0x68] sm:$0xff]
        %v4180 = vld [vmem:[#allocation3 + $0x78] sm:$0xff]
        %v4181 = vld [vmem:[#allocation3 + $0x80] sm:$0xff]
        %v4182 = vld [vmem:[#allocation3 + $0x90] sm:$0xff]
        %v4183 = vld [vmem:[#allocation3 + $0x98] sm:$0xff]
        %v4184 = vld [vmem:[#allocation3 + $0xa8] sm:$0xff]
        %v4185 = vld [vmem:[#allocation3 + $0xb0] sm:$0xff]
        %v4186 = vld [vmem:[#allocation3 + $0xc0] sm:$0xff]
        %v4187 = vld [vmem:[#allocation3 + $0xc8] sm:$0xff]
        %v4188 = vld [vmem:[#allocation3 + $0xd8] sm:$0xff]
        %v4189 = vld [vmem:[#allocation3 + $0xe0] sm:$0xff]
        %v4190 = vld [vmem:[#allocation3 + $0xf0] sm:$0xff]
        %v4191 = vld [vmem:[#allocation3 + $0xf8] sm:$0xff]
        %v4192 = vld [vmem:[#allocation3 + $0x108] sm:$0xff]
        %v4193 = vld [vmem:[#allocation3 + $0x110] sm:$0xff]
        %v4194 = vld [vmem:[#allocation3 + $0x120] sm:$0xff]
        %v4195 = vld [vmem:[#allocation3 + $0x128] sm:$0xff]
        %v4196 = vld [vmem:[#allocation3 + $0x138] sm:$0xff]
        %v4197 = vld [vmem:[#allocation3 + $0x140] sm:$0xff]
        %v4198 = vld [vmem:[#allocation3 + $0x150] sm:$0xff]
        %v4199 = vld [vmem:[#allocation3 + $0x158] sm:$0xff]
        %v4200 = vld [vmem:[#allocation3 + $0x168] sm:$0xff]
        %v4201 = vld [vmem:[#allocation3 + $0x170] sm:$0xff]
        %v4202 = vld [vmem:[#allocation3 + $0x1] sm:$0xff]
        %v4203 = vld [vmem:[#allocation3 + $0x9] sm:$0xff]
        %v4204 = vld [vmem:[#allocation3 + $0x19] sm:$0xff]
        %v4205 = vld [vmem:[#allocation3 + $0x21] sm:$0xff]
        %v4206 = vld [vmem:[#allocation3 + $0x31] sm:$0xff]
        %v4207 = vld [vmem:[#allocation3 + $0x39] sm:$0xff]
        %v4208 = vld [vmem:[#allocation3 + $0x49] sm:$0xff]
        %v4209 = vld [vmem:[#allocation3 + $0x51] sm:$0xff]
        %v4210 = vld [vmem:[#allocation3 + $0x61] sm:$0xff]
        %v4211 = vld [vmem:[#allocation3 + $0x69] sm:$0xff]
        %v4212 = vld [vmem:[#allocation3 + $0x79] sm:$0xff]
        %v4213 = vld [vmem:[#allocation3 + $0x81] sm:$0xff]
        %v4214 = vld [vmem:[#allocation3 + $0x91] sm:$0xff]
        %v4215 = vld [vmem:[#allocation3 + $0x99] sm:$0xff]
        %v4216 = vld [vmem:[#allocation3 + $0xa9] sm:$0xff]
        %v4217 = vld [vmem:[#allocation3 + $0xb1] sm:$0xff]
        %v4218 = vld [vmem:[#allocation3 + $0xc1] sm:$0xff]
        %v4219 = vld [vmem:[#allocation3 + $0xc9] sm:$0xff]
        %v4220 = vld [vmem:[#allocation3 + $0xd9] sm:$0xff]
        %v4221 = vld [vmem:[#allocation3 + $0xe1] sm:$0xff]
        %v4222 = vld [vmem:[#allocation3 + $0xf1] sm:$0xff]
        %v4223 = vld [vmem:[#allocation3 + $0xf9] sm:$0xff]
        %v4224 = vld [vmem:[#allocation3 + $0x109] sm:$0xff]
        %v4225 = vld [vmem:[#allocation3 + $0x111] sm:$0xff]
        %v4226 = vld [vmem:[#allocation3 + $0x121] sm:$0xff]
        %v4227 = vld [vmem:[#allocation3 + $0x129] sm:$0xff]
        %v4228 = vld [vmem:[#allocation3 + $0x139] sm:$0xff]
        %v4229 = vld [vmem:[#allocation3 + $0x141] sm:$0xff]
        %v4230 = vld [vmem:[#allocation3 + $0x151] sm:$0xff]
        %v4231 = vld [vmem:[#allocation3 + $0x159] sm:$0xff]
        %v4232 = vld [vmem:[#allocation3 + $0x169] sm:$0xff]
        %v4233 = vld [vmem:[#allocation3 + $0x171] sm:$0xff]
        %v4234 = vmax.f32 %v4170, %v4202
        %v4235 = vmax.f32 %v4171, %v4203
        %v4236 = vmax.f32 %v4172, %v4204
        %v4237 = vmax.f32 %v4173, %v4205
        %v4238 = vmax.f32 %v4174, %v4206
        %v4239 = vmax.f32 %v4175, %v4207
        %v4240 = vmax.f32 %v4176, %v4208
        %v4241 = vmax.f32 %v4177, %v4209
        %v4242 = vmax.f32 %v4178, %v4210
        %v4243 = vmax.f32 %v4179, %v4211
        %v4244 = vmax.f32 %v4180, %v4212
        %v4245 = vmax.f32 %v4181, %v4213
        %v4246 = vmax.f32 %v4182, %v4214
        %v4247 = vmax.f32 %v4183, %v4215
        %v4248 = vmax.f32 %v4184, %v4216
        %v4249 = vmax.f32 %v4185, %v4217
        %v4250 = vmax.f32 %v4186, %v4218
        %v4251 = vmax.f32 %v4187, %v4219
        %v4252 = vmax.f32 %v4188, %v4220
        %v4253 = vmax.f32 %v4189, %v4221
        %v4254 = vmax.f32 %v4190, %v4222
        %v4255 = vmax.f32 %v4191, %v4223
        %v4256 = vmax.f32 %v4192, %v4224
        %v4257 = vmax.f32 %v4193, %v4225
        %v4258 = vmax.f32 %v4194, %v4226
        %v4259 = vmax.f32 %v4195, %v4227
        %v4260 = vmax.f32 %v4196, %v4228
        %v4261 = vmax.f32 %v4197, %v4229
        %v4262 = vmax.f32 %v4198, %v4230
        %v4263 = vmax.f32 %v4199, %v4231
        %v4264 = vmax.f32 %v4200, %v4232
        %v4265 = vmax.f32 %v4201, %v4233
        %v4266 = vld [vmem:[#allocation3 + $0x2] sm:$0xff]
        %v4267 = vld [vmem:[#allocation3 + $0xa] sm:$0xff]
        %v4268 = vld [vmem:[#allocation3 + $0x1a] sm:$0xff]
        %v4269 = vld [vmem:[#allocation3 + $0x22] sm:$0xff]
        %v4270 = vld [vmem:[#allocation3 + $0x32] sm:$0xff]
        %v4271 = vld [vmem:[#allocation3 + $0x3a] sm:$0xff]
        %v4272 = vld [vmem:[#allocation3 + $0x4a] sm:$0xff]
        %v4273 = vld [vmem:[#allocation3 + $0x52] sm:$0xff]
        %v4274 = vld [vmem:[#allocation3 + $0x62] sm:$0xff]
        %v4275 = vld [vmem:[#allocation3 + $0x6a] sm:$0xff]
        %v4276 = vld [vmem:[#allocation3 + $0x7a] sm:$0xff]
        %v4277 = vld [vmem:[#allocation3 + $0x82] sm:$0xff]
        %v4278 = vld [vmem:[#allocation3 + $0x92] sm:$0xff]
        %v4279 = vld [vmem:[#allocation3 + $0x9a] sm:$0xff]
        %v4280 = vld [vmem:[#allocation3 + $0xaa] sm:$0xff]
        %v4281 = vld [vmem:[#allocation3 + $0xb2] sm:$0xff]
        %v4282 = vld [vmem:[#allocation3 + $0xc2] sm:$0xff]
        %v4283 = vld [vmem:[#allocation3 + $0xca] sm:$0xff]
        %v4284 = vld [vmem:[#allocation3 + $0xda] sm:$0xff]
        %v4285 = vld [vmem:[#allocation3 + $0xe2] sm:$0xff]
        %v4286 = vld [vmem:[#allocation3 + $0xf2] sm:$0xff]
        %v4287 = vld [vmem:[#allocation3 + $0xfa] sm:$0xff]
        %v4288 = vld [vmem:[#allocation3 + $0x10a] sm:$0xff]
        %v4289 = vld [vmem:[#allocation3 + $0x112] sm:$0xff]
        %v4290 = vld [vmem:[#allocation3 + $0x122] sm:$0xff]
        %v4291 = vld [vmem:[#allocation3 + $0x12a] sm:$0xff]
        %v4292 = vld [vmem:[#allocation3 + $0x13a] sm:$0xff]
        %v4293 = vld [vmem:[#allocation3 + $0x142] sm:$0xff]
        %v4294 = vld [vmem:[#allocation3 + $0x152] sm:$0xff]
        %v4295 = vld [vmem:[#allocation3 + $0x15a] sm:$0xff]
        %v4296 = vld [vmem:[#allocation3 + $0x16a] sm:$0xff]
        %v4297 = vld [vmem:[#allocation3 + $0x172] sm:$0xff]
        %v4298 = vmax.f32 %v4234, %v4266
        %v4299 = vmax.f32 %v4235, %v4267
        %v4300 = vmax.f32 %v4236, %v4268
        %v4301 = vmax.f32 %v4237, %v4269
        %v4302 = vmax.f32 %v4238, %v4270
        %v4303 = vmax.f32 %v4239, %v4271
        %v4304 = vmax.f32 %v4240, %v4272
        %v4305 = vmax.f32 %v4241, %v4273
        %v4306 = vmax.f32 %v4242, %v4274
        %v4307 = vmax.f32 %v4243, %v4275
        %v4308 = vmax.f32 %v4244, %v4276
        %v4309 = vmax.f32 %v4245, %v4277
        %v4310 = vmax.f32 %v4246, %v4278
        %v4311 = vmax.f32 %v4247, %v4279
        %v4312 = vmax.f32 %v4248, %v4280
        %v4313 = vmax.f32 %v4249, %v4281
        %v4314 = vmax.f32 %v4250, %v4282
        %v4315 = vmax.f32 %v4251, %v4283
        %v4316 = vmax.f32 %v4252, %v4284
        %v4317 = vmax.f32 %v4253, %v4285
        %v4318 = vmax.f32 %v4254, %v4286
        %v4319 = vmax.f32 %v4255, %v4287
        %v4320 = vmax.f32 %v4256, %v4288
        %v4321 = vmax.f32 %v4257, %v4289
        %v4322 = vmax.f32 %v4258, %v4290
        %v4323 = vmax.f32 %v4259, %v4291
        %v4324 = vmax.f32 %v4260, %v4292
        %v4325 = vmax.f32 %v4261, %v4293
        %v4326 = vmax.f32 %v4262, %v4294
        %v4327 = vmax.f32 %v4263, %v4295
        %v4328 = vmax.f32 %v4264, %v4296
        %v4329 = vmax.f32 %v4265, %v4297
        %v4362 = vcombine.high %v4298, %v4298
        %v4364 = vunpack.c.l.s4 1983009808
        %v4365 = vunpack.c.0.s8 %v4364
        %v4366 = vlaneseq
        %v4367 = vshrl.u32 %v4366, 7
        %v4368 = vsub.s32 %v4365, %v4367
        %v4369 = vrot.slane %v4298, %v4368
        %v4371 = vunpack.c.l.s4 1983009808
        %v4372 = vunpack.c.0.s8 %v4371
        %v4373 = vlaneseq
        %v4374 = vshrl.u32 %v4373, 7
        %v4375 = vsub.s32 %v4372, %v4374
        %v4376 = vrot.slane %v4362, %v4375
        %v4377 = vcombine.high %v4369, %v4369
        %v4378 = vcombine.high %v4376, %v4376
        %v4379 = vcombine.high %v4299, %v4299
        %v4381 = vunpack.c.l.s4 1983009808
        %v4382 = vunpack.c.0.s8 %v4381
        %v4383 = vlaneseq
        %v4384 = vshrl.u32 %v4383, 7
        %v4385 = vsub.s32 %v4382, %v4384
        %v4386 = vrot.slane %v4299, %v4385
        %v4388 = vunpack.c.l.s4 1983009808
        %v4389 = vunpack.c.0.s8 %v4388
        %v4390 = vlaneseq
        %v4391 = vshrl.u32 %v4390, 7
        %v4392 = vsub.s32 %v4389, %v4391
        %v4393 = vrot.slane %v4379, %v4392
        %v4394 = vcombine.high %v4386, %v4386
        %v4395 = vcombine.high %v4393, %v4393
        %v4396 = vcombine.high %v4300, %v4300
        %v4398 = vunpack.c.l.s4 1983009808
        %v4399 = vunpack.c.0.s8 %v4398
        %v4400 = vlaneseq
        %v4401 = vshrl.u32 %v4400, 7
        %v4402 = vsub.s32 %v4399, %v4401
        %v4403 = vrot.slane %v4300, %v4402
        %v4405 = vunpack.c.l.s4 1983009808
        %v4406 = vunpack.c.0.s8 %v4405
        %v4407 = vlaneseq
        %v4408 = vshrl.u32 %v4407, 7
        %v4409 = vsub.s32 %v4406, %v4408
        %v4410 = vrot.slane %v4396, %v4409
        %v4411 = vcombine.high %v4403, %v4403
        %v4412 = vcombine.high %v4410, %v4410
        %v4413 = vcombine.high %v4301, %v4301
        %v4415 = vunpack.c.l.s4 1983009808
        %v4416 = vunpack.c.0.s8 %v4415
        %v4417 = vlaneseq
        %v4418 = vshrl.u32 %v4417, 7
        %v4419 = vsub.s32 %v4416, %v4418
        %v4420 = vrot.slane %v4301, %v4419
        %v4422 = vunpack.c.l.s4 1983009808
        %v4423 = vunpack.c.0.s8 %v4422
        %v4424 = vlaneseq
        %v4425 = vshrl.u32 %v4424, 7
        %v4426 = vsub.s32 %v4423, %v4425
        %v4427 = vrot.slane %v4413, %v4426
        %v4428 = vcombine.high %v4420, %v4420
        %v4429 = vcombine.high %v4427, %v4427
        %v4430 = vcombine.high %v4302, %v4302
        %v4432 = vunpack.c.l.s4 1983009808
        %v4433 = vunpack.c.0.s8 %v4432
        %v4434 = vlaneseq
        %v4435 = vshrl.u32 %v4434, 7
        %v4436 = vsub.s32 %v4433, %v4435
        %v4437 = vrot.slane %v4302, %v4436
        %v4439 = vunpack.c.l.s4 1983009808
        %v4440 = vunpack.c.0.s8 %v4439
        %v4441 = vlaneseq
        %v4442 = vshrl.u32 %v4441, 7
        %v4443 = vsub.s32 %v4440, %v4442
        %v4444 = vrot.slane %v4430, %v4443
        %v4445 = vcombine.high %v4437, %v4437
        %v4446 = vcombine.high %v4444, %v4444
        %v4447 = vcombine.high %v4303, %v4303
        %v4449 = vunpack.c.l.s4 1983009808
        %v4450 = vunpack.c.0.s8 %v4449
        %v4451 = vlaneseq
        %v4452 = vshrl.u32 %v4451, 7
        %v4453 = vsub.s32 %v4450, %v4452
        %v4454 = vrot.slane %v4303, %v4453
        %v4456 = vunpack.c.l.s4 1983009808
        %v4457 = vunpack.c.0.s8 %v4456
        %v4458 = vlaneseq
        %v4459 = vshrl.u32 %v4458, 7
        %v4460 = vsub.s32 %v4457, %v4459
        %v4461 = vrot.slane %v4447, %v4460
        %v4462 = vcombine.high %v4454, %v4454
        %v4463 = vcombine.high %v4461, %v4461
        %v4464 = vcombine.high %v4304, %v4304
        %v4466 = vunpack.c.l.s4 1983009808
        %v4467 = vunpack.c.0.s8 %v4466
        %v4468 = vlaneseq
        %v4469 = vshrl.u32 %v4468, 7
        %v4470 = vsub.s32 %v4467, %v4469
        %v4471 = vrot.slane %v4304, %v4470
        %v4473 = vunpack.c.l.s4 1983009808
        %v4474 = vunpack.c.0.s8 %v4473
        %v4475 = vlaneseq
        %v4476 = vshrl.u32 %v4475, 7
        %v4477 = vsub.s32 %v4474, %v4476
        %v4478 = vrot.slane %v4464, %v4477
        %v4479 = vcombine.high %v4471, %v4471
        %v4480 = vcombine.high %v4478, %v4478
        %v4481 = vcombine.high %v4305, %v4305
        %v4483 = vunpack.c.l.s4 1983009808
        %v4484 = vunpack.c.0.s8 %v4483
        %v4485 = vlaneseq
        %v4486 = vshrl.u32 %v4485, 7
        %v4487 = vsub.s32 %v4484, %v4486
        %v4488 = vrot.slane %v4305, %v4487
        %v4490 = vunpack.c.l.s4 1983009808
        %v4491 = vunpack.c.0.s8 %v4490
        %v4492 = vlaneseq
        %v4493 = vshrl.u32 %v4492, 7
        %v4494 = vsub.s32 %v4491, %v4493
        %v4495 = vrot.slane %v4481, %v4494
        %v4496 = vcombine.high %v4488, %v4488
        %v4497 = vcombine.high %v4495, %v4495
        %v4498 = vcombine.high %v4306, %v4306
        %v4500 = vunpack.c.l.s4 1983009808
        %v4501 = vunpack.c.0.s8 %v4500
        %v4502 = vlaneseq
        %v4503 = vshrl.u32 %v4502, 7
        %v4504 = vsub.s32 %v4501, %v4503
        %v4505 = vrot.slane %v4306, %v4504
        %v4507 = vunpack.c.l.s4 1983009808
        %v4508 = vunpack.c.0.s8 %v4507
        %v4509 = vlaneseq
        %v4510 = vshrl.u32 %v4509, 7
        %v4511 = vsub.s32 %v4508, %v4510
        %v4512 = vrot.slane %v4498, %v4511
        %v4513 = vcombine.high %v4505, %v4505
        %v4514 = vcombine.high %v4512, %v4512
        %v4515 = vcombine.high %v4307, %v4307
        %v4517 = vunpack.c.l.s4 1983009808
        %v4518 = vunpack.c.0.s8 %v4517
        %v4519 = vlaneseq
        %v4520 = vshrl.u32 %v4519, 7
        %v4521 = vsub.s32 %v4518, %v4520
        %v4522 = vrot.slane %v4307, %v4521
        %v4524 = vunpack.c.l.s4 1983009808
        %v4525 = vunpack.c.0.s8 %v4524
        %v4526 = vlaneseq
        %v4527 = vshrl.u32 %v4526, 7
        %v4528 = vsub.s32 %v4525, %v4527
        %v4529 = vrot.slane %v4515, %v4528
        %v4530 = vcombine.high %v4522, %v4522
        %v4531 = vcombine.high %v4529, %v4529
        %v4532 = vcombine.high %v4308, %v4308
        %v4534 = vunpack.c.l.s4 1983009808
        %v4535 = vunpack.c.0.s8 %v4534
        %v4536 = vlaneseq
        %v4537 = vshrl.u32 %v4536, 7
        %v4538 = vsub.s32 %v4535, %v4537
        %v4539 = vrot.slane %v4308, %v4538
        %v4541 = vunpack.c.l.s4 1983009808
        %v4542 = vunpack.c.0.s8 %v4541
        %v4543 = vlaneseq
        %v4544 = vshrl.u32 %v4543, 7
        %v4545 = vsub.s32 %v4542, %v4544
        %v4546 = vrot.slane %v4532, %v4545
        %v4547 = vcombine.high %v4539, %v4539
        %v4548 = vcombine.high %v4546, %v4546
        %v4549 = vcombine.high %v4309, %v4309
        %v4551 = vunpack.c.l.s4 1983009808
        %v4552 = vunpack.c.0.s8 %v4551
        %v4553 = vlaneseq
        %v4554 = vshrl.u32 %v4553, 7
        %v4555 = vsub.s32 %v4552, %v4554
        %v4556 = vrot.slane %v4309, %v4555
        %v4558 = vunpack.c.l.s4 1983009808
        %v4559 = vunpack.c.0.s8 %v4558
        %v4560 = vlaneseq
        %v4561 = vshrl.u32 %v4560, 7
        %v4562 = vsub.s32 %v4559, %v4561
        %v4563 = vrot.slane %v4549, %v4562
        %v4564 = vcombine.high %v4556, %v4556
        %v4565 = vcombine.high %v4563, %v4563
        %v4566 = vcombine.high %v4310, %v4310
        %v4568 = vunpack.c.l.s4 1983009808
        %v4569 = vunpack.c.0.s8 %v4568
        %v4570 = vlaneseq
        %v4571 = vshrl.u32 %v4570, 7
        %v4572 = vsub.s32 %v4569, %v4571
        %v4573 = vrot.slane %v4310, %v4572
        %v4575 = vunpack.c.l.s4 1983009808
        %v4576 = vunpack.c.0.s8 %v4575
        %v4577 = vlaneseq
        %v4578 = vshrl.u32 %v4577, 7
        %v4579 = vsub.s32 %v4576, %v4578
        %v4580 = vrot.slane %v4566, %v4579
        %v4581 = vcombine.high %v4573, %v4573
        %v4582 = vcombine.high %v4580, %v4580
        %v4583 = vcombine.high %v4311, %v4311
        %v4585 = vunpack.c.l.s4 1983009808
        %v4586 = vunpack.c.0.s8 %v4585
        %v4587 = vlaneseq
        %v4588 = vshrl.u32 %v4587, 7
        %v4589 = vsub.s32 %v4586, %v4588
        %v4590 = vrot.slane %v4311, %v4589
        %v4592 = vunpack.c.l.s4 1983009808
        %v4593 = vunpack.c.0.s8 %v4592
        %v4594 = vlaneseq
        %v4595 = vshrl.u32 %v4594, 7
        %v4596 = vsub.s32 %v4593, %v4595
        %v4597 = vrot.slane %v4583, %v4596
        %v4598 = vcombine.high %v4590, %v4590
        %v4599 = vcombine.high %v4597, %v4597
        %v4600 = vcombine.high %v4312, %v4312
        %v4602 = vunpack.c.l.s4 1983009808
        %v4603 = vunpack.c.0.s8 %v4602
        %v4604 = vlaneseq
        %v4605 = vshrl.u32 %v4604, 7
        %v4606 = vsub.s32 %v4603, %v4605
        %v4607 = vrot.slane %v4312, %v4606
        %v4609 = vunpack.c.l.s4 1983009808
        %v4610 = vunpack.c.0.s8 %v4609
        %v4611 = vlaneseq
        %v4612 = vshrl.u32 %v4611, 7
        %v4613 = vsub.s32 %v4610, %v4612
        %v4614 = vrot.slane %v4600, %v4613
        %v4615 = vcombine.high %v4607, %v4607
        %v4616 = vcombine.high %v4614, %v4614
        %v4617 = vcombine.high %v4313, %v4313
        %v4619 = vunpack.c.l.s4 1983009808
        %v4620 = vunpack.c.0.s8 %v4619
        %v4621 = vlaneseq
        %v4622 = vshrl.u32 %v4621, 7
        %v4623 = vsub.s32 %v4620, %v4622
        %v4624 = vrot.slane %v4313, %v4623
        %v4626 = vunpack.c.l.s4 1983009808
        %v4627 = vunpack.c.0.s8 %v4626
        %v4628 = vlaneseq
        %v4629 = vshrl.u32 %v4628, 7
        %v4630 = vsub.s32 %v4627, %v4629
        %v4631 = vrot.slane %v4617, %v4630
        %v4632 = vcombine.high %v4624, %v4624
        %v4633 = vcombine.high %v4631, %v4631
        %v4634 = vcombine.high %v4314, %v4314
        %v4636 = vunpack.c.l.s4 1983009808
        %v4637 = vunpack.c.0.s8 %v4636
        %v4638 = vlaneseq
        %v4639 = vshrl.u32 %v4638, 7
        %v4640 = vsub.s32 %v4637, %v4639
        %v4641 = vrot.slane %v4314, %v4640
        %v4643 = vunpack.c.l.s4 1983009808
        %v4644 = vunpack.c.0.s8 %v4643
        %v4645 = vlaneseq
        %v4646 = vshrl.u32 %v4645, 7
        %v4647 = vsub.s32 %v4644, %v4646
        %v4648 = vrot.slane %v4634, %v4647
        %v4649 = vcombine.high %v4641, %v4641
        %v4650 = vcombine.high %v4648, %v4648
        %v4651 = vcombine.high %v4315, %v4315
        %v4653 = vunpack.c.l.s4 1983009808
        %v4654 = vunpack.c.0.s8 %v4653
        %v4655 = vlaneseq
        %v4656 = vshrl.u32 %v4655, 7
        %v4657 = vsub.s32 %v4654, %v4656
        %v4658 = vrot.slane %v4315, %v4657
        %v4660 = vunpack.c.l.s4 1983009808
        %v4661 = vunpack.c.0.s8 %v4660
        %v4662 = vlaneseq
        %v4663 = vshrl.u32 %v4662, 7
        %v4664 = vsub.s32 %v4661, %v4663
        %v4665 = vrot.slane %v4651, %v4664
        %v4666 = vcombine.high %v4658, %v4658
        %v4667 = vcombine.high %v4665, %v4665
        %v4668 = vcombine.high %v4316, %v4316
        %v4670 = vunpack.c.l.s4 1983009808
        %v4671 = vunpack.c.0.s8 %v4670
        %v4672 = vlaneseq
        %v4673 = vshrl.u32 %v4672, 7
        %v4674 = vsub.s32 %v4671, %v4673
        %v4675 = vrot.slane %v4316, %v4674
        %v4677 = vunpack.c.l.s4 1983009808
        %v4678 = vunpack.c.0.s8 %v4677
        %v4679 = vlaneseq
        %v4680 = vshrl.u32 %v4679, 7
        %v4681 = vsub.s32 %v4678, %v4680
        %v4682 = vrot.slane %v4668, %v4681
        %v4683 = vcombine.high %v4675, %v4675
        %v4684 = vcombine.high %v4682, %v4682
        %v4685 = vcombine.high %v4317, %v4317
        %v4687 = vunpack.c.l.s4 1983009808
        %v4688 = vunpack.c.0.s8 %v4687
        %v4689 = vlaneseq
        %v4690 = vshrl.u32 %v4689, 7
        %v4691 = vsub.s32 %v4688, %v4690
        %v4692 = vrot.slane %v4317, %v4691
        %v4694 = vunpack.c.l.s4 1983009808
        %v4695 = vunpack.c.0.s8 %v4694
        %v4696 = vlaneseq
        %v4697 = vshrl.u32 %v4696, 7
        %v4698 = vsub.s32 %v4695, %v4697
        %v4699 = vrot.slane %v4685, %v4698
        %v4700 = vcombine.high %v4692, %v4692
        %v4701 = vcombine.high %v4699, %v4699
        %v4702 = vcombine.high %v4318, %v4318
        %v4704 = vunpack.c.l.s4 1983009808
        %v4705 = vunpack.c.0.s8 %v4704
        %v4706 = vlaneseq
        %v4707 = vshrl.u32 %v4706, 7
        %v4708 = vsub.s32 %v4705, %v4707
        %v4709 = vrot.slane %v4318, %v4708
        %v4711 = vunpack.c.l.s4 1983009808
        %v4712 = vunpack.c.0.s8 %v4711
        %v4713 = vlaneseq
        %v4714 = vshrl.u32 %v4713, 7
        %v4715 = vsub.s32 %v4712, %v4714
        %v4716 = vrot.slane %v4702, %v4715
        %v4717 = vcombine.high %v4709, %v4709
        %v4718 = vcombine.high %v4716, %v4716
        %v4719 = vcombine.high %v4319, %v4319
        %v4721 = vunpack.c.l.s4 1983009808
        %v4722 = vunpack.c.0.s8 %v4721
        %v4723 = vlaneseq
        %v4724 = vshrl.u32 %v4723, 7
        %v4725 = vsub.s32 %v4722, %v4724
        %v4726 = vrot.slane %v4319, %v4725
        %v4728 = vunpack.c.l.s4 1983009808
        %v4729 = vunpack.c.0.s8 %v4728
        %v4730 = vlaneseq
        %v4731 = vshrl.u32 %v4730, 7
        %v4732 = vsub.s32 %v4729, %v4731
        %v4733 = vrot.slane %v4719, %v4732
        %v4734 = vcombine.high %v4726, %v4726
        %v4735 = vcombine.high %v4733, %v4733
        %v4736 = vcombine.high %v4320, %v4320
        %v4738 = vunpack.c.l.s4 1983009808
        %v4739 = vunpack.c.0.s8 %v4738
        %v4740 = vlaneseq
        %v4741 = vshrl.u32 %v4740, 7
        %v4742 = vsub.s32 %v4739, %v4741
        %v4743 = vrot.slane %v4320, %v4742
        %v4745 = vunpack.c.l.s4 1983009808
        %v4746 = vunpack.c.0.s8 %v4745
        %v4747 = vlaneseq
        %v4748 = vshrl.u32 %v4747, 7
        %v4749 = vsub.s32 %v4746, %v4748
        %v4750 = vrot.slane %v4736, %v4749
        %v4751 = vcombine.high %v4743, %v4743
        %v4752 = vcombine.high %v4750, %v4750
        %v4753 = vcombine.high %v4321, %v4321
        %v4755 = vunpack.c.l.s4 1983009808
        %v4756 = vunpack.c.0.s8 %v4755
        %v4757 = vlaneseq
        %v4758 = vshrl.u32 %v4757, 7
        %v4759 = vsub.s32 %v4756, %v4758
        %v4760 = vrot.slane %v4321, %v4759
        %v4762 = vunpack.c.l.s4 1983009808
        %v4763 = vunpack.c.0.s8 %v4762
        %v4764 = vlaneseq
        %v4765 = vshrl.u32 %v4764, 7
        %v4766 = vsub.s32 %v4763, %v4765
        %v4767 = vrot.slane %v4753, %v4766
        %v4768 = vcombine.high %v4760, %v4760
        %v4769 = vcombine.high %v4767, %v4767
        %v4770 = vcombine.high %v4322, %v4322
        %v4772 = vunpack.c.l.s4 1983009808
        %v4773 = vunpack.c.0.s8 %v4772
        %v4774 = vlaneseq
        %v4775 = vshrl.u32 %v4774, 7
        %v4776 = vsub.s32 %v4773, %v4775
        %v4777 = vrot.slane %v4322, %v4776
        %v4779 = vunpack.c.l.s4 1983009808
        %v4780 = vunpack.c.0.s8 %v4779
        %v4781 = vlaneseq
        %v4782 = vshrl.u32 %v4781, 7
        %v4783 = vsub.s32 %v4780, %v4782
        %v4784 = vrot.slane %v4770, %v4783
        %v4785 = vcombine.high %v4777, %v4777
        %v4786 = vcombine.high %v4784, %v4784
        %v4787 = vcombine.high %v4323, %v4323
        %v4789 = vunpack.c.l.s4 1983009808
        %v4790 = vunpack.c.0.s8 %v4789
        %v4791 = vlaneseq
        %v4792 = vshrl.u32 %v4791, 7
        %v4793 = vsub.s32 %v4790, %v4792
        %v4794 = vrot.slane %v4323, %v4793
        %v4796 = vunpack.c.l.s4 1983009808
        %v4797 = vunpack.c.0.s8 %v4796
        %v4798 = vlaneseq
        %v4799 = vshrl.u32 %v4798, 7
        %v4800 = vsub.s32 %v4797, %v4799
        %v4801 = vrot.slane %v4787, %v4800
        %v4802 = vcombine.high %v4794, %v4794
        %v4803 = vcombine.high %v4801, %v4801
        %v4804 = vcombine.high %v4324, %v4324
        %v4806 = vunpack.c.l.s4 1983009808
        %v4807 = vunpack.c.0.s8 %v4806
        %v4808 = vlaneseq
        %v4809 = vshrl.u32 %v4808, 7
        %v4810 = vsub.s32 %v4807, %v4809
        %v4811 = vrot.slane %v4324, %v4810
        %v4813 = vunpack.c.l.s4 1983009808
        %v4814 = vunpack.c.0.s8 %v4813
        %v4815 = vlaneseq
        %v4816 = vshrl.u32 %v4815, 7
        %v4817 = vsub.s32 %v4814, %v4816
        %v4818 = vrot.slane %v4804, %v4817
        %v4819 = vcombine.high %v4811, %v4811
        %v4820 = vcombine.high %v4818, %v4818
        %v4821 = vcombine.high %v4325, %v4325
        %v4823 = vunpack.c.l.s4 1983009808
        %v4824 = vunpack.c.0.s8 %v4823
        %v4825 = vlaneseq
        %v4826 = vshrl.u32 %v4825, 7
        %v4827 = vsub.s32 %v4824, %v4826
        %v4828 = vrot.slane %v4325, %v4827
        %v4830 = vunpack.c.l.s4 1983009808
        %v4831 = vunpack.c.0.s8 %v4830
        %v4832 = vlaneseq
        %v4833 = vshrl.u32 %v4832, 7
        %v4834 = vsub.s32 %v4831, %v4833
        %v4835 = vrot.slane %v4821, %v4834
        %v4836 = vcombine.high %v4828, %v4828
        %v4837 = vcombine.high %v4835, %v4835
        %v4838 = vcombine.high %v4326, %v4326
        %v4840 = vunpack.c.l.s4 1983009808
        %v4841 = vunpack.c.0.s8 %v4840
        %v4842 = vlaneseq
        %v4843 = vshrl.u32 %v4842, 7
        %v4844 = vsub.s32 %v4841, %v4843
        %v4845 = vrot.slane %v4326, %v4844
        %v4847 = vunpack.c.l.s4 1983009808
        %v4848 = vunpack.c.0.s8 %v4847
        %v4849 = vlaneseq
        %v4850 = vshrl.u32 %v4849, 7
        %v4851 = vsub.s32 %v4848, %v4850
        %v4852 = vrot.slane %v4838, %v4851
        %v4853 = vcombine.high %v4845, %v4845
        %v4854 = vcombine.high %v4852, %v4852
        %v4855 = vcombine.high %v4327, %v4327
        %v4857 = vunpack.c.l.s4 1983009808
        %v4858 = vunpack.c.0.s8 %v4857
        %v4859 = vlaneseq
        %v4860 = vshrl.u32 %v4859, 7
        %v4861 = vsub.s32 %v4858, %v4860
        %v4862 = vrot.slane %v4327, %v4861
        %v4864 = vunpack.c.l.s4 1983009808
        %v4865 = vunpack.c.0.s8 %v4864
        %v4866 = vlaneseq
        %v4867 = vshrl.u32 %v4866, 7
        %v4868 = vsub.s32 %v4865, %v4867
        %v4869 = vrot.slane %v4855, %v4868
        %v4870 = vcombine.high %v4862, %v4862
        %v4871 = vcombine.high %v4869, %v4869
        %v4872 = vcombine.high %v4328, %v4328
        %v4874 = vunpack.c.l.s4 1983009808
        %v4875 = vunpack.c.0.s8 %v4874
        %v4876 = vlaneseq
        %v4877 = vshrl.u32 %v4876, 7
        %v4878 = vsub.s32 %v4875, %v4877
        %v4879 = vrot.slane %v4328, %v4878
        %v4881 = vunpack.c.l.s4 1983009808
        %v4882 = vunpack.c.0.s8 %v4881
        %v4883 = vlaneseq
        %v4884 = vshrl.u32 %v4883, 7
        %v4885 = vsub.s32 %v4882, %v4884
        %v4886 = vrot.slane %v4872, %v4885
        %v4887 = vcombine.high %v4879, %v4879
        %v4888 = vcombine.high %v4886, %v4886
        %v4889 = vcombine.high %v4329, %v4329
        %v4891 = vunpack.c.l.s4 1983009808
        %v4892 = vunpack.c.0.s8 %v4891
        %v4893 = vlaneseq
        %v4894 = vshrl.u32 %v4893, 7
        %v4895 = vsub.s32 %v4892, %v4894
        %v4896 = vrot.slane %v4329, %v4895
        %v4898 = vunpack.c.l.s4 1983009808
        %v4899 = vunpack.c.0.s8 %v4898
        %v4900 = vlaneseq
        %v4901 = vshrl.u32 %v4900, 7
        %v4902 = vsub.s32 %v4899, %v4901
        %v4903 = vrot.slane %v4889, %v4902
        %v4904 = vcombine.high %v4896, %v4896
        %v4905 = vcombine.high %v4903, %v4903
        %v4906 = vlaneseq
        %v4907 = vshrl.u32 %v4906, 7
        %v4908 = vsub.s32 0, %v4907
        %v4909 = vrot.slane %v4369, %v4908
        %v4910 = vlaneseq
        %v4911 = vshrl.u32 %v4910, 7
        %v4912 = vsub.s32 0, %v4911
        %v4913 = vrot.slane %v4377, %v4912
        %v4914 = vlaneseq
        %v4915 = vshrl.u32 %v4914, 7
        %v4916 = vsub.s32 0, %v4915
        %v4917 = vrot.slane %v4376, %v4916
        %v4918 = vlaneseq
        %v4919 = vshrl.u32 %v4918, 7
        %v4920 = vsub.s32 0, %v4919
        %v4921 = vrot.slane %v4378, %v4920
        %v4922 = vlaneseq
        %v4923 = vshrl.u32 %v4922, 7
        %v4924 = vsub.s32 0, %v4923
        %v4925 = vrot.slane %v4386, %v4924
        %v4926 = vlaneseq
        %v4927 = vshrl.u32 %v4926, 7
        %v4928 = vsub.s32 0, %v4927
        %v4929 = vrot.slane %v4394, %v4928
        %v4930 = vlaneseq
        %v4931 = vshrl.u32 %v4930, 7
        %v4932 = vsub.s32 0, %v4931
        %v4933 = vrot.slane %v4393, %v4932
        %v4934 = vlaneseq
        %v4935 = vshrl.u32 %v4934, 7
        %v4936 = vsub.s32 0, %v4935
        %v4937 = vrot.slane %v4395, %v4936
        %v4938 = vlaneseq
        %v4939 = vshrl.u32 %v4938, 7
        %v4940 = vsub.s32 0, %v4939
        %v4941 = vrot.slane %v4403, %v4940
        %v4942 = vlaneseq
        %v4943 = vshrl.u32 %v4942, 7
        %v4944 = vsub.s32 0, %v4943
        %v4945 = vrot.slane %v4411, %v4944
        %v4946 = vlaneseq
        %v4947 = vshrl.u32 %v4946, 7
        %v4948 = vsub.s32 0, %v4947
        %v4949 = vrot.slane %v4410, %v4948
        %v4950 = vlaneseq
        %v4951 = vshrl.u32 %v4950, 7
        %v4952 = vsub.s32 0, %v4951
        %v4953 = vrot.slane %v4412, %v4952
        %v4954 = vlaneseq
        %v4955 = vshrl.u32 %v4954, 7
        %v4956 = vsub.s32 0, %v4955
        %v4957 = vrot.slane %v4420, %v4956
        %v4958 = vlaneseq
        %v4959 = vshrl.u32 %v4958, 7
        %v4960 = vsub.s32 0, %v4959
        %v4961 = vrot.slane %v4428, %v4960
        %v4962 = vlaneseq
        %v4963 = vshrl.u32 %v4962, 7
        %v4964 = vsub.s32 0, %v4963
        %v4965 = vrot.slane %v4427, %v4964
        %v4966 = vlaneseq
        %v4967 = vshrl.u32 %v4966, 7
        %v4968 = vsub.s32 0, %v4967
        %v4969 = vrot.slane %v4429, %v4968
        %v4970 = vlaneseq
        %v4971 = vshrl.u32 %v4970, 7
        %v4972 = vsub.s32 0, %v4971
        %v4973 = vrot.slane %v4437, %v4972
        %v4974 = vlaneseq
        %v4975 = vshrl.u32 %v4974, 7
        %v4976 = vsub.s32 0, %v4975
        %v4977 = vrot.slane %v4445, %v4976
        %v4978 = vlaneseq
        %v4979 = vshrl.u32 %v4978, 7
        %v4980 = vsub.s32 0, %v4979
        %v4981 = vrot.slane %v4444, %v4980
        %v4982 = vlaneseq
        %v4983 = vshrl.u32 %v4982, 7
        %v4984 = vsub.s32 0, %v4983
        %v4985 = vrot.slane %v4446, %v4984
        %v4986 = vlaneseq
        %v4987 = vshrl.u32 %v4986, 7
        %v4988 = vsub.s32 0, %v4987
        %v4989 = vrot.slane %v4454, %v4988
        %v4990 = vlaneseq
        %v4991 = vshrl.u32 %v4990, 7
        %v4992 = vsub.s32 0, %v4991
        %v4993 = vrot.slane %v4462, %v4992
        %v4994 = vlaneseq
        %v4995 = vshrl.u32 %v4994, 7
        %v4996 = vsub.s32 0, %v4995
        %v4997 = vrot.slane %v4461, %v4996
        %v4998 = vlaneseq
        %v4999 = vshrl.u32 %v4998, 7
        %v5000 = vsub.s32 0, %v4999
        %v5001 = vrot.slane %v4463, %v5000
        %v5002 = vlaneseq
        %v5003 = vshrl.u32 %v5002, 7
        %v5004 = vsub.s32 0, %v5003
        %v5005 = vrot.slane %v4471, %v5004
        %v5006 = vlaneseq
        %v5007 = vshrl.u32 %v5006, 7
        %v5008 = vsub.s32 0, %v5007
        %v5009 = vrot.slane %v4479, %v5008
        %v5010 = vlaneseq
        %v5011 = vshrl.u32 %v5010, 7
        %v5012 = vsub.s32 0, %v5011
        %v5013 = vrot.slane %v4478, %v5012
        %v5014 = vlaneseq
        %v5015 = vshrl.u32 %v5014, 7
        %v5016 = vsub.s32 0, %v5015
        %v5017 = vrot.slane %v4480, %v5016
        %v5018 = vlaneseq
        %v5019 = vshrl.u32 %v5018, 7
        %v5020 = vsub.s32 0, %v5019
        %v5021 = vrot.slane %v4488, %v5020
        %v5022 = vlaneseq
        %v5023 = vshrl.u32 %v5022, 7
        %v5024 = vsub.s32 0, %v5023
        %v5025 = vrot.slane %v4496, %v5024
        %v5026 = vlaneseq
        %v5027 = vshrl.u32 %v5026, 7
        %v5028 = vsub.s32 0, %v5027
        %v5029 = vrot.slane %v4495, %v5028
        %v5030 = vlaneseq
        %v5031 = vshrl.u32 %v5030, 7
        %v5032 = vsub.s32 0, %v5031
        %v5033 = vrot.slane %v4497, %v5032
        %v5034 = vlaneseq
        %v5035 = vshrl.u32 %v5034, 7
        %v5036 = vsub.s32 0, %v5035
        %v5037 = vrot.slane %v4505, %v5036
        %v5038 = vlaneseq
        %v5039 = vshrl.u32 %v5038, 7
        %v5040 = vsub.s32 0, %v5039
        %v5041 = vrot.slane %v4513, %v5040
        %v5042 = vlaneseq
        %v5043 = vshrl.u32 %v5042, 7
        %v5044 = vsub.s32 0, %v5043
        %v5045 = vrot.slane %v4512, %v5044
        %v5046 = vlaneseq
        %v5047 = vshrl.u32 %v5046, 7
        %v5048 = vsub.s32 0, %v5047
        %v5049 = vrot.slane %v4514, %v5048
        %v5050 = vlaneseq
        %v5051 = vshrl.u32 %v5050, 7
        %v5052 = vsub.s32 0, %v5051
        %v5053 = vrot.slane %v4522, %v5052
        %v5054 = vlaneseq
        %v5055 = vshrl.u32 %v5054, 7
        %v5056 = vsub.s32 0, %v5055
        %v5057 = vrot.slane %v4530, %v5056
        %v5058 = vlaneseq
        %v5059 = vshrl.u32 %v5058, 7
        %v5060 = vsub.s32 0, %v5059
        %v5061 = vrot.slane %v4529, %v5060
        %v5062 = vlaneseq
        %v5063 = vshrl.u32 %v5062, 7
        %v5064 = vsub.s32 0, %v5063
        %v5065 = vrot.slane %v4531, %v5064
        %v5066 = vlaneseq
        %v5067 = vshrl.u32 %v5066, 7
        %v5068 = vsub.s32 0, %v5067
        %v5069 = vrot.slane %v4539, %v5068
        %v5070 = vlaneseq
        %v5071 = vshrl.u32 %v5070, 7
        %v5072 = vsub.s32 0, %v5071
        %v5073 = vrot.slane %v4547, %v5072
        %v5074 = vlaneseq
        %v5075 = vshrl.u32 %v5074, 7
        %v5076 = vsub.s32 0, %v5075
        %v5077 = vrot.slane %v4546, %v5076
        %v5078 = vlaneseq
        %v5079 = vshrl.u32 %v5078, 7
        %v5080 = vsub.s32 0, %v5079
        %v5081 = vrot.slane %v4548, %v5080
        %v5082 = vlaneseq
        %v5083 = vshrl.u32 %v5082, 7
        %v5084 = vsub.s32 0, %v5083
        %v5085 = vrot.slane %v4556, %v5084
        %v5086 = vlaneseq
        %v5087 = vshrl.u32 %v5086, 7
        %v5088 = vsub.s32 0, %v5087
        %v5089 = vrot.slane %v4564, %v5088
        %v5090 = vlaneseq
        %v5091 = vshrl.u32 %v5090, 7
        %v5092 = vsub.s32 0, %v5091
        %v5093 = vrot.slane %v4563, %v5092
        %v5094 = vlaneseq
        %v5095 = vshrl.u32 %v5094, 7
        %v5096 = vsub.s32 0, %v5095
        %v5097 = vrot.slane %v4565, %v5096
        %v5098 = vlaneseq
        %v5099 = vshrl.u32 %v5098, 7
        %v5100 = vsub.s32 0, %v5099
        %v5101 = vrot.slane %v4573, %v5100
        %v5102 = vlaneseq
        %v5103 = vshrl.u32 %v5102, 7
        %v5104 = vsub.s32 0, %v5103
        %v5105 = vrot.slane %v4581, %v5104
        %v5106 = vlaneseq
        %v5107 = vshrl.u32 %v5106, 7
        %v5108 = vsub.s32 0, %v5107
        %v5109 = vrot.slane %v4580, %v5108
        %v5110 = vlaneseq
        %v5111 = vshrl.u32 %v5110, 7
        %v5112 = vsub.s32 0, %v5111
        %v5113 = vrot.slane %v4582, %v5112
        %v5114 = vlaneseq
        %v5115 = vshrl.u32 %v5114, 7
        %v5116 = vsub.s32 0, %v5115
        %v5117 = vrot.slane %v4590, %v5116
        %v5118 = vlaneseq
        %v5119 = vshrl.u32 %v5118, 7
        %v5120 = vsub.s32 0, %v5119
        %v5121 = vrot.slane %v4598, %v5120
        %v5122 = vlaneseq
        %v5123 = vshrl.u32 %v5122, 7
        %v5124 = vsub.s32 0, %v5123
        %v5125 = vrot.slane %v4597, %v5124
        %v5126 = vlaneseq
        %v5127 = vshrl.u32 %v5126, 7
        %v5128 = vsub.s32 0, %v5127
        %v5129 = vrot.slane %v4599, %v5128
        %v5130 = vlaneseq
        %v5131 = vshrl.u32 %v5130, 7
        %v5132 = vsub.s32 0, %v5131
        %v5133 = vrot.slane %v4607, %v5132
        %v5134 = vlaneseq
        %v5135 = vshrl.u32 %v5134, 7
        %v5136 = vsub.s32 0, %v5135
        %v5137 = vrot.slane %v4615, %v5136
        %v5138 = vlaneseq
        %v5139 = vshrl.u32 %v5138, 7
        %v5140 = vsub.s32 0, %v5139
        %v5141 = vrot.slane %v4614, %v5140
        %v5142 = vlaneseq
        %v5143 = vshrl.u32 %v5142, 7
        %v5144 = vsub.s32 0, %v5143
        %v5145 = vrot.slane %v4616, %v5144
        %v5146 = vlaneseq
        %v5147 = vshrl.u32 %v5146, 7
        %v5148 = vsub.s32 0, %v5147
        %v5149 = vrot.slane %v4624, %v5148
        %v5150 = vlaneseq
        %v5151 = vshrl.u32 %v5150, 7
        %v5152 = vsub.s32 0, %v5151
        %v5153 = vrot.slane %v4632, %v5152
        %v5154 = vlaneseq
        %v5155 = vshrl.u32 %v5154, 7
        %v5156 = vsub.s32 0, %v5155
        %v5157 = vrot.slane %v4631, %v5156
        %v5158 = vlaneseq
        %v5159 = vshrl.u32 %v5158, 7
        %v5160 = vsub.s32 0, %v5159
        %v5161 = vrot.slane %v4633, %v5160
        %v5162 = vlaneseq
        %v5163 = vshrl.u32 %v5162, 7
        %v5164 = vsub.s32 0, %v5163
        %v5165 = vrot.slane %v4641, %v5164
        %v5166 = vlaneseq
        %v5167 = vshrl.u32 %v5166, 7
        %v5168 = vsub.s32 0, %v5167
        %v5169 = vrot.slane %v4649, %v5168
        %v5170 = vlaneseq
        %v5171 = vshrl.u32 %v5170, 7
        %v5172 = vsub.s32 0, %v5171
        %v5173 = vrot.slane %v4648, %v5172
        %v5174 = vlaneseq
        %v5175 = vshrl.u32 %v5174, 7
        %v5176 = vsub.s32 0, %v5175
        %v5177 = vrot.slane %v4650, %v5176
        %v5178 = vlaneseq
        %v5179 = vshrl.u32 %v5178, 7
        %v5180 = vsub.s32 0, %v5179
        %v5181 = vrot.slane %v4658, %v5180
        %v5182 = vlaneseq
        %v5183 = vshrl.u32 %v5182, 7
        %v5184 = vsub.s32 0, %v5183
        %v5185 = vrot.slane %v4666, %v5184
        %v5186 = vlaneseq
        %v5187 = vshrl.u32 %v5186, 7
        %v5188 = vsub.s32 0, %v5187
        %v5189 = vrot.slane %v4665, %v5188
        %v5190 = vlaneseq
        %v5191 = vshrl.u32 %v5190, 7
        %v5192 = vsub.s32 0, %v5191
        %v5193 = vrot.slane %v4667, %v5192
        %v5194 = vlaneseq
        %v5195 = vshrl.u32 %v5194, 7
        %v5196 = vsub.s32 0, %v5195
        %v5197 = vrot.slane %v4675, %v5196
        %v5198 = vlaneseq
        %v5199 = vshrl.u32 %v5198, 7
        %v5200 = vsub.s32 0, %v5199
        %v5201 = vrot.slane %v4683, %v5200
        %v5202 = vlaneseq
        %v5203 = vshrl.u32 %v5202, 7
        %v5204 = vsub.s32 0, %v5203
        %v5205 = vrot.slane %v4682, %v5204
        %v5206 = vlaneseq
        %v5207 = vshrl.u32 %v5206, 7
        %v5208 = vsub.s32 0, %v5207
        %v5209 = vrot.slane %v4684, %v5208
        %v5210 = vlaneseq
        %v5211 = vshrl.u32 %v5210, 7
        %v5212 = vsub.s32 0, %v5211
        %v5213 = vrot.slane %v4692, %v5212
        %v5214 = vlaneseq
        %v5215 = vshrl.u32 %v5214, 7
        %v5216 = vsub.s32 0, %v5215
        %v5217 = vrot.slane %v4700, %v5216
        %v5218 = vlaneseq
        %v5219 = vshrl.u32 %v5218, 7
        %v5220 = vsub.s32 0, %v5219
        %v5221 = vrot.slane %v4699, %v5220
        %v5222 = vlaneseq
        %v5223 = vshrl.u32 %v5222, 7
        %v5224 = vsub.s32 0, %v5223
        %v5225 = vrot.slane %v4701, %v5224
        %v5226 = vlaneseq
        %v5227 = vshrl.u32 %v5226, 7
        %v5228 = vsub.s32 0, %v5227
        %v5229 = vrot.slane %v4709, %v5228
        %v5230 = vlaneseq
        %v5231 = vshrl.u32 %v5230, 7
        %v5232 = vsub.s32 0, %v5231
        %v5233 = vrot.slane %v4717, %v5232
        %v5234 = vlaneseq
        %v5235 = vshrl.u32 %v5234, 7
        %v5236 = vsub.s32 0, %v5235
        %v5237 = vrot.slane %v4716, %v5236
        %v5238 = vlaneseq
        %v5239 = vshrl.u32 %v5238, 7
        %v5240 = vsub.s32 0, %v5239
        %v5241 = vrot.slane %v4718, %v5240
        %v5242 = vlaneseq
        %v5243 = vshrl.u32 %v5242, 7
        %v5244 = vsub.s32 0, %v5243
        %v5245 = vrot.slane %v4726, %v5244
        %v5246 = vlaneseq
        %v5247 = vshrl.u32 %v5246, 7
        %v5248 = vsub.s32 0, %v5247
        %v5249 = vrot.slane %v4734, %v5248
        %v5250 = vlaneseq
        %v5251 = vshrl.u32 %v5250, 7
        %v5252 = vsub.s32 0, %v5251
        %v5253 = vrot.slane %v4733, %v5252
        %v5254 = vlaneseq
        %v5255 = vshrl.u32 %v5254, 7
        %v5256 = vsub.s32 0, %v5255
        %v5257 = vrot.slane %v4735, %v5256
        %v5258 = vlaneseq
        %v5259 = vshrl.u32 %v5258, 7
        %v5260 = vsub.s32 0, %v5259
        %v5261 = vrot.slane %v4743, %v5260
        %v5262 = vlaneseq
        %v5263 = vshrl.u32 %v5262, 7
        %v5264 = vsub.s32 0, %v5263
        %v5265 = vrot.slane %v4751, %v5264
        %v5266 = vlaneseq
        %v5267 = vshrl.u32 %v5266, 7
        %v5268 = vsub.s32 0, %v5267
        %v5269 = vrot.slane %v4750, %v5268
        %v5270 = vlaneseq
        %v5271 = vshrl.u32 %v5270, 7
        %v5272 = vsub.s32 0, %v5271
        %v5273 = vrot.slane %v4752, %v5272
        %v5274 = vlaneseq
        %v5275 = vshrl.u32 %v5274, 7
        %v5276 = vsub.s32 0, %v5275
        %v5277 = vrot.slane %v4760, %v5276
        %v5278 = vlaneseq
        %v5279 = vshrl.u32 %v5278, 7
        %v5280 = vsub.s32 0, %v5279
        %v5281 = vrot.slane %v4768, %v5280
        %v5282 = vlaneseq
        %v5283 = vshrl.u32 %v5282, 7
        %v5284 = vsub.s32 0, %v5283
        %v5285 = vrot.slane %v4767, %v5284
        %v5286 = vlaneseq
        %v5287 = vshrl.u32 %v5286, 7
        %v5288 = vsub.s32 0, %v5287
        %v5289 = vrot.slane %v4769, %v5288
        %v5290 = vlaneseq
        %v5291 = vshrl.u32 %v5290, 7
        %v5292 = vsub.s32 0, %v5291
        %v5293 = vrot.slane %v4777, %v5292
        %v5294 = vlaneseq
        %v5295 = vshrl.u32 %v5294, 7
        %v5296 = vsub.s32 0, %v5295
        %v5297 = vrot.slane %v4785, %v5296
        %v5298 = vlaneseq
        %v5299 = vshrl.u32 %v5298, 7
        %v5300 = vsub.s32 0, %v5299
        %v5301 = vrot.slane %v4784, %v5300
        %v5302 = vlaneseq
        %v5303 = vshrl.u32 %v5302, 7
        %v5304 = vsub.s32 0, %v5303
        %v5305 = vrot.slane %v4786, %v5304
        %v5306 = vlaneseq
        %v5307 = vshrl.u32 %v5306, 7
        %v5308 = vsub.s32 0, %v5307
        %v5309 = vrot.slane %v4794, %v5308
        %v5310 = vlaneseq
        %v5311 = vshrl.u32 %v5310, 7
        %v5312 = vsub.s32 0, %v5311
        %v5313 = vrot.slane %v4802, %v5312
        %v5314 = vlaneseq
        %v5315 = vshrl.u32 %v5314, 7
        %v5316 = vsub.s32 0, %v5315
        %v5317 = vrot.slane %v4801, %v5316
        %v5318 = vlaneseq
        %v5319 = vshrl.u32 %v5318, 7
        %v5320 = vsub.s32 0, %v5319
        %v5321 = vrot.slane %v4803, %v5320
        %v5322 = vlaneseq
        %v5323 = vshrl.u32 %v5322, 7
        %v5324 = vsub.s32 0, %v5323
        %v5325 = vrot.slane %v4811, %v5324
        %v5326 = vlaneseq
        %v5327 = vshrl.u32 %v5326, 7
        %v5328 = vsub.s32 0, %v5327
        %v5329 = vrot.slane %v4819, %v5328
        %v5330 = vlaneseq
        %v5331 = vshrl.u32 %v5330, 7
        %v5332 = vsub.s32 0, %v5331
        %v5333 = vrot.slane %v4818, %v5332
        %v5334 = vlaneseq
        %v5335 = vshrl.u32 %v5334, 7
        %v5336 = vsub.s32 0, %v5335
        %v5337 = vrot.slane %v4820, %v5336
        %v5338 = vlaneseq
        %v5339 = vshrl.u32 %v5338, 7
        %v5340 = vsub.s32 0, %v5339
        %v5341 = vrot.slane %v4828, %v5340
        %v5342 = vlaneseq
        %v5343 = vshrl.u32 %v5342, 7
        %v5344 = vsub.s32 0, %v5343
        %v5345 = vrot.slane %v4836, %v5344
        %v5346 = vlaneseq
        %v5347 = vshrl.u32 %v5346, 7
        %v5348 = vsub.s32 0, %v5347
        %v5349 = vrot.slane %v4835, %v5348
        %v5350 = vlaneseq
        %v5351 = vshrl.u32 %v5350, 7
        %v5352 = vsub.s32 0, %v5351
        %v5353 = vrot.slane %v4837, %v5352
        %v5354 = vlaneseq
        %v5355 = vshrl.u32 %v5354, 7
        %v5356 = vsub.s32 0, %v5355
        %v5357 = vrot.slane %v4845, %v5356
        %v5358 = vlaneseq
        %v5359 = vshrl.u32 %v5358, 7
        %v5360 = vsub.s32 0, %v5359
        %v5361 = vrot.slane %v4853, %v5360
        %v5362 = vlaneseq
        %v5363 = vshrl.u32 %v5362, 7
        %v5364 = vsub.s32 0, %v5363
        %v5365 = vrot.slane %v4852, %v5364
        %v5366 = vlaneseq
        %v5367 = vshrl.u32 %v5366, 7
        %v5368 = vsub.s32 0, %v5367
        %v5369 = vrot.slane %v4854, %v5368
        %v5370 = vlaneseq
        %v5371 = vshrl.u32 %v5370, 7
        %v5372 = vsub.s32 0, %v5371
        %v5373 = vrot.slane %v4862, %v5372
        %v5374 = vlaneseq
        %v5375 = vshrl.u32 %v5374, 7
        %v5376 = vsub.s32 0, %v5375
        %v5377 = vrot.slane %v4870, %v5376
        %v5378 = vlaneseq
        %v5379 = vshrl.u32 %v5378, 7
        %v5380 = vsub.s32 0, %v5379
        %v5381 = vrot.slane %v4869, %v5380
        %v5382 = vlaneseq
        %v5383 = vshrl.u32 %v5382, 7
        %v5384 = vsub.s32 0, %v5383
        %v5385 = vrot.slane %v4871, %v5384
        %v5386 = vlaneseq
        %v5387 = vshrl.u32 %v5386, 7
        %v5388 = vsub.s32 0, %v5387
        %v5389 = vrot.slane %v4879, %v5388
        %v5390 = vlaneseq
        %v5391 = vshrl.u32 %v5390, 7
        %v5392 = vsub.s32 0, %v5391
        %v5393 = vrot.slane %v4887, %v5392
        %v5394 = vlaneseq
        %v5395 = vshrl.u32 %v5394, 7
        %v5396 = vsub.s32 0, %v5395
        %v5397 = vrot.slane %v4886, %v5396
        %v5398 = vlaneseq
        %v5399 = vshrl.u32 %v5398, 7
        %v5400 = vsub.s32 0, %v5399
        %v5401 = vrot.slane %v4888, %v5400
        %v5402 = vlaneseq
        %v5403 = vshrl.u32 %v5402, 7
        %v5404 = vsub.s32 0, %v5403
        %v5405 = vrot.slane %v4896, %v5404
        %v5406 = vlaneseq
        %v5407 = vshrl.u32 %v5406, 7
        %v5408 = vsub.s32 0, %v5407
        %v5409 = vrot.slane %v4904, %v5408
        %v5410 = vlaneseq
        %v5411 = vshrl.u32 %v5410, 7
        %v5412 = vsub.s32 0, %v5411
        %v5413 = vrot.slane %v4903, %v5412
        %v5414 = vlaneseq
        %v5415 = vshrl.u32 %v5414, 7
        %v5416 = vsub.s32 0, %v5415
        %v5417 = vrot.slane %v4905, %v5416
        %vm5418 = vcmask 1041409
        %v5419 = vsel %vm5418, %v4913, %v4909
        %vm5420 = vcmask 1042434
        %v5421 = vsel %vm5420, %v4917, %v5419
        %vm5422 = vcmask 1043459
        %v5423 = vsel %vm5422, %v4921, %v5421
        %vm5424 = vcmask 1044484
        %v5425 = vsel %vm5424, %v4925, %v5423
        %vm5426 = vcmask 1045509
        %v5427 = vsel %vm5426, %v4929, %v5425
        %vm5428 = vcmask 1046534
        %v5429 = vsel %vm5428, %v4933, %v5427
        %vm5430 = vcmask 1047559
        %v5431 = vsel %vm5430, %v4937, %v5429
        %v5432 = vsel %vm5418, %v4945, %v4941
        %v5433 = vsel %vm5420, %v4949, %v5432
        %v5434 = vsel %vm5422, %v4953, %v5433
        %v5435 = vsel %vm5424, %v4957, %v5434
        %v5436 = vsel %vm5426, %v4961, %v5435
        %v5437 = vsel %vm5428, %v4965, %v5436
        %v5438 = vsel %vm5430, %v4969, %v5437
        %v5439 = vsel %vm5418, %v4977, %v4973
        %v5440 = vsel %vm5420, %v4981, %v5439
        %v5441 = vsel %vm5422, %v4985, %v5440
        %v5442 = vsel %vm5424, %v4989, %v5441
        %v5443 = vsel %vm5426, %v4993, %v5442
        %v5444 = vsel %vm5428, %v4997, %v5443
        %v5445 = vsel %vm5430, %v5001, %v5444
        %v5446 = vsel %vm5418, %v5009, %v5005
        %v5447 = vsel %vm5420, %v5013, %v5446
        %v5448 = vsel %vm5422, %v5017, %v5447
        %v5449 = vsel %vm5424, %v5021, %v5448
        %v5450 = vsel %vm5426, %v5025, %v5449
        %v5451 = vsel %vm5428, %v5029, %v5450
        %v5452 = vsel %vm5430, %v5033, %v5451
        %v5453 = vsel %vm5418, %v5041, %v5037
        %v5454 = vsel %vm5420, %v5045, %v5453
        %v5455 = vsel %vm5422, %v5049, %v5454
        %v5456 = vsel %vm5424, %v5053, %v5455
        %v5457 = vsel %vm5426, %v5057, %v5456
        %v5458 = vsel %vm5428, %v5061, %v5457
        %v5459 = vsel %vm5430, %v5065, %v5458
        %v5460 = vsel %vm5418, %v5073, %v5069
        %v5461 = vsel %vm5420, %v5077, %v5460
        %v5462 = vsel %vm5422, %v5081, %v5461
        %v5463 = vsel %vm5424, %v5085, %v5462
        %v5464 = vsel %vm5426, %v5089, %v5463
        %v5465 = vsel %vm5428, %v5093, %v5464
        %v5466 = vsel %vm5430, %v5097, %v5465
        %v5467 = vsel %vm5418, %v5105, %v5101
        %v5468 = vsel %vm5420, %v5109, %v5467
        %v5469 = vsel %vm5422, %v5113, %v5468
        %v5470 = vsel %vm5424, %v5117, %v5469
        %v5471 = vsel %vm5426, %v5121, %v5470
        %v5472 = vsel %vm5428, %v5125, %v5471
        %v5473 = vsel %vm5430, %v5129, %v5472
        %v5474 = vsel %vm5418, %v5137, %v5133
        %v5475 = vsel %vm5420, %v5141, %v5474
        %v5476 = vsel %vm5422, %v5145, %v5475
        %v5477 = vsel %vm5424, %v5149, %v5476
        %v5478 = vsel %vm5426, %v5153, %v5477
        %v5479 = vsel %vm5428, %v5157, %v5478
        %v5480 = vsel %vm5430, %v5161, %v5479
        %v5481 = vsel %vm5418, %v5169, %v5165
        %v5482 = vsel %vm5420, %v5173, %v5481
        %v5483 = vsel %vm5422, %v5177, %v5482
        %v5484 = vsel %vm5424, %v5181, %v5483
        %v5485 = vsel %vm5426, %v5185, %v5484
        %v5486 = vsel %vm5428, %v5189, %v5485
        %v5487 = vsel %vm5430, %v5193, %v5486
        %v5488 = vsel %vm5418, %v5201, %v5197
        %v5489 = vsel %vm5420, %v5205, %v5488
        %v5490 = vsel %vm5422, %v5209, %v5489
        %v5491 = vsel %vm5424, %v5213, %v5490
        %v5492 = vsel %vm5426, %v5217, %v5491
        %v5493 = vsel %vm5428, %v5221, %v5492
        %v5494 = vsel %vm5430, %v5225, %v5493
        %v5495 = vsel %vm5418, %v5233, %v5229
        %v5496 = vsel %vm5420, %v5237, %v5495
        %v5497 = vsel %vm5422, %v5241, %v5496
        %v5498 = vsel %vm5424, %v5245, %v5497
        %v5499 = vsel %vm5426, %v5249, %v5498
        %v5500 = vsel %vm5428, %v5253, %v5499
        %v5501 = vsel %vm5430, %v5257, %v5500
        %v5502 = vsel %vm5418, %v5265, %v5261
        %v5503 = vsel %vm5420, %v5269, %v5502
        %v5504 = vsel %vm5422, %v5273, %v5503
        %v5505 = vsel %vm5424, %v5277, %v5504
        %v5506 = vsel %vm5426, %v5281, %v5505
        %v5507 = vsel %vm5428, %v5285, %v5506
        %v5508 = vsel %vm5430, %v5289, %v5507
        %v5509 = vsel %vm5418, %v5297, %v5293
        %v5510 = vsel %vm5420, %v5301, %v5509
        %v5511 = vsel %vm5422, %v5305, %v5510
        %v5512 = vsel %vm5424, %v5309, %v5511
        %v5513 = vsel %vm5426, %v5313, %v5512
        %v5514 = vsel %vm5428, %v5317, %v5513
        %v5515 = vsel %vm5430, %v5321, %v5514
        %v5516 = vsel %vm5418, %v5329, %v5325
        %v5517 = vsel %vm5420, %v5333, %v5516
        %v5518 = vsel %vm5422, %v5337, %v5517
        %v5519 = vsel %vm5424, %v5341, %v5518
        %v5520 = vsel %vm5426, %v5345, %v5519
        %v5521 = vsel %vm5428, %v5349, %v5520
        %v5522 = vsel %vm5430, %v5353, %v5521
        %v5523 = vsel %vm5418, %v5361, %v5357
        %v5524 = vsel %vm5420, %v5365, %v5523
        %v5525 = vsel %vm5422, %v5369, %v5524
        %v5526 = vsel %vm5424, %v5373, %v5525
        %v5527 = vsel %vm5426, %v5377, %v5526
        %v5528 = vsel %vm5428, %v5381, %v5527
        %v5529 = vsel %vm5430, %v5385, %v5528
        %v5530 = vsel %vm5418, %v5393, %v5389
        %v5531 = vsel %vm5420, %v5397, %v5530
        %v5532 = vsel %vm5422, %v5401, %v5531
        %v5533 = vsel %vm5424, %v5405, %v5532
        %v5534 = vsel %vm5426, %v5409, %v5533
        %v5535 = vsel %vm5428, %v5413, %v5534
        %v5536 = vsel %vm5430, %v5417, %v5535
        %s5553 = scalar_lea.vmem [#allocation4], 8
        %5554 = vst.msk [vmem:[%s5553] sm:$0xff] %vm3507, %v5431
        %5555 = vst.msk [vmem:[%s5553 + $0x8] sm:$0xff] %vm3507, %v5438
        %5556 = vst.msk [vmem:[%s5553 + $0x10] sm:$0xff] %vm3507, %v5445
        %5557 = vst.msk [vmem:[%s5553 + $0x18] sm:$0xff] %vm3507, %v5452
        %5558 = vst.msk [vmem:[%s5553 + $0x20] sm:$0xff] %vm3507, %v5459
        %5559 = vst.msk [vmem:[%s5553 + $0x28] sm:$0xff] %vm3507, %v5466
        %5560 = vst.msk [vmem:[%s5553 + $0x30] sm:$0xff] %vm3507, %v5473
        %5561 = vst.msk [vmem:[%s5553 + $0x38] sm:$0xff] %vm3507, %v5480
        %5562 = vst.msk [vmem:[%s5553 + $0x40] sm:$0xff] %vm3507, %v5487
        %5563 = vst.msk [vmem:[%s5553 + $0x48] sm:$0xff] %vm3507, %v5494
        %5564 = vst.msk [vmem:[%s5553 + $0x50] sm:$0xff] %vm3507, %v5501
        %5565 = vst.msk [vmem:[%s5553 + $0x58] sm:$0xff] %vm3507, %v5508
        %5566 = vst.msk [vmem:[%s5553 + $0x60] sm:$0xff] %vm3507, %v5515
        %5567 = vst.msk [vmem:[%s5553 + $0x68] sm:$0xff] %vm3507, %v5522
        %5568 = vst.msk [vmem:[%s5553 + $0x70] sm:$0xff] %vm3507, %v5529
        %5569 = vst.msk [vmem:[%s5553 + $0x78] sm:$0xff] %vm3507, %v5536
        %5570 = vst.msk [vmem:[#allocation4] sm:$0xff] %vm3507, -3.4028235e+38
        %s5571 = scalar_lea.vmem [#allocation4], 136
        %5572 = vst.msk [vmem:[%s5571] sm:$0xff] %vm3507, -3.4028235e+38
        %v5573 = vld [vmem:[#allocation4] sm:$0xff]
        %v5574 = vld [vmem:[#allocation4 + $0x10] sm:$0xff]
        %v5575 = vld [vmem:[#allocation4 + $0x20] sm:$0xff]
        %v5576 = vld [vmem:[#allocation4 + $0x30] sm:$0xff]
        %v5577 = vld [vmem:[#allocation4 + $0x40] sm:$0xff]
        %v5578 = vld [vmem:[#allocation4 + $0x50] sm:$0xff]
        %v5579 = vld [vmem:[#allocation4 + $0x60] sm:$0xff]
        %v5580 = vld [vmem:[#allocation4 + $0x70] sm:$0xff]
        %v5581 = vld [vmem:[%s5553] sm:$0xff]
        %v5582 = vld [vmem:[%s5553 + $0x10] sm:$0xff]
        %v5583 = vld [vmem:[%s5553 + $0x20] sm:$0xff]
        %v5584 = vld [vmem:[%s5553 + $0x30] sm:$0xff]
        %v5585 = vld [vmem:[%s5553 + $0x40] sm:$0xff]
        %v5586 = vld [vmem:[%s5553 + $0x50] sm:$0xff]
        %v5587 = vld [vmem:[%s5553 + $0x60] sm:$0xff]
        %v5588 = vld [vmem:[%s5553 + $0x70] sm:$0xff]
        %v5589 = vmax.f32 %v5573, %v5581
        %v5590 = vmax.f32 %v5574, %v5582
        %v5591 = vmax.f32 %v5575, %v5583
        %v5592 = vmax.f32 %v5576, %v5584
        %v5593 = vmax.f32 %v5577, %v5585
        %v5594 = vmax.f32 %v5578, %v5586
        %v5595 = vmax.f32 %v5579, %v5587
        %v5596 = vmax.f32 %v5580, %v5588
        %s5597 = scalar_lea.vmem [#allocation4], 16
        %v5598 = vld [vmem:[%s5597] sm:$0xff]
        %v5599 = vld [vmem:[%s5597 + $0x10] sm:$0xff]
        %v5600 = vld [vmem:[%s5597 + $0x20] sm:$0xff]
        %v5601 = vld [vmem:[%s5597 + $0x30] sm:$0xff]
        %v5602 = vld [vmem:[%s5597 + $0x40] sm:$0xff]
        %v5603 = vld [vmem:[%s5597 + $0x50] sm:$0xff]
        %v5604 = vld [vmem:[%s5597 + $0x60] sm:$0xff]
        %v5605 = vld [vmem:[%s5597 + $0x70] sm:$0xff]
        %v5606 = vmax.f32 %v5589, %v5598
        %v5607 = vmax.f32 %v5590, %v5599
        %v5608 = vmax.f32 %v5591, %v5600
        %v5609 = vmax.f32 %v5592, %v5601
        %v5610 = vmax.f32 %v5593, %v5602
        %v5611 = vmax.f32 %v5594, %v5603
        %v5612 = vmax.f32 %v5595, %v5604
        %v5613 = vmax.f32 %v5596, %v5605
        %v5614 = vpack.c.bf16 %v5606, %v5606
        %v5615 = vpack.c.bf16 %v5607, %v5607
        %v5616 = vpack.c.bf16 %v5608, %v5608
        %v5617 = vpack.c.bf16 %v5609, %v5609
        %v5618 = vpack.c.bf16 %v5610, %v5610
        %v5619 = vpack.c.bf16 %v5611, %v5611
        %v5620 = vpack.c.bf16 %v5612, %v5612
        %v5621 = vpack.c.bf16 %v5613, %v5613
        %v5630 = vunpack.c.l.b16 %v5614
        %v5631 = vunpack.c.l.b16 %v5615
        %v5632 = vunpack.c.l.b16 %v5616
        %v5633 = vunpack.c.l.b16 %v5617
        %v5634 = vunpack.c.l.b16 %v5618
        %v5635 = vunpack.c.l.b16 %v5619
        %v5636 = vunpack.c.l.b16 %v5620
        %v5637 = vunpack.c.l.b16 %v5621
        %v5638 = vpack.c.b16 %v5630, %v5630
        %v5639 = vpack.c.b16 %v5631, %v5631
        %v5640 = vpack.c.b16 %v5632, %v5632
        %v5641 = vpack.c.b16 %v5633, %v5633
        %v5642 = vpack.c.b16 %v5634, %v5634
        %v5643 = vpack.c.b16 %v5635, %v5635
        %v5644 = vpack.c.b16 %v5636, %v5636
        %v5645 = vpack.c.b16 %v5637, %v5637
        %v5647 = vshrl.u32 %v5638, 16
        %v5649 = vrot.slane %v5647, 7
        %v5650 = vshll.u32 %v5638, 16
        %v5652 = vor.u32 %v5649, %v5650
        %v5653 = vrot.slane %v5649, 4
        %v5655 = vshrl.u32 %v5639, 16
        %v5657 = vrot.slane %v5655, 7
        %v5658 = vshll.u32 %v5639, 16
        %v5660 = vor.u32 %v5657, %v5658
        %v5661 = vrot.slane %v5657, 4
        %v5663 = vshrl.u32 %v5640, 16
        %v5665 = vrot.slane %v5663, 7
        %v5666 = vshll.u32 %v5640, 16
        %v5668 = vor.u32 %v5665, %v5666
        %v5669 = vrot.slane %v5665, 4
        %v5671 = vshrl.u32 %v5641, 16
        %v5673 = vrot.slane %v5671, 7
        %v5674 = vshll.u32 %v5641, 16
        %v5676 = vor.u32 %v5673, %v5674
        %v5677 = vrot.slane %v5673, 4
        %v5679 = vshrl.u32 %v5642, 16
        %v5681 = vrot.slane %v5679, 7
        %v5682 = vshll.u32 %v5642, 16
        %v5684 = vor.u32 %v5681, %v5682
        %v5685 = vrot.slane %v5681, 4
        %v5687 = vshrl.u32 %v5643, 16
        %v5689 = vrot.slane %v5687, 7
        %v5690 = vshll.u32 %v5643, 16
        %v5692 = vor.u32 %v5689, %v5690
        %v5693 = vrot.slane %v5689, 4
        %v5695 = vshrl.u32 %v5644, 16
        %v5697 = vrot.slane %v5695, 7
        %v5698 = vshll.u32 %v5644, 16
        %v5700 = vor.u32 %v5697, %v5698
        %v5701 = vrot.slane %v5697, 4
        %v5703 = vshrl.u32 %v5645, 16
        %v5705 = vrot.slane %v5703, 7
        %v5706 = vshll.u32 %v5645, 16
        %v5708 = vor.u32 %v5705, %v5706
        %v5709 = vrot.slane %v5705, 4
        %s5726 = scalar_lea.vmem [#allocation5], 8
        %vm5727 = vcmask 257024
        %vm5728 = vmand %vm5727, %vm689
        %v5729 = vld [vmem:[%s5726] sm:$0xf]
        %v5730 = vsel %vm5728, %v5652, %v5729
        %5731 = vst [vmem:[%s5726] sm:$0xf] %v5730
        %vm5732 = vcmask 253952
        %vm5733 = vmand %vm5732, %vm364
        %v5734 = vld [vmem:[%s5726 + $0x4] sm:$0x1]
        %v5735 = vsel %vm5733, %v5653, %v5734
        %5736 = vst [vmem:[%s5726 + $0x4] sm:$0x1] %v5735
        %v5737 = vld [vmem:[%s5726 + $0x8] sm:$0xf]
        %v5738 = vsel %vm5728, %v5660, %v5737
        %5739 = vst [vmem:[%s5726 + $0x8] sm:$0xf] %v5738
        %v5740 = vld [vmem:[%s5726 + $0xc] sm:$0x1]
        %v5741 = vsel %vm5733, %v5661, %v5740
        %5742 = vst [vmem:[%s5726 + $0xc] sm:$0x1] %v5741
        %v5743 = vld [vmem:[%s5726 + $0x10] sm:$0xf]
        %v5744 = vsel %vm5728, %v5668, %v5743
        %5745 = vst [vmem:[%s5726 + $0x10] sm:$0xf] %v5744
        %v5746 = vld [vmem:[%s5726 + $0x14] sm:$0x1]
        %v5747 = vsel %vm5733, %v5669, %v5746
        %5748 = vst [vmem:[%s5726 + $0x14] sm:$0x1] %v5747
        %v5749 = vld [vmem:[%s5726 + $0x18] sm:$0xf]
        %v5750 = vsel %vm5728, %v5676, %v5749
        %5751 = vst [vmem:[%s5726 + $0x18] sm:$0xf] %v5750
        %v5752 = vld [vmem:[%s5726 + $0x1c] sm:$0x1]
        %v5753 = vsel %vm5733, %v5677, %v5752
        %5754 = vst [vmem:[%s5726 + $0x1c] sm:$0x1] %v5753
        %v5755 = vld [vmem:[%s5726 + $0x20] sm:$0xf]
        %v5756 = vsel %vm5728, %v5684, %v5755
        %5757 = vst [vmem:[%s5726 + $0x20] sm:$0xf] %v5756
        %v5758 = vld [vmem:[%s5726 + $0x24] sm:$0x1]
        %v5759 = vsel %vm5733, %v5685, %v5758
        %5760 = vst [vmem:[%s5726 + $0x24] sm:$0x1] %v5759
        %v5761 = vld [vmem:[%s5726 + $0x28] sm:$0xf]
        %v5762 = vsel %vm5728, %v5692, %v5761
        %5763 = vst [vmem:[%s5726 + $0x28] sm:$0xf] %v5762
        %v5764 = vld [vmem:[%s5726 + $0x2c] sm:$0x1]
        %v5765 = vsel %vm5733, %v5693, %v5764
        %5766 = vst [vmem:[%s5726 + $0x2c] sm:$0x1] %v5765
        %v5767 = vld [vmem:[%s5726 + $0x30] sm:$0xf]
        %v5768 = vsel %vm5728, %v5700, %v5767
        %5769 = vst [vmem:[%s5726 + $0x30] sm:$0xf] %v5768
        %v5770 = vld [vmem:[%s5726 + $0x34] sm:$0x1]
        %v5771 = vsel %vm5733, %v5701, %v5770
        %5772 = vst [vmem:[%s5726 + $0x34] sm:$0x1] %v5771
        %v5773 = vld [vmem:[%s5726 + $0x38] sm:$0xf]
        %v5774 = vsel %vm5728, %v5708, %v5773
        %5775 = vst [vmem:[%s5726 + $0x38] sm:$0xf] %v5774
        %v5776 = vld [vmem:[%s5726 + $0x3c] sm:$0x1]
        %v5777 = vsel %vm5733, %v5709, %v5776
        %5778 = vst [vmem:[%s5726 + $0x3c] sm:$0x1] %v5777
        %vm5779 = vcmask 257024
        %5780 = vst.msk [vmem:[#allocation5] sm:$0xf] %vm5779, 0
        %5781 = vst.msk [vmem:[#allocation5 + $0x4] sm:$0x1] %vm4137, 0
        %s5782 = scalar_lea.vmem [#allocation5], 72
        %5783 = vst.msk [vmem:[%s5782] sm:$0xf] %vm5779, 0
        %5784 = vst.msk [vmem:[%s5782 + $0x4] sm:$0x1] %vm4137, 0
        %v5785 = vld [vmem:[#allocation5] sm:$0x1]
        %v5786 = vsel %vm5733, 0, %v5785
        %5787 = vst [vmem:[#allocation5] sm:$0x1] %v5786
        %v5788 = vld [vmem:[#allocation5 + $0x8] sm:$0x1]
        %v5789 = vsel %vm5733, 0, %v5788
        %5790 = vst [vmem:[#allocation5 + $0x8] sm:$0x1] %v5789
        %v5791 = vld [vmem:[#allocation5 + $0x10] sm:$0x1]
        %v5792 = vsel %vm5733, 0, %v5791
        %5793 = vst [vmem:[#allocation5 + $0x10] sm:$0x1] %v5792
        %v5794 = vld [vmem:[#allocation5 + $0x18] sm:$0x1]
        %v5795 = vsel %vm5733, 0, %v5794
        %5796 = vst [vmem:[#allocation5 + $0x18] sm:$0x1] %v5795
        %v5797 = vld [vmem:[#allocation5 + $0x20] sm:$0x1]
        %v5798 = vsel %vm5733, 0, %v5797
        %5799 = vst [vmem:[#allocation5 + $0x20] sm:$0x1] %v5798
        %v5800 = vld [vmem:[#allocation5 + $0x28] sm:$0x1]
        %v5801 = vsel %vm5733, 0, %v5800
        %5802 = vst [vmem:[#allocation5 + $0x28] sm:$0x1] %v5801
        %v5803 = vld [vmem:[#allocation5 + $0x30] sm:$0x1]
        %v5804 = vsel %vm5733, 0, %v5803
        %5805 = vst [vmem:[#allocation5 + $0x30] sm:$0x1] %v5804
        %v5806 = vld [vmem:[#allocation5 + $0x38] sm:$0x1]
        %v5807 = vsel %vm5733, 0, %v5806
        %5808 = vst [vmem:[#allocation5 + $0x38] sm:$0x1] %v5807
        %v5809 = vld [vmem:[#allocation5 + $0x40] sm:$0x1]
        %v5810 = vsel %vm5733, 0, %v5809
        %5811 = vst [vmem:[#allocation5 + $0x40] sm:$0x1] %v5810
        %v5812 = vld [vmem:[#allocation5 + $0x48] sm:$0x1]
        %v5813 = vsel %vm5733, 0, %v5812
        %5814 = vst [vmem:[#allocation5 + $0x48] sm:$0x1] %v5813
        %vm5815 = vmand %vm5732, %vm689
        %v5816 = vld [vmem:[#allocation5 + $0x4] sm:$0x1]
        %v5817 = vsel %vm5815, 0, %v5816
        %5818 = vst [vmem:[#allocation5 + $0x4] sm:$0x1] %v5817
        %v5819 = vld [vmem:[#allocation5 + $0xc] sm:$0x1]
        %v5820 = vsel %vm5815, 0, %v5819
        %5821 = vst [vmem:[#allocation5 + $0xc] sm:$0x1] %v5820
        %v5822 = vld [vmem:[#allocation5 + $0x14] sm:$0x1]
        %v5823 = vsel %vm5815, 0, %v5822
        %5824 = vst [vmem:[#allocation5 + $0x14] sm:$0x1] %v5823
        %v5825 = vld [vmem:[#allocation5 + $0x1c] sm:$0x1]
        %v5826 = vsel %vm5815, 0, %v5825
        %5827 = vst [vmem:[#allocation5 + $0x1c] sm:$0x1] %v5826
        %v5828 = vld [vmem:[#allocation5 + $0x24] sm:$0x1]
        %v5829 = vsel %vm5815, 0, %v5828
        %5830 = vst [vmem:[#allocation5 + $0x24] sm:$0x1] %v5829
        %v5831 = vld [vmem:[#allocation5 + $0x2c] sm:$0x1]
        %v5832 = vsel %vm5815, 0, %v5831
        %5833 = vst [vmem:[#allocation5 + $0x2c] sm:$0x1] %v5832
        %v5834 = vld [vmem:[#allocation5 + $0x34] sm:$0x1]
        %v5835 = vsel %vm5815, 0, %v5834
        %5836 = vst [vmem:[#allocation5 + $0x34] sm:$0x1] %v5835
        %v5837 = vld [vmem:[#allocation5 + $0x3c] sm:$0x1]
        %v5838 = vsel %vm5815, 0, %v5837
        %5839 = vst [vmem:[#allocation5 + $0x3c] sm:$0x1] %v5838
        %v5840 = vld [vmem:[#allocation5 + $0x44] sm:$0x1]
        %v5841 = vsel %vm5815, 0, %v5840
        %5842 = vst [vmem:[#allocation5 + $0x44] sm:$0x1] %v5841
        %v5843 = vld [vmem:[#allocation5 + $0x4c] sm:$0x1]
        %v5844 = vsel %vm5815, 0, %v5843
        %5845 = vst [vmem:[#allocation5 + $0x4c] sm:$0x1] %v5844
        %v5846 = vld [vmem:[#allocation5] sm:$0xf]
        %v5847 = vld [vmem:[#allocation5 + $0x8] sm:$0xf]
        %v5848 = vld [vmem:[#allocation5 + $0x10] sm:$0xf]
        %v5849 = vld [vmem:[#allocation5 + $0x18] sm:$0xf]
        %v5850 = vld [vmem:[#allocation5 + $0x20] sm:$0xf]
        %v5851 = vld [vmem:[#allocation5 + $0x28] sm:$0xf]
        %v5852 = vld [vmem:[#allocation5 + $0x30] sm:$0xf]
        %v5853 = vld [vmem:[#allocation5 + $0x38] sm:$0xf]
        %v5854 = vld [vmem:[#allocation5 + $0x4] sm:$0x1]
        %v5855 = vld [vmem:[#allocation5 + $0xc] sm:$0x1]
        %v5856 = vld [vmem:[#allocation5 + $0x14] sm:$0x1]
        %v5857 = vld [vmem:[#allocation5 + $0x1c] sm:$0x1]
        %v5858 = vld [vmem:[#allocation5 + $0x24] sm:$0x1]
        %v5859 = vld [vmem:[#allocation5 + $0x2c] sm:$0x1]
        %v5860 = vld [vmem:[#allocation5 + $0x34] sm:$0x1]
        %v5861 = vld [vmem:[#allocation5 + $0x3c] sm:$0x1]
        %v5863 = vshrl.u32 %v5846, 16
        %v5865 = vrot.slane %v5863, 4
        %v5866 = vshll.u32 %v5846, 16
        %v5868 = vrot.slane %v5866, 5
        %v5869 = vor.u32 %v5865, %v5868
        %v5870 = vrot.slane %v5869, 4
        %v5872 = vshll.u32 %v5854, 16
        %v5874 = vrot.slane %v5872, 5
        %v5875 = vsel %vm973, %v5870, %v5874
        %v5877 = vshrl.u32 %v5847, 16
        %v5879 = vrot.slane %v5877, 4
        %v5880 = vshll.u32 %v5847, 16
        %v5882 = vrot.slane %v5880, 5
        %v5883 = vor.u32 %v5879, %v5882
        %v5884 = vrot.slane %v5883, 4
        %v5886 = vshll.u32 %v5855, 16
        %v5888 = vrot.slane %v5886, 5
        %v5889 = vsel %vm973, %v5884, %v5888
        %v5891 = vshrl.u32 %v5848, 16
        %v5893 = vrot.slane %v5891, 4
        %v5894 = vshll.u32 %v5848, 16
        %v5896 = vrot.slane %v5894, 5
        %v5897 = vor.u32 %v5893, %v5896
        %v5898 = vrot.slane %v5897, 4
        %v5900 = vshll.u32 %v5856, 16
        %v5902 = vrot.slane %v5900, 5
        %v5903 = vsel %vm973, %v5898, %v5902
        %v5905 = vshrl.u32 %v5849, 16
        %v5907 = vrot.slane %v5905, 4
        %v5908 = vshll.u32 %v5849, 16
        %v5910 = vrot.slane %v5908, 5
        %v5911 = vor.u32 %v5907, %v5910
        %v5912 = vrot.slane %v5911, 4
        %v5914 = vshll.u32 %v5857, 16
        %v5916 = vrot.slane %v5914, 5
        %v5917 = vsel %vm973, %v5912, %v5916
        %v5919 = vshrl.u32 %v5850, 16
        %v5921 = vrot.slane %v5919, 4
        %v5922 = vshll.u32 %v5850, 16
        %v5924 = vrot.slane %v5922, 5
        %v5925 = vor.u32 %v5921, %v5924
        %v5926 = vrot.slane %v5925, 4
        %v5928 = vshll.u32 %v5858, 16
        %v5930 = vrot.slane %v5928, 5
        %v5931 = vsel %vm973, %v5926, %v5930
        %v5933 = vshrl.u32 %v5851, 16
        %v5935 = vrot.slane %v5933, 4
        %v5936 = vshll.u32 %v5851, 16
        %v5938 = vrot.slane %v5936, 5
        %v5939 = vor.u32 %v5935, %v5938
        %v5940 = vrot.slane %v5939, 4
        %v5942 = vshll.u32 %v5859, 16
        %v5944 = vrot.slane %v5942, 5
        %v5945 = vsel %vm973, %v5940, %v5944
        %v5947 = vshrl.u32 %v5852, 16
        %v5949 = vrot.slane %v5947, 4
        %v5950 = vshll.u32 %v5852, 16
        %v5952 = vrot.slane %v5950, 5
        %v5953 = vor.u32 %v5949, %v5952
        %v5954 = vrot.slane %v5953, 4
        %v5956 = vshll.u32 %v5860, 16
        %v5958 = vrot.slane %v5956, 5
        %v5959 = vsel %vm973, %v5954, %v5958
        %v5961 = vshrl.u32 %v5853, 16
        %v5963 = vrot.slane %v5961, 4
        %v5964 = vshll.u32 %v5853, 16
        %v5966 = vrot.slane %v5964, 5
        %v5967 = vor.u32 %v5963, %v5966
        %v5968 = vrot.slane %v5967, 4
        %v5970 = vshll.u32 %v5861, 16
        %v5972 = vrot.slane %v5970, 5
        %v5973 = vsel %vm973, %v5968, %v5972
        %v5974 = vld [vmem:[#allocation5] sm:$0xe]
        %v5975 = vld [vmem:[#allocation5 + $0x8] sm:$0xe]
        %v5976 = vld [vmem:[#allocation5 + $0x10] sm:$0xe]
        %v5977 = vld [vmem:[#allocation5 + $0x18] sm:$0xe]
        %v5978 = vld [vmem:[#allocation5 + $0x20] sm:$0xe]
        %v5979 = vld [vmem:[#allocation5 + $0x28] sm:$0xe]
        %v5980 = vld [vmem:[#allocation5 + $0x30] sm:$0xe]
        %v5981 = vld [vmem:[#allocation5 + $0x38] sm:$0xe]
        %v5998 = vrot.slane %v5974, 5
        %v5999 = vrot.slane %v5998, 4
        %v6000 = vrot.slane %v5854, 5
        %v6001 = vsel %vm1424, %v5999, %v6000
        %v6002 = vrot.slane %v5975, 5
        %v6003 = vrot.slane %v6002, 4
        %v6004 = vrot.slane %v5855, 5
        %v6005 = vsel %vm1424, %v6003, %v6004
        %v6006 = vrot.slane %v5976, 5
        %v6007 = vrot.slane %v6006, 4
        %v6008 = vrot.slane %v5856, 5
        %v6009 = vsel %vm1424, %v6007, %v6008
        %v6010 = vrot.slane %v5977, 5
        %v6011 = vrot.slane %v6010, 4
        %v6012 = vrot.slane %v5857, 5
        %v6013 = vsel %vm1424, %v6011, %v6012
        %v6014 = vrot.slane %v5978, 5
        %v6015 = vrot.slane %v6014, 4
        %v6016 = vrot.slane %v5858, 5
        %v6017 = vsel %vm1424, %v6015, %v6016
        %v6018 = vrot.slane %v5979, 5
        %v6019 = vrot.slane %v6018, 4
        %v6020 = vrot.slane %v5859, 5
        %v6021 = vsel %vm1424, %v6019, %v6020
        %v6022 = vrot.slane %v5980, 5
        %v6023 = vrot.slane %v6022, 4
        %v6024 = vrot.slane %v5860, 5
        %v6025 = vsel %vm1424, %v6023, %v6024
        %v6026 = vrot.slane %v5981, 5
        %v6027 = vrot.slane %v6026, 4
        %v6028 = vrot.slane %v5861, 5
        %v6029 = vsel %vm1424, %v6027, %v6028
        %v6030 = vld [vmem:[%s5726] sm:$0xf]
        %v6031 = vld [vmem:[%s5726 + $0x8] sm:$0xf]
        %v6032 = vld [vmem:[%s5726 + $0x10] sm:$0xf]
        %v6033 = vld [vmem:[%s5726 + $0x18] sm:$0xf]
        %v6034 = vld [vmem:[%s5726 + $0x20] sm:$0xf]
        %v6035 = vld [vmem:[%s5726 + $0x28] sm:$0xf]
        %v6036 = vld [vmem:[%s5726 + $0x30] sm:$0xf]
        %v6037 = vld [vmem:[%s5726 + $0x38] sm:$0xf]
        %v6038 = vld [vmem:[%s5726 + $0x4] sm:$0x1]
        %v6039 = vld [vmem:[%s5726 + $0xc] sm:$0x1]
        %v6040 = vld [vmem:[%s5726 + $0x14] sm:$0x1]
        %v6041 = vld [vmem:[%s5726 + $0x1c] sm:$0x1]
        %v6042 = vld [vmem:[%s5726 + $0x24] sm:$0x1]
        %v6043 = vld [vmem:[%s5726 + $0x2c] sm:$0x1]
        %v6044 = vld [vmem:[%s5726 + $0x34] sm:$0x1]
        %v6045 = vld [vmem:[%s5726 + $0x3c] sm:$0x1]
        %v6047 = vshrl.u32 %v6030, 16
        %v6049 = vrot.slane %v6047, 4
        %v6050 = vshll.u32 %v6030, 16
        %v6052 = vrot.slane %v6050, 5
        %v6053 = vor.u32 %v6049, %v6052
        %v6054 = vrot.slane %v6053, 4
        %v6056 = vshll.u32 %v6038, 16
        %v6058 = vrot.slane %v6056, 5
        %v6059 = vsel %vm973, %v6054, %v6058
        %v6061 = vshrl.u32 %v6031, 16
        %v6063 = vrot.slane %v6061, 4
        %v6064 = vshll.u32 %v6031, 16
        %v6066 = vrot.slane %v6064, 5
        %v6067 = vor.u32 %v6063, %v6066
        %v6068 = vrot.slane %v6067, 4
        %v6070 = vshll.u32 %v6039, 16
        %v6072 = vrot.slane %v6070, 5
        %v6073 = vsel %vm973, %v6068, %v6072
        %v6075 = vshrl.u32 %v6032, 16
        %v6077 = vrot.slane %v6075, 4
        %v6078 = vshll.u32 %v6032, 16
        %v6080 = vrot.slane %v6078, 5
        %v6081 = vor.u32 %v6077, %v6080
        %v6082 = vrot.slane %v6081, 4
        %v6084 = vshll.u32 %v6040, 16
        %v6086 = vrot.slane %v6084, 5
        %v6087 = vsel %vm973, %v6082, %v6086
        %v6089 = vshrl.u32 %v6033, 16
        %v6091 = vrot.slane %v6089, 4
        %v6092 = vshll.u32 %v6033, 16
        %v6094 = vrot.slane %v6092, 5
        %v6095 = vor.u32 %v6091, %v6094
        %v6096 = vrot.slane %v6095, 4
        %v6098 = vshll.u32 %v6041, 16
        %v6100 = vrot.slane %v6098, 5
        %v6101 = vsel %vm973, %v6096, %v6100
        %v6103 = vshrl.u32 %v6034, 16
        %v6105 = vrot.slane %v6103, 4
        %v6106 = vshll.u32 %v6034, 16
        %v6108 = vrot.slane %v6106, 5
        %v6109 = vor.u32 %v6105, %v6108
        %v6110 = vrot.slane %v6109, 4
        %v6112 = vshll.u32 %v6042, 16
        %v6114 = vrot.slane %v6112, 5
        %v6115 = vsel %vm973, %v6110, %v6114
        %v6117 = vshrl.u32 %v6035, 16
        %v6119 = vrot.slane %v6117, 4
        %v6120 = vshll.u32 %v6035, 16
        %v6122 = vrot.slane %v6120, 5
        %v6123 = vor.u32 %v6119, %v6122
        %v6124 = vrot.slane %v6123, 4
        %v6126 = vshll.u32 %v6043, 16
        %v6128 = vrot.slane %v6126, 5
        %v6129 = vsel %vm973, %v6124, %v6128
        %v6131 = vshrl.u32 %v6036, 16
        %v6133 = vrot.slane %v6131, 4
        %v6134 = vshll.u32 %v6036, 16
        %v6136 = vrot.slane %v6134, 5
        %v6137 = vor.u32 %v6133, %v6136
        %v6138 = vrot.slane %v6137, 4
        %v6140 = vshll.u32 %v6044, 16
        %v6142 = vrot.slane %v6140, 5
        %v6143 = vsel %vm973, %v6138, %v6142
        %v6145 = vshrl.u32 %v6037, 16
        %v6147 = vrot.slane %v6145, 4
        %v6148 = vshll.u32 %v6037, 16
        %v6150 = vrot.slane %v6148, 5
        %v6151 = vor.u32 %v6147, %v6150
        %v6152 = vrot.slane %v6151, 4
        %v6154 = vshll.u32 %v6045, 16
        %v6156 = vrot.slane %v6154, 5
        %v6157 = vsel %vm973, %v6152, %v6156
        %v6158 = vld [vmem:[%s5726] sm:$0xe]
        %v6159 = vld [vmem:[%s5726 + $0x8] sm:$0xe]
        %v6160 = vld [vmem:[%s5726 + $0x10] sm:$0xe]
        %v6161 = vld [vmem:[%s5726 + $0x18] sm:$0xe]
        %v6162 = vld [vmem:[%s5726 + $0x20] sm:$0xe]
        %v6163 = vld [vmem:[%s5726 + $0x28] sm:$0xe]
        %v6164 = vld [vmem:[%s5726 + $0x30] sm:$0xe]
        %v6165 = vld [vmem:[%s5726 + $0x38] sm:$0xe]
        %v6182 = vrot.slane %v6158, 5
        %v6183 = vrot.slane %v6182, 4
        %v6184 = vrot.slane %v6038, 5
        %v6185 = vsel %vm1424, %v6183, %v6184
        %v6186 = vrot.slane %v6159, 5
        %v6187 = vrot.slane %v6186, 4
        %v6188 = vrot.slane %v6039, 5
        %v6189 = vsel %vm1424, %v6187, %v6188
        %v6190 = vrot.slane %v6160, 5
        %v6191 = vrot.slane %v6190, 4
        %v6192 = vrot.slane %v6040, 5
        %v6193 = vsel %vm1424, %v6191, %v6192
        %v6194 = vrot.slane %v6161, 5
        %v6195 = vrot.slane %v6194, 4
        %v6196 = vrot.slane %v6041, 5
        %v6197 = vsel %vm1424, %v6195, %v6196
        %v6198 = vrot.slane %v6162, 5
        %v6199 = vrot.slane %v6198, 4
        %v6200 = vrot.slane %v6042, 5
        %v6201 = vsel %vm1424, %v6199, %v6200
        %v6202 = vrot.slane %v6163, 5
        %v6203 = vrot.slane %v6202, 4
        %v6204 = vrot.slane %v6043, 5
        %v6205 = vsel %vm1424, %v6203, %v6204
        %v6206 = vrot.slane %v6164, 5
        %v6207 = vrot.slane %v6206, 4
        %v6208 = vrot.slane %v6044, 5
        %v6209 = vsel %vm1424, %v6207, %v6208
        %v6210 = vrot.slane %v6165, 5
        %v6211 = vrot.slane %v6210, 4
        %v6212 = vrot.slane %v6045, 5
        %v6213 = vsel %vm1424, %v6211, %v6212
        %s6214 = scalar_lea.vmem [#allocation5], 16
        %v6215 = vld [vmem:[%s6214] sm:$0xf]
        %v6216 = vld [vmem:[%s6214 + $0x8] sm:$0xf]
        %v6217 = vld [vmem:[%s6214 + $0x10] sm:$0xf]
        %v6218 = vld [vmem:[%s6214 + $0x18] sm:$0xf]
        %v6219 = vld [vmem:[%s6214 + $0x20] sm:$0xf]
        %v6220 = vld [vmem:[%s6214 + $0x28] sm:$0xf]
        %v6221 = vld [vmem:[%s6214 + $0x30] sm:$0xf]
        %v6222 = vld [vmem:[%s6214 + $0x38] sm:$0xf]
        %v6223 = vld [vmem:[%s6214 + $0x4] sm:$0x1]
        %v6224 = vld [vmem:[%s6214 + $0xc] sm:$0x1]
        %v6225 = vld [vmem:[%s6214 + $0x14] sm:$0x1]
        %v6226 = vld [vmem:[%s6214 + $0x1c] sm:$0x1]
        %v6227 = vld [vmem:[%s6214 + $0x24] sm:$0x1]
        %v6228 = vld [vmem:[%s6214 + $0x2c] sm:$0x1]
        %v6229 = vld [vmem:[%s6214 + $0x34] sm:$0x1]
        %v6230 = vld [vmem:[%s6214 + $0x3c] sm:$0x1]
        %v6232 = vshrl.u32 %v6215, 16
        %v6234 = vrot.slane %v6232, 4
        %v6235 = vshll.u32 %v6215, 16
        %v6237 = vrot.slane %v6235, 5
        %v6238 = vor.u32 %v6234, %v6237
        %v6239 = vrot.slane %v6238, 4
        %v6241 = vshll.u32 %v6223, 16
        %v6243 = vrot.slane %v6241, 5
        %v6244 = vsel %vm973, %v6239, %v6243
        %v6246 = vshrl.u32 %v6216, 16
        %v6248 = vrot.slane %v6246, 4
        %v6249 = vshll.u32 %v6216, 16
        %v6251 = vrot.slane %v6249, 5
        %v6252 = vor.u32 %v6248, %v6251
        %v6253 = vrot.slane %v6252, 4
        %v6255 = vshll.u32 %v6224, 16
        %v6257 = vrot.slane %v6255, 5
        %v6258 = vsel %vm973, %v6253, %v6257
        %v6260 = vshrl.u32 %v6217, 16
        %v6262 = vrot.slane %v6260, 4
        %v6263 = vshll.u32 %v6217, 16
        %v6265 = vrot.slane %v6263, 5
        %v6266 = vor.u32 %v6262, %v6265
        %v6267 = vrot.slane %v6266, 4
        %v6269 = vshll.u32 %v6225, 16
        %v6271 = vrot.slane %v6269, 5
        %v6272 = vsel %vm973, %v6267, %v6271
        %v6274 = vshrl.u32 %v6218, 16
        %v6276 = vrot.slane %v6274, 4
        %v6277 = vshll.u32 %v6218, 16
        %v6279 = vrot.slane %v6277, 5
        %v6280 = vor.u32 %v6276, %v6279
        %v6281 = vrot.slane %v6280, 4
        %v6283 = vshll.u32 %v6226, 16
        %v6285 = vrot.slane %v6283, 5
        %v6286 = vsel %vm973, %v6281, %v6285
        %v6288 = vshrl.u32 %v6219, 16
        %v6290 = vrot.slane %v6288, 4
        %v6291 = vshll.u32 %v6219, 16
        %v6293 = vrot.slane %v6291, 5
        %v6294 = vor.u32 %v6290, %v6293
        %v6295 = vrot.slane %v6294, 4
        %v6297 = vshll.u32 %v6227, 16
        %v6299 = vrot.slane %v6297, 5
        %v6300 = vsel %vm973, %v6295, %v6299
        %v6302 = vshrl.u32 %v6220, 16
        %v6304 = vrot.slane %v6302, 4
        %v6305 = vshll.u32 %v6220, 16
        %v6307 = vrot.slane %v6305, 5
        %v6308 = vor.u32 %v6304, %v6307
        %v6309 = vrot.slane %v6308, 4
        %v6311 = vshll.u32 %v6228, 16
        %v6313 = vrot.slane %v6311, 5
        %v6314 = vsel %vm973, %v6309, %v6313
        %v6316 = vshrl.u32 %v6221, 16
        %v6318 = vrot.slane %v6316, 4
        %v6319 = vshll.u32 %v6221, 16
        %v6321 = vrot.slane %v6319, 5
        %v6322 = vor.u32 %v6318, %v6321
        %v6323 = vrot.slane %v6322, 4
        %v6325 = vshll.u32 %v6229, 16
        %v6327 = vrot.slane %v6325, 5
        %v6328 = vsel %vm973, %v6323, %v6327
        %v6330 = vshrl.u32 %v6222, 16
        %v6332 = vrot.slane %v6330, 4
        %v6333 = vshll.u32 %v6222, 16
        %v6335 = vrot.slane %v6333, 5
        %v6336 = vor.u32 %v6332, %v6335
        %v6337 = vrot.slane %v6336, 4
        %v6339 = vshll.u32 %v6230, 16
        %v6341 = vrot.slane %v6339, 5
        %v6342 = vsel %vm973, %v6337, %v6341
        %v6343 = vld [vmem:[%s6214] sm:$0xe]
        %v6344 = vld [vmem:[%s6214 + $0x8] sm:$0xe]
        %v6345 = vld [vmem:[%s6214 + $0x10] sm:$0xe]
        %v6346 = vld [vmem:[%s6214 + $0x18] sm:$0xe]
        %v6347 = vld [vmem:[%s6214 + $0x20] sm:$0xe]
        %v6348 = vld [vmem:[%s6214 + $0x28] sm:$0xe]
        %v6349 = vld [vmem:[%s6214 + $0x30] sm:$0xe]
        %v6350 = vld [vmem:[%s6214 + $0x38] sm:$0xe]
        %v6367 = vrot.slane %v6343, 5
        %v6368 = vrot.slane %v6367, 4
        %v6369 = vrot.slane %v6223, 5
        %v6370 = vsel %vm1424, %v6368, %v6369
        %v6371 = vrot.slane %v6344, 5
        %v6372 = vrot.slane %v6371, 4
        %v6373 = vrot.slane %v6224, 5
        %v6374 = vsel %vm1424, %v6372, %v6373
        %v6375 = vrot.slane %v6345, 5
        %v6376 = vrot.slane %v6375, 4
        %v6377 = vrot.slane %v6225, 5
        %v6378 = vsel %vm1424, %v6376, %v6377
        %v6379 = vrot.slane %v6346, 5
        %v6380 = vrot.slane %v6379, 4
        %v6381 = vrot.slane %v6226, 5
        %v6382 = vsel %vm1424, %v6380, %v6381
        %v6383 = vrot.slane %v6347, 5
        %v6384 = vrot.slane %v6383, 4
        %v6385 = vrot.slane %v6227, 5
        %v6386 = vsel %vm1424, %v6384, %v6385
        %v6387 = vrot.slane %v6348, 5
        %v6388 = vrot.slane %v6387, 4
        %v6389 = vrot.slane %v6228, 5
        %v6390 = vsel %vm1424, %v6388, %v6389
        %v6391 = vrot.slane %v6349, 5
        %v6392 = vrot.slane %v6391, 4
        %v6393 = vrot.slane %v6229, 5
        %v6394 = vsel %vm1424, %v6392, %v6393
        %v6395 = vrot.slane %v6350, 5
        %v6396 = vrot.slane %v6395, 4
        %v6397 = vrot.slane %v6230, 5
        %v6398 = vsel %vm1424, %v6396, %v6397
        %v6407 = vunpack.c.l.b16 %v5846
        %v6408 = vunpack.c.l.b16 %v5847
        %v6409 = vunpack.c.l.b16 %v5848
        %v6410 = vunpack.c.l.b16 %v5849
        %v6411 = vunpack.c.l.b16 %v5850
        %v6412 = vunpack.c.l.b16 %v5851
        %v6413 = vunpack.c.l.b16 %v5852
        %v6414 = vunpack.c.l.b16 %v5853
        %v6415 = vpack.c.b16 %v6408, %v6407
        %v6416 = vpack.c.b16 %v6410, %v6409
        %v6417 = vpack.c.b16 %v6412, %v6411
        %v6418 = vpack.c.b16 %v6414, %v6413
        %v6419 = vunpack.c.l.b16 %v5875
        %v6420 = vunpack.c.l.b16 %v5889
        %v6421 = vunpack.c.l.b16 %v5903
        %v6422 = vunpack.c.l.b16 %v5917
        %v6423 = vunpack.c.l.b16 %v5931
        %v6424 = vunpack.c.l.b16 %v5945
        %v6425 = vunpack.c.l.b16 %v5959
        %v6426 = vunpack.c.l.b16 %v5973
        %v6427 = vpack.c.b16 %v6420, %v6419
        %v6428 = vpack.c.b16 %v6422, %v6421
        %v6429 = vpack.c.b16 %v6424, %v6423
        %v6430 = vpack.c.b16 %v6426, %v6425
        %6431 = vrot.lane.b32.xlu0 %v6427, 32
        %v6432 = vpop.permute.xlu0 %6431
        %6433 = vrot.lane.b32.xlu0 %v6428, 32
        %v6434 = vpop.permute.xlu0 %6433
        %6435 = vrot.lane.b32.xlu0 %v6429, 32
        %v6436 = vpop.permute.xlu0 %6435
        %6437 = vrot.lane.b32.xlu0 %v6430, 32
        %v6438 = vpop.permute.xlu0 %6437
        %v6439 = vunpack.c.l.b16 %v6001
        %v6440 = vunpack.c.l.b16 %v6005
        %v6441 = vunpack.c.l.b16 %v6009
        %v6442 = vunpack.c.l.b16 %v6013
        %v6443 = vunpack.c.l.b16 %v6017
        %v6444 = vunpack.c.l.b16 %v6021
        %v6445 = vunpack.c.l.b16 %v6025
        %v6446 = vunpack.c.l.b16 %v6029
        %v6447 = vpack.c.b16 %v6440, %v6439
        %v6448 = vpack.c.b16 %v6442, %v6441
        %v6449 = vpack.c.b16 %v6444, %v6443
        %v6450 = vpack.c.b16 %v6446, %v6445
        %6451 = vrot.lane.b32.xlu0 %v6447, 64
        %v6452 = vpop.permute.xlu0 %6451
        %6453 = vrot.lane.b32.xlu0 %v6448, 64
        %v6454 = vpop.permute.xlu0 %6453
        %6455 = vrot.lane.b32.xlu0 %v6449, 64
        %v6456 = vpop.permute.xlu0 %6455
        %6457 = vrot.lane.b32.xlu0 %v6450, 64
        %v6458 = vpop.permute.xlu0 %6457
        %v6467 = vunpack.c.l.b16 %v6030
        %v6468 = vunpack.c.l.b16 %v6031
        %v6469 = vunpack.c.l.b16 %v6032
        %v6470 = vunpack.c.l.b16 %v6033
        %v6471 = vunpack.c.l.b16 %v6034
        %v6472 = vunpack.c.l.b16 %v6035
        %v6473 = vunpack.c.l.b16 %v6036
        %v6474 = vunpack.c.l.b16 %v6037
        %v6475 = vpack.c.b16 %v6468, %v6467
        %v6476 = vpack.c.b16 %v6470, %v6469
        %v6477 = vpack.c.b16 %v6472, %v6471
        %v6478 = vpack.c.b16 %v6474, %v6473
        %6479 = vrot.lane.b32.xlu0 %v6475, 96
        %v6480 = vpop.permute.xlu0 %6479
        %6481 = vrot.lane.b32.xlu0 %v6476, 96
        %v6482 = vpop.permute.xlu0 %6481
        %6483 = vrot.lane.b32.xlu0 %v6477, 96
        %v6484 = vpop.permute.xlu0 %6483
        %6485 = vrot.lane.b32.xlu0 %v6478, 96
        %v6486 = vpop.permute.xlu0 %6485
        %v6487 = vunpack.c.l.b16 %v6059
        %v6488 = vunpack.c.l.b16 %v6073
        %v6489 = vunpack.c.l.b16 %v6087
        %v6490 = vunpack.c.l.b16 %v6101
        %v6491 = vunpack.c.l.b16 %v6115
        %v6492 = vunpack.c.l.b16 %v6129
        %v6493 = vunpack.c.l.b16 %v6143
        %v6494 = vunpack.c.l.b16 %v6157
        %v6495 = vpack.c.b16 %v6488, %v6487
        %v6496 = vpack.c.b16 %v6490, %v6489
        %v6497 = vpack.c.b16 %v6492, %v6491
        %v6498 = vpack.c.b16 %v6494, %v6493
        %v6499 = vunpack.c.l.b16 %v6185
        %v6500 = vunpack.c.l.b16 %v6189
        %v6501 = vunpack.c.l.b16 %v6193
        %v6502 = vunpack.c.l.b16 %v6197
        %v6503 = vunpack.c.l.b16 %v6201
        %v6504 = vunpack.c.l.b16 %v6205
        %v6505 = vunpack.c.l.b16 %v6209
        %v6506 = vunpack.c.l.b16 %v6213
        %v6507 = vpack.c.b16 %v6500, %v6499
        %v6508 = vpack.c.b16 %v6502, %v6501
        %v6509 = vpack.c.b16 %v6504, %v6503
        %v6510 = vpack.c.b16 %v6506, %v6505
        %6511 = vrot.lane.b32.xlu0 %v6507, 32
        %v6512 = vpop.permute.xlu0 %6511
        %6513 = vrot.lane.b32.xlu0 %v6508, 32
        %v6514 = vpop.permute.xlu0 %6513
        %6515 = vrot.lane.b32.xlu0 %v6509, 32
        %v6516 = vpop.permute.xlu0 %6515
        %6517 = vrot.lane.b32.xlu0 %v6510, 32
        %v6518 = vpop.permute.xlu0 %6517
        %v6527 = vunpack.c.l.b16 %v6215
        %v6528 = vunpack.c.l.b16 %v6216
        %v6529 = vunpack.c.l.b16 %v6217
        %v6530 = vunpack.c.l.b16 %v6218
        %v6531 = vunpack.c.l.b16 %v6219
        %v6532 = vunpack.c.l.b16 %v6220
        %v6533 = vunpack.c.l.b16 %v6221
        %v6534 = vunpack.c.l.b16 %v6222
        %v6535 = vpack.c.b16 %v6528, %v6527
        %v6536 = vpack.c.b16 %v6530, %v6529
        %v6537 = vpack.c.b16 %v6532, %v6531
        %v6538 = vpack.c.b16 %v6534, %v6533
        %6539 = vrot.lane.b32.xlu0 %v6535, 64
        %v6540 = vpop.permute.xlu0 %6539
        %6541 = vrot.lane.b32.xlu0 %v6536, 64
        %v6542 = vpop.permute.xlu0 %6541
        %6543 = vrot.lane.b32.xlu0 %v6537, 64
        %v6544 = vpop.permute.xlu0 %6543
        %6545 = vrot.lane.b32.xlu0 %v6538, 64
        %v6546 = vpop.permute.xlu0 %6545
        %v6547 = vunpack.c.l.b16 %v6244
        %v6548 = vunpack.c.l.b16 %v6258
        %v6549 = vunpack.c.l.b16 %v6272
        %v6550 = vunpack.c.l.b16 %v6286
        %v6551 = vunpack.c.l.b16 %v6300
        %v6552 = vunpack.c.l.b16 %v6314
        %v6553 = vunpack.c.l.b16 %v6328
        %v6554 = vunpack.c.l.b16 %v6342
        %v6555 = vpack.c.b16 %v6548, %v6547
        %v6556 = vpack.c.b16 %v6550, %v6549
        %v6557 = vpack.c.b16 %v6552, %v6551
        %v6558 = vpack.c.b16 %v6554, %v6553
        %6559 = vrot.lane.b32.xlu0 %v6555, 96
        %v6560 = vpop.permute.xlu0 %6559
        %6561 = vrot.lane.b32.xlu0 %v6556, 96
        %v6562 = vpop.permute.xlu0 %6561
        %6563 = vrot.lane.b32.xlu0 %v6557, 96
        %v6564 = vpop.permute.xlu0 %6563
        %6565 = vrot.lane.b32.xlu0 %v6558, 96
        %v6566 = vpop.permute.xlu0 %6565
        %v6567 = vunpack.c.l.b16 %v6370
        %v6568 = vunpack.c.l.b16 %v6374
        %v6569 = vunpack.c.l.b16 %v6378
        %v6570 = vunpack.c.l.b16 %v6382
        %v6571 = vunpack.c.l.b16 %v6386
        %v6572 = vunpack.c.l.b16 %v6390
        %v6573 = vunpack.c.l.b16 %v6394
        %v6574 = vunpack.c.l.b16 %v6398
        %v6575 = vpack.c.b16 %v6568, %v6567
        %v6576 = vpack.c.b16 %v6570, %v6569
        %v6577 = vpack.c.b16 %v6572, %v6571
        %v6578 = vpack.c.b16 %v6574, %v6573
        %v6581 = vsel %vm3507, %v6415, %v6432
        %v6584 = vsel %vm3507, %v6416, %v6434
        %v6587 = vsel %vm3507, %v6417, %v6436
        %v6590 = vsel %vm3507, %v6418, %v6438
        %v6592 = vsel %vm3573, %v6581, %v6452
        %v6594 = vsel %vm3573, %v6584, %v6454
        %v6596 = vsel %vm3573, %v6587, %v6456
        %v6598 = vsel %vm3573, %v6590, %v6458
        %v6600 = vsel %vm3639, %v6592, %v6480
        %v6603 = vsel %vm3639, %v6594, %v6482
        %v6606 = vsel %vm3639, %v6596, %v6484
        %v6609 = vsel %vm3639, %v6598, %v6486
        %v6613 = vsel %vm3507, %v6495, %v6512
        %v6616 = vsel %vm3507, %v6496, %v6514
        %v6619 = vsel %vm3507, %v6497, %v6516
        %v6622 = vsel %vm3507, %v6498, %v6518
        %v6624 = vsel %vm3573, %v6613, %v6540
        %v6626 = vsel %vm3573, %v6616, %v6542
        %v6628 = vsel %vm3573, %v6619, %v6544
        %v6630 = vsel %vm3573, %v6622, %v6546
        %v6632 = vsel %vm3639, %v6624, %v6560
        %v6635 = vsel %vm3639, %v6626, %v6562
        %v6638 = vsel %vm3639, %v6628, %v6564
        %v6641 = vsel %vm3639, %v6630, %v6566
        %v6643 = vld [vmem:[%s3] sm:$0xf]
        %v6644 = vld [vmem:[%s3 + $0x4] sm:$0xf]
        %v6645 = vld [vmem:[%s3 + $0x8] sm:$0xf]
        %v6646 = vld [vmem:[%s3 + $0xc] sm:$0xf]
        %v6647 = vld [vmem:[%s3 + $0x10] sm:$0xf]
        %v6648 = vld [vmem:[%s3 + $0x14] sm:$0xf]
        %v6649 = vld [vmem:[%s3 + $0x18] sm:$0xf]
        %v6650 = vld [vmem:[%s3 + $0x1c] sm:$0xf]
        %v6651 = vld [vmem:[%s3 + $0x20] sm:$0xf]
        %v6652 = vld [vmem:[%s3 + $0x24] sm:$0xf]
        %v6653 = vld [vmem:[%s3 + $0x28] sm:$0xf]
        %v6654 = vld [vmem:[%s3 + $0x2c] sm:$0xf]
        %v6655 = vld [vmem:[%s3 + $0x30] sm:$0xf]
        %v6656 = vld [vmem:[%s3 + $0x34] sm:$0xf]
        %v6657 = vld [vmem:[%s3 + $0x38] sm:$0xf]
        %v6658 = vld [vmem:[%s3 + $0x3c] sm:$0xf]
        %v6659 = vld [vmem:[%s3 + $0x40] sm:$0xf]
        %v6660 = vld [vmem:[%s3 + $0x44] sm:$0xf]
        %v6661 = vld [vmem:[%s3 + $0x48] sm:$0xf]
        %v6662 = vld [vmem:[%s3 + $0x4c] sm:$0xf]
        %v6663 = vld [vmem:[%s3 + $0x50] sm:$0xf]
        %v6664 = vld [vmem:[%s3 + $0x54] sm:$0xf]
        %v6665 = vld [vmem:[%s3 + $0x58] sm:$0xf]
        %v6666 = vld [vmem:[%s3 + $0x5c] sm:$0xf]
        %v6667 = vld [vmem:[%s3 + $0x60] sm:$0xf]
        %v6668 = vld [vmem:[%s3 + $0x64] sm:$0xf]
        %v6669 = vld [vmem:[%s3 + $0x68] sm:$0xf]
        %v6670 = vld [vmem:[%s3 + $0x6c] sm:$0xf]
        %v6671 = vld [vmem:[%s3 + $0x70] sm:$0xf]
        %v6672 = vld [vmem:[%s3 + $0x74] sm:$0xf]
        %v6673 = vld [vmem:[%s3 + $0x78] sm:$0xf]
        %v6674 = vld [vmem:[%s3 + $0x7c] sm:$0xf]
        %v6675 = vld [vmem:[%s3 + $0x80] sm:$0xf]
        %v6676 = vld [vmem:[%s3 + $0x84] sm:$0xf]
        %v6677 = vld [vmem:[%s3 + $0x88] sm:$0xf]
        %v6678 = vld [vmem:[%s3 + $0x8c] sm:$0xf]
        %v6679 = vld [vmem:[%s4] sm:$0x1]
        %v6681 = vlaneseq
        %v6682 = vshrl.u32 %v6681, 7
        %v6683 = vsub.s32 0, %v6682
        %v6684 = vrot.slane %v6679, %v6683
        %v6722 = vunpack.c.l.b16 %v6643
        %v6723 = vunpack.c.l.b16 %v6644
        %v6724 = vunpack.c.l.b16 %v6645
        %v6725 = vunpack.c.l.b16 %v6646
        %v6726 = vunpack.c.l.b16 %v6647
        %v6727 = vunpack.c.l.b16 %v6648
        %v6728 = vunpack.c.l.b16 %v6649
        %v6729 = vunpack.c.l.b16 %v6650
        %v6730 = vunpack.c.l.b16 %v6651
        %v6731 = vunpack.c.l.b16 %v6652
        %v6732 = vunpack.c.l.b16 %v6653
        %v6733 = vunpack.c.l.b16 %v6654
        %v6734 = vunpack.c.l.b16 %v6655
        %v6735 = vunpack.c.l.b16 %v6656
        %v6736 = vunpack.c.l.b16 %v6657
        %v6737 = vunpack.c.l.b16 %v6658
        %v6738 = vunpack.c.l.b16 %v6659
        %v6739 = vunpack.c.l.b16 %v6660
        %v6740 = vunpack.c.l.b16 %v6661
        %v6741 = vunpack.c.l.b16 %v6662
        %v6742 = vunpack.c.l.b16 %v6663
        %v6743 = vunpack.c.l.b16 %v6664
        %v6744 = vunpack.c.l.b16 %v6665
        %v6745 = vunpack.c.l.b16 %v6666
        %v6746 = vunpack.c.l.b16 %v6667
        %v6747 = vunpack.c.l.b16 %v6668
        %v6748 = vunpack.c.l.b16 %v6669
        %v6749 = vunpack.c.l.b16 %v6670
        %v6750 = vunpack.c.l.b16 %v6671
        %v6751 = vunpack.c.l.b16 %v6672
        %v6752 = vunpack.c.l.b16 %v6673
        %v6753 = vunpack.c.l.b16 %v6674
        %v6754 = vunpack.c.l.b16 %v6675
        %v6755 = vunpack.c.l.b16 %v6676
        %v6756 = vunpack.c.l.b16 %v6677
        %v6757 = vunpack.c.l.b16 %v6678
        %v6758 = vpack.c.b16 %v6723, %v6722
        %v6759 = vpack.c.b16 %v6725, %v6724
        %v6760 = vpack.c.b16 %v6727, %v6726
        %v6761 = vpack.c.b16 %v6729, %v6728
        %v6762 = vpack.c.b16 %v6731, %v6730
        %v6763 = vpack.c.b16 %v6733, %v6732
        %v6764 = vpack.c.b16 %v6735, %v6734
        %v6765 = vpack.c.b16 %v6737, %v6736
        %v6766 = vpack.c.b16 %v6739, %v6738
        %v6767 = vpack.c.b16 %v6741, %v6740
        %v6768 = vpack.c.b16 %v6743, %v6742
        %v6769 = vpack.c.b16 %v6745, %v6744
        %v6770 = vpack.c.b16 %v6747, %v6746
        %v6771 = vpack.c.b16 %v6749, %v6748
        %v6772 = vpack.c.b16 %v6751, %v6750
        %v6773 = vpack.c.b16 %v6753, %v6752
        %v6774 = vpack.c.b16 %v6755, %v6754
        %v6775 = vpack.c.b16 %v6757, %v6756
        %v6795 = vsel %vm3507, %v6575, 0
        %v6798 = vsel %vm3507, %v6576, 0
        %v6801 = vsel %vm3507, %v6577, 0
        %v6804 = vsel %vm3507, %v6578, 0
        %6806 = vmatprep.subr.bf16.mxu0 0
        %6807 = vmatpush1.bf16.msra.mxu0 %v6758
        %6808 = vmatprep.subr.bf16.mxu0 0
        %6809 = vmatpush1.bf16.msra.mxu0 %v6759
        %6810 = vmatprep.subr.bf16.mxu0 0
        %6811 = vmatpush1.bf16.msra.mxu0 %v6760
        %6812 = vmatprep.subr.bf16.mxu0 0
        %6813 = vmatpush1.bf16.msra.mxu0 %v6761
        %6814 = vmatprep.subr.bf16.mxu0 0
        %6815 = vmatpush1.bf16.msra.mxu0 %v6762
        %6816 = vmatprep.subr.bf16.mxu0 0
        %6817 = vmatpush1.bf16.msra.mxu0 %v6763
        %6818 = vmatprep.subr.bf16.mxu0 0
        %6819 = vmatpush1.bf16.msra.mxu0 %v6764
        %6820 = vmatprep.subr.bf16.mxu0 0
        %6821 = vmatpush1.bf16.msra.mxu0 %v6765
        %6822 = vmatprep.subr.bf16.mxu0 0
        %6823 = vmatpush1.bf16.msra.mxu0 %v6766
        %6824 = vmatprep.subr.bf16.mxu0 0
        %6825 = vmatpush1.bf16.msra.mxu0 %v6767
        %6826 = vmatprep.subr.bf16.mxu0 0
        %6827 = vmatpush1.bf16.msra.mxu0 %v6768
        %6828 = vmatprep.subr.bf16.mxu0 0
        %6829 = vmatpush1.bf16.msra.mxu0 %v6769
        %6830 = vmatprep.subr.bf16.mxu0 0
        %6831 = vmatpush1.bf16.msra.mxu0 %v6770
        %6832 = vmatprep.subr.bf16.mxu0 0
        %6833 = vmatpush1.bf16.msra.mxu0 %v6771
        %6834 = vmatprep.subr.bf16.mxu0 0
        %6835 = vmatpush1.bf16.msra.mxu0 %v6772
        %6836 = vmatprep.subr.bf16.mxu0 0
        %6837 = vmatpush1.bf16.msra.mxu0 %v6773
        %6838 = vmatprep.mubr.bf16.mxu0 %v6632
        %6839 = vmatmul.mubr.bf16.gmra.mrb[0].mxu0 %v6600
        %v6840 = vpop.f32.mrb[0].mxu0
        %v6841 = vadd.f32 %v6684, %v6840
        %v6842 = vpop.f32.mrb[0].mxu0
        %v6843 = vpop.f32.mrb[0].mxu0
        %v6844 = vadd.f32 %v6684, %v6843
        %v6845 = vpop.f32.mrb[0].mxu0
        %6846 = vmatprep.mubr.bf16.mxu0 %v6635
        %6847 = vmatmul.mubr.bf16.gmra.mrb[0].mxu0 %v6603
        %v6848 = vpop.f32.mrb[0].mxu0
        %v6849 = vadd.f32 %v6684, %v6848
        %v6850 = vpop.f32.mrb[0].mxu0
        %v6851 = vpop.f32.mrb[0].mxu0
        %v6852 = vadd.f32 %v6684, %v6851
        %v6853 = vpop.f32.mrb[0].mxu0
        %6854 = vmatprep.mubr.bf16.mxu0 %v6638
        %6855 = vmatmul.mubr.bf16.gmra.mrb[0].mxu0 %v6606
        %v6856 = vpop.f32.mrb[0].mxu0
        %v6857 = vadd.f32 %v6684, %v6856
        %v6858 = vpop.f32.mrb[0].mxu0
        %v6859 = vpop.f32.mrb[0].mxu0
        %v6860 = vadd.f32 %v6684, %v6859
        %v6861 = vpop.f32.mrb[0].mxu0
        %6862 = vmatprep.mubr.bf16.mxu0 %v6641
        %6863 = vmatmul.mubr.bf16.gmra.mrb[0].mxu0 %v6609
        %v6864 = vpop.f32.mrb[0].mxu0
        %v6865 = vadd.f32 %v6684, %v6864
        %v6866 = vpop.f32.mrb[0].mxu0
        %v6867 = vpop.f32.mrb[0].mxu0
        %v6868 = vadd.f32 %v6684, %v6867
        %v6869 = vpop.f32.mrb[0].mxu0
        %6870 = vdwg.mxu0
        %6871 = vmatprep.subr.bf16.mxu0 0
        %6872 = vmatpush1.bf16.msra.mxu0 %v6774
        %6873 = vmatprep.subr.bf16.mxu0 0
        %6874 = vmatpush1.bf16.msra.mxu0 %v6775
        %6875 = vmatprep.subr.bf16.mxu0 0
        %6876 = vmatpush1.bf16.msra.mxu0 0
        %6877 = vmatprep.subr.bf16.mxu0 0
        %6878 = vmatpush1.bf16.msra.mxu0 0
        %6879 = vmatprep.subr.bf16.mxu0 0
        %6880 = vmatpush1.bf16.msra.mxu0 0
        %6881 = vmatprep.subr.bf16.mxu0 0
        %6882 = vmatpush1.bf16.msra.mxu0 0
        %6883 = vmatprep.subr.bf16.mxu0 0
        %6884 = vmatpush1.bf16.msra.mxu0 0
        %6885 = vmatprep.subr.bf16.mxu0 0
        %6886 = vmatpush1.bf16.msra.mxu0 0
        %6887 = vmatprep.subr.bf16.mxu0 0
        %6888 = vmatpush1.bf16.msra.mxu0 0
        %6889 = vmatprep.subr.bf16.mxu0 0
        %6890 = vmatpush1.bf16.msra.mxu0 0
        %6891 = vmatprep.subr.bf16.mxu0 0
        %6892 = vmatpush1.bf16.msra.mxu0 0
        %6893 = vmatprep.subr.bf16.mxu0 0
        %6894 = vmatpush1.bf16.msra.mxu0 0
        %6895 = vmatprep.subr.bf16.mxu0 0
        %6896 = vmatpush1.bf16.msra.mxu0 0
        %6897 = vmatprep.subr.bf16.mxu0 0
        %6898 = vmatpush1.bf16.msra.mxu0 0
        %6899 = vmatprep.subr.bf16.mxu0 0
        %6900 = vmatpush1.bf16.msra.mxu0 0
        %6901 = vmatprep.subr.bf16.mxu0 0
        %6902 = vmatpush1.bf16.msra.mxu0 0
        %6903 = vmatprep.mubr.bf16.mxu0 0
        %6904 = vmatmul.mubr.bf16.gmra.mrb[0].mxu0 %v6795
        %v6905 = vpop.f32.mrb[0].mxu0
        %v6906 = vadd.f32 %v6841, %v6905
        %v6907 = vpop.f32.mrb[0].mxu0
        %v6908 = vpop.f32.mrb[0].mxu0
        %v6909 = vadd.f32 %v6844, %v6908
        %v6910 = vpop.f32.mrb[0].mxu0
        %6911 = vmatprep.mubr.bf16.mxu0 0
        %6912 = vmatmul.mubr.bf16.gmra.mrb[0].mxu0 %v6798
        %v6913 = vpop.f32.mrb[0].mxu0
        %v6914 = vadd.f32 %v6849, %v6913
        %v6915 = vpop.f32.mrb[0].mxu0
        %v6916 = vpop.f32.mrb[0].mxu0
        %v6917 = vadd.f32 %v6852, %v6916
        %v6918 = vpop.f32.mrb[0].mxu0
        %6919 = vmatprep.mubr.bf16.mxu0 0
        %6920 = vmatmul.mubr.bf16.gmra.mrb[0].mxu0 %v6801
        %v6921 = vpop.f32.mrb[0].mxu0
        %v6922 = vadd.f32 %v6857, %v6921
        %v6923 = vpop.f32.mrb[0].mxu0
        %v6924 = vpop.f32.mrb[0].mxu0
        %v6925 = vadd.f32 %v6860, %v6924
        %v6926 = vpop.f32.mrb[0].mxu0
        %6927 = vmatprep.mubr.bf16.mxu0 0
        %6928 = vmatmul.mubr.bf16.gmra.mrb[0].mxu0 %v6804
        %v6929 = vpop.f32.mrb[0].mxu0
        %v6930 = vadd.f32 %v6865, %v6929
        %v6931 = vpop.f32.mrb[0].mxu0
        %v6932 = vpop.f32.mrb[0].mxu0
        %v6933 = vadd.f32 %v6868, %v6932
        %v6934 = vpop.f32.mrb[0].mxu0
        %6935 = vdwg.mxu0
        %vm6936 = vcmp.ge.f32.partialorder %v6906, 0.0
        %vm6937 = vcmp.ge.f32.partialorder %v6909, 0.0
        %vm6938 = vcmp.ge.f32.partialorder %v6914, 0.0
        %vm6939 = vcmp.ge.f32.partialorder %v6917, 0.0
        %vm6940 = vcmp.ge.f32.partialorder %v6922, 0.0
        %vm6941 = vcmp.ge.f32.partialorder %v6925, 0.0
        %vm6942 = vcmp.ge.f32.partialorder %v6930, 0.0
        %vm6943 = vcmp.ge.f32.partialorder %v6933, 0.0
        %v6944 = vmul.f32 %v6906, 0.01
        %v6945 = vmul.f32 %v6909, 0.01
        %v6946 = vmul.f32 %v6914, 0.01
        %v6947 = vmul.f32 %v6917, 0.01
        %v6948 = vmul.f32 %v6922, 0.01
        %v6949 = vmul.f32 %v6925, 0.01
        %v6950 = vmul.f32 %v6930, 0.01
        %v6951 = vmul.f32 %v6933, 0.01
        %v6952 = vsel %vm6936, %v6906, %v6944
        %v6953 = vsel %vm6937, %v6909, %v6945
        %v6954 = vsel %vm6938, %v6914, %v6946
        %v6955 = vsel %vm6939, %v6917, %v6947
        %v6956 = vsel %vm6940, %v6922, %v6948
        %v6957 = vsel %vm6941, %v6925, %v6949
        %v6958 = vsel %vm6942, %v6930, %v6950
        %v6959 = vsel %vm6943, %v6933, %v6951
        %6960 = vst.msk [vmem:[#allocation6 + $0x1] sm:$0xff] %vm3573, %v6952
        %6961 = vst.msk [vmem:[#allocation6 + $0x11] sm:$0xff] %vm3573, %v6953
        %6962 = vst.msk [vmem:[#allocation6 + $0x21] sm:$0xff] %vm3573, %v6954
        %6963 = vst.msk [vmem:[#allocation6 + $0x31] sm:$0xff] %vm3573, %v6955
        %6964 = vst.msk [vmem:[#allocation6 + $0x41] sm:$0xff] %vm3573, %v6956
        %6965 = vst.msk [vmem:[#allocation6 + $0x51] sm:$0xff] %vm3573, %v6957
        %6966 = vst.msk [vmem:[#allocation6 + $0x61] sm:$0xff] %vm3573, %v6958
        %6967 = vst.msk [vmem:[#allocation6 + $0x71] sm:$0xff] %vm3573, %v6959
        %vm6968 = vcmask 516096
        %6969 = vst.msk [vmem:[#allocation6] sm:$0x1] %vm6968, -3.4028235e+38
        %6970 = vst.msk [vmem:[#allocation6 + $0x10] sm:$0x1] %vm6968, -3.4028235e+38
        %6971 = vst.msk [vmem:[#allocation6 + $0x20] sm:$0x1] %vm6968, -3.4028235e+38
        %6972 = vst.msk [vmem:[#allocation6 + $0x30] sm:$0x1] %vm6968, -3.4028235e+38
        %6973 = vst.msk [vmem:[#allocation6 + $0x40] sm:$0x1] %vm6968, -3.4028235e+38
        %6974 = vst.msk [vmem:[#allocation6 + $0x50] sm:$0x1] %vm6968, -3.4028235e+38
        %6975 = vst.msk [vmem:[#allocation6 + $0x60] sm:$0x1] %vm6968, -3.4028235e+38
        %6976 = vst.msk [vmem:[#allocation6 + $0x70] sm:$0x1] %vm6968, -3.4028235e+38
        %6977 = vst.msk [vmem:[#allocation6 + $0x9] sm:$0x1] %vm6968, -3.4028235e+38
        %6978 = vst.msk [vmem:[#allocation6 + $0x19] sm:$0x1] %vm6968, -3.4028235e+38
        %6979 = vst.msk [vmem:[#allocation6 + $0x29] sm:$0x1] %vm6968, -3.4028235e+38
        %6980 = vst.msk [vmem:[#allocation6 + $0x39] sm:$0x1] %vm6968, -3.4028235e+38
        %6981 = vst.msk [vmem:[#allocation6 + $0x49] sm:$0x1] %vm6968, -3.4028235e+38
        %6982 = vst.msk [vmem:[#allocation6 + $0x59] sm:$0x1] %vm6968, -3.4028235e+38
        %6983 = vst.msk [vmem:[#allocation6 + $0x69] sm:$0x1] %vm6968, -3.4028235e+38
        %6984 = vst.msk [vmem:[#allocation6 + $0x79] sm:$0x1] %vm6968, -3.4028235e+38
        %v6985 = vld [vmem:[#allocation6] sm:$0xff]
        %v6986 = vld [vmem:[#allocation6 + $0x10] sm:$0xff]
        %v6987 = vld [vmem:[#allocation6 + $0x20] sm:$0xff]
        %v6988 = vld [vmem:[#allocation6 + $0x30] sm:$0xff]
        %v6989 = vld [vmem:[#allocation6 + $0x40] sm:$0xff]
        %v6990 = vld [vmem:[#allocation6 + $0x50] sm:$0xff]
        %v6991 = vld [vmem:[#allocation6 + $0x60] sm:$0xff]
        %v6992 = vld [vmem:[#allocation6 + $0x70] sm:$0xff]
        %v6993 = vld [vmem:[#allocation6 + $0x1] sm:$0xff]
        %v6994 = vld [vmem:[#allocation6 + $0x11] sm:$0xff]
        %v6995 = vld [vmem:[#allocation6 + $0x21] sm:$0xff]
        %v6996 = vld [vmem:[#allocation6 + $0x31] sm:$0xff]
        %v6997 = vld [vmem:[#allocation6 + $0x41] sm:$0xff]
        %v6998 = vld [vmem:[#allocation6 + $0x51] sm:$0xff]
        %v6999 = vld [vmem:[#allocation6 + $0x61] sm:$0xff]
        %v7000 = vld [vmem:[#allocation6 + $0x71] sm:$0xff]
        %v7001 = vmax.f32 %v6985, %v6993
        %v7002 = vmax.f32 %v6986, %v6994
        %v7003 = vmax.f32 %v6987, %v6995
        %v7004 = vmax.f32 %v6988, %v6996
        %v7005 = vmax.f32 %v6989, %v6997
        %v7006 = vmax.f32 %v6990, %v6998
        %v7007 = vmax.f32 %v6991, %v6999
        %v7008 = vmax.f32 %v6992, %v7000
        %v7009 = vld [vmem:[#allocation6 + $0x2] sm:$0xff]
        %v7010 = vld [vmem:[#allocation6 + $0x12] sm:$0xff]
        %v7011 = vld [vmem:[#allocation6 + $0x22] sm:$0xff]
        %v7012 = vld [vmem:[#allocation6 + $0x32] sm:$0xff]
        %v7013 = vld [vmem:[#allocation6 + $0x42] sm:$0xff]
        %v7014 = vld [vmem:[#allocation6 + $0x52] sm:$0xff]
        %v7015 = vld [vmem:[#allocation6 + $0x62] sm:$0xff]
        %v7016 = vld [vmem:[#allocation6 + $0x72] sm:$0xff]
        %v7017 = vmax.f32 %v7001, %v7009
        %v7018 = vmax.f32 %v7002, %v7010
        %v7019 = vmax.f32 %v7003, %v7011
        %v7020 = vmax.f32 %v7004, %v7012
        %v7021 = vmax.f32 %v7005, %v7013
        %v7022 = vmax.f32 %v7006, %v7014
        %v7023 = vmax.f32 %v7007, %v7015
        %v7024 = vmax.f32 %v7008, %v7016
        %v7033 = vcombine.high %v7017, %v7017
        %v7035 = vunpack.c.l.s4 1983009808
        %v7036 = vunpack.c.0.s8 %v7035
        %v7037 = vlaneseq
        %v7038 = vshrl.u32 %v7037, 7
        %v7039 = vsub.s32 %v7036, %v7038
        %v7040 = vrot.slane %v7017, %v7039
        %v7042 = vunpack.c.l.s4 1983009808
        %v7043 = vunpack.c.0.s8 %v7042
        %v7044 = vlaneseq
        %v7045 = vshrl.u32 %v7044, 7
        %v7046 = vsub.s32 %v7043, %v7045
        %v7047 = vrot.slane %v7033, %v7046
        %v7048 = vcombine.high %v7040, %v7040
        %v7049 = vcombine.high %v7047, %v7047
        %v7050 = vcombine.high %v7018, %v7018
        %v7052 = vunpack.c.l.s4 1983009808
        %v7053 = vunpack.c.0.s8 %v7052
        %v7054 = vlaneseq
        %v7055 = vshrl.u32 %v7054, 7
        %v7056 = vsub.s32 %v7053, %v7055
        %v7057 = vrot.slane %v7018, %v7056
        %v7059 = vunpack.c.l.s4 1983009808
        %v7060 = vunpack.c.0.s8 %v7059
        %v7061 = vlaneseq
        %v7062 = vshrl.u32 %v7061, 7
        %v7063 = vsub.s32 %v7060, %v7062
        %v7064 = vrot.slane %v7050, %v7063
        %v7065 = vcombine.high %v7057, %v7057
        %v7066 = vcombine.high %v7064, %v7064
        %v7067 = vcombine.high %v7019, %v7019
        %v7069 = vunpack.c.l.s4 1983009808
        %v7070 = vunpack.c.0.s8 %v7069
        %v7071 = vlaneseq
        %v7072 = vshrl.u32 %v7071, 7
        %v7073 = vsub.s32 %v7070, %v7072
        %v7074 = vrot.slane %v7019, %v7073
        %v7076 = vunpack.c.l.s4 1983009808
        %v7077 = vunpack.c.0.s8 %v7076
        %v7078 = vlaneseq
        %v7079 = vshrl.u32 %v7078, 7
        %v7080 = vsub.s32 %v7077, %v7079
        %v7081 = vrot.slane %v7067, %v7080
        %v7082 = vcombine.high %v7074, %v7074
        %v7083 = vcombine.high %v7081, %v7081
        %v7084 = vcombine.high %v7020, %v7020
        %v7086 = vunpack.c.l.s4 1983009808
        %v7087 = vunpack.c.0.s8 %v7086
        %v7088 = vlaneseq
        %v7089 = vshrl.u32 %v7088, 7
        %v7090 = vsub.s32 %v7087, %v7089
        %v7091 = vrot.slane %v7020, %v7090
        %v7093 = vunpack.c.l.s4 1983009808
        %v7094 = vunpack.c.0.s8 %v7093
        %v7095 = vlaneseq
        %v7096 = vshrl.u32 %v7095, 7
        %v7097 = vsub.s32 %v7094, %v7096
        %v7098 = vrot.slane %v7084, %v7097
        %v7099 = vcombine.high %v7091, %v7091
        %v7100 = vcombine.high %v7098, %v7098
        %v7101 = vcombine.high %v7021, %v7021
        %v7103 = vunpack.c.l.s4 1983009808
        %v7104 = vunpack.c.0.s8 %v7103
        %v7105 = vlaneseq
        %v7106 = vshrl.u32 %v7105, 7
        %v7107 = vsub.s32 %v7104, %v7106
        %v7108 = vrot.slane %v7021, %v7107
        %v7110 = vunpack.c.l.s4 1983009808
        %v7111 = vunpack.c.0.s8 %v7110
        %v7112 = vlaneseq
        %v7113 = vshrl.u32 %v7112, 7
        %v7114 = vsub.s32 %v7111, %v7113
        %v7115 = vrot.slane %v7101, %v7114
        %v7116 = vcombine.high %v7108, %v7108
        %v7117 = vcombine.high %v7115, %v7115
        %v7118 = vcombine.high %v7022, %v7022
        %v7120 = vunpack.c.l.s4 1983009808
        %v7121 = vunpack.c.0.s8 %v7120
        %v7122 = vlaneseq
        %v7123 = vshrl.u32 %v7122, 7
        %v7124 = vsub.s32 %v7121, %v7123
        %v7125 = vrot.slane %v7022, %v7124
        %v7127 = vunpack.c.l.s4 1983009808
        %v7128 = vunpack.c.0.s8 %v7127
        %v7129 = vlaneseq
        %v7130 = vshrl.u32 %v7129, 7
        %v7131 = vsub.s32 %v7128, %v7130
        %v7132 = vrot.slane %v7118, %v7131
        %v7133 = vcombine.high %v7125, %v7125
        %v7134 = vcombine.high %v7132, %v7132
        %v7135 = vcombine.high %v7023, %v7023
        %v7137 = vunpack.c.l.s4 1983009808
        %v7138 = vunpack.c.0.s8 %v7137
        %v7139 = vlaneseq
        %v7140 = vshrl.u32 %v7139, 7
        %v7141 = vsub.s32 %v7138, %v7140
        %v7142 = vrot.slane %v7023, %v7141
        %v7144 = vunpack.c.l.s4 1983009808
        %v7145 = vunpack.c.0.s8 %v7144
        %v7146 = vlaneseq
        %v7147 = vshrl.u32 %v7146, 7
        %v7148 = vsub.s32 %v7145, %v7147
        %v7149 = vrot.slane %v7135, %v7148
        %v7150 = vcombine.high %v7142, %v7142
        %v7151 = vcombine.high %v7149, %v7149
        %v7152 = vcombine.high %v7024, %v7024
        %v7154 = vunpack.c.l.s4 1983009808
        %v7155 = vunpack.c.0.s8 %v7154
        %v7156 = vlaneseq
        %v7157 = vshrl.u32 %v7156, 7
        %v7158 = vsub.s32 %v7155, %v7157
        %v7159 = vrot.slane %v7024, %v7158
        %v7161 = vunpack.c.l.s4 1983009808
        %v7162 = vunpack.c.0.s8 %v7161
        %v7163 = vlaneseq
        %v7164 = vshrl.u32 %v7163, 7
        %v7165 = vsub.s32 %v7162, %v7164
        %v7166 = vrot.slane %v7152, %v7165
        %v7167 = vcombine.high %v7159, %v7159
        %v7168 = vcombine.high %v7166, %v7166
        %v7169 = vlaneseq
        %v7170 = vshrl.u32 %v7169, 7
        %v7171 = vsub.s32 0, %v7170
        %v7172 = vrot.slane %v7040, %v7171
        %v7173 = vlaneseq
        %v7174 = vshrl.u32 %v7173, 7
        %v7175 = vsub.s32 0, %v7174
        %v7176 = vrot.slane %v7048, %v7175
        %v7177 = vlaneseq
        %v7178 = vshrl.u32 %v7177, 7
        %v7179 = vsub.s32 0, %v7178
        %v7180 = vrot.slane %v7047, %v7179
        %v7181 = vlaneseq
        %v7182 = vshrl.u32 %v7181, 7
        %v7183 = vsub.s32 0, %v7182
        %v7184 = vrot.slane %v7049, %v7183
        %v7185 = vlaneseq
        %v7186 = vshrl.u32 %v7185, 7
        %v7187 = vsub.s32 0, %v7186
        %v7188 = vrot.slane %v7057, %v7187
        %v7189 = vlaneseq
        %v7190 = vshrl.u32 %v7189, 7
        %v7191 = vsub.s32 0, %v7190
        %v7192 = vrot.slane %v7065, %v7191
        %v7193 = vlaneseq
        %v7194 = vshrl.u32 %v7193, 7
        %v7195 = vsub.s32 0, %v7194
        %v7196 = vrot.slane %v7064, %v7195
        %v7197 = vlaneseq
        %v7198 = vshrl.u32 %v7197, 7
        %v7199 = vsub.s32 0, %v7198
        %v7200 = vrot.slane %v7066, %v7199
        %v7201 = vlaneseq
        %v7202 = vshrl.u32 %v7201, 7
        %v7203 = vsub.s32 0, %v7202
        %v7204 = vrot.slane %v7074, %v7203
        %v7205 = vlaneseq
        %v7206 = vshrl.u32 %v7205, 7
        %v7207 = vsub.s32 0, %v7206
        %v7208 = vrot.slane %v7082, %v7207
        %v7209 = vlaneseq
        %v7210 = vshrl.u32 %v7209, 7
        %v7211 = vsub.s32 0, %v7210
        %v7212 = vrot.slane %v7081, %v7211
        %v7213 = vlaneseq
        %v7214 = vshrl.u32 %v7213, 7
        %v7215 = vsub.s32 0, %v7214
        %v7216 = vrot.slane %v7083, %v7215
        %v7217 = vlaneseq
        %v7218 = vshrl.u32 %v7217, 7
        %v7219 = vsub.s32 0, %v7218
        %v7220 = vrot.slane %v7091, %v7219
        %v7221 = vlaneseq
        %v7222 = vshrl.u32 %v7221, 7
        %v7223 = vsub.s32 0, %v7222
        %v7224 = vrot.slane %v7099, %v7223
        %v7225 = vlaneseq
        %v7226 = vshrl.u32 %v7225, 7
        %v7227 = vsub.s32 0, %v7226
        %v7228 = vrot.slane %v7098, %v7227
        %v7229 = vlaneseq
        %v7230 = vshrl.u32 %v7229, 7
        %v7231 = vsub.s32 0, %v7230
        %v7232 = vrot.slane %v7100, %v7231
        %v7233 = vlaneseq
        %v7234 = vshrl.u32 %v7233, 7
        %v7235 = vsub.s32 0, %v7234
        %v7236 = vrot.slane %v7108, %v7235
        %v7237 = vlaneseq
        %v7238 = vshrl.u32 %v7237, 7
        %v7239 = vsub.s32 0, %v7238
        %v7240 = vrot.slane %v7116, %v7239
        %v7241 = vlaneseq
        %v7242 = vshrl.u32 %v7241, 7
        %v7243 = vsub.s32 0, %v7242
        %v7244 = vrot.slane %v7115, %v7243
        %v7245 = vlaneseq
        %v7246 = vshrl.u32 %v7245, 7
        %v7247 = vsub.s32 0, %v7246
        %v7248 = vrot.slane %v7117, %v7247
        %v7249 = vlaneseq
        %v7250 = vshrl.u32 %v7249, 7
        %v7251 = vsub.s32 0, %v7250
        %v7252 = vrot.slane %v7125, %v7251
        %v7253 = vlaneseq
        %v7254 = vshrl.u32 %v7253, 7
        %v7255 = vsub.s32 0, %v7254
        %v7256 = vrot.slane %v7133, %v7255
        %v7257 = vlaneseq
        %v7258 = vshrl.u32 %v7257, 7
        %v7259 = vsub.s32 0, %v7258
        %v7260 = vrot.slane %v7132, %v7259
        %v7261 = vlaneseq
        %v7262 = vshrl.u32 %v7261, 7
        %v7263 = vsub.s32 0, %v7262
        %v7264 = vrot.slane %v7134, %v7263
        %v7265 = vlaneseq
        %v7266 = vshrl.u32 %v7265, 7
        %v7267 = vsub.s32 0, %v7266
        %v7268 = vrot.slane %v7142, %v7267
        %v7269 = vlaneseq
        %v7270 = vshrl.u32 %v7269, 7
        %v7271 = vsub.s32 0, %v7270
        %v7272 = vrot.slane %v7150, %v7271
        %v7273 = vlaneseq
        %v7274 = vshrl.u32 %v7273, 7
        %v7275 = vsub.s32 0, %v7274
        %v7276 = vrot.slane %v7149, %v7275
        %v7277 = vlaneseq
        %v7278 = vshrl.u32 %v7277, 7
        %v7279 = vsub.s32 0, %v7278
        %v7280 = vrot.slane %v7151, %v7279
        %v7281 = vlaneseq
        %v7282 = vshrl.u32 %v7281, 7
        %v7283 = vsub.s32 0, %v7282
        %v7284 = vrot.slane %v7159, %v7283
        %v7285 = vlaneseq
        %v7286 = vshrl.u32 %v7285, 7
        %v7287 = vsub.s32 0, %v7286
        %v7288 = vrot.slane %v7167, %v7287
        %v7289 = vlaneseq
        %v7290 = vshrl.u32 %v7289, 7
        %v7291 = vsub.s32 0, %v7290
        %v7292 = vrot.slane %v7166, %v7291
        %v7293 = vlaneseq
        %v7294 = vshrl.u32 %v7293, 7
        %v7295 = vsub.s32 0, %v7294
        %v7296 = vrot.slane %v7168, %v7295
        %v7297 = vsel %vm5418, %v7176, %v7172
        %v7298 = vsel %vm5420, %v7180, %v7297
        %v7299 = vsel %vm5422, %v7184, %v7298
        %v7300 = vsel %vm5418, %v7192, %v7188
        %v7301 = vsel %vm5420, %v7196, %v7300
        %v7302 = vsel %vm5422, %v7200, %v7301
        %v7303 = vsel %vm5418, %v7208, %v7204
        %v7304 = vsel %vm5420, %v7212, %v7303
        %v7305 = vsel %vm5422, %v7216, %v7304
        %v7306 = vsel %vm5418, %v7224, %v7220
        %v7307 = vsel %vm5420, %v7228, %v7306
        %v7308 = vsel %vm5422, %v7232, %v7307
        %v7309 = vsel %vm5418, %v7240, %v7236
        %v7310 = vsel %vm5420, %v7244, %v7309
        %v7311 = vsel %vm5422, %v7248, %v7310
        %v7312 = vsel %vm5418, %v7256, %v7252
        %v7313 = vsel %vm5420, %v7260, %v7312
        %v7314 = vsel %vm5422, %v7264, %v7313
        %v7315 = vsel %vm5418, %v7272, %v7268
        %v7316 = vsel %vm5420, %v7276, %v7315
        %v7317 = vsel %vm5422, %v7280, %v7316
        %v7318 = vsel %vm5418, %v7288, %v7284
        %v7319 = vsel %vm5420, %v7292, %v7318
        %v7320 = vsel %vm5422, %v7296, %v7319
        %s7329 = scalar_lea.vmem [#allocation7], 4
        %vm7330 = vcmask 519168
        %7331 = vst.msk [vmem:[%s7329] sm:$0xf] %vm7330, %v7299
        %7332 = vst.msk [vmem:[%s7329 + $0x4] sm:$0xf] %vm7330, %v7302
        %7333 = vst.msk [vmem:[%s7329 + $0x8] sm:$0xf] %vm7330, %v7305
        %7334 = vst.msk [vmem:[%s7329 + $0xc] sm:$0xf] %vm7330, %v7308
        %7335 = vst.msk [vmem:[%s7329 + $0x10] sm:$0xf] %vm7330, %v7311
        %7336 = vst.msk [vmem:[%s7329 + $0x14] sm:$0xf] %vm7330, %v7314
        %7337 = vst.msk [vmem:[%s7329 + $0x18] sm:$0xf] %vm7330, %v7317
        %7338 = vst.msk [vmem:[%s7329 + $0x1c] sm:$0xf] %vm7330, %v7320
        %7339 = vst.msk [vmem:[#allocation7] sm:$0xf] %vm7330, -3.4028235e+38
        %s7340 = scalar_lea.vmem [#allocation7], 36
        %7341 = vst.msk [vmem:[%s7340] sm:$0xf] %vm7330, -3.4028235e+38
        %v7342 = vld [vmem:[#allocation7] sm:$0xf]
        %v7343 = vld [vmem:[#allocation7 + $0x8] sm:$0xf]
        %v7344 = vld [vmem:[#allocation7 + $0x10] sm:$0xf]
        %v7345 = vld [vmem:[#allocation7 + $0x18] sm:$0xf]
        %v7346 = vld [vmem:[%s7329] sm:$0xf]
        %v7347 = vld [vmem:[%s7329 + $0x8] sm:$0xf]
        %v7348 = vld [vmem:[%s7329 + $0x10] sm:$0xf]
        %v7349 = vld [vmem:[%s7329 + $0x18] sm:$0xf]
        %v7350 = vmax.f32 %v7342, %v7346
        %v7351 = vmax.f32 %v7343, %v7347
        %v7352 = vmax.f32 %v7344, %v7348
        %v7353 = vmax.f32 %v7345, %v7349
        %s7354 = scalar_lea.vmem [#allocation7], 8
        %v7355 = vld [vmem:[%s7354] sm:$0xf]
        %v7356 = vld [vmem:[%s7354 + $0x8] sm:$0xf]
        %v7357 = vld [vmem:[%s7354 + $0x10] sm:$0xf]
        %v7358 = vld [vmem:[%s7354 + $0x18] sm:$0xf]
        %v7359 = vmax.f32 %v7350, %v7355
        %v7360 = vmax.f32 %v7351, %v7356
        %v7361 = vmax.f32 %v7352, %v7357
        %v7362 = vmax.f32 %v7353, %v7358
        %v7363 = vpack.c.bf16 %v7359, %v7359
        %v7364 = vpack.c.bf16 %v7360, %v7360
        %v7365 = vpack.c.bf16 %v7361, %v7361
        %v7366 = vpack.c.bf16 %v7362, %v7362
        %v7371 = vunpack.c.l.b16 %v7363
        %v7372 = vunpack.c.l.b16 %v7364
        %v7373 = vunpack.c.l.b16 %v7365
        %v7374 = vunpack.c.l.b16 %v7366
        %v7375 = vpack.c.b16 %v7371, %v7371
        %v7376 = vpack.c.b16 %v7372, %v7372
        %v7377 = vpack.c.b16 %v7373, %v7373
        %v7378 = vpack.c.b16 %v7374, %v7374
        %v7380 = vshrl.u32 %v7375, 16
        %v7382 = vrot.slane %v7380, 7
        %v7383 = vshll.u32 %v7375, 16
        %v7385 = vor.u32 %v7382, %v7383
        %v7387 = vshrl.u32 %v7376, 16
        %v7389 = vrot.slane %v7387, 7
        %v7390 = vshll.u32 %v7376, 16
        %v7392 = vor.u32 %v7389, %v7390
        %v7394 = vshrl.u32 %v7377, 16
        %v7396 = vrot.slane %v7394, 7
        %v7397 = vshll.u32 %v7377, 16
        %v7399 = vor.u32 %v7396, %v7397
        %v7401 = vshrl.u32 %v7378, 16
        %v7403 = vrot.slane %v7401, 7
        %v7404 = vshll.u32 %v7378, 16
        %v7406 = vor.u32 %v7403, %v7404
        %s7411 = scalar_lea.vmem [#allocation8], 4
        %vm7412 = vcmask 518144
        %vm7413 = vsmask.f32 2306
        %vm7414 = vmand %vm7412, %vm7413
        %v7415 = vld [vmem:[%s7411] sm:$0x7]
        %v7416 = vsel %vm7414, %v7385, %v7415
        %7417 = vst [vmem:[%s7411] sm:$0x7] %v7416
        %v7418 = vld [vmem:[%s7411 + $0x4] sm:$0x7]
        %v7419 = vsel %vm7414, %v7392, %v7418
        %7420 = vst [vmem:[%s7411 + $0x4] sm:$0x7] %v7419
        %v7421 = vld [vmem:[%s7411 + $0x8] sm:$0x7]
        %v7422 = vsel %vm7414, %v7399, %v7421
        %7423 = vst [vmem:[%s7411 + $0x8] sm:$0x7] %v7422
        %v7424 = vld [vmem:[%s7411 + $0xc] sm:$0x7]
        %v7425 = vsel %vm7414, %v7406, %v7424
        %7426 = vst [vmem:[%s7411 + $0xc] sm:$0x7] %v7425
        %vm7427 = vcmask 518144
        %7428 = vst.msk [vmem:[#allocation8] sm:$0x7] %vm7427, 0
        %s7429 = scalar_lea.vmem [#allocation8], 20
        %7430 = vst.msk [vmem:[%s7429] sm:$0x7] %vm7427, 0
        %vm7431 = vcmask 516096
        %vm7432 = vmand %vm7431, %vm364
        %v7433 = vld [vmem:[#allocation8] sm:$0x1]
        %v7434 = vsel %vm7432, 0, %v7433
        %7435 = vst [vmem:[#allocation8] sm:$0x1] %v7434
        %v7436 = vld [vmem:[#allocation8 + $0x4] sm:$0x1]
        %v7437 = vsel %vm7432, 0, %v7436
        %7438 = vst [vmem:[#allocation8 + $0x4] sm:$0x1] %v7437
        %v7439 = vld [vmem:[#allocation8 + $0x8] sm:$0x1]
        %v7440 = vsel %vm7432, 0, %v7439
        %7441 = vst [vmem:[#allocation8 + $0x8] sm:$0x1] %v7440
        %v7442 = vld [vmem:[#allocation8 + $0xc] sm:$0x1]
        %v7443 = vsel %vm7432, 0, %v7442
        %7444 = vst [vmem:[#allocation8 + $0xc] sm:$0x1] %v7443
        %v7445 = vld [vmem:[#allocation8 + $0x10] sm:$0x1]
        %v7446 = vsel %vm7432, 0, %v7445
        %7447 = vst [vmem:[#allocation8 + $0x10] sm:$0x1] %v7446
        %v7448 = vld [vmem:[#allocation8 + $0x14] sm:$0x1]
        %v7449 = vsel %vm7432, 0, %v7448
        %7450 = vst [vmem:[#allocation8 + $0x14] sm:$0x1] %v7449
        %vm7451 = vcmask 518146
        %vm7452 = vsmask.f32 7946
        %vm7453 = vmand %vm7451, %vm7452
        %v7454 = vld [vmem:[#allocation8] sm:$0x4]
        %v7455 = vsel %vm7453, 0, %v7454
        %7456 = vst [vmem:[#allocation8] sm:$0x4] %v7455
        %v7457 = vld [vmem:[#allocation8 + $0x4] sm:$0x4]
        %v7458 = vsel %vm7453, 0, %v7457
        %7459 = vst [vmem:[#allocation8 + $0x4] sm:$0x4] %v7458
        %v7460 = vld [vmem:[#allocation8 + $0x8] sm:$0x4]
        %v7461 = vsel %vm7453, 0, %v7460
        %7462 = vst [vmem:[#allocation8 + $0x8] sm:$0x4] %v7461
        %v7463 = vld [vmem:[#allocation8 + $0xc] sm:$0x4]
        %v7464 = vsel %vm7453, 0, %v7463
        %7465 = vst [vmem:[#allocation8 + $0xc] sm:$0x4] %v7464
        %v7466 = vld [vmem:[#allocation8 + $0x10] sm:$0x4]
        %v7467 = vsel %vm7453, 0, %v7466
        %7468 = vst [vmem:[#allocation8 + $0x10] sm:$0x4] %v7467
        %v7469 = vld [vmem:[#allocation8 + $0x14] sm:$0x4]
        %v7470 = vsel %vm7453, 0, %v7469
        %7471 = vst [vmem:[#allocation8 + $0x14] sm:$0x4] %v7470
        %v7472 = vld [vmem:[#allocation8] sm:$0x3]
        %v7473 = vld [vmem:[#allocation8 + $0x4] sm:$0x3]
        %v7474 = vld [vmem:[#allocation8 + $0x8] sm:$0x3]
        %v7475 = vld [vmem:[#allocation8 + $0xc] sm:$0x3]
        %v7476 = vld [vmem:[#allocation8] sm:$0x7]
        %v7477 = vld [vmem:[#allocation8 + $0x4] sm:$0x7]
        %v7478 = vld [vmem:[#allocation8 + $0x8] sm:$0x7]
        %v7479 = vld [vmem:[#allocation8 + $0xc] sm:$0x7]
        %v7485 = vunpack.c.l.s4 1983009808
        %v7486 = vunpack.c.0.s8 %v7485
        %v7487 = vlaneseq
        %v7488 = vshrl.u32 %v7487, 7
        %v7489 = vsub.s32 %v7486, %v7488
        %v7490 = vrot.slane %v7476, %v7489
        %v7491 = vcombine.high %v7490, %v7490
        %v7493 = vunpack.c.l.s4 1983009808
        %v7494 = vunpack.c.0.s8 %v7493
        %v7495 = vlaneseq
        %v7496 = vshrl.u32 %v7495, 7
        %v7497 = vsub.s32 %v7494, %v7496
        %v7498 = vrot.slane %v7477, %v7497
        %v7499 = vcombine.high %v7498, %v7498
        %v7501 = vunpack.c.l.s4 1983009808
        %v7502 = vunpack.c.0.s8 %v7501
        %v7503 = vlaneseq
        %v7504 = vshrl.u32 %v7503, 7
        %v7505 = vsub.s32 %v7502, %v7504
        %v7506 = vrot.slane %v7478, %v7505
        %v7507 = vcombine.high %v7506, %v7506
        %v7509 = vunpack.c.l.s4 1983009808
        %v7510 = vunpack.c.0.s8 %v7509
        %v7511 = vlaneseq
        %v7512 = vshrl.u32 %v7511, 7
        %v7513 = vsub.s32 %v7510, %v7512
        %v7514 = vrot.slane %v7479, %v7513
        %v7515 = vcombine.high %v7514, %v7514
        %vm7516 = vsmask.f32 1280
        %vm7517 = vsmask.f32 3336
        %vm7518 = vmor %vm7516, %vm7517
        %vm7519 = vsmask.f32 5392
        %vm7520 = vmor %vm7518, %vm7519
        %vm7521 = vsmask.f32 7448
        %vm7522 = vmor %vm7520, %vm7521
        %v7524 = vshrl.u32 %v7490, 16
        %v7526 = vrot.slane %v7524, 6
        %v7527 = vshll.u32 %v7490, 16
        %v7529 = vrot.slane %v7527, 7
        %v7530 = vor.u32 %v7526, %v7529
        %v7531 = vrot.slane %v7530, 2
        %v7533 = vshll.u32 %v7491, 16
        %v7535 = vrot.slane %v7533, 7
        %v7536 = vsel %vm7522, %v7531, %v7535
        %v7538 = vshrl.u32 %v7498, 16
        %v7540 = vrot.slane %v7538, 6
        %v7541 = vshll.u32 %v7498, 16
        %v7543 = vrot.slane %v7541, 7
        %v7544 = vor.u32 %v7540, %v7543
        %v7545 = vrot.slane %v7544, 2
        %v7547 = vshll.u32 %v7499, 16
        %v7549 = vrot.slane %v7547, 7
        %v7550 = vsel %vm7522, %v7545, %v7549
        %v7552 = vshrl.u32 %v7506, 16
        %v7554 = vrot.slane %v7552, 6
        %v7555 = vshll.u32 %v7506, 16
        %v7557 = vrot.slane %v7555, 7
        %v7558 = vor.u32 %v7554, %v7557
        %v7559 = vrot.slane %v7558, 2
        %v7561 = vshll.u32 %v7507, 16
        %v7563 = vrot.slane %v7561, 7
        %v7564 = vsel %vm7522, %v7559, %v7563
        %v7566 = vshrl.u32 %v7514, 16
        %v7568 = vrot.slane %v7566, 6
        %v7569 = vshll.u32 %v7514, 16
        %v7571 = vrot.slane %v7569, 7
        %v7572 = vor.u32 %v7568, %v7571
        %v7573 = vrot.slane %v7572, 2
        %v7575 = vshll.u32 %v7515, 16
        %v7577 = vrot.slane %v7575, 7
        %v7578 = vsel %vm7522, %v7573, %v7577
        %v7579 = vld [vmem:[#allocation8] sm:$0x6]
        %v7580 = vld [vmem:[#allocation8 + $0x4] sm:$0x6]
        %v7581 = vld [vmem:[#allocation8 + $0x8] sm:$0x6]
        %v7582 = vld [vmem:[#allocation8 + $0xc] sm:$0x6]
        %v7588 = vunpack.c.l.s4 1983009808
        %v7589 = vunpack.c.0.s8 %v7588
        %v7590 = vlaneseq
        %v7591 = vshrl.u32 %v7590, 7
        %v7592 = vsub.s32 %v7589, %v7591
        %v7593 = vrot.slane %v7579, %v7592
        %v7594 = vcombine.high %v7593, %v7593
        %v7596 = vunpack.c.l.s4 1983009808
        %v7597 = vunpack.c.0.s8 %v7596
        %v7598 = vlaneseq
        %v7599 = vshrl.u32 %v7598, 7
        %v7600 = vsub.s32 %v7597, %v7599
        %v7601 = vrot.slane %v7580, %v7600
        %v7602 = vcombine.high %v7601, %v7601
        %v7604 = vunpack.c.l.s4 1983009808
        %v7605 = vunpack.c.0.s8 %v7604
        %v7606 = vlaneseq
        %v7607 = vshrl.u32 %v7606, 7
        %v7608 = vsub.s32 %v7605, %v7607
        %v7609 = vrot.slane %v7581, %v7608
        %v7610 = vcombine.high %v7609, %v7609
        %v7612 = vunpack.c.l.s4 1983009808
        %v7613 = vunpack.c.0.s8 %v7612
        %v7614 = vlaneseq
        %v7615 = vshrl.u32 %v7614, 7
        %v7616 = vsub.s32 %v7613, %v7615
        %v7617 = vrot.slane %v7582, %v7616
        %v7618 = vcombine.high %v7617, %v7617
        %vm7619 = vcmask 1040384
        %vm7620 = vcmask 1042434
        %vm7621 = vmor %vm7619, %vm7620
        %vm7622 = vcmask 1044484
        %vm7623 = vmor %vm7621, %vm7622
        %vm7624 = vcmask 1046534
        %vm7625 = vmor %vm7623, %vm7624
        %v7626 = vrot.slane %v7593, 7
        %v7627 = vrot.slane %v7626, 2
        %v7628 = vrot.slane %v7594, 7
        %v7629 = vsel %vm7625, %v7627, %v7628
        %v7630 = vrot.slane %v7601, 7
        %v7631 = vrot.slane %v7630, 2
        %v7632 = vrot.slane %v7602, 7
        %v7633 = vsel %vm7625, %v7631, %v7632
        %v7634 = vrot.slane %v7609, 7
        %v7635 = vrot.slane %v7634, 2
        %v7636 = vrot.slane %v7610, 7
        %v7637 = vsel %vm7625, %v7635, %v7636
        %v7638 = vrot.slane %v7617, 7
        %v7639 = vrot.slane %v7638, 2
        %v7640 = vrot.slane %v7618, 7
        %v7641 = vsel %vm7625, %v7639, %v7640
        %v7642 = vld [vmem:[%s7411] sm:$0x3]
        %v7643 = vld [vmem:[%s7411 + $0x4] sm:$0x3]
        %v7644 = vld [vmem:[%s7411 + $0x8] sm:$0x3]
        %v7645 = vld [vmem:[%s7411 + $0xc] sm:$0x3]
        %v7646 = vld [vmem:[%s7411] sm:$0x7]
        %v7647 = vld [vmem:[%s7411 + $0x4] sm:$0x7]
        %v7648 = vld [vmem:[%s7411 + $0x8] sm:$0x7]
        %v7649 = vld [vmem:[%s7411 + $0xc] sm:$0x7]
        %v7655 = vunpack.c.l.s4 1983009808
        %v7656 = vunpack.c.0.s8 %v7655
        %v7657 = vlaneseq
        %v7658 = vshrl.u32 %v7657, 7
        %v7659 = vsub.s32 %v7656, %v7658
        %v7660 = vrot.slane %v7646, %v7659
        %v7661 = vcombine.high %v7660, %v7660
        %v7663 = vunpack.c.l.s4 1983009808
        %v7664 = vunpack.c.0.s8 %v7663
        %v7665 = vlaneseq
        %v7666 = vshrl.u32 %v7665, 7
        %v7667 = vsub.s32 %v7664, %v7666
        %v7668 = vrot.slane %v7647, %v7667
        %v7669 = vcombine.high %v7668, %v7668
        %v7671 = vunpack.c.l.s4 1983009808
        %v7672 = vunpack.c.0.s8 %v7671
        %v7673 = vlaneseq
        %v7674 = vshrl.u32 %v7673, 7
        %v7675 = vsub.s32 %v7672, %v7674
        %v7676 = vrot.slane %v7648, %v7675
        %v7677 = vcombine.high %v7676, %v7676
        %v7679 = vunpack.c.l.s4 1983009808
        %v7680 = vunpack.c.0.s8 %v7679
        %v7681 = vlaneseq
        %v7682 = vshrl.u32 %v7681, 7
        %v7683 = vsub.s32 %v7680, %v7682
        %v7684 = vrot.slane %v7649, %v7683
        %v7685 = vcombine.high %v7684, %v7684
        %v7687 = vshrl.u32 %v7660, 16
        %v7689 = vrot.slane %v7687, 6
        %v7690 = vshll.u32 %v7660, 16
        %v7692 = vrot.slane %v7690, 7
        %v7693 = vor.u32 %v7689, %v7692
        %v7694 = vrot.slane %v7693, 2
        %v7696 = vshll.u32 %v7661, 16
        %v7698 = vrot.slane %v7696, 7
        %v7699 = vsel %vm7522, %v7694, %v7698
        %v7701 = vshrl.u32 %v7668, 16
        %v7703 = vrot.slane %v7701, 6
        %v7704 = vshll.u32 %v7668, 16
        %v7706 = vrot.slane %v7704, 7
        %v7707 = vor.u32 %v7703, %v7706
        %v7708 = vrot.slane %v7707, 2
        %v7710 = vshll.u32 %v7669, 16
        %v7712 = vrot.slane %v7710, 7
        %v7713 = vsel %vm7522, %v7708, %v7712
        %v7715 = vshrl.u32 %v7676, 16
        %v7717 = vrot.slane %v7715, 6
        %v7718 = vshll.u32 %v7676, 16
        %v7720 = vrot.slane %v7718, 7
        %v7721 = vor.u32 %v7717, %v7720
        %v7722 = vrot.slane %v7721, 2
        %v7724 = vshll.u32 %v7677, 16
        %v7726 = vrot.slane %v7724, 7
        %v7727 = vsel %vm7522, %v7722, %v7726
        %v7729 = vshrl.u32 %v7684, 16
        %v7731 = vrot.slane %v7729, 6
        %v7732 = vshll.u32 %v7684, 16
        %v7734 = vrot.slane %v7732, 7
        %v7735 = vor.u32 %v7731, %v7734
        %v7736 = vrot.slane %v7735, 2
        %v7738 = vshll.u32 %v7685, 16
        %v7740 = vrot.slane %v7738, 7
        %v7741 = vsel %vm7522, %v7736, %v7740
        %v7742 = vld [vmem:[%s7411] sm:$0x6]
        %v7743 = vld [vmem:[%s7411 + $0x4] sm:$0x6]
        %v7744 = vld [vmem:[%s7411 + $0x8] sm:$0x6]
        %v7745 = vld [vmem:[%s7411 + $0xc] sm:$0x6]
        %v7751 = vunpack.c.l.s4 1983009808
        %v7752 = vunpack.c.0.s8 %v7751
        %v7753 = vlaneseq
        %v7754 = vshrl.u32 %v7753, 7
        %v7755 = vsub.s32 %v7752, %v7754
        %v7756 = vrot.slane %v7742, %v7755
        %v7757 = vcombine.high %v7756, %v7756
        %v7759 = vunpack.c.l.s4 1983009808
        %v7760 = vunpack.c.0.s8 %v7759
        %v7761 = vlaneseq
        %v7762 = vshrl.u32 %v7761, 7
        %v7763 = vsub.s32 %v7760, %v7762
        %v7764 = vrot.slane %v7743, %v7763
        %v7765 = vcombine.high %v7764, %v7764
        %v7767 = vunpack.c.l.s4 1983009808
        %v7768 = vunpack.c.0.s8 %v7767
        %v7769 = vlaneseq
        %v7770 = vshrl.u32 %v7769, 7
        %v7771 = vsub.s32 %v7768, %v7770
        %v7772 = vrot.slane %v7744, %v7771
        %v7773 = vcombine.high %v7772, %v7772
        %v7775 = vunpack.c.l.s4 1983009808
        %v7776 = vunpack.c.0.s8 %v7775
        %v7777 = vlaneseq
        %v7778 = vshrl.u32 %v7777, 7
        %v7779 = vsub.s32 %v7776, %v7778
        %v7780 = vrot.slane %v7745, %v7779
        %v7781 = vcombine.high %v7780, %v7780
        %v7782 = vrot.slane %v7756, 7
        %v7783 = vrot.slane %v7782, 2
        %v7784 = vrot.slane %v7757, 7
        %v7785 = vsel %vm7625, %v7783, %v7784
        %v7786 = vrot.slane %v7764, 7
        %v7787 = vrot.slane %v7786, 2
        %v7788 = vrot.slane %v7765, 7
        %v7789 = vsel %vm7625, %v7787, %v7788
        %v7790 = vrot.slane %v7772, 7
        %v7791 = vrot.slane %v7790, 2
        %v7792 = vrot.slane %v7773, 7
        %v7793 = vsel %vm7625, %v7791, %v7792
        %v7794 = vrot.slane %v7780, 7
        %v7795 = vrot.slane %v7794, 2
        %v7796 = vrot.slane %v7781, 7
        %v7797 = vsel %vm7625, %v7795, %v7796
        %s7798 = scalar_lea.vmem [#allocation8], 8
        %v7799 = vld [vmem:[%s7798] sm:$0x3]
        %v7800 = vld [vmem:[%s7798 + $0x4] sm:$0x3]
        %v7801 = vld [vmem:[%s7798 + $0x8] sm:$0x3]
        %v7802 = vld [vmem:[%s7798 + $0xc] sm:$0x3]
        %v7803 = vld [vmem:[%s7798] sm:$0x7]
        %v7804 = vld [vmem:[%s7798 + $0x4] sm:$0x7]
        %v7805 = vld [vmem:[%s7798 + $0x8] sm:$0x7]
        %v7806 = vld [vmem:[%s7798 + $0xc] sm:$0x7]
        %v7812 = vunpack.c.l.s4 1983009808
        %v7813 = vunpack.c.0.s8 %v7812
        %v7814 = vlaneseq
        %v7815 = vshrl.u32 %v7814, 7
        %v7816 = vsub.s32 %v7813, %v7815
        %v7817 = vrot.slane %v7803, %v7816
        %v7818 = vcombine.high %v7817, %v7817
        %v7820 = vunpack.c.l.s4 1983009808
        %v7821 = vunpack.c.0.s8 %v7820
        %v7822 = vlaneseq
        %v7823 = vshrl.u32 %v7822, 7
        %v7824 = vsub.s32 %v7821, %v7823
        %v7825 = vrot.slane %v7804, %v7824
        %v7826 = vcombine.high %v7825, %v7825
        %v7828 = vunpack.c.l.s4 1983009808
        %v7829 = vunpack.c.0.s8 %v7828
        %v7830 = vlaneseq
        %v7831 = vshrl.u32 %v7830, 7
        %v7832 = vsub.s32 %v7829, %v7831
        %v7833 = vrot.slane %v7805, %v7832
        %v7834 = vcombine.high %v7833, %v7833
        %v7836 = vunpack.c.l.s4 1983009808
        %v7837 = vunpack.c.0.s8 %v7836
        %v7838 = vlaneseq
        %v7839 = vshrl.u32 %v7838, 7
        %v7840 = vsub.s32 %v7837, %v7839
        %v7841 = vrot.slane %v7806, %v7840
        %v7842 = vcombine.high %v7841, %v7841
        %v7844 = vshrl.u32 %v7817, 16
        %v7846 = vrot.slane %v7844, 6
        %v7847 = vshll.u32 %v7817, 16
        %v7849 = vrot.slane %v7847, 7
        %v7850 = vor.u32 %v7846, %v7849
        %v7851 = vrot.slane %v7850, 2
        %v7853 = vshll.u32 %v7818, 16
        %v7855 = vrot.slane %v7853, 7
        %v7856 = vsel %vm7522, %v7851, %v7855
        %v7858 = vshrl.u32 %v7825, 16
        %v7860 = vrot.slane %v7858, 6
        %v7861 = vshll.u32 %v7825, 16
        %v7863 = vrot.slane %v7861, 7
        %v7864 = vor.u32 %v7860, %v7863
        %v7865 = vrot.slane %v7864, 2
        %v7867 = vshll.u32 %v7826, 16
        %v7869 = vrot.slane %v7867, 7
        %v7870 = vsel %vm7522, %v7865, %v7869
        %v7872 = vshrl.u32 %v7833, 16
        %v7874 = vrot.slane %v7872, 6
        %v7875 = vshll.u32 %v7833, 16
        %v7877 = vrot.slane %v7875, 7
        %v7878 = vor.u32 %v7874, %v7877
        %v7879 = vrot.slane %v7878, 2
        %v7881 = vshll.u32 %v7834, 16
        %v7883 = vrot.slane %v7881, 7
        %v7884 = vsel %vm7522, %v7879, %v7883
        %v7886 = vshrl.u32 %v7841, 16
        %v7888 = vrot.slane %v7886, 6
        %v7889 = vshll.u32 %v7841, 16
        %v7891 = vrot.slane %v7889, 7
        %v7892 = vor.u32 %v7888, %v7891
        %v7893 = vrot.slane %v7892, 2
        %v7895 = vshll.u32 %v7842, 16
        %v7897 = vrot.slane %v7895, 7
        %v7898 = vsel %vm7522, %v7893, %v7897
        %v7899 = vld [vmem:[%s7798] sm:$0x6]
        %v7900 = vld [vmem:[%s7798 + $0x4] sm:$0x6]
        %v7901 = vld [vmem:[%s7798 + $0x8] sm:$0x6]
        %v7902 = vld [vmem:[%s7798 + $0xc] sm:$0x6]
        %v7908 = vunpack.c.l.s4 1983009808
        %v7909 = vunpack.c.0.s8 %v7908
        %v7910 = vlaneseq
        %v7911 = vshrl.u32 %v7910, 7
        %v7912 = vsub.s32 %v7909, %v7911
        %v7913 = vrot.slane %v7899, %v7912
        %v7914 = vcombine.high %v7913, %v7913
        %v7916 = vunpack.c.l.s4 1983009808
        %v7917 = vunpack.c.0.s8 %v7916
        %v7918 = vlaneseq
        %v7919 = vshrl.u32 %v7918, 7
        %v7920 = vsub.s32 %v7917, %v7919
        %v7921 = vrot.slane %v7900, %v7920
        %v7922 = vcombine.high %v7921, %v7921
        %v7924 = vunpack.c.l.s4 1983009808
        %v7925 = vunpack.c.0.s8 %v7924
        %v7926 = vlaneseq
        %v7927 = vshrl.u32 %v7926, 7
        %v7928 = vsub.s32 %v7925, %v7927
        %v7929 = vrot.slane %v7901, %v7928
        %v7930 = vcombine.high %v7929, %v7929
        %v7932 = vunpack.c.l.s4 1983009808
        %v7933 = vunpack.c.0.s8 %v7932
        %v7934 = vlaneseq
        %v7935 = vshrl.u32 %v7934, 7
        %v7936 = vsub.s32 %v7933, %v7935
        %v7937 = vrot.slane %v7902, %v7936
        %v7938 = vcombine.high %v7937, %v7937
        %v7939 = vrot.slane %v7913, 7
        %v7940 = vrot.slane %v7939, 2
        %v7941 = vrot.slane %v7914, 7
        %v7942 = vsel %vm7625, %v7940, %v7941
        %v7943 = vrot.slane %v7921, 7
        %v7944 = vrot.slane %v7943, 2
        %v7945 = vrot.slane %v7922, 7
        %v7946 = vsel %vm7625, %v7944, %v7945
        %v7947 = vrot.slane %v7929, 7
        %v7948 = vrot.slane %v7947, 2
        %v7949 = vrot.slane %v7930, 7
        %v7950 = vsel %vm7625, %v7948, %v7949
        %v7951 = vrot.slane %v7937, 7
        %v7952 = vrot.slane %v7951, 2
        %v7953 = vrot.slane %v7938, 7
        %v7954 = vsel %vm7625, %v7952, %v7953
        %v7959 = vcombine.low %v7472, %v7473
        %v7960 = vcombine.low %v7474, %v7475
        %v7962 = vunpack.c.l.s4 1983009808
        %v7963 = vunpack.c.0.s8 %v7962
        %v7964 = vlaneseq
        %v7965 = vshrl.u32 %v7964, 7
        %v7966 = vsub.s32 %v7963, %v7965
        %v7967 = vrot.slane %v7959, %v7966
        %v7969 = vunpack.c.l.s4 1983009808
        %v7970 = vunpack.c.0.s8 %v7969
        %v7971 = vlaneseq
        %v7972 = vshrl.u32 %v7971, 7
        %v7973 = vsub.s32 %v7970, %v7972
        %v7974 = vrot.slane %v7960, %v7973
        %v7975 = vcombine.low %v7967, %v7974
        %v7976 = vcombine.low %v7536, %v7550
        %v7977 = vcombine.low %v7564, %v7578
        %v7979 = vunpack.c.l.s4 1983009808
        %v7980 = vunpack.c.0.s8 %v7979
        %v7981 = vlaneseq
        %v7982 = vshrl.u32 %v7981, 7
        %v7983 = vsub.s32 %v7980, %v7982
        %v7984 = vrot.slane %v7976, %v7983
        %v7986 = vunpack.c.l.s4 1983009808
        %v7987 = vunpack.c.0.s8 %v7986
        %v7988 = vlaneseq
        %v7989 = vshrl.u32 %v7988, 7
        %v7990 = vsub.s32 %v7987, %v7989
        %v7991 = vrot.slane %v7977, %v7990
        %v7992 = vcombine.low %v7984, %v7991
        %7993 = vrot.lane.b32.xlu0 %v7992, 64
        %v7994 = vpop.permute.xlu0 %7993
        %v7995 = vcombine.low %v7629, %v7633
        %v7996 = vcombine.low %v7637, %v7641
        %v7998 = vunpack.c.l.s4 1983009808
        %v7999 = vunpack.c.0.s8 %v7998
        %v8000 = vlaneseq
        %v8001 = vshrl.u32 %v8000, 7
        %v8002 = vsub.s32 %v7999, %v8001
        %v8003 = vrot.slane %v7995, %v8002
        %v8005 = vunpack.c.l.s4 1983009808
        %v8006 = vunpack.c.0.s8 %v8005
        %v8007 = vlaneseq
        %v8008 = vshrl.u32 %v8007, 7
        %v8009 = vsub.s32 %v8006, %v8008
        %v8010 = vrot.slane %v7996, %v8009
        %v8011 = vcombine.low %v8003, %v8010
        %v8016 = vcombine.low %v7642, %v7643
        %v8017 = vcombine.low %v7644, %v7645
        %v8019 = vunpack.c.l.s4 1983009808
        %v8020 = vunpack.c.0.s8 %v8019
        %v8021 = vlaneseq
        %v8022 = vshrl.u32 %v8021, 7
        %v8023 = vsub.s32 %v8020, %v8022
        %v8024 = vrot.slane %v8016, %v8023
        %v8026 = vunpack.c.l.s4 1983009808
        %v8027 = vunpack.c.0.s8 %v8026
        %v8028 = vlaneseq
        %v8029 = vshrl.u32 %v8028, 7
        %v8030 = vsub.s32 %v8027, %v8029
        %v8031 = vrot.slane %v8017, %v8030
        %v8032 = vcombine.low %v8024, %v8031
        %8033 = vrot.lane.b32.xlu0 %v8032, 64
        %v8034 = vpop.permute.xlu0 %8033
        %v8035 = vcombine.low %v7699, %v7713
        %v8036 = vcombine.low %v7727, %v7741
        %v8038 = vunpack.c.l.s4 1983009808
        %v8039 = vunpack.c.0.s8 %v8038
        %v8040 = vlaneseq
        %v8041 = vshrl.u32 %v8040, 7
        %v8042 = vsub.s32 %v8039, %v8041
        %v8043 = vrot.slane %v8035, %v8042
        %v8045 = vunpack.c.l.s4 1983009808
        %v8046 = vunpack.c.0.s8 %v8045
        %v8047 = vlaneseq
        %v8048 = vshrl.u32 %v8047, 7
        %v8049 = vsub.s32 %v8046, %v8048
        %v8050 = vrot.slane %v8036, %v8049
        %v8051 = vcombine.low %v8043, %v8050
        %v8052 = vcombine.low %v7785, %v7789
        %v8053 = vcombine.low %v7793, %v7797
        %v8055 = vunpack.c.l.s4 1983009808
        %v8056 = vunpack.c.0.s8 %v8055
        %v8057 = vlaneseq
        %v8058 = vshrl.u32 %v8057, 7
        %v8059 = vsub.s32 %v8056, %v8058
        %v8060 = vrot.slane %v8052, %v8059
        %v8062 = vunpack.c.l.s4 1983009808
        %v8063 = vunpack.c.0.s8 %v8062
        %v8064 = vlaneseq
        %v8065 = vshrl.u32 %v8064, 7
        %v8066 = vsub.s32 %v8063, %v8065
        %v8067 = vrot.slane %v8053, %v8066
        %v8068 = vcombine.low %v8060, %v8067
        %8069 = vrot.lane.b32.xlu0 %v8068, 64
        %v8070 = vpop.permute.xlu0 %8069
        %v8075 = vcombine.low %v7799, %v7800
        %v8076 = vcombine.low %v7801, %v7802
        %v8078 = vunpack.c.l.s4 1983009808
        %v8079 = vunpack.c.0.s8 %v8078
        %v8080 = vlaneseq
        %v8081 = vshrl.u32 %v8080, 7
        %v8082 = vsub.s32 %v8079, %v8081
        %v8083 = vrot.slane %v8075, %v8082
        %v8085 = vunpack.c.l.s4 1983009808
        %v8086 = vunpack.c.0.s8 %v8085
        %v8087 = vlaneseq
        %v8088 = vshrl.u32 %v8087, 7
        %v8089 = vsub.s32 %v8086, %v8088
        %v8090 = vrot.slane %v8076, %v8089
        %v8091 = vcombine.low %v8083, %v8090
        %v8092 = vcombine.low %v7856, %v7870
        %v8093 = vcombine.low %v7884, %v7898
        %v8095 = vunpack.c.l.s4 1983009808
        %v8096 = vunpack.c.0.s8 %v8095
        %v8097 = vlaneseq
        %v8098 = vshrl.u32 %v8097, 7
        %v8099 = vsub.s32 %v8096, %v8098
        %v8100 = vrot.slane %v8092, %v8099
        %v8102 = vunpack.c.l.s4 1983009808
        %v8103 = vunpack.c.0.s8 %v8102
        %v8104 = vlaneseq
        %v8105 = vshrl.u32 %v8104, 7
        %v8106 = vsub.s32 %v8103, %v8105
        %v8107 = vrot.slane %v8093, %v8106
        %v8108 = vcombine.low %v8100, %v8107
        %8109 = vrot.lane.b32.xlu0 %v8108, 64
        %v8110 = vpop.permute.xlu0 %8109
        %v8111 = vcombine.low %v7942, %v7946
        %v8112 = vcombine.low %v7950, %v7954
        %v8114 = vunpack.c.l.s4 1983009808
        %v8115 = vunpack.c.0.s8 %v8114
        %v8116 = vlaneseq
        %v8117 = vshrl.u32 %v8116, 7
        %v8118 = vsub.s32 %v8115, %v8117
        %v8119 = vrot.slane %v8111, %v8118
        %v8121 = vunpack.c.l.s4 1983009808
        %v8122 = vunpack.c.0.s8 %v8121
        %v8123 = vlaneseq
        %v8124 = vshrl.u32 %v8123, 7
        %v8125 = vsub.s32 %v8122, %v8124
        %v8126 = vrot.slane %v8112, %v8125
        %v8127 = vcombine.low %v8119, %v8126
        %v8130 = vsel %vm3573, %v7975, %v7994
        %v8134 = vsel %vm3573, %v8011, %v8034
        %v8138 = vsel %vm3573, %v8051, %v8070
        %v8142 = vsel %vm3573, %v8091, %v8110
        %v8144 = vld [vmem:[%s5] sm:$0xf]
        %v8145 = vld [vmem:[%s5 + $0x4] sm:$0xf]
        %v8146 = vld [vmem:[%s5 + $0x8] sm:$0xf]
        %v8147 = vld [vmem:[%s5 + $0xc] sm:$0xf]
        %v8148 = vld [vmem:[%s5 + $0x10] sm:$0xf]
        %v8149 = vld [vmem:[%s5 + $0x14] sm:$0xf]
        %v8150 = vld [vmem:[%s5 + $0x18] sm:$0xf]
        %v8151 = vld [vmem:[%s5 + $0x1c] sm:$0xf]
        %v8152 = vld [vmem:[%s5 + $0x20] sm:$0xf]
        %v8153 = vld [vmem:[%s5 + $0x24] sm:$0xf]
        %v8154 = vld [vmem:[%s5 + $0x28] sm:$0xf]
        %v8155 = vld [vmem:[%s5 + $0x2c] sm:$0xf]
        %v8156 = vld [vmem:[%s5 + $0x30] sm:$0xf]
        %v8157 = vld [vmem:[%s5 + $0x34] sm:$0xf]
        %v8158 = vld [vmem:[%s5 + $0x38] sm:$0xf]
        %v8159 = vld [vmem:[%s5 + $0x3c] sm:$0xf]
        %v8160 = vld [vmem:[%s5 + $0x40] sm:$0xf]
        %v8161 = vld [vmem:[%s5 + $0x44] sm:$0xf]
        %v8162 = vld [vmem:[%s5 + $0x48] sm:$0xf]
        %v8163 = vld [vmem:[%s5 + $0x4c] sm:$0xf]
        %v8164 = vld [vmem:[%s5 + $0x50] sm:$0xf]
        %v8165 = vld [vmem:[%s5 + $0x54] sm:$0xf]
        %v8166 = vld [vmem:[%s5 + $0x58] sm:$0xf]
        %v8167 = vld [vmem:[%s5 + $0x5c] sm:$0xf]
        %v8168 = vld [vmem:[%s5 + $0x60] sm:$0xf]
        %v8169 = vld [vmem:[%s5 + $0x64] sm:$0xf]
        %v8170 = vld [vmem:[%s5 + $0x68] sm:$0xf]
        %v8171 = vld [vmem:[%s5 + $0x6c] sm:$0xf]
        %v8172 = vld [vmem:[%s5 + $0x70] sm:$0xf]
        %v8173 = vld [vmem:[%s5 + $0x74] sm:$0xf]
        %v8174 = vld [vmem:[%s5 + $0x78] sm:$0xf]
        %v8175 = vld [vmem:[%s5 + $0x7c] sm:$0xf]
        %v8176 = vld [vmem:[%s5 + $0x80] sm:$0xf]
        %v8177 = vld [vmem:[%s5 + $0x84] sm:$0xf]
        %v8178 = vld [vmem:[%s5 + $0x88] sm:$0xf]
        %v8179 = vld [vmem:[%s5 + $0x8c] sm:$0xf]
        %v8180 = vld [vmem:[%s5 + $0x90] sm:$0xf]
        %v8181 = vld [vmem:[%s5 + $0x94] sm:$0xf]
        %v8182 = vld [vmem:[%s5 + $0x98] sm:$0xf]
        %v8183 = vld [vmem:[%s5 + $0x9c] sm:$0xf]
        %v8184 = vld [vmem:[%s5 + $0xa0] sm:$0xf]
        %v8185 = vld [vmem:[%s5 + $0xa4] sm:$0xf]
        %v8186 = vld [vmem:[%s5 + $0xa8] sm:$0xf]
        %v8187 = vld [vmem:[%s5 + $0xac] sm:$0xf]
        %v8188 = vld [vmem:[%s5 + $0xb0] sm:$0xf]
        %v8189 = vld [vmem:[%s5 + $0xb4] sm:$0xf]
        %v8190 = vld [vmem:[%s5 + $0xb8] sm:$0xf]
        %v8191 = vld [vmem:[%s5 + $0xbc] sm:$0xf]
        %v8192 = vld [vmem:[%s5 + $0xc0] sm:$0xf]
        %v8193 = vld [vmem:[%s5 + $0xc4] sm:$0xf]
        %v8194 = vld [vmem:[%s5 + $0xc8] sm:$0xf]
        %v8195 = vld [vmem:[%s5 + $0xcc] sm:$0xf]
        %v8196 = vld [vmem:[%s5 + $0xd0] sm:$0xf]
        %v8197 = vld [vmem:[%s5 + $0xd4] sm:$0xf]
        %v8198 = vld [vmem:[%s5 + $0xd8] sm:$0xf]
        %v8199 = vld [vmem:[%s5 + $0xdc] sm:$0xf]
        %v8200 = vld [vmem:[%s5 + $0xe0] sm:$0xf]
        %v8201 = vld [vmem:[%s5 + $0xe4] sm:$0xf]
        %v8202 = vld [vmem:[%s5 + $0xe8] sm:$0xf]
        %v8203 = vld [vmem:[%s5 + $0xec] sm:$0xf]
        %v8204 = vld [vmem:[%s5 + $0xf0] sm:$0xf]
        %v8205 = vld [vmem:[%s5 + $0xf4] sm:$0xf]
        %v8206 = vld [vmem:[%s5 + $0xf8] sm:$0xf]
        %v8207 = vld [vmem:[%s5 + $0xfc] sm:$0xf]
        %v8208 = vld [vmem:[%s5 + $0x100] sm:$0xf]
        %v8209 = vld [vmem:[%s5 + $0x104] sm:$0xf]
        %v8210 = vld [vmem:[%s5 + $0x108] sm:$0xf]
        %v8211 = vld [vmem:[%s5 + $0x10c] sm:$0xf]
        %v8212 = vld [vmem:[%s5 + $0x110] sm:$0xf]
        %v8213 = vld [vmem:[%s5 + $0x114] sm:$0xf]
        %v8214 = vld [vmem:[%s5 + $0x118] sm:$0xf]
        %v8215 = vld [vmem:[%s5 + $0x11c] sm:$0xf]
        %v8216 = vld [vmem:[%s6] sm:$0x1]
        %v8218 = vlaneseq
        %v8219 = vshrl.u32 %v8218, 7
        %v8220 = vsub.s32 0, %v8219
        %v8221 = vrot.slane %v8216, %v8220
        %v8295 = vunpack.c.l.b16 %v8144
        %v8296 = vunpack.c.l.b16 %v8145
        %v8297 = vunpack.c.l.b16 %v8146
        %v8298 = vunpack.c.l.b16 %v8147
        %v8299 = vunpack.c.l.b16 %v8148
        %v8300 = vunpack.c.l.b16 %v8149
        %v8301 = vunpack.c.l.b16 %v8150
        %v8302 = vunpack.c.l.b16 %v8151
        %v8303 = vunpack.c.l.b16 %v8152
        %v8304 = vunpack.c.l.b16 %v8153
        %v8305 = vunpack.c.l.b16 %v8154
        %v8306 = vunpack.c.l.b16 %v8155
        %v8307 = vunpack.c.l.b16 %v8156
        %v8308 = vunpack.c.l.b16 %v8157
        %v8309 = vunpack.c.l.b16 %v8158
        %v8310 = vunpack.c.l.b16 %v8159
        %v8311 = vunpack.c.l.b16 %v8160
        %v8312 = vunpack.c.l.b16 %v8161
        %v8313 = vunpack.c.l.b16 %v8162
        %v8314 = vunpack.c.l.b16 %v8163
        %v8315 = vunpack.c.l.b16 %v8164
        %v8316 = vunpack.c.l.b16 %v8165
        %v8317 = vunpack.c.l.b16 %v8166
        %v8318 = vunpack.c.l.b16 %v8167
        %v8319 = vunpack.c.l.b16 %v8168
        %v8320 = vunpack.c.l.b16 %v8169
        %v8321 = vunpack.c.l.b16 %v8170
        %v8322 = vunpack.c.l.b16 %v8171
        %v8323 = vunpack.c.l.b16 %v8172
        %v8324 = vunpack.c.l.b16 %v8173
        %v8325 = vunpack.c.l.b16 %v8174
        %v8326 = vunpack.c.l.b16 %v8175
        %v8327 = vunpack.c.l.b16 %v8176
        %v8328 = vunpack.c.l.b16 %v8177
        %v8329 = vunpack.c.l.b16 %v8178
        %v8330 = vunpack.c.l.b16 %v8179
        %v8331 = vunpack.c.l.b16 %v8180
        %v8332 = vunpack.c.l.b16 %v8181
        %v8333 = vunpack.c.l.b16 %v8182
        %v8334 = vunpack.c.l.b16 %v8183
        %v8335 = vunpack.c.l.b16 %v8184
        %v8336 = vunpack.c.l.b16 %v8185
        %v8337 = vunpack.c.l.b16 %v8186
        %v8338 = vunpack.c.l.b16 %v8187
        %v8339 = vunpack.c.l.b16 %v8188
        %v8340 = vunpack.c.l.b16 %v8189
        %v8341 = vunpack.c.l.b16 %v8190
        %v8342 = vunpack.c.l.b16 %v8191
        %v8343 = vunpack.c.l.b16 %v8192
        %v8344 = vunpack.c.l.b16 %v8193
        %v8345 = vunpack.c.l.b16 %v8194
        %v8346 = vunpack.c.l.b16 %v8195
        %v8347 = vunpack.c.l.b16 %v8196
        %v8348 = vunpack.c.l.b16 %v8197
        %v8349 = vunpack.c.l.b16 %v8198
        %v8350 = vunpack.c.l.b16 %v8199
        %v8351 = vunpack.c.l.b16 %v8200
        %v8352 = vunpack.c.l.b16 %v8201
        %v8353 = vunpack.c.l.b16 %v8202
        %v8354 = vunpack.c.l.b16 %v8203
        %v8355 = vunpack.c.l.b16 %v8204
        %v8356 = vunpack.c.l.b16 %v8205
        %v8357 = vunpack.c.l.b16 %v8206
        %v8358 = vunpack.c.l.b16 %v8207
        %v8359 = vunpack.c.l.b16 %v8208
        %v8360 = vunpack.c.l.b16 %v8209
        %v8361 = vunpack.c.l.b16 %v8210
        %v8362 = vunpack.c.l.b16 %v8211
        %v8363 = vunpack.c.l.b16 %v8212
        %v8364 = vunpack.c.l.b16 %v8213
        %v8365 = vunpack.c.l.b16 %v8214
        %v8366 = vunpack.c.l.b16 %v8215
        %v8367 = vpack.c.b16 %v8296, %v8295
        %v8368 = vpack.c.b16 %v8298, %v8297
        %v8369 = vpack.c.b16 %v8300, %v8299
        %v8370 = vpack.c.b16 %v8302, %v8301
        %v8371 = vpack.c.b16 %v8304, %v8303
        %v8372 = vpack.c.b16 %v8306, %v8305
        %v8373 = vpack.c.b16 %v8308, %v8307
        %v8374 = vpack.c.b16 %v8310, %v8309
        %v8375 = vpack.c.b16 %v8312, %v8311
        %v8376 = vpack.c.b16 %v8314, %v8313
        %v8377 = vpack.c.b16 %v8316, %v8315
        %v8378 = vpack.c.b16 %v8318, %v8317
        %v8379 = vpack.c.b16 %v8320, %v8319
        %v8380 = vpack.c.b16 %v8322, %v8321
        %v8381 = vpack.c.b16 %v8324, %v8323
        %v8382 = vpack.c.b16 %v8326, %v8325
        %v8383 = vpack.c.b16 %v8328, %v8327
        %v8384 = vpack.c.b16 %v8330, %v8329
        %v8385 = vpack.c.b16 %v8332, %v8331
        %v8386 = vpack.c.b16 %v8334, %v8333
        %v8387 = vpack.c.b16 %v8336, %v8335
        %v8388 = vpack.c.b16 %v8338, %v8337
        %v8389 = vpack.c.b16 %v8340, %v8339
        %v8390 = vpack.c.b16 %v8342, %v8341
        %v8391 = vpack.c.b16 %v8344, %v8343
        %v8392 = vpack.c.b16 %v8346, %v8345
        %v8393 = vpack.c.b16 %v8348, %v8347
        %v8394 = vpack.c.b16 %v8350, %v8349
        %v8395 = vpack.c.b16 %v8352, %v8351
        %v8396 = vpack.c.b16 %v8354, %v8353
        %v8397 = vpack.c.b16 %v8356, %v8355
        %v8398 = vpack.c.b16 %v8358, %v8357
        %v8399 = vpack.c.b16 %v8360, %v8359
        %v8400 = vpack.c.b16 %v8362, %v8361
        %v8401 = vpack.c.b16 %v8364, %v8363
        %v8402 = vpack.c.b16 %v8366, %v8365
        %v8440 = vsel %vm3573, %v8127, 0
        %8442 = vmatprep.subr.bf16.mxu0 0
        %8443 = vmatpush1.bf16.msra.mxu0 %v8367
        %8444 = vmatprep.subr.bf16.mxu0 0
        %8445 = vmatpush1.bf16.msra.mxu0 %v8368
        %8446 = vmatprep.subr.bf16.mxu0 0
        %8447 = vmatpush1.bf16.msra.mxu0 %v8369
        %8448 = vmatprep.subr.bf16.mxu0 0
        %8449 = vmatpush1.bf16.msra.mxu0 %v8370
        %8450 = vmatprep.subr.bf16.mxu0 0
        %8451 = vmatpush1.bf16.msra.mxu0 %v8371
        %8452 = vmatprep.subr.bf16.mxu0 0
        %8453 = vmatpush1.bf16.msra.mxu0 %v8372
        %8454 = vmatprep.subr.bf16.mxu0 0
        %8455 = vmatpush1.bf16.msra.mxu0 %v8373
        %8456 = vmatprep.subr.bf16.mxu0 0
        %8457 = vmatpush1.bf16.msra.mxu0 %v8374
        %8458 = vmatprep.subr.bf16.mxu0 0
        %8459 = vmatpush1.bf16.msra.mxu0 %v8375
        %8460 = vmatprep.subr.bf16.mxu0 0
        %8461 = vmatpush1.bf16.msra.mxu0 %v8376
        %8462 = vmatprep.subr.bf16.mxu0 0
        %8463 = vmatpush1.bf16.msra.mxu0 %v8377
        %8464 = vmatprep.subr.bf16.mxu0 0
        %8465 = vmatpush1.bf16.msra.mxu0 %v8378
        %8466 = vmatprep.subr.bf16.mxu0 0
        %8467 = vmatpush1.bf16.msra.mxu0 %v8379
        %8468 = vmatprep.subr.bf16.mxu0 0
        %8469 = vmatpush1.bf16.msra.mxu0 %v8380
        %8470 = vmatprep.subr.bf16.mxu0 0
        %8471 = vmatpush1.bf16.msra.mxu0 %v8381
        %8472 = vmatprep.subr.bf16.mxu0 0
        %8473 = vmatpush1.bf16.msra.mxu0 %v8382
        %8474 = vmatprep.mubr.bf16.mxu0 %v8134
        %8475 = vmatmul.mubr.bf16.gmra.mrb[0].mxu0 %v8130
        %v8476 = vpop.f32.mrb[0].mxu0
        %v8477 = vadd.f32 %v8221, %v8476
        %v8478 = vpop.f32.mrb[0].mxu0
        %v8479 = vpop.f32.mrb[0].mxu0
        %v8480 = vadd.f32 %v8221, %v8479
        %v8481 = vpop.f32.mrb[0].mxu0
        %8482 = vdwg.mxu0
        %8483 = vmatprep.subr.bf16.mxu0 0
        %8484 = vmatpush1.bf16.msra.mxu0 %v8383
        %8485 = vmatprep.subr.bf16.mxu0 0
        %8486 = vmatpush1.bf16.msra.mxu0 %v8384
        %8487 = vmatprep.subr.bf16.mxu0 0
        %8488 = vmatpush1.bf16.msra.mxu0 %v8385
        %8489 = vmatprep.subr.bf16.mxu0 0
        %8490 = vmatpush1.bf16.msra.mxu0 %v8386
        %8491 = vmatprep.subr.bf16.mxu0 0
        %8492 = vmatpush1.bf16.msra.mxu0 %v8387
        %8493 = vmatprep.subr.bf16.mxu0 0
        %8494 = vmatpush1.bf16.msra.mxu0 %v8388
        %8495 = vmatprep.subr.bf16.mxu0 0
        %8496 = vmatpush1.bf16.msra.mxu0 %v8389
        %8497 = vmatprep.subr.bf16.mxu0 0
        %8498 = vmatpush1.bf16.msra.mxu0 %v8390
        %8499 = vmatprep.subr.bf16.mxu0 0
        %8500 = vmatpush1.bf16.msra.mxu0 %v8391
        %8501 = vmatprep.subr.bf16.mxu0 0
        %8502 = vmatpush1.bf16.msra.mxu0 %v8392
        %8503 = vmatprep.subr.bf16.mxu0 0
        %8504 = vmatpush1.bf16.msra.mxu0 %v8393
        %8505 = vmatprep.subr.bf16.mxu0 0
        %8506 = vmatpush1.bf16.msra.mxu0 %v8394
        %8507 = vmatprep.subr.bf16.mxu0 0
        %8508 = vmatpush1.bf16.msra.mxu0 %v8395
        %8509 = vmatprep.subr.bf16.mxu0 0
        %8510 = vmatpush1.bf16.msra.mxu0 %v8396
        %8511 = vmatprep.subr.bf16.mxu0 0
        %8512 = vmatpush1.bf16.msra.mxu0 %v8397
        %8513 = vmatprep.subr.bf16.mxu0 0
        %8514 = vmatpush1.bf16.msra.mxu0 %v8398
        %8515 = vmatprep.mubr.bf16.mxu0 %v8142
        %8516 = vmatmul.mubr.bf16.gmra.mrb[0].mxu0 %v8138
        %v8517 = vpop.f32.mrb[0].mxu0
        %v8518 = vadd.f32 %v8477, %v8517
        %v8519 = vpop.f32.mrb[0].mxu0
        %v8520 = vpop.f32.mrb[0].mxu0
        %v8521 = vadd.f32 %v8480, %v8520
        %v8522 = vpop.f32.mrb[0].mxu0
        %8523 = vdwg.mxu0
        %8524 = vmatprep.subr.bf16.mxu0 0
        %8525 = vmatpush1.bf16.msra.mxu0 %v8399
        %8526 = vmatprep.subr.bf16.mxu0 0
        %8527 = vmatpush1.bf16.msra.mxu0 %v8400
        %8528 = vmatprep.subr.bf16.mxu0 0
        %8529 = vmatpush1.bf16.msra.mxu0 %v8401
        %8530 = vmatprep.subr.bf16.mxu0 0
        %8531 = vmatpush1.bf16.msra.mxu0 %v8402
        %8532 = vmatprep.subr.bf16.mxu0 0
        %8533 = vmatpush1.bf16.msra.mxu0 0
        %8534 = vmatprep.subr.bf16.mxu0 0
        %8535 = vmatpush1.bf16.msra.mxu0 0
        %8536 = vmatprep.subr.bf16.mxu0 0
        %8537 = vmatpush1.bf16.msra.mxu0 0
        %8538 = vmatprep.subr.bf16.mxu0 0
        %8539 = vmatpush1.bf16.msra.mxu0 0
        %8540 = vmatprep.subr.bf16.mxu0 0
        %8541 = vmatpush1.bf16.msra.mxu0 0
        %8542 = vmatprep.subr.bf16.mxu0 0
        %8543 = vmatpush1.bf16.msra.mxu0 0
        %8544 = vmatprep.subr.bf16.mxu0 0
        %8545 = vmatpush1.bf16.msra.mxu0 0
        %8546 = vmatprep.subr.bf16.mxu0 0
        %8547 = vmatpush1.bf16.msra.mxu0 0
        %8548 = vmatprep.subr.bf16.mxu0 0
        %8549 = vmatpush1.bf16.msra.mxu0 0
        %8550 = vmatprep.subr.bf16.mxu0 0
        %8551 = vmatpush1.bf16.msra.mxu0 0
        %8552 = vmatprep.subr.bf16.mxu0 0
        %8553 = vmatpush1.bf16.msra.mxu0 0
        %8554 = vmatprep.subr.bf16.mxu0 0
        %8555 = vmatpush1.bf16.msra.mxu0 0
        %8556 = vmatprep.mubr.bf16.mxu0 0
        %8557 = vmatmul.mubr.bf16.gmra.mrb[0].mxu0 %v8440
        %v8558 = vpop.f32.mrb[0].mxu0
        %v8559 = vadd.f32 %v8518, %v8558
        %v8560 = vpop.f32.mrb[0].mxu0
        %v8561 = vpop.f32.mrb[0].mxu0
        %v8562 = vadd.f32 %v8521, %v8561
        %v8563 = vpop.f32.mrb[0].mxu0
        %8564 = vdwg.mxu0
        %vm8565 = vcmp.ge.f32.partialorder %v8559, 0.0
        %vm8566 = vcmp.ge.f32.partialorder %v8562, 0.0
        %v8567 = vmul.f32 %v8559, 0.01
        %v8568 = vmul.f32 %v8562, 0.01
        %v8569 = vsel %vm8565, %v8559, %v8567
        %v8570 = vsel %vm8566, %v8562, %v8568
        %v8573 = vcombine.high %v8569, %v8569
        %v8574 = vcombine.high %v8570, %v8570
        %8577 = vst [vmem:[#allocation9 + $0x1] sm:$0xf] %v8569
        %8578 = vst [vmem:[#allocation9 + $0x9] sm:$0xf] %v8573
        %8579 = vst [vmem:[#allocation9 + $0x11] sm:$0xf] %v8570
        %8580 = vst [vmem:[#allocation9 + $0x19] sm:$0xf] %v8574
        %8581 = vst [vmem:[#allocation9] sm:$0x1] -3.4028235e+38
        %8582 = vst [vmem:[#allocation9 + $0x8] sm:$0x1] -3.4028235e+38
        %8583 = vst [vmem:[#allocation9 + $0x10] sm:$0x1] -3.4028235e+38
        %8584 = vst [vmem:[#allocation9 + $0x18] sm:$0x1] -3.4028235e+38
        %8585 = vst [vmem:[#allocation9 + $0x5] sm:$0x1] -3.4028235e+38
        %8586 = vst [vmem:[#allocation9 + $0xd] sm:$0x1] -3.4028235e+38
        %8587 = vst [vmem:[#allocation9 + $0x15] sm:$0x1] -3.4028235e+38
        %8588 = vst [vmem:[#allocation9 + $0x1d] sm:$0x1] -3.4028235e+38
        %v8589 = vld [vmem:[#allocation9] sm:$0xf]
        %v8590 = vld [vmem:[#allocation9 + $0x8] sm:$0xf]
        %v8591 = vld [vmem:[#allocation9 + $0x10] sm:$0xf]
        %v8592 = vld [vmem:[#allocation9 + $0x18] sm:$0xf]
        %v8593 = vld [vmem:[#allocation9 + $0x1] sm:$0xf]
        %v8594 = vld [vmem:[#allocation9 + $0x9] sm:$0xf]
        %v8595 = vld [vmem:[#allocation9 + $0x11] sm:$0xf]
        %v8596 = vld [vmem:[#allocation9 + $0x19] sm:$0xf]
        %v8597 = vmax.f32 %v8589, %v8593
        %v8598 = vmax.f32 %v8590, %v8594
        %v8599 = vmax.f32 %v8591, %v8595
        %v8600 = vmax.f32 %v8592, %v8596
        %v8601 = vld [vmem:[#allocation9 + $0x2] sm:$0xf]
        %v8602 = vld [vmem:[#allocation9 + $0xa] sm:$0xf]
        %v8603 = vld [vmem:[#allocation9 + $0x12] sm:$0xf]
        %v8604 = vld [vmem:[#allocation9 + $0x1a] sm:$0xf]
        %v8605 = vmax.f32 %v8597, %v8601
        %v8606 = vmax.f32 %v8598, %v8602
        %v8607 = vmax.f32 %v8599, %v8603
        %v8608 = vmax.f32 %v8600, %v8604
        %v8614 = vunpack.c.l.s4 1983009808
        %v8615 = vunpack.c.0.s8 %v8614
        %v8616 = vlaneseq
        %v8617 = vshrl.u32 %v8616, 7
        %v8618 = vsub.s32 %v8615, %v8617
        %v8619 = vrot.slane %v8605, %v8618
        %v8620 = vcombine.high %v8619, %v8619
        %v8622 = vunpack.c.l.s4 1983009808
        %v8623 = vunpack.c.0.s8 %v8622
        %v8624 = vlaneseq
        %v8625 = vshrl.u32 %v8624, 7
        %v8626 = vsub.s32 %v8623, %v8625
        %v8627 = vrot.slane %v8606, %v8626
        %v8628 = vcombine.high %v8627, %v8627
        %v8630 = vunpack.c.l.s4 1983009808
        %v8631 = vunpack.c.0.s8 %v8630
        %v8632 = vlaneseq
        %v8633 = vshrl.u32 %v8632, 7
        %v8634 = vsub.s32 %v8631, %v8633
        %v8635 = vrot.slane %v8607, %v8634
        %v8636 = vcombine.high %v8635, %v8635
        %v8638 = vunpack.c.l.s4 1983009808
        %v8639 = vunpack.c.0.s8 %v8638
        %v8640 = vlaneseq
        %v8641 = vshrl.u32 %v8640, 7
        %v8642 = vsub.s32 %v8639, %v8641
        %v8643 = vrot.slane %v8608, %v8642
        %v8644 = vcombine.high %v8643, %v8643
        %v8645 = vlaneseq
        %v8646 = vshrl.u32 %v8645, 7
        %v8647 = vsub.s32 0, %v8646
        %v8648 = vrot.slane %v8619, %v8647
        %v8649 = vlaneseq
        %v8650 = vshrl.u32 %v8649, 7
        %v8651 = vsub.s32 0, %v8650
        %v8652 = vrot.slane %v8620, %v8651
        %v8653 = vlaneseq
        %v8654 = vshrl.u32 %v8653, 7
        %v8655 = vsub.s32 0, %v8654
        %v8656 = vrot.slane %v8627, %v8655
        %v8657 = vlaneseq
        %v8658 = vshrl.u32 %v8657, 7
        %v8659 = vsub.s32 0, %v8658
        %v8660 = vrot.slane %v8628, %v8659
        %v8661 = vlaneseq
        %v8662 = vshrl.u32 %v8661, 7
        %v8663 = vsub.s32 0, %v8662
        %v8664 = vrot.slane %v8635, %v8663
        %v8665 = vlaneseq
        %v8666 = vshrl.u32 %v8665, 7
        %v8667 = vsub.s32 0, %v8666
        %v8668 = vrot.slane %v8636, %v8667
        %v8669 = vlaneseq
        %v8670 = vshrl.u32 %v8669, 7
        %v8671 = vsub.s32 0, %v8670
        %v8672 = vrot.slane %v8643, %v8671
        %v8673 = vlaneseq
        %v8674 = vshrl.u32 %v8673, 7
        %v8675 = vsub.s32 0, %v8674
        %v8676 = vrot.slane %v8644, %v8675
        %v8677 = vsel %vm5418, %v8652, %v8648
        %v8678 = vsel %vm5418, %v8660, %v8656
        %v8679 = vsel %vm5418, %v8668, %v8664
        %v8680 = vsel %vm5418, %v8676, %v8672
        %s8685 = scalar_lea.vmem [#allocation10], 2
        %8686 = vst [vmem:[%s8685] sm:$0x3] %v8677
        %8687 = vst [vmem:[%s8685 + $0x2] sm:$0x3] %v8678
        %8688 = vst [vmem:[%s8685 + $0x4] sm:$0x3] %v8679
        %8689 = vst [vmem:[%s8685 + $0x6] sm:$0x3] %v8680
        %8690 = vst [vmem:[#allocation10] sm:$0x3] -3.4028235e+38
        %s8691 = scalar_lea.vmem [#allocation10], 10
        %8692 = vst [vmem:[%s8691] sm:$0x3] -3.4028235e+38
        %v8693 = vld [vmem:[#allocation10] sm:$0x3]
        %v8694 = vld [vmem:[#allocation10 + $0x4] sm:$0x3]
        %v8695 = vld [vmem:[%s8685] sm:$0x3]
        %v8696 = vld [vmem:[%s8685 + $0x4] sm:$0x3]
        %v8697 = vmax.f32 %v8693, %v8695
        %v8698 = vmax.f32 %v8694, %v8696
        %s8699 = scalar_lea.vmem [#allocation10], 4
        %v8700 = vld [vmem:[%s8699] sm:$0x3]
        %v8701 = vld [vmem:[%s8699 + $0x4] sm:$0x3]
        %v8702 = vmax.f32 %v8697, %v8700
        %v8703 = vmax.f32 %v8698, %v8701
        %v8704 = vpack.c.bf16 %v8702, %v8702
        %v8705 = vpack.c.bf16 %v8703, %v8703
        %v8709 = vunpack.c.l.s4 1983009808
        %v8710 = vunpack.c.0.s8 %v8709
        %v8711 = vlaneseq
        %v8712 = vshrl.u32 %v8711, 7
        %v8713 = vsub.s32 %v8710, %v8712
        %v8714 = vrot.slane %v8704, %v8713
        %v8716 = vunpack.c.l.s4 1983009808
        %v8717 = vunpack.c.0.s8 %v8716
        %v8718 = vlaneseq
        %v8719 = vshrl.u32 %v8718, 7
        %v8720 = vsub.s32 %v8717, %v8719
        %v8721 = vrot.slane %v8705, %v8720
        %v8723 = vshrl.u32 %v8714, 16
        %v8725 = vrot.slane %v8723, 7
        %v8726 = vshll.u32 %v8714, 16
        %v8728 = vor.u32 %v8725, %v8726
        %v8730 = vshrl.u32 %v8721, 16
        %v8732 = vrot.slane %v8730, 7
        %v8733 = vshll.u32 %v8721, 16
        %v8735 = vor.u32 %v8732, %v8733
        %s8738 = scalar_lea.vmem [#allocation11], 2
        %vm8739 = vcmask 1041408
        %vm8740 = vsmask.f32 1282
        %vm8741 = vmand %vm8739, %vm8740
        %v8742 = vld [vmem:[%s8738] sm:$0x3]
        %v8743 = vsel %vm8741, %v8728, %v8742
        %8744 = vst [vmem:[%s8738] sm:$0x3] %v8743
        %v8745 = vld [vmem:[%s8738 + $0x2] sm:$0x3]
        %v8746 = vsel %vm8741, %v8735, %v8745
        %8747 = vst [vmem:[%s8738 + $0x2] sm:$0x3] %v8746
        %8748 = vst [vmem:[#allocation11] sm:$0x3] 0
        %s8749 = scalar_lea.vmem [#allocation11], 6
        %8750 = vst [vmem:[%s8749] sm:$0x3] 0
        %vm8751 = vmand %vm7619, %vm364
        %v8752 = vld [vmem:[#allocation11] sm:$0x1]
        %v8753 = vsel %vm8751, 0, %v8752
        %8754 = vst [vmem:[#allocation11] sm:$0x1] %v8753
        %v8755 = vld [vmem:[#allocation11 + $0x2] sm:$0x1]
        %v8756 = vsel %vm8751, 0, %v8755
        %8757 = vst [vmem:[#allocation11 + $0x2] sm:$0x1] %v8756
        %v8758 = vld [vmem:[#allocation11 + $0x4] sm:$0x1]
        %v8759 = vsel %vm8751, 0, %v8758
        %8760 = vst [vmem:[#allocation11 + $0x4] sm:$0x1] %v8759
        %v8761 = vld [vmem:[#allocation11 + $0x6] sm:$0x1]
        %v8762 = vsel %vm8751, 0, %v8761
        %8763 = vst [vmem:[#allocation11 + $0x6] sm:$0x1] %v8762
        %vm8764 = vcmask 1041409
        %vm8765 = vsmask.f32 7942
        %vm8766 = vmand %vm8764, %vm8765
        %v8767 = vld [vmem:[#allocation11] sm:$0x2]
        %v8768 = vsel %vm8766, 0, %v8767
        %8769 = vst [vmem:[#allocation11] sm:$0x2] %v8768
        %v8770 = vld [vmem:[#allocation11 + $0x2] sm:$0x2]
        %v8771 = vsel %vm8766, 0, %v8770
        %8772 = vst [vmem:[#allocation11 + $0x2] sm:$0x2] %v8771
        %v8773 = vld [vmem:[#allocation11 + $0x4] sm:$0x2]
        %v8774 = vsel %vm8766, 0, %v8773
        %8775 = vst [vmem:[#allocation11 + $0x4] sm:$0x2] %v8774
        %v8776 = vld [vmem:[#allocation11 + $0x6] sm:$0x2]
        %v8777 = vsel %vm8766, 0, %v8776
        %8778 = vst [vmem:[#allocation11 + $0x6] sm:$0x2] %v8777
        %v8779 = vld [vmem:[#allocation11] sm:$0x1]
        %v8780 = vld [vmem:[#allocation11 + $0x2] sm:$0x1]
        %v8781 = vld [vmem:[#allocation11] sm:$0x3]
        %v8782 = vld [vmem:[#allocation11 + $0x2] sm:$0x3]
        %v8786 = vunpack.c.l.s4 1966171168
        %v8787 = vunpack.c.0.s8 %v8786
        %v8788 = vlaneseq
        %v8789 = vshrl.u32 %v8788, 7
        %v8790 = vsub.s32 %v8787, %v8789
        %v8791 = vrot.slane %v8781, %v8790
        %v8792 = vcombine.high %v8791, %v8791
        %v8794 = vunpack.c.l.s4 1966171168
        %v8795 = vunpack.c.0.s8 %v8794
        %v8796 = vlaneseq
        %v8797 = vshrl.u32 %v8796, 7
        %v8798 = vsub.s32 %v8795, %v8797
        %v8799 = vrot.slane %v8782, %v8798
        %v8800 = vcombine.high %v8799, %v8799
        %vm8801 = vsmask.f32 1284
        %vm8802 = vmor %vm364, %vm8801
        %vm8803 = vsmask.f32 2312
        %vm8804 = vmor %vm8802, %vm8803
        %vm8805 = vsmask.f32 3340
        %vm8806 = vmor %vm8804, %vm8805
        %vm8807 = vmor %vm8806, %vm365
        %vm8808 = vsmask.f32 5396
        %vm8809 = vmor %vm8807, %vm8808
        %vm8810 = vsmask.f32 6424
        %vm8811 = vmor %vm8809, %vm8810
        %vm8812 = vsmask.f32 7452
        %vm8813 = vmor %vm8811, %vm8812
        %v8815 = vshrl.u32 %v8791, 16
        %v8817 = vrot.slane %v8815, 7
        %v8818 = vrot.slane %v8817, 1
        %v8820 = vshll.u32 %v8792, 16
        %v8822 = vsel %vm8813, %v8818, %v8820
        %v8824 = vshrl.u32 %v8799, 16
        %v8826 = vrot.slane %v8824, 7
        %v8827 = vrot.slane %v8826, 1
        %v8829 = vshll.u32 %v8800, 16
        %v8831 = vsel %vm8813, %v8827, %v8829
        %v8832 = vld [vmem:[#allocation11] sm:$0x2]
        %v8833 = vld [vmem:[#allocation11 + $0x2] sm:$0x2]
        %v8837 = vunpack.c.l.s4 1966171168
        %v8838 = vunpack.c.0.s8 %v8837
        %v8839 = vlaneseq
        %v8840 = vshrl.u32 %v8839, 7
        %v8841 = vsub.s32 %v8838, %v8840
        %v8842 = vrot.slane %v8832, %v8841
        %v8843 = vcombine.high %v8842, %v8842
        %v8845 = vunpack.c.l.s4 1966171168
        %v8846 = vunpack.c.0.s8 %v8845
        %v8847 = vlaneseq
        %v8848 = vshrl.u32 %v8847, 7
        %v8849 = vsub.s32 %v8846, %v8848
        %v8850 = vrot.slane %v8833, %v8849
        %v8851 = vcombine.high %v8850, %v8850
        %v8852 = vld [vmem:[%s8738] sm:$0x1]
        %v8853 = vld [vmem:[%s8738 + $0x2] sm:$0x1]
        %v8854 = vld [vmem:[%s8738] sm:$0x3]
        %v8855 = vld [vmem:[%s8738 + $0x2] sm:$0x3]
        %v8859 = vunpack.c.l.s4 1966171168
        %v8860 = vunpack.c.0.s8 %v8859
        %v8861 = vlaneseq
        %v8862 = vshrl.u32 %v8861, 7
        %v8863 = vsub.s32 %v8860, %v8862
        %v8864 = vrot.slane %v8854, %v8863
        %v8865 = vcombine.high %v8864, %v8864
        %v8867 = vunpack.c.l.s4 1966171168
        %v8868 = vunpack.c.0.s8 %v8867
        %v8869 = vlaneseq
        %v8870 = vshrl.u32 %v8869, 7
        %v8871 = vsub.s32 %v8868, %v8870
        %v8872 = vrot.slane %v8855, %v8871
        %v8873 = vcombine.high %v8872, %v8872
        %v8875 = vshrl.u32 %v8864, 16
        %v8877 = vrot.slane %v8875, 7
        %v8878 = vrot.slane %v8877, 1
        %v8880 = vshll.u32 %v8865, 16
        %v8882 = vsel %vm8813, %v8878, %v8880
        %v8884 = vshrl.u32 %v8872, 16
        %v8886 = vrot.slane %v8884, 7
        %v8887 = vrot.slane %v8886, 1
        %v8889 = vshll.u32 %v8873, 16
        %v8891 = vsel %vm8813, %v8887, %v8889
        %v8892 = vld [vmem:[%s8738] sm:$0x2]
        %v8893 = vld [vmem:[%s8738 + $0x2] sm:$0x2]
        %v8897 = vunpack.c.l.s4 1966171168
        %v8898 = vunpack.c.0.s8 %v8897
        %v8899 = vlaneseq
        %v8900 = vshrl.u32 %v8899, 7
        %v8901 = vsub.s32 %v8898, %v8900
        %v8902 = vrot.slane %v8892, %v8901
        %v8903 = vcombine.high %v8902, %v8902
        %v8905 = vunpack.c.l.s4 1966171168
        %v8906 = vunpack.c.0.s8 %v8905
        %v8907 = vlaneseq
        %v8908 = vshrl.u32 %v8907, 7
        %v8909 = vsub.s32 %v8906, %v8908
        %v8910 = vrot.slane %v8893, %v8909
        %v8911 = vcombine.high %v8910, %v8910
        %s8912 = scalar_lea.vmem [#allocation11], 4
        %v8913 = vld [vmem:[%s8912] sm:$0x1]
        %v8914 = vld [vmem:[%s8912 + $0x2] sm:$0x1]
        %v8915 = vld [vmem:[%s8912] sm:$0x3]
        %v8916 = vld [vmem:[%s8912 + $0x2] sm:$0x3]
        %v8920 = vunpack.c.l.s4 1966171168
        %v8921 = vunpack.c.0.s8 %v8920
        %v8922 = vlaneseq
        %v8923 = vshrl.u32 %v8922, 7
        %v8924 = vsub.s32 %v8921, %v8923
        %v8925 = vrot.slane %v8915, %v8924
        %v8926 = vcombine.high %v8925, %v8925
        %v8928 = vunpack.c.l.s4 1966171168
        %v8929 = vunpack.c.0.s8 %v8928
        %v8930 = vlaneseq
        %v8931 = vshrl.u32 %v8930, 7
        %v8932 = vsub.s32 %v8929, %v8931
        %v8933 = vrot.slane %v8916, %v8932
        %v8934 = vcombine.high %v8933, %v8933
        %v8936 = vshrl.u32 %v8925, 16
        %v8938 = vrot.slane %v8936, 7
        %v8939 = vrot.slane %v8938, 1
        %v8941 = vshll.u32 %v8926, 16
        %v8943 = vsel %vm8813, %v8939, %v8941
        %v8945 = vshrl.u32 %v8933, 16
        %v8947 = vrot.slane %v8945, 7
        %v8948 = vrot.slane %v8947, 1
        %v8950 = vshll.u32 %v8934, 16
        %v8952 = vsel %vm8813, %v8948, %v8950
        %v8953 = vld [vmem:[%s8912] sm:$0x2]
        %v8954 = vld [vmem:[%s8912 + $0x2] sm:$0x2]
        %v8958 = vunpack.c.l.s4 1966171168
        %v8959 = vunpack.c.0.s8 %v8958
        %v8960 = vlaneseq
        %v8961 = vshrl.u32 %v8960, 7
        %v8962 = vsub.s32 %v8959, %v8961
        %v8963 = vrot.slane %v8953, %v8962
        %v8964 = vcombine.high %v8963, %v8963
        %v8966 = vunpack.c.l.s4 1966171168
        %v8967 = vunpack.c.0.s8 %v8966
        %v8968 = vlaneseq
        %v8969 = vshrl.u32 %v8968, 7
        %v8970 = vsub.s32 %v8967, %v8969
        %v8971 = vrot.slane %v8954, %v8970
        %v8972 = vcombine.high %v8971, %v8971
        %v8975 = vcombine.low %v8779, %v8780
        %v8977 = vunpack.c.l.s4 1966171168
        %v8978 = vunpack.c.0.s8 %v8977
        %v8979 = vlaneseq
        %v8980 = vshrl.u32 %v8979, 7
        %v8981 = vsub.s32 %v8978, %v8980
        %v8982 = vrot.slane %v8975, %v8981
        %v8984 = vunpack.c.l.s4 1966171168
        %v8985 = vunpack.c.0.s8 %v8984
        %v8986 = vlaneseq
        %v8987 = vshrl.u32 %v8986, 7
        %v8988 = vsub.s32 %v8985, %v8987
        %v8989 = vrot.slane %v8982, %v8988
        %v8991 = vcombine.low %v8822, %v8831
        %v8993 = vunpack.c.l.s4 1966171168
        %v8994 = vunpack.c.0.s8 %v8993
        %v8995 = vlaneseq
        %v8996 = vshrl.u32 %v8995, 7
        %v8997 = vsub.s32 %v8994, %v8996
        %v8998 = vrot.slane %v8991, %v8997
        %v9000 = vunpack.c.l.s4 1966171168
        %v9001 = vunpack.c.0.s8 %v9000
        %v9002 = vlaneseq
        %v9003 = vshrl.u32 %v9002, 7
        %v9004 = vsub.s32 %v9001, %v9003
        %v9005 = vrot.slane %v8998, %v9004
        %v9007 = vcombine.low %v8843, %v8851
        %v9009 = vunpack.c.l.s4 1966171168
        %v9010 = vunpack.c.0.s8 %v9009
        %v9011 = vlaneseq
        %v9012 = vshrl.u32 %v9011, 7
        %v9013 = vsub.s32 %v9010, %v9012
        %v9014 = vrot.slane %v9007, %v9013
        %v9016 = vunpack.c.l.s4 1966171168
        %v9017 = vunpack.c.0.s8 %v9016
        %v9018 = vlaneseq
        %v9019 = vshrl.u32 %v9018, 7
        %v9020 = vsub.s32 %v9017, %v9019
        %v9021 = vrot.slane %v9014, %v9020
        %v9025 = vcombine.low %v8852, %v8853
        %v9027 = vunpack.c.l.s4 1966171168
        %v9028 = vunpack.c.0.s8 %v9027
        %v9029 = vlaneseq
        %v9030 = vshrl.u32 %v9029, 7
        %v9031 = vsub.s32 %v9028, %v9030
        %v9032 = vrot.slane %v9025, %v9031
        %v9034 = vunpack.c.l.s4 1966171168
        %v9035 = vunpack.c.0.s8 %v9034
        %v9036 = vlaneseq
        %v9037 = vshrl.u32 %v9036, 7
        %v9038 = vsub.s32 %v9035, %v9037
        %v9039 = vrot.slane %v9032, %v9038
        %v9041 = vcombine.low %v8882, %v8891
        %v9043 = vunpack.c.l.s4 1966171168
        %v9044 = vunpack.c.0.s8 %v9043
        %v9045 = vlaneseq
        %v9046 = vshrl.u32 %v9045, 7
        %v9047 = vsub.s32 %v9044, %v9046
        %v9048 = vrot.slane %v9041, %v9047
        %v9050 = vunpack.c.l.s4 1966171168
        %v9051 = vunpack.c.0.s8 %v9050
        %v9052 = vlaneseq
        %v9053 = vshrl.u32 %v9052, 7
        %v9054 = vsub.s32 %v9051, %v9053
        %v9055 = vrot.slane %v9048, %v9054
        %v9057 = vcombine.low %v8903, %v8911
        %v9059 = vunpack.c.l.s4 1966171168
        %v9060 = vunpack.c.0.s8 %v9059
        %v9061 = vlaneseq
        %v9062 = vshrl.u32 %v9061, 7
        %v9063 = vsub.s32 %v9060, %v9062
        %v9064 = vrot.slane %v9057, %v9063
        %v9066 = vunpack.c.l.s4 1966171168
        %v9067 = vunpack.c.0.s8 %v9066
        %v9068 = vlaneseq
        %v9069 = vshrl.u32 %v9068, 7
        %v9070 = vsub.s32 %v9067, %v9069
        %v9071 = vrot.slane %v9064, %v9070
        %v9075 = vcombine.low %v8913, %v8914
        %v9077 = vunpack.c.l.s4 1966171168
        %v9078 = vunpack.c.0.s8 %v9077
        %v9079 = vlaneseq
        %v9080 = vshrl.u32 %v9079, 7
        %v9081 = vsub.s32 %v9078, %v9080
        %v9082 = vrot.slane %v9075, %v9081
        %v9084 = vunpack.c.l.s4 1966171168
        %v9085 = vunpack.c.0.s8 %v9084
        %v9086 = vlaneseq
        %v9087 = vshrl.u32 %v9086, 7
        %v9088 = vsub.s32 %v9085, %v9087
        %v9089 = vrot.slane %v9082, %v9088
        %v9091 = vcombine.low %v8943, %v8952
        %v9093 = vunpack.c.l.s4 1966171168
        %v9094 = vunpack.c.0.s8 %v9093
        %v9095 = vlaneseq
        %v9096 = vshrl.u32 %v9095, 7
        %v9097 = vsub.s32 %v9094, %v9096
        %v9098 = vrot.slane %v9091, %v9097
        %v9100 = vunpack.c.l.s4 1966171168
        %v9101 = vunpack.c.0.s8 %v9100
        %v9102 = vlaneseq
        %v9103 = vshrl.u32 %v9102, 7
        %v9104 = vsub.s32 %v9101, %v9103
        %v9105 = vrot.slane %v9098, %v9104
        %v9107 = vcombine.low %v8964, %v8972
        %v9109 = vunpack.c.l.s4 1966171168
        %v9110 = vunpack.c.0.s8 %v9109
        %v9111 = vlaneseq
        %v9112 = vshrl.u32 %v9111, 7
        %v9113 = vsub.s32 %v9110, %v9112
        %v9114 = vrot.slane %v9107, %v9113
        %v9116 = vunpack.c.l.s4 1966171168
        %v9117 = vunpack.c.0.s8 %v9116
        %v9118 = vlaneseq
        %v9119 = vshrl.u32 %v9118, 7
        %v9120 = vsub.s32 %v9117, %v9119
        %v9121 = vrot.slane %v9114, %v9120
        %v9123 = vld [vmem:[%s7] sm:$0xff]
        %v9124 = vld [vmem:[%s7 + $0x8] sm:$0xff]
        %v9125 = vld [vmem:[%s7 + $0x10] sm:$0xff]
        %v9126 = vld [vmem:[%s7 + $0x18] sm:$0xff]
        %v9127 = vld [vmem:[%s7 + $0x20] sm:$0xff]
        %v9128 = vld [vmem:[%s7 + $0x28] sm:$0xff]
        %v9129 = vld [vmem:[%s7 + $0x30] sm:$0xff]
        %v9130 = vld [vmem:[%s7 + $0x38] sm:$0xff]
        %v9131 = vld [vmem:[%s7 + $0x40] sm:$0xff]
        %v9132 = vld [vmem:[%s7 + $0x48] sm:$0xff]
        %v9133 = vld [vmem:[%s7 + $0x50] sm:$0xff]
        %v9134 = vld [vmem:[%s7 + $0x58] sm:$0xff]
        %v9135 = vld [vmem:[%s7 + $0x60] sm:$0xff]
        %v9136 = vld [vmem:[%s7 + $0x68] sm:$0xff]
        %v9137 = vld [vmem:[%s7 + $0x70] sm:$0xff]
        %v9138 = vld [vmem:[%s7 + $0x78] sm:$0xff]
        %v9139 = vld [vmem:[%s7 + $0x80] sm:$0xff]
        %v9140 = vld [vmem:[%s7 + $0x88] sm:$0xff]
        %v9141 = vld [vmem:[%s7 + $0x90] sm:$0xff]
        %v9142 = vld [vmem:[%s7 + $0x98] sm:$0xff]
        %v9143 = vld [vmem:[%s7 + $0xa0] sm:$0xff]
        %v9144 = vld [vmem:[%s7 + $0xa8] sm:$0xff]
        %v9145 = vld [vmem:[%s7 + $0xb0] sm:$0xff]
        %v9146 = vld [vmem:[%s7 + $0xb8] sm:$0xff]
        %v9147 = vld [vmem:[%s7 + $0xc0] sm:$0xff]
        %v9148 = vld [vmem:[%s7 + $0xc8] sm:$0xff]
        %v9149 = vld [vmem:[%s7 + $0xd0] sm:$0xff]
        %v9150 = vld [vmem:[%s7 + $0xd8] sm:$0xff]
        %v9151 = vld [vmem:[%s7 + $0xe0] sm:$0xff]
        %v9152 = vld [vmem:[%s7 + $0xe8] sm:$0xff]
        %v9153 = vld [vmem:[%s7 + $0xf0] sm:$0xff]
        %v9154 = vld [vmem:[%s7 + $0xf8] sm:$0xff]
        %v9155 = vld [vmem:[%s7 + $0x100] sm:$0xff]
        %v9156 = vld [vmem:[%s7 + $0x108] sm:$0xff]
        %v9157 = vld [vmem:[%s7 + $0x110] sm:$0xff]
        %v9158 = vld [vmem:[%s7 + $0x118] sm:$0xff]
        %v9159 = vld [vmem:[%s7 + $0x120] sm:$0xff]
        %v9160 = vld [vmem:[%s7 + $0x128] sm:$0xff]
        %v9161 = vld [vmem:[%s7 + $0x130] sm:$0xff]
        %v9162 = vld [vmem:[%s7 + $0x138] sm:$0xff]
        %v9163 = vld [vmem:[%s7 + $0x140] sm:$0xff]
        %v9164 = vld [vmem:[%s7 + $0x148] sm:$0xff]
        %v9165 = vld [vmem:[%s7 + $0x150] sm:$0xff]
        %v9166 = vld [vmem:[%s7 + $0x158] sm:$0xff]
        %v9167 = vld [vmem:[%s7 + $0x160] sm:$0xff]
        %v9168 = vld [vmem:[%s7 + $0x168] sm:$0xff]
        %v9169 = vld [vmem:[%s7 + $0x170] sm:$0xff]
        %v9170 = vld [vmem:[%s7 + $0x178] sm:$0xff]
        %v9171 = vld [vmem:[%s7 + $0x180] sm:$0xff]
        %v9172 = vld [vmem:[%s7 + $0x188] sm:$0xff]
        %v9173 = vld [vmem:[%s7 + $0x190] sm:$0xff]
        %v9174 = vld [vmem:[%s7 + $0x198] sm:$0xff]
        %v9175 = vld [vmem:[%s7 + $0x1a0] sm:$0xff]
        %v9176 = vld [vmem:[%s7 + $0x1a8] sm:$0xff]
        %v9177 = vld [vmem:[%s7 + $0x1b0] sm:$0xff]
        %v9178 = vld [vmem:[%s7 + $0x1b8] sm:$0xff]
        %v9179 = vld [vmem:[%s7 + $0x1c0] sm:$0xff]
        %v9180 = vld [vmem:[%s7 + $0x1c8] sm:$0xff]
        %v9181 = vld [vmem:[%s7 + $0x1d0] sm:$0xff]
        %v9182 = vld [vmem:[%s7 + $0x1d8] sm:$0xff]
        %v9183 = vld [vmem:[%s7 + $0x1e0] sm:$0xff]
        %v9184 = vld [vmem:[%s7 + $0x1e8] sm:$0xff]
        %v9185 = vld [vmem:[%s7 + $0x1f0] sm:$0xff]
        %v9186 = vld [vmem:[%s7 + $0x1f8] sm:$0xff]
        %v9187 = vld [vmem:[%s7 + $0x200] sm:$0xff]
        %v9188 = vld [vmem:[%s7 + $0x208] sm:$0xff]
        %v9189 = vld [vmem:[%s7 + $0x210] sm:$0xff]
        %v9190 = vld [vmem:[%s7 + $0x218] sm:$0xff]
        %v9191 = vld [vmem:[%s7 + $0x220] sm:$0xff]
        %v9192 = vld [vmem:[%s7 + $0x228] sm:$0xff]
        %v9193 = vld [vmem:[%s7 + $0x230] sm:$0xff]
        %v9194 = vld [vmem:[%s7 + $0x238] sm:$0xff]
        %v9195 = vld [vmem:[%s7 + $0x240] sm:$0xff]
        %v9196 = vld [vmem:[%s7 + $0x248] sm:$0xff]
        %v9197 = vld [vmem:[%s7 + $0x250] sm:$0xff]
        %v9198 = vld [vmem:[%s7 + $0x258] sm:$0xff]
        %v9199 = vld [vmem:[%s7 + $0x260] sm:$0xff]
        %v9200 = vld [vmem:[%s7 + $0x268] sm:$0xff]
        %v9201 = vld [vmem:[%s7 + $0x270] sm:$0xff]
        %v9202 = vld [vmem:[%s7 + $0x278] sm:$0xff]
        %v9203 = vld [vmem:[%s7 + $0x280] sm:$0xff]
        %v9204 = vld [vmem:[%s7 + $0x288] sm:$0xff]
        %v9205 = vld [vmem:[%s7 + $0x290] sm:$0xff]
        %v9206 = vld [vmem:[%s7 + $0x298] sm:$0xff]
        %v9207 = vld [vmem:[%s7 + $0x2a0] sm:$0xff]
        %v9208 = vld [vmem:[%s7 + $0x2a8] sm:$0xff]
        %v9209 = vld [vmem:[%s7 + $0x2b0] sm:$0xff]
        %v9210 = vld [vmem:[%s7 + $0x2b8] sm:$0xff]
        %v9211 = vld [vmem:[%s7 + $0x2c0] sm:$0xff]
        %v9212 = vld [vmem:[%s7 + $0x2c8] sm:$0xff]
        %v9213 = vld [vmem:[%s7 + $0x2d0] sm:$0xff]
        %v9214 = vld [vmem:[%s7 + $0x2d8] sm:$0xff]
        %v9215 = vld [vmem:[%s7 + $0x2e0] sm:$0xff]
        %v9216 = vld [vmem:[%s7 + $0x2e8] sm:$0xff]
        %v9217 = vld [vmem:[%s7 + $0x2f0] sm:$0xff]
        %v9218 = vld [vmem:[%s7 + $0x2f8] sm:$0xff]
        %v9219 = vld [vmem:[%s7 + $0x300] sm:$0xff]
        %v9220 = vld [vmem:[%s7 + $0x308] sm:$0xff]
        %v9221 = vld [vmem:[%s7 + $0x310] sm:$0xff]
        %v9222 = vld [vmem:[%s7 + $0x318] sm:$0xff]
        %v9223 = vld [vmem:[%s7 + $0x320] sm:$0xff]
        %v9224 = vld [vmem:[%s7 + $0x328] sm:$0xff]
        %v9225 = vld [vmem:[%s7 + $0x330] sm:$0xff]
        %v9226 = vld [vmem:[%s7 + $0x338] sm:$0xff]
        %v9227 = vld [vmem:[%s7 + $0x340] sm:$0xff]
        %v9228 = vld [vmem:[%s7 + $0x348] sm:$0xff]
        %v9229 = vld [vmem:[%s7 + $0x350] sm:$0xff]
        %v9230 = vld [vmem:[%s7 + $0x358] sm:$0xff]
        %v9231 = vld [vmem:[%s7 + $0x360] sm:$0xff]
        %v9232 = vld [vmem:[%s7 + $0x368] sm:$0xff]
        %v9233 = vld [vmem:[%s7 + $0x370] sm:$0xff]
        %v9234 = vld [vmem:[%s7 + $0x378] sm:$0xff]
        %v9235 = vld [vmem:[%s7 + $0x380] sm:$0xff]
        %v9236 = vld [vmem:[%s7 + $0x388] sm:$0xff]
        %v9237 = vld [vmem:[%s7 + $0x390] sm:$0xff]
        %v9238 = vld [vmem:[%s7 + $0x398] sm:$0xff]
        %v9239 = vld [vmem:[%s7 + $0x3a0] sm:$0xff]
        %v9240 = vld [vmem:[%s7 + $0x3a8] sm:$0xff]
        %v9241 = vld [vmem:[%s7 + $0x3b0] sm:$0xff]
        %v9242 = vld [vmem:[%s7 + $0x3b8] sm:$0xff]
        %v9243 = vld [vmem:[%s7 + $0x3c0] sm:$0xff]
        %v9244 = vld [vmem:[%s7 + $0x3c8] sm:$0xff]
        %v9245 = vld [vmem:[%s7 + $0x3d0] sm:$0xff]
        %v9246 = vld [vmem:[%s7 + $0x3d8] sm:$0xff]
        %v9247 = vld [vmem:[%s7 + $0x3e0] sm:$0xff]
        %v9248 = vld [vmem:[%s7 + $0x3e8] sm:$0xff]
        %v9249 = vld [vmem:[%s7 + $0x3f0] sm:$0xff]
        %v9250 = vld [vmem:[%s7 + $0x3f8] sm:$0xff]
        %v9251 = vld [vmem:[%s7 + $0x400] sm:$0xff]
        %v9252 = vld [vmem:[%s7 + $0x408] sm:$0xff]
        %v9253 = vld [vmem:[%s7 + $0x410] sm:$0xff]
        %v9254 = vld [vmem:[%s7 + $0x418] sm:$0xff]
        %v9255 = vld [vmem:[%s7 + $0x420] sm:$0xff]
        %v9256 = vld [vmem:[%s7 + $0x428] sm:$0xff]
        %v9257 = vld [vmem:[%s7 + $0x430] sm:$0xff]
        %v9258 = vld [vmem:[%s7 + $0x438] sm:$0xff]
        %v9259 = vld [vmem:[%s7 + $0x440] sm:$0xff]
        %v9260 = vld [vmem:[%s7 + $0x448] sm:$0xff]
        %v9261 = vld [vmem:[%s7 + $0x450] sm:$0xff]
        %v9262 = vld [vmem:[%s7 + $0x458] sm:$0xff]
        %v9263 = vld [vmem:[%s7 + $0x460] sm:$0xff]
        %v9264 = vld [vmem:[%s7 + $0x468] sm:$0xff]
        %v9265 = vld [vmem:[%s7 + $0x470] sm:$0xff]
        %v9266 = vld [vmem:[%s7 + $0x478] sm:$0xff]
        %v9267 = vld [vmem:[%s8] sm:$0x3]
        %v9269 = vlaneseq
        %v9270 = vshrl.u32 %v9269, 7
        %v9271 = vsub.s32 0, %v9270
        %v9272 = vrot.slane %v9267, %v9271
        %v9273 = vlaneseq
        %v9274 = vshrl.u32 %v9273, 7
        %v9275 = vsub.s32 1, %v9274
        %v9276 = vrot.slane %v9267, %v9275
        %v9423 = vunpack.c.l.b16 %v9123
        %v9424 = vunpack.c.h.b16 %v9123
        %v9425 = vunpack.c.l.b16 %v9124
        %v9426 = vunpack.c.h.b16 %v9124
        %v9427 = vunpack.c.l.b16 %v9125
        %v9428 = vunpack.c.h.b16 %v9125
        %v9429 = vunpack.c.l.b16 %v9126
        %v9430 = vunpack.c.h.b16 %v9126
        %v9431 = vunpack.c.l.b16 %v9127
        %v9432 = vunpack.c.h.b16 %v9127
        %v9433 = vunpack.c.l.b16 %v9128
        %v9434 = vunpack.c.h.b16 %v9128
        %v9435 = vunpack.c.l.b16 %v9129
        %v9436 = vunpack.c.h.b16 %v9129
        %v9437 = vunpack.c.l.b16 %v9130
        %v9438 = vunpack.c.h.b16 %v9130
        %v9439 = vunpack.c.l.b16 %v9131
        %v9440 = vunpack.c.h.b16 %v9131
        %v9441 = vunpack.c.l.b16 %v9132
        %v9442 = vunpack.c.h.b16 %v9132
        %v9443 = vunpack.c.l.b16 %v9133
        %v9444 = vunpack.c.h.b16 %v9133
        %v9445 = vunpack.c.l.b16 %v9134
        %v9446 = vunpack.c.h.b16 %v9134
        %v9447 = vunpack.c.l.b16 %v9135
        %v9448 = vunpack.c.h.b16 %v9135
        %v9449 = vunpack.c.l.b16 %v9136
        %v9450 = vunpack.c.h.b16 %v9136
        %v9451 = vunpack.c.l.b16 %v9137
        %v9452 = vunpack.c.h.b16 %v9137
        %v9453 = vunpack.c.l.b16 %v9138
        %v9454 = vunpack.c.h.b16 %v9138
        %v9455 = vunpack.c.l.b16 %v9139
        %v9456 = vunpack.c.h.b16 %v9139
        %v9457 = vunpack.c.l.b16 %v9140
        %v9458 = vunpack.c.h.b16 %v9140
        %v9459 = vunpack.c.l.b16 %v9141
        %v9460 = vunpack.c.h.b16 %v9141
        %v9461 = vunpack.c.l.b16 %v9142
        %v9462 = vunpack.c.h.b16 %v9142
        %v9463 = vunpack.c.l.b16 %v9143
        %v9464 = vunpack.c.h.b16 %v9143
        %v9465 = vunpack.c.l.b16 %v9144
        %v9466 = vunpack.c.h.b16 %v9144
        %v9467 = vunpack.c.l.b16 %v9145
        %v9468 = vunpack.c.h.b16 %v9145
        %v9469 = vunpack.c.l.b16 %v9146
        %v9470 = vunpack.c.h.b16 %v9146
        %v9471 = vunpack.c.l.b16 %v9147
        %v9472 = vunpack.c.h.b16 %v9147
        %v9473 = vunpack.c.l.b16 %v9148
        %v9474 = vunpack.c.h.b16 %v9148
        %v9475 = vunpack.c.l.b16 %v9149
        %v9476 = vunpack.c.h.b16 %v9149
        %v9477 = vunpack.c.l.b16 %v9150
        %v9478 = vunpack.c.h.b16 %v9150
        %v9479 = vunpack.c.l.b16 %v9151
        %v9480 = vunpack.c.h.b16 %v9151
        %v9481 = vunpack.c.l.b16 %v9152
        %v9482 = vunpack.c.h.b16 %v9152
        %v9483 = vunpack.c.l.b16 %v9153
        %v9484 = vunpack.c.h.b16 %v9153
        %v9485 = vunpack.c.l.b16 %v9154
        %v9486 = vunpack.c.h.b16 %v9154
        %v9487 = vunpack.c.l.b16 %v9155
        %v9488 = vunpack.c.h.b16 %v9155
        %v9489 = vunpack.c.l.b16 %v9156
        %v9490 = vunpack.c.h.b16 %v9156
        %v9491 = vunpack.c.l.b16 %v9157
        %v9492 = vunpack.c.h.b16 %v9157
        %v9493 = vunpack.c.l.b16 %v9158
        %v9494 = vunpack.c.h.b16 %v9158
        %v9495 = vunpack.c.l.b16 %v9159
        %v9496 = vunpack.c.h.b16 %v9159
        %v9497 = vunpack.c.l.b16 %v9160
        %v9498 = vunpack.c.h.b16 %v9160
        %v9499 = vunpack.c.l.b16 %v9161
        %v9500 = vunpack.c.h.b16 %v9161
        %v9501 = vunpack.c.l.b16 %v9162
        %v9502 = vunpack.c.h.b16 %v9162
        %v9503 = vunpack.c.l.b16 %v9163
        %v9504 = vunpack.c.h.b16 %v9163
        %v9505 = vunpack.c.l.b16 %v9164
        %v9506 = vunpack.c.h.b16 %v9164
        %v9507 = vunpack.c.l.b16 %v9165
        %v9508 = vunpack.c.h.b16 %v9165
        %v9509 = vunpack.c.l.b16 %v9166
        %v9510 = vunpack.c.h.b16 %v9166
        %v9511 = vunpack.c.l.b16 %v9167
        %v9512 = vunpack.c.h.b16 %v9167
        %v9513 = vunpack.c.l.b16 %v9168
        %v9514 = vunpack.c.h.b16 %v9168
        %v9515 = vunpack.c.l.b16 %v9169
        %v9516 = vunpack.c.h.b16 %v9169
        %v9517 = vunpack.c.l.b16 %v9170
        %v9518 = vunpack.c.h.b16 %v9170
        %v9519 = vunpack.c.l.b16 %v9171
        %v9520 = vunpack.c.h.b16 %v9171
        %v9521 = vunpack.c.l.b16 %v9172
        %v9522 = vunpack.c.h.b16 %v9172
        %v9523 = vunpack.c.l.b16 %v9173
        %v9524 = vunpack.c.h.b16 %v9173
        %v9525 = vunpack.c.l.b16 %v9174
        %v9526 = vunpack.c.h.b16 %v9174
        %v9527 = vunpack.c.l.b16 %v9175
        %v9528 = vunpack.c.h.b16 %v9175
        %v9529 = vunpack.c.l.b16 %v9176
        %v9530 = vunpack.c.h.b16 %v9176
        %v9531 = vunpack.c.l.b16 %v9177
        %v9532 = vunpack.c.h.b16 %v9177
        %v9533 = vunpack.c.l.b16 %v9178
        %v9534 = vunpack.c.h.b16 %v9178
        %v9535 = vunpack.c.l.b16 %v9179
        %v9536 = vunpack.c.h.b16 %v9179
        %v9537 = vunpack.c.l.b16 %v9180
        %v9538 = vunpack.c.h.b16 %v9180
        %v9539 = vunpack.c.l.b16 %v9181
        %v9540 = vunpack.c.h.b16 %v9181
        %v9541 = vunpack.c.l.b16 %v9182
        %v9542 = vunpack.c.h.b16 %v9182
        %v9543 = vunpack.c.l.b16 %v9183
        %v9544 = vunpack.c.h.b16 %v9183
        %v9545 = vunpack.c.l.b16 %v9184
        %v9546 = vunpack.c.h.b16 %v9184
        %v9547 = vunpack.c.l.b16 %v9185
        %v9548 = vunpack.c.h.b16 %v9185
        %v9549 = vunpack.c.l.b16 %v9186
        %v9550 = vunpack.c.h.b16 %v9186
        %v9551 = vunpack.c.l.b16 %v9187
        %v9552 = vunpack.c.h.b16 %v9187
        %v9553 = vunpack.c.l.b16 %v9188
        %v9554 = vunpack.c.h.b16 %v9188
        %v9555 = vunpack.c.l.b16 %v9189
        %v9556 = vunpack.c.h.b16 %v9189
        %v9557 = vunpack.c.l.b16 %v9190
        %v9558 = vunpack.c.h.b16 %v9190
        %v9559 = vunpack.c.l.b16 %v9191
        %v9560 = vunpack.c.h.b16 %v9191
        %v9561 = vunpack.c.l.b16 %v9192
        %v9562 = vunpack.c.h.b16 %v9192
        %v9563 = vunpack.c.l.b16 %v9193
        %v9564 = vunpack.c.h.b16 %v9193
        %v9565 = vunpack.c.l.b16 %v9194
        %v9566 = vunpack.c.h.b16 %v9194
        %v9567 = vunpack.c.l.b16 %v9195
        %v9568 = vunpack.c.h.b16 %v9195
        %v9569 = vunpack.c.l.b16 %v9196
        %v9570 = vunpack.c.h.b16 %v9196
        %v9571 = vunpack.c.l.b16 %v9197
        %v9572 = vunpack.c.h.b16 %v9197
        %v9573 = vunpack.c.l.b16 %v9198
        %v9574 = vunpack.c.h.b16 %v9198
        %v9575 = vunpack.c.l.b16 %v9199
        %v9576 = vunpack.c.h.b16 %v9199
        %v9577 = vunpack.c.l.b16 %v9200
        %v9578 = vunpack.c.h.b16 %v9200
        %v9579 = vunpack.c.l.b16 %v9201
        %v9580 = vunpack.c.h.b16 %v9201
        %v9581 = vunpack.c.l.b16 %v9202
        %v9582 = vunpack.c.h.b16 %v9202
        %v9583 = vunpack.c.l.b16 %v9203
        %v9584 = vunpack.c.h.b16 %v9203
        %v9585 = vunpack.c.l.b16 %v9204
        %v9586 = vunpack.c.h.b16 %v9204
        %v9587 = vunpack.c.l.b16 %v9205
        %v9588 = vunpack.c.h.b16 %v9205
        %v9589 = vunpack.c.l.b16 %v9206
        %v9590 = vunpack.c.h.b16 %v9206
        %v9591 = vunpack.c.l.b16 %v9207
        %v9592 = vunpack.c.h.b16 %v9207
        %v9593 = vunpack.c.l.b16 %v9208
        %v9594 = vunpack.c.h.b16 %v9208
        %v9595 = vunpack.c.l.b16 %v9209
        %v9596 = vunpack.c.h.b16 %v9209
        %v9597 = vunpack.c.l.b16 %v9210
        %v9598 = vunpack.c.h.b16 %v9210
        %v9599 = vunpack.c.l.b16 %v9211
        %v9600 = vunpack.c.h.b16 %v9211
        %v9601 = vunpack.c.l.b16 %v9212
        %v9602 = vunpack.c.h.b16 %v9212
        %v9603 = vunpack.c.l.b16 %v9213
        %v9604 = vunpack.c.h.b16 %v9213
        %v9605 = vunpack.c.l.b16 %v9214
        %v9606 = vunpack.c.h.b16 %v9214
        %v9607 = vunpack.c.l.b16 %v9215
        %v9608 = vunpack.c.h.b16 %v9215
        %v9609 = vunpack.c.l.b16 %v9216
        %v9610 = vunpack.c.h.b16 %v9216
        %v9611 = vunpack.c.l.b16 %v9217
        %v9612 = vunpack.c.h.b16 %v9217
        %v9613 = vunpack.c.l.b16 %v9218
        %v9614 = vunpack.c.h.b16 %v9218
        %v9615 = vunpack.c.l.b16 %v9219
        %v9616 = vunpack.c.h.b16 %v9219
        %v9617 = vunpack.c.l.b16 %v9220
        %v9618 = vunpack.c.h.b16 %v9220
        %v9619 = vunpack.c.l.b16 %v9221
        %v9620 = vunpack.c.h.b16 %v9221
        %v9621 = vunpack.c.l.b16 %v9222
        %v9622 = vunpack.c.h.b16 %v9222
        %v9623 = vunpack.c.l.b16 %v9223
        %v9624 = vunpack.c.h.b16 %v9223
        %v9625 = vunpack.c.l.b16 %v9224
        %v9626 = vunpack.c.h.b16 %v9224
        %v9627 = vunpack.c.l.b16 %v9225
        %v9628 = vunpack.c.h.b16 %v9225
        %v9629 = vunpack.c.l.b16 %v9226
        %v9630 = vunpack.c.h.b16 %v9226
        %v9631 = vunpack.c.l.b16 %v9227
        %v9632 = vunpack.c.h.b16 %v9227
        %v9633 = vunpack.c.l.b16 %v9228
        %v9634 = vunpack.c.h.b16 %v9228
        %v9635 = vunpack.c.l.b16 %v9229
        %v9636 = vunpack.c.h.b16 %v9229
        %v9637 = vunpack.c.l.b16 %v9230
        %v9638 = vunpack.c.h.b16 %v9230
        %v9639 = vunpack.c.l.b16 %v9231
        %v9640 = vunpack.c.h.b16 %v9231
        %v9641 = vunpack.c.l.b16 %v9232
        %v9642 = vunpack.c.h.b16 %v9232
        %v9643 = vunpack.c.l.b16 %v9233
        %v9644 = vunpack.c.h.b16 %v9233
        %v9645 = vunpack.c.l.b16 %v9234
        %v9646 = vunpack.c.h.b16 %v9234
        %v9647 = vunpack.c.l.b16 %v9235
        %v9648 = vunpack.c.h.b16 %v9235
        %v9649 = vunpack.c.l.b16 %v9236
        %v9650 = vunpack.c.h.b16 %v9236
        %v9651 = vunpack.c.l.b16 %v9237
        %v9652 = vunpack.c.h.b16 %v9237
        %v9653 = vunpack.c.l.b16 %v9238
        %v9654 = vunpack.c.h.b16 %v9238
        %v9655 = vunpack.c.l.b16 %v9239
        %v9656 = vunpack.c.h.b16 %v9239
        %v9657 = vunpack.c.l.b16 %v9240
        %v9658 = vunpack.c.h.b16 %v9240
        %v9659 = vunpack.c.l.b16 %v9241
        %v9660 = vunpack.c.h.b16 %v9241
        %v9661 = vunpack.c.l.b16 %v9242
        %v9662 = vunpack.c.h.b16 %v9242
        %v9663 = vunpack.c.l.b16 %v9243
        %v9664 = vunpack.c.h.b16 %v9243
        %v9665 = vunpack.c.l.b16 %v9244
        %v9666 = vunpack.c.h.b16 %v9244
        %v9667 = vunpack.c.l.b16 %v9245
        %v9668 = vunpack.c.h.b16 %v9245
        %v9669 = vunpack.c.l.b16 %v9246
        %v9670 = vunpack.c.h.b16 %v9246
        %v9671 = vunpack.c.l.b16 %v9247
        %v9672 = vunpack.c.h.b16 %v9247
        %v9673 = vunpack.c.l.b16 %v9248
        %v9674 = vunpack.c.h.b16 %v9248
        %v9675 = vunpack.c.l.b16 %v9249
        %v9676 = vunpack.c.h.b16 %v9249
        %v9677 = vunpack.c.l.b16 %v9250
        %v9678 = vunpack.c.h.b16 %v9250
        %v9679 = vunpack.c.l.b16 %v9251
        %v9680 = vunpack.c.h.b16 %v9251
        %v9681 = vunpack.c.l.b16 %v9252
        %v9682 = vunpack.c.h.b16 %v9252
        %v9683 = vunpack.c.l.b16 %v9253
        %v9684 = vunpack.c.h.b16 %v9253
        %v9685 = vunpack.c.l.b16 %v9254
        %v9686 = vunpack.c.h.b16 %v9254
        %v9687 = vunpack.c.l.b16 %v9255
        %v9688 = vunpack.c.h.b16 %v9255
        %v9689 = vunpack.c.l.b16 %v9256
        %v9690 = vunpack.c.h.b16 %v9256
        %v9691 = vunpack.c.l.b16 %v9257
        %v9692 = vunpack.c.h.b16 %v9257
        %v9693 = vunpack.c.l.b16 %v9258
        %v9694 = vunpack.c.h.b16 %v9258
        %v9695 = vunpack.c.l.b16 %v9259
        %v9696 = vunpack.c.h.b16 %v9259
        %v9697 = vunpack.c.l.b16 %v9260
        %v9698 = vunpack.c.h.b16 %v9260
        %v9699 = vunpack.c.l.b16 %v9261
        %v9700 = vunpack.c.h.b16 %v9261
        %v9701 = vunpack.c.l.b16 %v9262
        %v9702 = vunpack.c.h.b16 %v9262
        %v9703 = vunpack.c.l.b16 %v9263
        %v9704 = vunpack.c.h.b16 %v9263
        %v9705 = vunpack.c.l.b16 %v9264
        %v9706 = vunpack.c.h.b16 %v9264
        %v9707 = vunpack.c.l.b16 %v9265
        %v9708 = vunpack.c.h.b16 %v9265
        %v9709 = vunpack.c.l.b16 %v9266
        %v9710 = vunpack.c.h.b16 %v9266
        %v9711 = vpack.c.b16 %v9425, %v9423
        %v9712 = vpack.c.b16 %v9426, %v9424
        %v9713 = vpack.c.b16 %v9429, %v9427
        %v9714 = vpack.c.b16 %v9430, %v9428
        %v9715 = vpack.c.b16 %v9433, %v9431
        %v9716 = vpack.c.b16 %v9434, %v9432
        %v9717 = vpack.c.b16 %v9437, %v9435
        %v9718 = vpack.c.b16 %v9438, %v9436
        %v9719 = vpack.c.b16 %v9441, %v9439
        %v9720 = vpack.c.b16 %v9442, %v9440
        %v9721 = vpack.c.b16 %v9445, %v9443
        %v9722 = vpack.c.b16 %v9446, %v9444
        %v9723 = vpack.c.b16 %v9449, %v9447
        %v9724 = vpack.c.b16 %v9450, %v9448
        %v9725 = vpack.c.b16 %v9453, %v9451
        %v9726 = vpack.c.b16 %v9454, %v9452
        %v9727 = vpack.c.b16 %v9457, %v9455
        %v9728 = vpack.c.b16 %v9458, %v9456
        %v9729 = vpack.c.b16 %v9461, %v9459
        %v9730 = vpack.c.b16 %v9462, %v9460
        %v9731 = vpack.c.b16 %v9465, %v9463
        %v9732 = vpack.c.b16 %v9466, %v9464
        %v9733 = vpack.c.b16 %v9469, %v9467
        %v9734 = vpack.c.b16 %v9470, %v9468
        %v9735 = vpack.c.b16 %v9473, %v9471
        %v9736 = vpack.c.b16 %v9474, %v9472
        %v9737 = vpack.c.b16 %v9477, %v9475
        %v9738 = vpack.c.b16 %v9478, %v9476
        %v9739 = vpack.c.b16 %v9481, %v9479
        %v9740 = vpack.c.b16 %v9482, %v9480
        %v9741 = vpack.c.b16 %v9485, %v9483
        %v9742 = vpack.c.b16 %v9486, %v9484
        %v9743 = vpack.c.b16 %v9489, %v9487
        %v9744 = vpack.c.b16 %v9490, %v9488
        %v9745 = vpack.c.b16 %v9493, %v9491
        %v9746 = vpack.c.b16 %v9494, %v9492
        %v9747 = vpack.c.b16 %v9497, %v9495
        %v9748 = vpack.c.b16 %v9498, %v9496
        %v9749 = vpack.c.b16 %v9501, %v9499
        %v9750 = vpack.c.b16 %v9502, %v9500
        %v9751 = vpack.c.b16 %v9505, %v9503
        %v9752 = vpack.c.b16 %v9506, %v9504
        %v9753 = vpack.c.b16 %v9509, %v9507
        %v9754 = vpack.c.b16 %v9510, %v9508
        %v9755 = vpack.c.b16 %v9513, %v9511
        %v9756 = vpack.c.b16 %v9514, %v9512
        %v9757 = vpack.c.b16 %v9517, %v9515
        %v9758 = vpack.c.b16 %v9518, %v9516
        %v9759 = vpack.c.b16 %v9521, %v9519
        %v9760 = vpack.c.b16 %v9522, %v9520
        %v9761 = vpack.c.b16 %v9525, %v9523
        %v9762 = vpack.c.b16 %v9526, %v9524
        %v9763 = vpack.c.b16 %v9529, %v9527
        %v9764 = vpack.c.b16 %v9530, %v9528
        %v9765 = vpack.c.b16 %v9533, %v9531
        %v9766 = vpack.c.b16 %v9534, %v9532
        %v9767 = vpack.c.b16 %v9537, %v9535
        %v9768 = vpack.c.b16 %v9538, %v9536
        %v9769 = vpack.c.b16 %v9541, %v9539
        %v9770 = vpack.c.b16 %v9542, %v9540
        %v9771 = vpack.c.b16 %v9545, %v9543
        %v9772 = vpack.c.b16 %v9546, %v9544
        %v9773 = vpack.c.b16 %v9549, %v9547
        %v9774 = vpack.c.b16 %v9550, %v9548
        %v9775 = vpack.c.b16 %v9553, %v9551
        %v9776 = vpack.c.b16 %v9554, %v9552
        %v9777 = vpack.c.b16 %v9557, %v9555
        %v9778 = vpack.c.b16 %v9558, %v9556
        %v9779 = vpack.c.b16 %v9561, %v9559
        %v9780 = vpack.c.b16 %v9562, %v9560
        %v9781 = vpack.c.b16 %v9565, %v9563
        %v9782 = vpack.c.b16 %v9566, %v9564
        %v9783 = vpack.c.b16 %v9569, %v9567
        %v9784 = vpack.c.b16 %v9570, %v9568
        %v9785 = vpack.c.b16 %v9573, %v9571
        %v9786 = vpack.c.b16 %v9574, %v9572
        %v9787 = vpack.c.b16 %v9577, %v9575
        %v9788 = vpack.c.b16 %v9578, %v9576
        %v9789 = vpack.c.b16 %v9581, %v9579
        %v9790 = vpack.c.b16 %v9582, %v9580
        %v9791 = vpack.c.b16 %v9585, %v9583
        %v9792 = vpack.c.b16 %v9586, %v9584
        %v9793 = vpack.c.b16 %v9589, %v9587
        %v9794 = vpack.c.b16 %v9590, %v9588
        %v9795 = vpack.c.b16 %v9593, %v9591
        %v9796 = vpack.c.b16 %v9594, %v9592
        %v9797 = vpack.c.b16 %v9597, %v9595
        %v9798 = vpack.c.b16 %v9598, %v9596
        %v9799 = vpack.c.b16 %v9601, %v9599
        %v9800 = vpack.c.b16 %v9602, %v9600
        %v9801 = vpack.c.b16 %v9605, %v9603
        %v9802 = vpack.c.b16 %v9606, %v9604
        %v9803 = vpack.c.b16 %v9609, %v9607
        %v9804 = vpack.c.b16 %v9610, %v9608
        %v9805 = vpack.c.b16 %v9613, %v9611
        %v9806 = vpack.c.b16 %v9614, %v9612
        %v9807 = vpack.c.b16 %v9617, %v9615
        %v9808 = vpack.c.b16 %v9618, %v9616
        %v9809 = vpack.c.b16 %v9621, %v9619
        %v9810 = vpack.c.b16 %v9622, %v9620
        %v9811 = vpack.c.b16 %v9625, %v9623
        %v9812 = vpack.c.b16 %v9626, %v9624
        %v9813 = vpack.c.b16 %v9629, %v9627
        %v9814 = vpack.c.b16 %v9630, %v9628
        %v9815 = vpack.c.b16 %v9633, %v9631
        %v9816 = vpack.c.b16 %v9634, %v9632
        %v9817 = vpack.c.b16 %v9637, %v9635
        %v9818 = vpack.c.b16 %v9638, %v9636
        %v9819 = vpack.c.b16 %v9641, %v9639
        %v9820 = vpack.c.b16 %v9642, %v9640
        %v9821 = vpack.c.b16 %v9645, %v9643
        %v9822 = vpack.c.b16 %v9646, %v9644
        %v9823 = vpack.c.b16 %v9649, %v9647
        %v9824 = vpack.c.b16 %v9650, %v9648
        %v9825 = vpack.c.b16 %v9653, %v9651
        %v9826 = vpack.c.b16 %v9654, %v9652
        %v9827 = vpack.c.b16 %v9657, %v9655
        %v9828 = vpack.c.b16 %v9658, %v9656
        %v9829 = vpack.c.b16 %v9661, %v9659
        %v9830 = vpack.c.b16 %v9662, %v9660
        %v9831 = vpack.c.b16 %v9665, %v9663
        %v9832 = vpack.c.b16 %v9666, %v9664
        %v9833 = vpack.c.b16 %v9669, %v9667
        %v9834 = vpack.c.b16 %v9670, %v9668
        %v9835 = vpack.c.b16 %v9673, %v9671
        %v9836 = vpack.c.b16 %v9674, %v9672
        %v9837 = vpack.c.b16 %v9677, %v9675
        %v9838 = vpack.c.b16 %v9678, %v9676
        %v9839 = vpack.c.b16 %v9681, %v9679
        %v9840 = vpack.c.b16 %v9682, %v9680
        %v9841 = vpack.c.b16 %v9685, %v9683
        %v9842 = vpack.c.b16 %v9686, %v9684
        %v9843 = vpack.c.b16 %v9689, %v9687
        %v9844 = vpack.c.b16 %v9690, %v9688
        %v9845 = vpack.c.b16 %v9693, %v9691
        %v9846 = vpack.c.b16 %v9694, %v9692
        %v9847 = vpack.c.b16 %v9697, %v9695
        %v9848 = vpack.c.b16 %v9698, %v9696
        %v9849 = vpack.c.b16 %v9701, %v9699
        %v9850 = vpack.c.b16 %v9702, %v9700
        %v9851 = vpack.c.b16 %v9705, %v9703
        %v9852 = vpack.c.b16 %v9706, %v9704
        %v9853 = vpack.c.b16 %v9709, %v9707
        %v9854 = vpack.c.b16 %v9710, %v9708
        %9999 = vmatprep.subr.bf16.mxu0 %v9712
        %10000 = vmatpush1.bf16.msra.mxu0 %v9711
        %10001 = vmatprep.subr.bf16.mxu0 %v9714
        %10002 = vmatpush1.bf16.msra.mxu0 %v9713
        %10003 = vmatprep.subr.bf16.mxu0 %v9716
        %10004 = vmatpush1.bf16.msra.mxu0 %v9715
        %10005 = vmatprep.subr.bf16.mxu0 %v9718
        %10006 = vmatpush1.bf16.msra.mxu0 %v9717
        %10007 = vmatprep.subr.bf16.mxu0 %v9720
        %10008 = vmatpush1.bf16.msra.mxu0 %v9719
        %10009 = vmatprep.subr.bf16.mxu0 %v9722
        %10010 = vmatpush1.bf16.msra.mxu0 %v9721
        %10011 = vmatprep.subr.bf16.mxu0 %v9724
        %10012 = vmatpush1.bf16.msra.mxu0 %v9723
        %10013 = vmatprep.subr.bf16.mxu0 %v9726
        %10014 = vmatpush1.bf16.msra.mxu0 %v9725
        %10015 = vmatprep.subr.bf16.mxu0 %v9728
        %10016 = vmatpush1.bf16.msra.mxu0 %v9727
        %10017 = vmatprep.subr.bf16.mxu0 %v9730
        %10018 = vmatpush1.bf16.msra.mxu0 %v9729
        %10019 = vmatprep.subr.bf16.mxu0 %v9732
        %10020 = vmatpush1.bf16.msra.mxu0 %v9731
        %10021 = vmatprep.subr.bf16.mxu0 %v9734
        %10022 = vmatpush1.bf16.msra.mxu0 %v9733
        %10023 = vmatprep.subr.bf16.mxu0 %v9736
        %10024 = vmatpush1.bf16.msra.mxu0 %v9735
        %10025 = vmatprep.subr.bf16.mxu0 %v9738
        %10026 = vmatpush1.bf16.msra.mxu0 %v9737
        %10027 = vmatprep.subr.bf16.mxu0 %v9740
        %10028 = vmatpush1.bf16.msra.mxu0 %v9739
        %10029 = vmatprep.subr.bf16.mxu0 %v9742
        %10030 = vmatpush1.bf16.msra.mxu0 %v9741
        %10031 = vmatprep.mubr.bf16.mxu0 %v9005
        %10032 = vmatmul.mubr.bf16.gmra.mrb[0].mxu0 %v8989
        %v10033 = vpop.f32.mrb[0].mxu0
        %v10034 = vadd.f32 %v9272, %v10033
        %v10035 = vpop.f32.mrb[0].mxu0
        %v10036 = vadd.f32 %v9276, %v10035
        %v10037 = vpop.f32.mrb[0].mxu0
        %v10038 = vpop.f32.mrb[0].mxu0
        %10039 = vdwg.mxu0
        %10040 = vmatprep.subr.bf16.mxu0 %v9744
        %10041 = vmatpush1.bf16.msra.mxu0 %v9743
        %10042 = vmatprep.subr.bf16.mxu0 %v9746
        %10043 = vmatpush1.bf16.msra.mxu0 %v9745
        %10044 = vmatprep.subr.bf16.mxu0 %v9748
        %10045 = vmatpush1.bf16.msra.mxu0 %v9747
        %10046 = vmatprep.subr.bf16.mxu0 %v9750
        %10047 = vmatpush1.bf16.msra.mxu0 %v9749
        %10048 = vmatprep.subr.bf16.mxu0 %v9752
        %10049 = vmatpush1.bf16.msra.mxu0 %v9751
        %10050 = vmatprep.subr.bf16.mxu0 %v9754
        %10051 = vmatpush1.bf16.msra.mxu0 %v9753
        %10052 = vmatprep.subr.bf16.mxu0 %v9756
        %10053 = vmatpush1.bf16.msra.mxu0 %v9755
        %10054 = vmatprep.subr.bf16.mxu0 %v9758
        %10055 = vmatpush1.bf16.msra.mxu0 %v9757
        %10056 = vmatprep.subr.bf16.mxu0 %v9760
        %10057 = vmatpush1.bf16.msra.mxu0 %v9759
        %10058 = vmatprep.subr.bf16.mxu0 %v9762
        %10059 = vmatpush1.bf16.msra.mxu0 %v9761
        %10060 = vmatprep.subr.bf16.mxu0 %v9764
        %10061 = vmatpush1.bf16.msra.mxu0 %v9763
        %10062 = vmatprep.subr.bf16.mxu0 %v9766
        %10063 = vmatpush1.bf16.msra.mxu0 %v9765
        %10064 = vmatprep.subr.bf16.mxu0 %v9768
        %10065 = vmatpush1.bf16.msra.mxu0 %v9767
        %10066 = vmatprep.subr.bf16.mxu0 %v9770
        %10067 = vmatpush1.bf16.msra.mxu0 %v9769
        %10068 = vmatprep.subr.bf16.mxu0 %v9772
        %10069 = vmatpush1.bf16.msra.mxu0 %v9771
        %10070 = vmatprep.subr.bf16.mxu0 %v9774
        %10071 = vmatpush1.bf16.msra.mxu0 %v9773
        %10072 = vmatprep.mubr.bf16.mxu0 %v9039
        %10073 = vmatmul.mubr.bf16.gmra.mrb[0].mxu0 %v9021
        %v10074 = vpop.f32.mrb[0].mxu0
        %v10075 = vadd.f32 %v10034, %v10074
        %v10076 = vpop.f32.mrb[0].mxu0
        %v10077 = vadd.f32 %v10036, %v10076
        %v10078 = vpop.f32.mrb[0].mxu0
        %v10079 = vpop.f32.mrb[0].mxu0
        %10080 = vdwg.mxu0
        %10081 = vmatprep.subr.bf16.mxu0 %v9776
        %10082 = vmatpush1.bf16.msra.mxu0 %v9775
        %10083 = vmatprep.subr.bf16.mxu0 %v9778
        %10084 = vmatpush1.bf16.msra.mxu0 %v9777
        %10085 = vmatprep.subr.bf16.mxu0 %v9780
        %10086 = vmatpush1.bf16.msra.mxu0 %v9779
        %10087 = vmatprep.subr.bf16.mxu0 %v9782
        %10088 = vmatpush1.bf16.msra.mxu0 %v9781
        %10089 = vmatprep.subr.bf16.mxu0 %v9784
        %10090 = vmatpush1.bf16.msra.mxu0 %v9783
        %10091 = vmatprep.subr.bf16.mxu0 %v9786
        %10092 = vmatpush1.bf16.msra.mxu0 %v9785
        %10093 = vmatprep.subr.bf16.mxu0 %v9788
        %10094 = vmatpush1.bf16.msra.mxu0 %v9787
        %10095 = vmatprep.subr.bf16.mxu0 %v9790
        %10096 = vmatpush1.bf16.msra.mxu0 %v9789
        %10097 = vmatprep.subr.bf16.mxu0 %v9792
        %10098 = vmatpush1.bf16.msra.mxu0 %v9791
        %10099 = vmatprep.subr.bf16.mxu0 %v9794
        %10100 = vmatpush1.bf16.msra.mxu0 %v9793
        %10101 = vmatprep.subr.bf16.mxu0 %v9796
        %10102 = vmatpush1.bf16.msra.mxu0 %v9795
        %10103 = vmatprep.subr.bf16.mxu0 %v9798
        %10104 = vmatpush1.bf16.msra.mxu0 %v9797
        %10105 = vmatprep.subr.bf16.mxu0 %v9800
        %10106 = vmatpush1.bf16.msra.mxu0 %v9799
        %10107 = vmatprep.subr.bf16.mxu0 %v9802
        %10108 = vmatpush1.bf16.msra.mxu0 %v9801
        %10109 = vmatprep.subr.bf16.mxu0 %v9804
        %10110 = vmatpush1.bf16.msra.mxu0 %v9803
        %10111 = vmatprep.subr.bf16.mxu0 %v9806
        %10112 = vmatpush1.bf16.msra.mxu0 %v9805
        %10113 = vmatprep.mubr.bf16.mxu0 %v9071
        %10114 = vmatmul.mubr.bf16.gmra.mrb[0].mxu0 %v9055
        %v10115 = vpop.f32.mrb[0].mxu0
        %v10116 = vadd.f32 %v10075, %v10115
        %v10117 = vpop.f32.mrb[0].mxu0
        %v10118 = vadd.f32 %v10077, %v10117
        %v10119 = vpop.f32.mrb[0].mxu0
        %v10120 = vpop.f32.mrb[0].mxu0
        %10121 = vdwg.mxu0
        %10122 = vmatprep.subr.bf16.mxu0 %v9808
        %10123 = vmatpush1.bf16.msra.mxu0 %v9807
        %10124 = vmatprep.subr.bf16.mxu0 %v9810
        %10125 = vmatpush1.bf16.msra.mxu0 %v9809
        %10126 = vmatprep.subr.bf16.mxu0 %v9812
        %10127 = vmatpush1.bf16.msra.mxu0 %v9811
        %10128 = vmatprep.subr.bf16.mxu0 %v9814
        %10129 = vmatpush1.bf16.msra.mxu0 %v9813
        %10130 = vmatprep.subr.bf16.mxu0 %v9816
        %10131 = vmatpush1.bf16.msra.mxu0 %v9815
        %10132 = vmatprep.subr.bf16.mxu0 %v9818
        %10133 = vmatpush1.bf16.msra.mxu0 %v9817
        %10134 = vmatprep.subr.bf16.mxu0 %v9820
        %10135 = vmatpush1.bf16.msra.mxu0 %v9819
        %10136 = vmatprep.subr.bf16.mxu0 %v9822
        %10137 = vmatpush1.bf16.msra.mxu0 %v9821
        %10138 = vmatprep.subr.bf16.mxu0 %v9824
        %10139 = vmatpush1.bf16.msra.mxu0 %v9823
        %10140 = vmatprep.subr.bf16.mxu0 %v9826
        %10141 = vmatpush1.bf16.msra.mxu0 %v9825
        %10142 = vmatprep.subr.bf16.mxu0 %v9828
        %10143 = vmatpush1.bf16.msra.mxu0 %v9827
        %10144 = vmatprep.subr.bf16.mxu0 %v9830
        %10145 = vmatpush1.bf16.msra.mxu0 %v9829
        %10146 = vmatprep.subr.bf16.mxu0 %v9832
        %10147 = vmatpush1.bf16.msra.mxu0 %v9831
        %10148 = vmatprep.subr.bf16.mxu0 %v9834
        %10149 = vmatpush1.bf16.msra.mxu0 %v9833
        %10150 = vmatprep.subr.bf16.mxu0 %v9836
        %10151 = vmatpush1.bf16.msra.mxu0 %v9835
        %10152 = vmatprep.subr.bf16.mxu0 %v9838
        %10153 = vmatpush1.bf16.msra.mxu0 %v9837
        %10154 = vmatprep.mubr.bf16.mxu0 %v9105
        %10155 = vmatmul.mubr.bf16.gmra.mrb[0].mxu0 %v9089
        %v10156 = vpop.f32.mrb[0].mxu0
        %v10157 = vadd.f32 %v10116, %v10156
        %v10158 = vpop.f32.mrb[0].mxu0
        %v10159 = vadd.f32 %v10118, %v10158
        %v10160 = vpop.f32.mrb[0].mxu0
        %v10161 = vpop.f32.mrb[0].mxu0
        %10162 = vdwg.mxu0
        %10163 = vmatprep.subr.bf16.mxu0 %v9840
        %10164 = vmatpush1.bf16.msra.mxu0 %v9839
        %10165 = vmatprep.subr.bf16.mxu0 %v9842
        %10166 = vmatpush1.bf16.msra.mxu0 %v9841
        %10167 = vmatprep.subr.bf16.mxu0 %v9844
        %10168 = vmatpush1.bf16.msra.mxu0 %v9843
        %10169 = vmatprep.subr.bf16.mxu0 %v9846
        %10170 = vmatpush1.bf16.msra.mxu0 %v9845
        %10171 = vmatprep.subr.bf16.mxu0 %v9848
        %10172 = vmatpush1.bf16.msra.mxu0 %v9847
        %10173 = vmatprep.subr.bf16.mxu0 %v9850
        %10174 = vmatpush1.bf16.msra.mxu0 %v9849
        %10175 = vmatprep.subr.bf16.mxu0 %v9852
        %10176 = vmatpush1.bf16.msra.mxu0 %v9851
        %10177 = vmatprep.subr.bf16.mxu0 %v9854
        %10178 = vmatpush1.bf16.msra.mxu0 %v9853
        %10179 = vmatprep.subr.bf16.mxu0 0
        %10180 = vmatpush1.bf16.msra.mxu0 0
        %10181 = vmatprep.subr.bf16.mxu0 0
        %10182 = vmatpush1.bf16.msra.mxu0 0
        %10183 = vmatprep.subr.bf16.mxu0 0
        %10184 = vmatpush1.bf16.msra.mxu0 0
        %10185 = vmatprep.subr.bf16.mxu0 0
        %10186 = vmatpush1.bf16.msra.mxu0 0
        %10187 = vmatprep.subr.bf16.mxu0 0
        %10188 = vmatpush1.bf16.msra.mxu0 0
        %10189 = vmatprep.subr.bf16.mxu0 0
        %10190 = vmatpush1.bf16.msra.mxu0 0
        %10191 = vmatprep.subr.bf16.mxu0 0
        %10192 = vmatpush1.bf16.msra.mxu0 0
        %10193 = vmatprep.subr.bf16.mxu0 0
        %10194 = vmatpush1.bf16.msra.mxu0 0
        %10195 = vmatprep.mubr.bf16.mxu0 0
        %10196 = vmatmul.mubr.bf16.gmra.mrb[0].mxu0 %v9121
        %v10197 = vpop.f32.mrb[0].mxu0
        %v10198 = vadd.f32 %v10157, %v10197
        %v10199 = vpop.f32.mrb[0].mxu0
        %v10200 = vadd.f32 %v10159, %v10199
        %v10201 = vpop.f32.mrb[0].mxu0
        %v10202 = vpop.f32.mrb[0].mxu0
        %10203 = vdwg.mxu0
        %vm10204 = vcmp.ge.f32.partialorder %v10198, 0.0
        %vm10205 = vcmp.ge.f32.partialorder %v10200, 0.0
        %v10206 = vmul.f32 %v10198, 0.01
        %v10207 = vmul.f32 %v10200, 0.01
        %v10208 = vsel %vm10204, %v10198, %v10206
        %v10209 = vsel %vm10205, %v10200, %v10207
        %v10212 = vcombine.low %v10208, %v10209
        %v10214 = vunpack.c.l.s4 1983009808
        %v10215 = vunpack.c.0.s8 %v10214
        %v10216 = vlaneseq
        %v10217 = vshrl.u32 %v10216, 7
        %v10218 = vsub.s32 %v10215, %v10217
        %v10219 = vrot.slane %v10212, %v10218
        %v10220 = vcombine.high %v10219, %v10219
        %10223 = vst [vmem:[%s325] sm:$0xf] %v10219
        %10224 = vst [vmem:[%s325 + $0x4] sm:$0xf] %v10220
        %s10225 = sand.u32 %s225, 1
        %s10226 = scalar_lea.sflag [#allocation13], %s10225
        %s10227 = sand.u32 %s225, 1
        %s10228 = smul.addr %s10227, 8
        %s10229 = scalar_lea.vmem [#allocation12], %s10228
        // Predicated region
        $region57: #{model_forward.1} parent=55 // pred_check
          %p10230 = pneg %p235
        $region58: #{model_forward.1} parent=55 // pred_check_branch
          %10232 = sbr.rel (%p10230) target = $region60
        $region59: #{model_forward.1} parent=55 // pred_region
          %s10234 = ssub.s32 128, 128
          %10235 = vsyncadd %s10226, %s10234
          %s10236 = smul.addr %s23, 4
          %s10237 = smul.addr %s10236, 32
          %s10238 = scalar_lea.hbm %s9, %s10237
          %s10239 = sshll.u32 %s10229, 4
          %s10240 = int_to_ptr.vmem [resolvable:$true] %s10239
          %10245 = dma.vmem_to_hbm [thread:$0]  %s10240, 128, %s10238, %s10226, 64, 64, 4
        $region60: #{model_forward.1} parent=55 // pred_fallthru
          _
      $region56: #{model_forward.1} parent=5 // pred_fallthru
        _
      %p10246 = scmp.le.s32.totalorder 2, %s18
      // Predicated region
      $region61: #{model_forward.1} parent=5 // pred_check
        %p10247 = pneg %p10246
      $region62: #{model_forward.1} parent=5 // pred_check_branch
        %10249 = sbr.rel (%p10247) target = $region64
      $region63: #{model_forward.1} parent=5 // pred_region
        %s10250 = ssub.s32 %s18, 2
        // Predicated region
        $region65: #{model_forward.1} parent=63 // pred_check
          %p10251 = pneg %p241
        $region66: #{model_forward.1} parent=63 // pred_check_branch
          %10253 = sbr.rel (%p10251) target = $region68
        $region67: #{model_forward.1} parent=63 // pred_region
          %s10254 = sand.u32 %s226, 1
          %s10255 = scalar_lea.sflag [#allocation13], %s10254
          %s10256 = sand.u32 %s226, 1
          %s10257 = smul.addr %s10256, 8
          %s10258 = scalar_lea.vmem [#allocation12], %s10257
          %10259 = dma.done %s10255, 128
        $region68: #{model_forward.1} parent=63 // pred_fallthru
          _
      $region64: #{model_forward.1} parent=5 // pred_fallthru
        _
    $region6: #{model_forward.1} parent=1 // loop_footer
      %s22 = sadd.s32 1, %s18
    $region7: #{model_forward.1} parent=1 // loop_footer_branch
      %17 = sbr.rel target = $region3
    $region8: #{model_forward.1} parent=1 // loop_exit
      _
    %10260 = vsyncpa [#allocation13], 1
    %s10261 = scalar_lea.sflag [#allocation13], 1
    %10262 = vsyncpa %s10261, 1

</llo_original>
